<compile_context>
chip_gen: v6e
topology: v6e:2x2x1
jax: 0.10.0
libtpu: 0.0.40
codegen_flags: <defaults>
</compile_context>

<pallas_src>
import functools

import jax
import jax.numpy as jnp
from jax import lax
from jax.experimental import pallas as pl
from jax.experimental.pallas import tpu as pltpu

_VMEM_LIMIT = 48 * 1024 * 1024        # legal on v5e/v6e (128 MiB) and v7x (64 MiB)
_SINGLE_PASS_BYTES = 16 * 1024 * 1024  # gate: whole conv+BN layer in one kernel
_TILE_BYTES = 12 * 1024 * 1024         # per-grid-step footprint budget (tiled path)
_BN_EPS = 1e-5
_NEG_SLOPE = 0.2


def _round_up(x, m):
    return (x + m - 1) // m * m


def _pick_m_tile(M, K, Cp, out_bytes):
    """Largest M tile keeping the double-buffered per-step footprint small."""
    per_row = 2 * K * 2 + 2 * Cp * max(out_bytes, 2)   # double-buffered in + out
    t = _TILE_BYTES // max(per_row, 1)
    t = max(min(t, 2048), 256)
    if M <= t:
        return _round_up(M, 8)
    return (t // 128) * 128


# ---------------------------------------------------------------------------
# Kernels
# ---------------------------------------------------------------------------
def _conv_act_kernel(p_ref, w_ref, o_ref, *, act):
    """Conv-as-matmul + activation (no BatchNorm). bf16 operands, f32 acc."""
    x = jnp.dot(p_ref[...], w_ref[...], preferred_element_type=jnp.float32)
    if act == "lrelu":
        x = jnp.where(x > 0, x, _NEG_SLOPE * x)
    elif act == "sigmoid":
        x = 1.0 / (1.0 + jnp.exp(-x))
    o_ref[...] = x.astype(o_ref.dtype)


def _conv_bn_lrelu_kernel(p_ref, w_ref, o_ref, *, inv_m, m_real):
    """Single-pass conv + BatchNorm(batch stats) + LeakyReLU, all in VMEM."""
    x = jnp.dot(p_ref[...], w_ref[...], preferred_element_type=jnp.float32)
    valid = lax.broadcasted_iota(jnp.int32, x.shape, 0) < m_real
    xv = jnp.where(valid, x, 0.0)
    mean = jnp.sum(xv, axis=0, keepdims=True) * inv_m
    xc = jnp.where(valid, x - mean, 0.0)              # centered, padded rows = 0
    var = jnp.sum(xc * xc, axis=0, keepdims=True) * inv_m
    y = xc * lax.rsqrt(var + _BN_EPS)
    y = jnp.where(y > 0, y, _NEG_SLOPE * y)
    o_ref[...] = y.astype(o_ref.dtype)


def _conv_bn_lrelu_head_kernel(p_ref, w_ref, w5_ref, sel_ref, o_ref, *,
                               inv_m, m_real):
    """Layer 4 (conv+BN+LeakyReLU) fused with the final valid conv + sigmoid."""
    x = jnp.dot(p_ref[...], w_ref[...], preferred_element_type=jnp.float32)
    valid = lax.broadcasted_iota(jnp.int32, x.shape, 0) < m_real
    xv = jnp.where(valid, x, 0.0)
    mean = jnp.sum(xv, axis=0, keepdims=True) * inv_m
    xc = jnp.where(valid, x - mean, 0.0)
    var = jnp.sum(xc * xc, axis=0, keepdims=True) * inv_m
    y = xc * lax.rsqrt(var + _BN_EPS)
    y = jnp.where(y > 0, y, _NEG_SLOPE * y)
    # Final kh x kw "valid" conv folded in: per-batch sum of y * w5 row-layout,
    # group-reduced via a small selection matmul, then sigmoid.
    z = y * w5_ref[...]
    g = jnp.dot(sel_ref[...], z, preferred_element_type=jnp.float32)
    s = jnp.sum(g, axis=1, keepdims=True)
    o_ref[...] = jnp.broadcast_to(1.0 / (1.0 + jnp.exp(-s)), o_ref.shape)


def _conv_stats_kernel(p_ref, w_ref, raw_ref, stats_ref):
    """Two-pass fallback, pass 1: matmul -> bf16 raw + resident sum/sumsq."""
    @pl.when(pl.program_id(0) == 0)
    def _():
        stats_ref[...] = jnp.zeros_like(stats_ref)

    x = jnp.dot(p_ref[...], w_ref[...], preferred_element_type=jnp.float32)
    raw_ref[...] = x.astype(raw_ref.dtype)
    stats_ref[0:1, :] += jnp.sum(x, axis=0, keepdims=True)
    stats_ref[1:2, :] += jnp.sum(x * x, axis=0, keepdims=True)


def _scale_bias_lrelu_kernel(raw_ref, sb_ref, o_ref):
    """Two-pass fallback, pass 2: pure FMA (precomputed scale/bias) + LeakyReLU."""
    x = raw_ref[...].astype(jnp.float32)
    y = x * sb_ref[0:1, :] + sb_ref[1:2, :]
    y = jnp.where(y > 0, y, _NEG_SLOPE * y)
    o_ref[...] = y.astype(o_ref.dtype)


# ---------------------------------------------------------------------------
# pallas_call wrappers
# ---------------------------------------------------------------------------
def _conv_act(patches, w_mat, M, Cp, *, act, out_dtype):
    K = patches.shape[1]
    out_bytes = jnp.dtype(out_dtype).itemsize
    m_tile = _pick_m_tile(M, K, Cp, out_bytes)
    Mp = _round_up(M, m_tile)
    patches = jnp.pad(patches, ((0, Mp - M), (0, 0)))
    grid = (Mp // m_tile,)
    cost = pl.CostEstimate(
        flops=2 * Mp * K * Cp,
        transcendentals=Mp * Cp if act == "sigmoid" else 0,
        bytes_accessed=Mp * K * 2 + K * Cp * 2 + Mp * Cp * out_bytes)
    return pl.pallas_call(
        functools.partial(_conv_act_kernel, act=act),
        out_shape=jax.ShapeDtypeStruct((Mp, Cp), out_dtype),
        grid=grid,
        in_specs=[pl.BlockSpec((m_tile, K), lambda i: (i, 0)),
                  pl.BlockSpec((K, Cp), lambda i: (0, 0))],
        out_specs=pl.BlockSpec((m_tile, Cp), lambda i: (i, 0)),
        compiler_params=pltpu.CompilerParams(
            dimension_semantics=("parallel",),
            vmem_limit_bytes=_VMEM_LIMIT),
        cost_estimate=cost,
    )(patches, w_mat)


def _conv_bn_lrelu_single(patches, w_mat, M, Cp, Mp):
    K = patches.shape[1]
    patches = jnp.pad(patches, ((0, Mp - M), (0, 0)))
    cost = pl.CostEstimate(
        flops=2 * Mp * K * Cp + 10 * Mp * Cp,
        transcendentals=Cp,
        bytes_accessed=Mp * K * 2 + K * Cp * 2 + Mp * Cp * 2)
    return pl.pallas_call(
        functools.partial(_conv_bn_lrelu_kernel, inv_m=1.0 / M, m_real=M),
        out_shape=jax.ShapeDtypeStruct((Mp, Cp), jnp.bfloat16),
        grid=(1,),
        in_specs=[pl.BlockSpec((Mp, K), lambda i: (0, 0)),
                  pl.BlockSpec((K, Cp), lambda i: (0, 0))],
        out_specs=pl.BlockSpec((Mp, Cp), lambda i: (0, 0)),
        compiler_params=pltpu.CompilerParams(
            dimension_semantics=("arbitrary",),
            vmem_limit_bytes=_VMEM_LIMIT),
        cost_estimate=cost,
    )(patches, w_mat)


def _conv_bn_lrelu_two_pass(patches, w_mat, M, Cp):
    K = patches.shape[1]
    m_tile = _pick_m_tile(M, K, Cp, 2)
    Mp = _round_up(M, m_tile)
    patches = jnp.pad(patches, ((0, Mp - M), (0, 0)))
    grid = (Mp // m_tile,)

    raw, stats = pl.pallas_call(
        _conv_stats_kernel,
        out_shape=(jax.ShapeDtypeStruct((Mp, Cp), jnp.bfloat16),
                   jax.ShapeDtypeStruct((8, Cp), jnp.float32)),
        grid=grid,
        in_specs=[pl.BlockSpec((m_tile, K), lambda i: (i, 0)),
                  pl.BlockSpec((K, Cp), lambda i: (0, 0))],
        out_specs=(pl.BlockSpec((m_tile, Cp), lambda i: (i, 0)),
                   pl.BlockSpec((8, Cp), lambda i: (0, 0))),
        compiler_params=pltpu.CompilerParams(
            dimension_semantics=("arbitrary",),   # resident stats accumulator
            vmem_limit_bytes=_VMEM_LIMIT),
        cost_estimate=pl.CostEstimate(
            flops=2 * Mp * K * Cp, transcendentals=0,
            bytes_accessed=Mp * K * 2 + K * Cp * 2 + Mp * Cp * 2 + 8 * Cp * 4),
    )(patches, w_mat)

    # Tiny per-channel op in plain JAX: scale/bias computed once in f32.
    mean = stats[0] / M
    var = stats[1] / M - mean * mean
    scale = lax.rsqrt(var + _BN_EPS)
    bias = -mean * scale
    sb = jnp.zeros((8, Cp), jnp.float32).at[0].set(scale).at[1].set(bias)

    return pl.pallas_call(
        _scale_bias_lrelu_kernel,
        out_shape=jax.ShapeDtypeStruct((Mp, Cp), jnp.bfloat16),
        grid=grid,
        in_specs=[pl.BlockSpec((m_tile, Cp), lambda i: (i, 0)),
                  pl.BlockSpec((8, Cp), lambda i: (0, 0))],
        out_specs=pl.BlockSpec((m_tile, Cp), lambda i: (i, 0)),
        compiler_params=pltpu.CompilerParams(
            dimension_semantics=("parallel",),
            vmem_limit_bytes=_VMEM_LIMIT),
        cost_estimate=pl.CostEstimate(
            flops=4 * Mp * Cp, transcendentals=0,
            bytes_accessed=Mp * Cp * 4 + 8 * Cp * 4),
    )(raw, sb)


def _conv_bn_lrelu(patches, w_mat, M, Cp):
    K = patches.shape[1]
    Mp = _round_up(M, 8)
    if Mp * K * 2 + K * Cp * 2 + Mp * Cp * 16 <= _SINGLE_PASS_BYTES:
        return _conv_bn_lrelu_single(patches, w_mat, M, Cp, Mp)
    return _conv_bn_lrelu_two_pass(patches, w_mat, M, Cp)


# ---------------------------------------------------------------------------
# Layer & model wrappers (plain-JAX glue)
# ---------------------------------------------------------------------------
def _im2col(x_nhwc, kh, kw, stride, pad):
    """Patch matrix (M, K) with K ordered (kh, kw, cin); rows ordered (n, oh, ow)."""
    N, H, W, C = x_nhwc.shape
    OH = (H + 2 * pad - kh) // stride + 1
    OW = (W + 2 * pad - kw) // stride + 1
    xp = jnp.pad(x_nhwc, ((0, 0), (pad, pad), (pad, pad), (0, 0)))
    cols = [xp[:, i:i + stride * (OH - 1) + 1:stride,
                  j:j + stride * (OW - 1) + 1:stride, :]
            for i in range(kh) for j in range(kw)]
    patches = jnp.concatenate(cols, axis=-1).reshape(N * OH * OW, kh * kw * C)
    return patches, OH, OW


def _weight_matrix(w_pt, Cp):
    """PyTorch (Cout, Cin, kh, kw) -> bf16 (K, Cp) with K ordered (kh, kw, cin)."""
    Cout, Cin, kh, kw = w_pt.shape
    K = kh * kw * Cin
    w = jnp.transpose(w_pt, (2, 3, 1, 0)).reshape(K, Cout)
    return jnp.pad(w, ((0, 0), (0, Cp - Cout))).astype(jnp.bfloat16)


def _conv_layer(x_nhwc, w_pt, *, stride, pad, use_bn, act):
    N = x_nhwc.shape[0]
    Cout = w_pt.shape[0]
    kh, kw = w_pt.shape[2], w_pt.shape[3]
    patches, OH, OW = _im2col(x_nhwc, kh, kw, stride, pad)
    M = patches.shape[0]
    Cp = _round_up(Cout, 128)
    w_mat = _weight_matrix(w_pt, Cp)
    if use_bn:
        out = _conv_bn_lrelu(patches, w_mat, M, Cp)
    else:
        out_dtype = jnp.float32 if act == "sigmoid" else jnp.bfloat16
        out = _conv_act(patches, w_mat, M, Cp, act=act, out_dtype=out_dtype)
    return out[:M, :Cout].reshape(N, OH, OW, Cout)


def _fused_tail(x_nhwc, w4_pt, w5_pt, *, stride=2, pad=1):
    """Layer 4 (conv+BN+LReLU) fused with the final 1x1-output conv + sigmoid.

    Returns (N,1,1,1) f32, or None if the fusion preconditions don't hold."""
    N, H, W, _ = x_nhwc.shape
    C4, _, kh4, kw4 = w4_pt.shape
    co5, c5, kh5, kw5 = w5_pt.shape
    OH = (H + 2 * pad - kh4) // stride + 1
    OW = (W + 2 * pad - kw4) // stride + 1
    if co5 != 1 or c5 != C4 or (OH, OW) != (kh5, kw5):
        return None

    patches, OH, OW = _im2col(x_nhwc, kh4, kw4, stride, pad)
    M, K = patches.shape                       # M = N * OH * OW
    Cp = _round_up(C4, 128)
    Mp = _round_up(M, 8)
    Np = _round_up(N, 8)
    if Mp * K * 2 + K * Cp * 2 + Mp * Cp * 20 > _SINGLE_PASS_BYTES:
        return None

    patches = jnp.pad(patches, ((0, Mp - M), (0, 0)))
    w4_mat = _weight_matrix(w4_pt, Cp)

    group = OH * OW
    # Final-conv weight laid out per (layer-4 spatial row, channel), one copy
    # per batch element; zero on padded rows/channels.
    w5_rows = jnp.transpose(w5_pt[0], (1, 2, 0)).reshape(group, C4)
    w5_rows = jnp.pad(w5_rows, ((0, 0), (0, Cp - C4))).astype(jnp.float32)
    w5_big = jnp.pad(jnp.tile(w5_rows, (N, 1)), ((0, Mp - M), (0, 0)))

    m_idx = jnp.arange(Mp)
    sel = ((jnp.arange(Np)[:, None] == (m_idx[None, :] // group))
           & (m_idx[None, :] < M)).astype(jnp.float32)

    cost = pl.CostEstimate(
        flops=2 * Mp * K * Cp + 2 * Np * Mp * Cp + 12 * Mp * Cp,
        transcendentals=Cp + Np,
        bytes_accessed=Mp * K * 2 + K * Cp * 2 + Mp * Cp * 4
        + Np * Mp * 4 + Np * 128 * 4)
    out = pl.pallas_call(
        functools.partial(_conv_bn_lrelu_head_kernel, inv_m=1.0 / M, m_real=M),
        out_shape=jax.ShapeDtypeStruct((Np, 128), jnp.float32),
        grid=(1,),
        in_specs=[pl.BlockSpec((Mp, K), lambda i: (0, 0)),
                  pl.BlockSpec((K, Cp), lambda i: (0, 0)),
                  pl.BlockSpec((Mp, Cp), lambda i: (0, 0)),
                  pl.BlockSpec((Np, Mp), lambda i: (0, 0))],
        out_specs=pl.BlockSpec((Np, 128), lambda i: (0, 0)),
        compiler_params=pltpu.CompilerParams(
            dimension_semantics=("arbitrary",),
            vmem_limit_bytes=_VMEM_LIMIT),
        cost_estimate=cost,
    )(patches, w4_mat, w5_big, sel)
    return out[:N, :1].reshape(N, 1, 1, 1)


def discriminator_forward(x_nchw, params):
    """Matches Discriminator(ndf, nc, kernel_size=4).forward (training-mode BN)."""
    w1, w2, w3, w4, w5 = params
    x = jnp.transpose(x_nchw, (0, 2, 3, 1)).astype(jnp.bfloat16)   # NCHW -> NHWC
    x = _conv_layer(x, w1, stride=2, pad=1, use_bn=False, act="lrelu")
    x = _conv_layer(x, w2, stride=2, pad=1, use_bn=True, act="lrelu")
    x = _conv_layer(x, w3, stride=2, pad=1, use_bn=True, act="lrelu")
    out = _fused_tail(x, w4, w5)
    if out is None:   # unfused fallback
        x = _conv_layer(x, w4, stride=2, pad=1, use_bn=True, act="lrelu")
        x = _conv_layer(x, w5, stride=1, pad=0, use_bn=False, act="sigmoid")
        out = jnp.transpose(x, (0, 3, 1, 2))
    return out.astype(jnp.float32)                                  # (N,1,1,1)


def init_params(key, ndf, nc, k):
    # DCGAN-style N(0, 0.02) weights; shapes follow the PyTorch module.
    shapes = [
        (ndf, nc, k, k),
        (ndf * 2, ndf, k, k),
        (ndf * 4, ndf * 2, k, k),
        (ndf * 8, ndf * 4, k, k),
        (1, ndf * 8, k, k),
    ]
    keys = jax.random.split(key, len(shapes))
    return [0.02 * jax.random.normal(kk, s, jnp.float32)
            for kk, s in zip(keys, shapes)]


def _ref_forward(x_nchw, params):
    # Pure-JAX f32 reference (lax.conv) for a correctness sanity check.
    def conv(x, w, stride, pad):
        return lax.conv_general_dilated(
            x, w, (stride, stride), [(pad, pad), (pad, pad)],
            dimension_numbers=("NCHW", "OIHW", "NCHW"))

    def bn(x):
        mean = jnp.mean(x, axis=(0, 2, 3), keepdims=True)
        var = jnp.mean(jnp.square(x - mean), axis=(0, 2, 3), keepdims=True)
        return (x - mean) * lax.rsqrt(var + _BN_EPS)

    def lrelu(x):
        return jnp.where(x > 0, x, _NEG_SLOPE * x)

    w1, w2, w3, w4, w5 = params
    x = lrelu(conv(x_nchw, w1, 2, 1))
    x = lrelu(bn(conv(x, w2, 2, 1)))
    x = lrelu(bn(conv(x, w3, 2, 1)))
    x = lrelu(bn(conv(x, w4, 2, 1)))
    return jax.nn.sigmoid(conv(x, w5, 1, 0))


if __name__ == "__main__":
    # DCGAN config: kernel 4, four stride-2 convs then a 4x4 valid conv -> 1x1,
    # which requires 64x64 spatial input.
    ndf, nc, kernel_size = 8, 3, 4
    key = jax.random.PRNGKey(0)
    kx, kp = jax.random.split(key)
    x = jax.random.normal(kx, (2, nc, 64, 64), jnp.float32)      # NCHW
    params = init_params(kp, ndf, nc, kernel_size)

    fwd = jax.jit(discriminator_forward)
    out = jax.block_until_ready(fwd(x, params))
    assert out.shape == (2, 1, 1, 1), out.shape

    ref = _ref_forward(x, params)
    err = float(jnp.max(jnp.abs(out - ref)))
    # bf16 MXU operands + bf16 inter-layer activations -> looser tolerance.
    assert err < 3e-2, err

    print("KERNEL_OK")
</pallas_src>

<mosaic_0001>
module attributes {stable_mosaic.version = 11 : i64} {
  func.func @_conv_act_kernel(%arg0: i32, %arg1: memref<2048x48xbf16, #tpu.memory_space<vmem>>, %arg2: memref<48x128xbf16, #tpu.memory_space<vmem>>, %arg3: memref<2048x128xbf16, #tpu.memory_space<vmem>>) attributes {dimension_semantics = [#tpu.dimension_semantics<parallel>], iteration_bounds = array<i64: 1>, scalar_prefetch = 0 : i64, scratch_operands = 0 : i64, tpu.core_type = #tpu.core_type<tc>, window_params = [{transform_indices = @transform_0, window_bounds = array<i64: 2048, 48>}, {pipeline_mode = #tpu.pipeline_mode<synchronous>, transform_indices = @transform_1, window_bounds = array<i64: 48, 128>}, {transform_indices = @transform_2, window_bounds = array<i64: 2048, 128>}]} {
    %c0 = arith.constant 0 : index
    %c0_0 = arith.constant 0 : index
    %0 = vector.load %arg1[%c0, %c0_0] : memref<2048x48xbf16, #tpu.memory_space<vmem>>, vector<2048x48xbf16>
    %c0_1 = arith.constant 0 : index
    %c0_2 = arith.constant 0 : index
    %1 = vector.load %arg2[%c0_1, %c0_2] : memref<48x128xbf16, #tpu.memory_space<vmem>>, vector<48x128xbf16>
    %cst = arith.constant dense<0.000000e+00> : vector<2048x128xf32>
    %2 = tpu.matmul %0, %1, %cst {dimension_numbers = #tpu.dot_dimension_numbers<[1], [0], [0], [1], [0, 0, 1, 1], [], []>} : vector<2048x48xbf16>, vector<48x128xbf16>, vector<2048x128xf32> -> vector<2048x128xf32>
    %cst_3 = arith.constant 0.000000e+00 : f32
    %3 = vector.broadcast %cst_3 : f32 to vector<2048x128xf32>
    %4 = arith.cmpf ogt, %2, %3 : vector<2048x128xf32>
    %cst_4 = arith.constant 2.000000e-01 : f32
    %5 = vector.broadcast %cst_4 : f32 to vector<2048x128xf32>
    %6 = arith.mulf %5, %2 : vector<2048x128xf32>
    %7 = arith.select %4, %2, %6 : vector<2048x128xi1>, vector<2048x128xf32>
    %8 = arith.truncf %7 : vector<2048x128xf32> to vector<2048x128xbf16>
    %c0_5 = arith.constant 0 : index
    %c0_6 = arith.constant 0 : index
    %9 = vector.load %arg3[%c0_5, %c0_6] : memref<2048x128xbf16, #tpu.memory_space<vmem>>, vector<2048x128xbf16>
    tpu.vector_store %arg3[%c0_5, %c0_6], %8 {strides = array<i32>} : memref<2048x128xbf16, #tpu.memory_space<vmem>>, vector<2048x128xbf16>,
    return
  }
  func.func @transform_0(%arg0: i32) -> (i32, i32) {
    %c0_i32 = arith.constant 0 : i32
    %c0_i32_0 = arith.constant 0 : i32
    return %arg0, %c0_i32 : i32, i32
  }
  func.func @transform_1(%arg0: i32) -> (i32, i32) {
    %c0_i32 = arith.constant 0 : i32
    %c0_i32_0 = arith.constant 0 : i32
    %c0_i32_1 = arith.constant 0 : i32
    return %c0_i32, %c0_i32_0 : i32, i32
  }
  func.func @transform_2(%arg0: i32) -> (i32, i32) {
    %c0_i32 = arith.constant 0 : i32
    %c0_i32_0 = arith.constant 0 : i32
    return %arg0, %c0_i32 : i32, i32
  }
}

module attributes {stable_mosaic.version = 11 : i64} {
  func.func @_conv_bn_lrelu_kernel(%arg0: i32, %arg1: memref<512x128xbf16, #tpu.memory_space<vmem>>, %arg2: memref<128x128xbf16, #tpu.memory_space<vmem>>, %arg3: memref<512x128xbf16, #tpu.memory_space<vmem>>) attributes {dimension_semantics = [#tpu.dimension_semantics<arbitrary>], iteration_bounds = array<i64: 1>, scalar_prefetch = 0 : i64, scratch_operands = 0 : i64, tpu.core_type = #tpu.core_type<tc>, window_params = [{pipeline_mode = #tpu.pipeline_mode<synchronous>, transform_indices = @transform_0, window_bounds = array<i64: 512, 128>}, {pipeline_mode = #tpu.pipeline_mode<synchronous>, transform_indices = @transform_1, window_bounds = array<i64: 128, 128>}, {pipeline_mode = #tpu.pipeline_mode<synchronous>, transform_indices = @transform_2, window_bounds = array<i64: 512, 128>}]} {
    %c0 = arith.constant 0 : index
    %c0_0 = arith.constant 0 : index
    %0 = vector.load %arg1[%c0, %c0_0] : memref<512x128xbf16, #tpu.memory_space<vmem>>, vector<512x128xbf16>
    %c0_1 = arith.constant 0 : index
    %c0_2 = arith.constant 0 : index
    %1 = vector.load %arg2[%c0_1, %c0_2] : memref<128x128xbf16, #tpu.memory_space<vmem>>, vector<128x128xbf16>
    %cst = arith.constant dense<0.000000e+00> : vector<512x128xf32>
    %2 = tpu.matmul %0, %1, %cst {dimension_numbers = #tpu.dot_dimension_numbers<[1], [0], [0], [1], [0, 0, 1, 1], [], []>} : vector<512x128xbf16>, vector<128x128xbf16>, vector<512x128xf32> -> vector<512x128xf32>
    %3 = tpu.iota {dimensions = array<i32: 0>} : vector<512x128xi32>
    %c512_i32 = arith.constant 512 : i32
    %4 = vector.broadcast %c512_i32 : i32 to vector<512x128xi32>
    %5 = arith.cmpi slt, %3, %4 : vector<512x128xi32>
    %cst_3 = arith.constant 0.000000e+00 : f32
    %6 = vector.broadcast %cst_3 : f32 to vector<512x128xf32>
    %7 = arith.select %5, %2, %6 : vector<512x128xi1>, vector<512x128xf32>
    %cst_4 = arith.constant dense<0.000000e+00> : vector<128xf32>
    %8 = vector.multi_reduction <add>, %7, %cst_4 [0] : vector<512x128xf32> to vector<128xf32>
    %9 = vector.shape_cast %8 : vector<128xf32> to vector<1x128xf32>
    %cst_5 = arith.constant 0.001953125 : f32
    %10 = vector.broadcast %cst_5 : f32 to vector<1x128xf32>
    %11 = arith.mulf %9, %10 : vector<1x128xf32>
    %12 = vector.broadcast %11 : vector<1x128xf32> to vector<512x128xf32>
    %13 = arith.subf %2, %12 : vector<512x128xf32>
    %cst_6 = arith.constant 0.000000e+00 : f32
    %14 = vector.broadcast %cst_6 : f32 to vector<512x128xf32>
    %15 = arith.select %5, %13, %14 : vector<512x128xi1>, vector<512x128xf32>
    %16 = arith.mulf %15, %15 : vector<512x128xf32>
    %cst_7 = arith.constant dense<0.000000e+00> : vector<128xf32>
    %17 = vector.multi_reduction <add>, %16, %cst_7 [0] : vector<512x128xf32> to vector<128xf32>
    %18 = vector.shape_cast %17 : vector<128xf32> to vector<1x128xf32>
    %cst_8 = arith.constant 0.001953125 : f32
    %19 = vector.broadcast %cst_8 : f32 to vector<1x128xf32>
    %20 = arith.mulf %18, %19 : vector<1x128xf32>
    %cst_9 = arith.constant 9.99999974E-6 : f32
    %21 = vector.broadcast %cst_9 : f32 to vector<1x128xf32>
    %22 = arith.addf %20, %21 : vector<1x128xf32>
    %23 = math.rsqrt %22 : vector<1x128xf32>
    %24 = vector.broadcast %23 : vector<1x128xf32> to vector<512x128xf32>
    %25 = arith.mulf %15, %24 : vector<512x128xf32>
    %cst_10 = arith.constant 0.000000e+00 : f32
    %26 = vector.broadcast %cst_10 : f32 to vector<512x128xf32>
    %27 = arith.cmpf ogt, %25, %26 : vector<512x128xf32>
    %cst_11 = arith.constant 2.000000e-01 : f32
    %28 = vector.broadcast %cst_11 : f32 to vector<512x128xf32>
    %29 = arith.mulf %28, %25 : vector<512x128xf32>
    %30 = arith.select %27, %25, %29 : vector<512x128xi1>, vector<512x128xf32>
    %31 = arith.truncf %30 : vector<512x128xf32> to vector<512x128xbf16>
    %c0_12 = arith.constant 0 : index
    %c0_13 = arith.constant 0 : index
    %32 = vector.load %arg3[%c0_12, %c0_13] : memref<512x128xbf16, #tpu.memory_space<vmem>>, vector<512x128xbf16>
    tpu.vector_store %arg3[%c0_12, %c0_13], %31 {strides = array<i32>} : memref<512x128xbf16, #tpu.memory_space<vmem>>, vector<512x128xbf16>,
    return
  }
  func.func @transform_0(%arg0: i32) -> (i32, i32) {
    %c0_i32 = arith.constant 0 : i32
    %c0_i32_0 = arith.constant 0 : i32
    %c0_i32_1 = arith.constant 0 : i32
    return %c0_i32, %c0_i32_0 : i32, i32
  }
  func.func @transform_1(%arg0: i32) -> (i32, i32) {
    %c0_i32 = arith.constant 0 : i32
    %c0_i32_0 = arith.constant 0 : i32
    %c0_i32_1 = arith.constant 0 : i32
    return %c0_i32, %c0_i32_0 : i32, i32
  }
  func.func @transform_2(%arg0: i32) -> (i32, i32) {
    %c0_i32 = arith.constant 0 : i32
    %c0_i32_0 = arith.constant 0 : i32
    %c0_i32_1 = arith.constant 0 : i32
    return %c0_i32, %c0_i32_0 : i32, i32
  }
}

module attributes {stable_mosaic.version = 11 : i64} {
  func.func @_conv_bn_lrelu_kernel(%arg0: i32, %arg1: memref<128x256xbf16, #tpu.memory_space<vmem>>, %arg2: memref<256x128xbf16, #tpu.memory_space<vmem>>, %arg3: memref<128x128xbf16, #tpu.memory_space<vmem>>) attributes {dimension_semantics = [#tpu.dimension_semantics<arbitrary>], iteration_bounds = array<i64: 1>, scalar_prefetch = 0 : i64, scratch_operands = 0 : i64, tpu.core_type = #tpu.core_type<tc>, window_params = [{pipeline_mode = #tpu.pipeline_mode<synchronous>, transform_indices = @transform_0, window_bounds = array<i64: 128, 256>}, {pipeline_mode = #tpu.pipeline_mode<synchronous>, transform_indices = @transform_1, window_bounds = array<i64: 256, 128>}, {pipeline_mode = #tpu.pipeline_mode<synchronous>, transform_indices = @transform_2, window_bounds = array<i64: 128, 128>}]} {
    %c0 = arith.constant 0 : index
    %c0_0 = arith.constant 0 : index
    %0 = vector.load %arg1[%c0, %c0_0] : memref<128x256xbf16, #tpu.memory_space<vmem>>, vector<128x256xbf16>
    %c0_1 = arith.constant 0 : index
    %c0_2 = arith.constant 0 : index
    %1 = vector.load %arg2[%c0_1, %c0_2] : memref<256x128xbf16, #tpu.memory_space<vmem>>, vector<256x128xbf16>
    %cst = arith.constant dense<0.000000e+00> : vector<128x128xf32>
    %2 = tpu.matmul %0, %1, %cst {dimension_numbers = #tpu.dot_dimension_numbers<[1], [0], [0], [1], [0, 0, 1, 1], [], []>} : vector<128x256xbf16>, vector<256x128xbf16>, vector<128x128xf32> -> vector<128x128xf32>
    %3 = tpu.iota {dimensions = array<i32: 0>} : vector<128x128xi32>
    %c128_i32 = arith.constant 128 : i32
    %4 = vector.broadcast %c128_i32 : i32 to vector<128x128xi32>
    %5 = arith.cmpi slt, %3, %4 : vector<128x128xi32>
    %cst_3 = arith.constant 0.000000e+00 : f32
    %6 = vector.broadcast %cst_3 : f32 to vector<128x128xf32>
    %7 = arith.select %5, %2, %6 : vector<128x128xi1>, vector<128x128xf32>
    %cst_4 = arith.constant dense<0.000000e+00> : vector<128xf32>
    %8 = vector.multi_reduction <add>, %7, %cst_4 [0] : vector<128x128xf32> to vector<128xf32>
    %9 = vector.shape_cast %8 : vector<128xf32> to vector<1x128xf32>
    %cst_5 = arith.constant 7.812500e-03 : f32
    %10 = vector.broadcast %cst_5 : f32 to vector<1x128xf32>
    %11 = arith.mulf %9, %10 : vector<1x128xf32>
    %12 = vector.broadcast %11 : vector<1x128xf32> to vector<128x128xf32>
    %13 = arith.subf %2, %12 : vector<128x128xf32>
    %cst_6 = arith.constant 0.000000e+00 : f32
    %14 = vector.broadcast %cst_6 : f32 to vector<128x128xf32>
    %15 = arith.select %5, %13, %14 : vector<128x128xi1>, vector<128x128xf32>
    %16 = arith.mulf %15, %15 : vector<128x128xf32>
    %cst_7 = arith.constant dense<0.000000e+00> : vector<128xf32>
    %17 = vector.multi_reduction <add>, %16, %cst_7 [0] : vector<128x128xf32> to vector<128xf32>
    %18 = vector.shape_cast %17 : vector<128xf32> to vector<1x128xf32>
    %cst_8 = arith.constant 7.812500e-03 : f32
    %19 = vector.broadcast %cst_8 : f32 to vector<1x128xf32>
    %20 = arith.mulf %18, %19 : vector<1x128xf32>
    %cst_9 = arith.constant 9.99999974E-6 : f32
    %21 = vector.broadcast %cst_9 : f32 to vector<1x128xf32>
    %22 = arith.addf %20, %21 : vector<1x128xf32>
    %23 = math.rsqrt %22 : vector<1x128xf32>
    %24 = vector.broadcast %23 : vector<1x128xf32> to vector<128x128xf32>
    %25 = arith.mulf %15, %24 : vector<128x128xf32>
    %cst_10 = arith.constant 0.000000e+00 : f32
    %26 = vector.broadcast %cst_10 : f32 to vector<128x128xf32>
    %27 = arith.cmpf ogt, %25, %26 : vector<128x128xf32>
    %cst_11 = arith.constant 2.000000e-01 : f32
    %28 = vector.broadcast %cst_11 : f32 to vector<128x128xf32>
    %29 = arith.mulf %28, %25 : vector<128x128xf32>
    %30 = arith.select %27, %25, %29 : vector<128x128xi1>, vector<128x128xf32>
    %31 = arith.truncf %30 : vector<128x128xf32> to vector<128x128xbf16>
    %c0_12 = arith.constant 0 : index
    %c0_13 = arith.constant 0 : index
    %32 = vector.load %arg3[%c0_12, %c0_13] : memref<128x128xbf16, #tpu.memory_space<vmem>>, vector<128x128xbf16>
    tpu.vector_store %arg3[%c0_12, %c0_13], %31 {strides = array<i32>} : memref<128x128xbf16, #tpu.memory_space<vmem>>, vector<128x128xbf16>,
    return
  }
  func.func @transform_0(%arg0: i32) -> (i32, i32) {
    %c0_i32 = arith.constant 0 : i32
    %c0_i32_0 = arith.constant 0 : i32
    %c0_i32_1 = arith.constant 0 : i32
    return %c0_i32, %c0_i32_0 : i32, i32
  }
  func.func @transform_1(%arg0: i32) -> (i32, i32) {
    %c0_i32 = arith.constant 0 : i32
    %c0_i32_0 = arith.constant 0 : i32
    %c0_i32_1 = arith.constant 0 : i32
    return %c0_i32, %c0_i32_0 : i32, i32
  }
  func.func @transform_2(%arg0: i32) -> (i32, i32) {
    %c0_i32 = arith.constant 0 : i32
    %c0_i32_0 = arith.constant 0 : i32
    %c0_i32_1 = arith.constant 0 : i32
    return %c0_i32, %c0_i32_0 : i32, i32
  }
}

module attributes {stable_mosaic.version = 11 : i64} {
  func.func @_conv_bn_lrelu_head_kernel(%arg0: i32, %arg1: memref<32x512xbf16, #tpu.memory_space<vmem>>, %arg2: memref<512x128xbf16, #tpu.memory_space<vmem>>, %arg3: memref<32x128xf32, #tpu.memory_space<vmem>>, %arg4: memref<8x32xf32, #tpu.memory_space<vmem>>, %arg5: memref<8x128xf32, #tpu.memory_space<vmem>>) attributes {dimension_semantics = [#tpu.dimension_semantics<arbitrary>], iteration_bounds = array<i64: 1>, scalar_prefetch = 0 : i64, scratch_operands = 0 : i64, tpu.core_type = #tpu.core_type<tc>, window_params = [{pipeline_mode = #tpu.pipeline_mode<synchronous>, transform_indices = @transform_0, window_bounds = array<i64: 32, 512>}, {pipeline_mode = #tpu.pipeline_mode<synchronous>, transform_indices = @transform_1, window_bounds = array<i64: 512, 128>}, {pipeline_mode = #tpu.pipeline_mode<synchronous>, transform_indices = @transform_2, window_bounds = array<i64: 32, 128>}, {pipeline_mode = #tpu.pipeline_mode<synchronous>, transform_indices = @transform_3, window_bounds = array<i64: 8, 32>}, {pipeline_mode = #tpu.pipeline_mode<synchronous>, transform_indices = @transform_4, window_bounds = array<i64: 8, 128>}]} {
    %c0 = arith.constant 0 : index
    %c0_0 = arith.constant 0 : index
    %0 = vector.load %arg1[%c0, %c0_0] : memref<32x512xbf16, #tpu.memory_space<vmem>>, vector<32x512xbf16>
    %c0_1 = arith.constant 0 : index
    %c0_2 = arith.constant 0 : index
    %1 = vector.load %arg2[%c0_1, %c0_2] : memref<512x128xbf16, #tpu.memory_space<vmem>>, vector<512x128xbf16>
    %cst = arith.constant dense<0.000000e+00> : vector<32x128xf32>
    %2 = tpu.matmul %0, %1, %cst {dimension_numbers = #tpu.dot_dimension_numbers<[1], [0], [0], [1], [0, 0, 1, 1], [], []>} : vector<32x512xbf16>, vector<512x128xbf16>, vector<32x128xf32> -> vector<32x128xf32>
    %3 = tpu.iota {dimensions = array<i32: 0>} : vector<32x128xi32>
    %c32_i32 = arith.constant 32 : i32
    %4 = vector.broadcast %c32_i32 : i32 to vector<32x128xi32>
    %5 = arith.cmpi slt, %3, %4 : vector<32x128xi32>
    %cst_3 = arith.constant 0.000000e+00 : f32
    %6 = vector.broadcast %cst_3 : f32 to vector<32x128xf32>
    %7 = arith.select %5, %2, %6 : vector<32x128xi1>, vector<32x128xf32>
    %cst_4 = arith.constant dense<0.000000e+00> : vector<128xf32>
    %8 = vector.multi_reduction <add>, %7, %cst_4 [0] : vector<32x128xf32> to vector<128xf32>
    %9 = vector.shape_cast %8 : vector<128xf32> to vector<1x128xf32>
    %cst_5 = arith.constant 3.125000e-02 : f32
    %10 = vector.broadcast %cst_5 : f32 to vector<1x128xf32>
    %11 = arith.mulf %9, %10 : vector<1x128xf32>
    %12 = vector.broadcast %11 : vector<1x128xf32> to vector<32x128xf32>
    %13 = arith.subf %2, %12 : vector<32x128xf32>
    %cst_6 = arith.constant 0.000000e+00 : f32
    %14 = vector.broadcast %cst_6 : f32 to vector<32x128xf32>
    %15 = arith.select %5, %13, %14 : vector<32x128xi1>, vector<32x128xf32>
    %16 = arith.mulf %15, %15 : vector<32x128xf32>
    %cst_7 = arith.constant dense<0.000000e+00> : vector<128xf32>
    %17 = vector.multi_reduction <add>, %16, %cst_7 [0] : vector<32x128xf32> to vector<128xf32>
    %18 = vector.shape_cast %17 : vector<128xf32> to vector<1x128xf32>
    %cst_8 = arith.constant 3.125000e-02 : f32
    %19 = vector.broadcast %cst_8 : f32 to vector<1x128xf32>
    %20 = arith.mulf %18, %19 : vector<1x128xf32>
    %cst_9 = arith.constant 9.99999974E-6 : f32
    %21 = vector.broadcast %cst_9 : f32 to vector<1x128xf32>
    %22 = arith.addf %20, %21 : vector<1x128xf32>
    %23 = math.rsqrt %22 : vector<1x128xf32>
    %24 = vector.broadcast %23 : vector<1x128xf32> to vector<32x128xf32>
    %25 = arith.mulf %15, %24 : vector<32x128xf32>
    %cst_10 = arith.constant 0.000000e+00 : f32
    %26 = vector.broadcast %cst_10 : f32 to vector<32x128xf32>
    %27 = arith.cmpf ogt, %25, %26 : vector<32x128xf32>
    %cst_11 = arith.constant 2.000000e-01 : f32
    %28 = vector.broadcast %cst_11 : f32 to vector<32x128xf32>
    %29 = arith.mulf %28, %25 : vector<32x128xf32>
    %30 = arith.select %27, %25, %29 : vector<32x128xi1>, vector<32x128xf32>
    %c0_12 = arith.constant 0 : index
    %c0_13 = arith.constant 0 : index
    %31 = vector.load %arg3[%c0_12, %c0_13] : memref<32x128xf32, #tpu.memory_space<vmem>>, vector<32x128xf32>
    %32 = arith.mulf %30, %31 : vector<32x128xf32>
    %c0_14 = arith.constant 0 : index
    %c0_15 = arith.constant 0 : index
    %33 = vector.load %arg4[%c0_14, %c0_15] : memref<8x32xf32, #tpu.memory_space<vmem>>, vector<8x32xf32>
    %cst_16 = arith.constant dense<0.000000e+00> : vector<8x128xf32>
    %34 = tpu.matmul %33, %32, %cst_16 {dimension_numbers = #tpu.dot_dimension_numbers<[1], [0], [0], [1], [0, 0, 1, 1], [], []>} : vector<8x32xf32>, vector<32x128xf32>, vector<8x128xf32> -> vector<8x128xf32>
    %cst_17 = arith.constant dense<0.000000e+00> : vector<8xf32>
    %35 = vector.multi_reduction <add>, %34, %cst_17 [1] : vector<8x128xf32> to vector<8xf32>
    %36 = vector.shape_cast %35 : vector<8xf32> to vector<8x1xf32>
    %cst_18 = arith.constant 0.000000e+00 : f32
    %37 = vector.broadcast %cst_18 : f32 to vector<8x1xf32>
    %38 = arith.subf %37, %36 : vector<8x1xf32>
    %39 = math.exp %38 : vector<8x1xf32>
    %cst_19 = arith.constant 1.000000e+00 : f32
    %40 = vector.broadcast %cst_19 : f32 to vector<8x1xf32>
    %41 = arith.addf %40, %39 : vector<8x1xf32>
    %cst_20 = arith.constant 1.000000e+00 : f32
    %42 = vector.broadcast %cst_20 : f32 to vector<8x1xf32>
    %43 = arith.divf %42, %41 : vector<8x1xf32>
    %44 = vector.shape_cast %43 : vector<8x1xf32> to vector<8x1xf32>
    %45 = vector.broadcast %44 : vector<8x1xf32> to vector<8x128xf32>
    %c0_21 = arith.constant 0 : index
    %c0_22 = arith.constant 0 : index
    %46 = vector.load %arg5[%c0_21, %c0_22] : memref<8x128xf32, #tpu.memory_space<vmem>>, vector<8x128xf32>
    tpu.vector_store %arg5[%c0_21, %c0_22], %45 {strides = array<i32>} : memref<8x128xf32, #tpu.memory_space<vmem>>, vector<8x128xf32>,
    return
  }
  func.func @transform_0(%arg0: i32) -> (i32, i32) {
    %c0_i32 = arith.constant 0 : i32
    %c0_i32_0 = arith.constant 0 : i32
    %c0_i32_1 = arith.constant 0 : i32
    return %c0_i32, %c0_i32_0 : i32, i32
  }
  func.func @transform_1(%arg0: i32) -> (i32, i32) {
    %c0_i32 = arith.constant 0 : i32
    %c0_i32_0 = arith.constant 0 : i32
    %c0_i32_1 = arith.constant 0 : i32
    return %c0_i32, %c0_i32_0 : i32, i32
  }
  func.func @transform_2(%arg0: i32) -> (i32, i32) {
    %c0_i32 = arith.constant 0 : i32
    %c0_i32_0 = arith.constant 0 : i32
    %c0_i32_1 = arith.constant 0 : i32
    return %c0_i32, %c0_i32_0 : i32, i32
  }
  func.func @transform_3(%arg0: i32) -> (i32, i32) {
    %c0_i32 = arith.constant 0 : i32
    %c0_i32_0 = arith.constant 0 : i32
    %c0_i32_1 = arith.constant 0 : i32
    return %c0_i32, %c0_i32_0 : i32, i32
  }
  func.func @transform_4(%arg0: i32) -> (i32, i32) {
    %c0_i32 = arith.constant 0 : i32
    %c0_i32_0 = arith.constant 0 : i32
    %c0_i32_1 = arith.constant 0 : i32
    return %c0_i32, %c0_i32_0 : i32, i32
  }
}

</mosaic_0001>

<llo_original>
// kernel: discriminator_forward.4
$region0: #{discriminator_forward.4}
  #allocation0 [shape = 'u32[]', space=smem, size = 0x4, offset = 0x4, fixed_abs, tag = 'smem constant byte address 0x4 - core index']
  #allocation1 [shape = 'u32[144,128]{1,0:T(1,128)}', space=vmem, size = 0x12000, scoped, tag = 'internal scratch']
  %s0 = inlined_call_operand.vmem [shape: bf16[2048,48], index: 0, kind: input, shape index: {}]
  %s1 = inlined_call_operand.vmem [shape: bf16[48,128], index: 1, kind: input, shape index: {}]
  %s2 = inlined_call_operand.vmem [shape: bf16[2048,128], index: 2, kind: output, shape index: {}]
  %s3 = sld [smem:[#allocation0]]
  $region18: #{discriminator_forward.4} parent=0
    _
  %s5 = ssub.s32 1, %s3
  %s6 = scalar_select 0, %s5, %s3
  // Predicated region
  $region2: #{discriminator_forward.4} parent=0 // pred_check
    _
  $region3: #{discriminator_forward.4} parent=0 // pred_check_branch
    %8 = sbr.rel (0) target = $region5
  $region4: #{discriminator_forward.4} parent=0 // pred_region
    _
  $region5: #{discriminator_forward.4} parent=0 // pred_fallthru
    _
  // Predicated region
  $region6: #{discriminator_forward.4} parent=0 // pred_check
    _
  $region7: #{discriminator_forward.4} parent=0 // pred_check_branch
    %10 = sbr.rel (0) target = $region9
  $region8: #{discriminator_forward.4} parent=0 // pred_region
    _
  $region9: #{discriminator_forward.4} parent=0 // pred_fallthru
    _
  %v12 = vld [vmem:[%s0] sm:$0xf]
  %v13 = vld [vmem:[%s0 + $0x4] sm:$0xf]
  %v14 = vld [vmem:[%s0 + $0x8] sm:$0xf]
  %v15 = vld [vmem:[%s0 + $0xc] sm:$0xf]
  %v16 = vld [vmem:[%s0 + $0x10] sm:$0xf]
  %v17 = vld [vmem:[%s0 + $0x14] sm:$0xf]
  %v18 = vld [vmem:[%s0 + $0x18] sm:$0xf]
  %v19 = vld [vmem:[%s0 + $0x1c] sm:$0xf]
  %v20 = vld [vmem:[%s0 + $0x20] sm:$0xf]
  %v21 = vld [vmem:[%s0 + $0x24] sm:$0xf]
  %v22 = vld [vmem:[%s0 + $0x28] sm:$0xf]
  %v23 = vld [vmem:[%s0 + $0x2c] sm:$0xf]
  %v24 = vld [vmem:[%s0 + $0x30] sm:$0xf]
  %v25 = vld [vmem:[%s0 + $0x34] sm:$0xf]
  %v26 = vld [vmem:[%s0 + $0x38] sm:$0xf]
  %v27 = vld [vmem:[%s0 + $0x3c] sm:$0xf]
  %v28 = vld [vmem:[%s0 + $0x40] sm:$0xf]
  %v29 = vld [vmem:[%s0 + $0x44] sm:$0xf]
  %v30 = vld [vmem:[%s0 + $0x48] sm:$0xf]
  %v31 = vld [vmem:[%s0 + $0x4c] sm:$0xf]
  %v32 = vld [vmem:[%s0 + $0x50] sm:$0xf]
  %v33 = vld [vmem:[%s0 + $0x54] sm:$0xf]
  %v34 = vld [vmem:[%s0 + $0x58] sm:$0xf]
  %v35 = vld [vmem:[%s0 + $0x5c] sm:$0xf]
  %v36 = vld [vmem:[%s0 + $0x60] sm:$0xf]
  %v37 = vld [vmem:[%s0 + $0x64] sm:$0xf]
  %v38 = vld [vmem:[%s0 + $0x68] sm:$0xf]
  %v39 = vld [vmem:[%s0 + $0x6c] sm:$0xf]
  %v40 = vld [vmem:[%s0 + $0x70] sm:$0xf]
  %v41 = vld [vmem:[%s0 + $0x74] sm:$0xf]
  %v42 = vld [vmem:[%s0 + $0x78] sm:$0xf]
  %v43 = vld [vmem:[%s0 + $0x7c] sm:$0xf]
  %v44 = vld [vmem:[%s0 + $0x80] sm:$0xf]
  %v45 = vld [vmem:[%s0 + $0x84] sm:$0xf]
  %v46 = vld [vmem:[%s0 + $0x88] sm:$0xf]
  %v47 = vld [vmem:[%s0 + $0x8c] sm:$0xf]
  %v48 = vld [vmem:[%s0 + $0x90] sm:$0xf]
  %v49 = vld [vmem:[%s0 + $0x94] sm:$0xf]
  %v50 = vld [vmem:[%s0 + $0x98] sm:$0xf]
  %v51 = vld [vmem:[%s0 + $0x9c] sm:$0xf]
  %v52 = vld [vmem:[%s0 + $0xa0] sm:$0xf]
  %v53 = vld [vmem:[%s0 + $0xa4] sm:$0xf]
  %v54 = vld [vmem:[%s0 + $0xa8] sm:$0xf]
  %v55 = vld [vmem:[%s0 + $0xac] sm:$0xf]
  %v56 = vld [vmem:[%s0 + $0xb0] sm:$0xf]
  %v57 = vld [vmem:[%s0 + $0xb4] sm:$0xf]
  %v58 = vld [vmem:[%s0 + $0xb8] sm:$0xf]
  %v59 = vld [vmem:[%s0 + $0xbc] sm:$0xf]
  %v60 = vld [vmem:[%s0 + $0xc0] sm:$0xf]
  %v61 = vld [vmem:[%s0 + $0xc4] sm:$0xf]
  %v62 = vld [vmem:[%s0 + $0xc8] sm:$0xf]
  %v63 = vld [vmem:[%s0 + $0xcc] sm:$0xf]
  %v64 = vld [vmem:[%s0 + $0xd0] sm:$0xf]
  %v65 = vld [vmem:[%s0 + $0xd4] sm:$0xf]
  %v66 = vld [vmem:[%s0 + $0xd8] sm:$0xf]
  %v67 = vld [vmem:[%s0 + $0xdc] sm:$0xf]
  %v68 = vld [vmem:[%s0 + $0xe0] sm:$0xf]
  %v69 = vld [vmem:[%s0 + $0xe4] sm:$0xf]
  %v70 = vld [vmem:[%s0 + $0xe8] sm:$0xf]
  %v71 = vld [vmem:[%s0 + $0xec] sm:$0xf]
  %v72 = vld [vmem:[%s0 + $0xf0] sm:$0xf]
  %v73 = vld [vmem:[%s0 + $0xf4] sm:$0xf]
  %v74 = vld [vmem:[%s0 + $0xf8] sm:$0xf]
  %v75 = vld [vmem:[%s0 + $0xfc] sm:$0xf]
  %v76 = vld [vmem:[%s0 + $0x100] sm:$0xf]
  %v77 = vld [vmem:[%s0 + $0x104] sm:$0xf]
  %v78 = vld [vmem:[%s0 + $0x108] sm:$0xf]
  %v79 = vld [vmem:[%s0 + $0x10c] sm:$0xf]
  %v80 = vld [vmem:[%s0 + $0x110] sm:$0xf]
  %v81 = vld [vmem:[%s0 + $0x114] sm:$0xf]
  %v82 = vld [vmem:[%s0 + $0x118] sm:$0xf]
  %v83 = vld [vmem:[%s0 + $0x11c] sm:$0xf]
  %v84 = vld [vmem:[%s0 + $0x120] sm:$0xf]
  %v85 = vld [vmem:[%s0 + $0x124] sm:$0xf]
  %v86 = vld [vmem:[%s0 + $0x128] sm:$0xf]
  %v87 = vld [vmem:[%s0 + $0x12c] sm:$0xf]
  %v88 = vld [vmem:[%s0 + $0x130] sm:$0xf]
  %v89 = vld [vmem:[%s0 + $0x134] sm:$0xf]
  %v90 = vld [vmem:[%s0 + $0x138] sm:$0xf]
  %v91 = vld [vmem:[%s0 + $0x13c] sm:$0xf]
  %v92 = vld [vmem:[%s0 + $0x140] sm:$0xf]
  %v93 = vld [vmem:[%s0 + $0x144] sm:$0xf]
  %v94 = vld [vmem:[%s0 + $0x148] sm:$0xf]
  %v95 = vld [vmem:[%s0 + $0x14c] sm:$0xf]
  %v96 = vld [vmem:[%s0 + $0x150] sm:$0xf]
  %v97 = vld [vmem:[%s0 + $0x154] sm:$0xf]
  %v98 = vld [vmem:[%s0 + $0x158] sm:$0xf]
  %v99 = vld [vmem:[%s0 + $0x15c] sm:$0xf]
  %v100 = vld [vmem:[%s0 + $0x160] sm:$0xf]
  %v101 = vld [vmem:[%s0 + $0x164] sm:$0xf]
  %v102 = vld [vmem:[%s0 + $0x168] sm:$0xf]
  %v103 = vld [vmem:[%s0 + $0x16c] sm:$0xf]
  %v104 = vld [vmem:[%s0 + $0x170] sm:$0xf]
  %v105 = vld [vmem:[%s0 + $0x174] sm:$0xf]
  %v106 = vld [vmem:[%s0 + $0x178] sm:$0xf]
  %v107 = vld [vmem:[%s0 + $0x17c] sm:$0xf]
  %v108 = vld [vmem:[%s0 + $0x180] sm:$0xf]
  %v109 = vld [vmem:[%s0 + $0x184] sm:$0xf]
  %v110 = vld [vmem:[%s0 + $0x188] sm:$0xf]
  %v111 = vld [vmem:[%s0 + $0x18c] sm:$0xf]
  %v112 = vld [vmem:[%s0 + $0x190] sm:$0xf]
  %v113 = vld [vmem:[%s0 + $0x194] sm:$0xf]
  %v114 = vld [vmem:[%s0 + $0x198] sm:$0xf]
  %v115 = vld [vmem:[%s0 + $0x19c] sm:$0xf]
  %v116 = vld [vmem:[%s0 + $0x1a0] sm:$0xf]
  %v117 = vld [vmem:[%s0 + $0x1a4] sm:$0xf]
  %v118 = vld [vmem:[%s0 + $0x1a8] sm:$0xf]
  %v119 = vld [vmem:[%s0 + $0x1ac] sm:$0xf]
  %v120 = vld [vmem:[%s0 + $0x1b0] sm:$0xf]
  %v121 = vld [vmem:[%s0 + $0x1b4] sm:$0xf]
  %v122 = vld [vmem:[%s0 + $0x1b8] sm:$0xf]
  %v123 = vld [vmem:[%s0 + $0x1bc] sm:$0xf]
  %v124 = vld [vmem:[%s0 + $0x1c0] sm:$0xf]
  %v125 = vld [vmem:[%s0 + $0x1c4] sm:$0xf]
  %v126 = vld [vmem:[%s0 + $0x1c8] sm:$0xf]
  %v127 = vld [vmem:[%s0 + $0x1cc] sm:$0xf]
  %v128 = vld [vmem:[%s0 + $0x1d0] sm:$0xf]
  %v129 = vld [vmem:[%s0 + $0x1d4] sm:$0xf]
  %v130 = vld [vmem:[%s0 + $0x1d8] sm:$0xf]
  %v131 = vld [vmem:[%s0 + $0x1dc] sm:$0xf]
  %v132 = vld [vmem:[%s0 + $0x1e0] sm:$0xf]
  %v133 = vld [vmem:[%s0 + $0x1e4] sm:$0xf]
  %v134 = vld [vmem:[%s0 + $0x1e8] sm:$0xf]
  %v135 = vld [vmem:[%s0 + $0x1ec] sm:$0xf]
  %v136 = vld [vmem:[%s0 + $0x1f0] sm:$0xf]
  %v137 = vld [vmem:[%s0 + $0x1f4] sm:$0xf]
  %v138 = vld [vmem:[%s0 + $0x1f8] sm:$0xf]
  %v139 = vld [vmem:[%s0 + $0x1fc] sm:$0xf]
  %v140 = vld [vmem:[%s0 + $0x200] sm:$0xf]
  %v141 = vld [vmem:[%s0 + $0x204] sm:$0xf]
  %v142 = vld [vmem:[%s0 + $0x208] sm:$0xf]
  %v143 = vld [vmem:[%s0 + $0x20c] sm:$0xf]
  %v144 = vld [vmem:[%s0 + $0x210] sm:$0xf]
  %v145 = vld [vmem:[%s0 + $0x214] sm:$0xf]
  %v146 = vld [vmem:[%s0 + $0x218] sm:$0xf]
  %v147 = vld [vmem:[%s0 + $0x21c] sm:$0xf]
  %v148 = vld [vmem:[%s0 + $0x220] sm:$0xf]
  %v149 = vld [vmem:[%s0 + $0x224] sm:$0xf]
  %v150 = vld [vmem:[%s0 + $0x228] sm:$0xf]
  %v151 = vld [vmem:[%s0 + $0x22c] sm:$0xf]
  %v152 = vld [vmem:[%s0 + $0x230] sm:$0xf]
  %v153 = vld [vmem:[%s0 + $0x234] sm:$0xf]
  %v154 = vld [vmem:[%s0 + $0x238] sm:$0xf]
  %v155 = vld [vmem:[%s0 + $0x23c] sm:$0xf]
  %v156 = vld [vmem:[%s0 + $0x240] sm:$0xf]
  %v157 = vld [vmem:[%s0 + $0x244] sm:$0xf]
  %v158 = vld [vmem:[%s0 + $0x248] sm:$0xf]
  %v159 = vld [vmem:[%s0 + $0x24c] sm:$0xf]
  %v160 = vld [vmem:[%s0 + $0x250] sm:$0xf]
  %v161 = vld [vmem:[%s0 + $0x254] sm:$0xf]
  %v162 = vld [vmem:[%s0 + $0x258] sm:$0xf]
  %v163 = vld [vmem:[%s0 + $0x25c] sm:$0xf]
  %v164 = vld [vmem:[%s0 + $0x260] sm:$0xf]
  %v165 = vld [vmem:[%s0 + $0x264] sm:$0xf]
  %v166 = vld [vmem:[%s0 + $0x268] sm:$0xf]
  %v167 = vld [vmem:[%s0 + $0x26c] sm:$0xf]
  %v168 = vld [vmem:[%s0 + $0x270] sm:$0xf]
  %v169 = vld [vmem:[%s0 + $0x274] sm:$0xf]
  %v170 = vld [vmem:[%s0 + $0x278] sm:$0xf]
  %v171 = vld [vmem:[%s0 + $0x27c] sm:$0xf]
  %v172 = vld [vmem:[%s0 + $0x280] sm:$0xf]
  %v173 = vld [vmem:[%s0 + $0x284] sm:$0xf]
  %v174 = vld [vmem:[%s0 + $0x288] sm:$0xf]
  %v175 = vld [vmem:[%s0 + $0x28c] sm:$0xf]
  %v176 = vld [vmem:[%s0 + $0x290] sm:$0xf]
  %v177 = vld [vmem:[%s0 + $0x294] sm:$0xf]
  %v178 = vld [vmem:[%s0 + $0x298] sm:$0xf]
  %v179 = vld [vmem:[%s0 + $0x29c] sm:$0xf]
  %v180 = vld [vmem:[%s0 + $0x2a0] sm:$0xf]
  %v181 = vld [vmem:[%s0 + $0x2a4] sm:$0xf]
  %v182 = vld [vmem:[%s0 + $0x2a8] sm:$0xf]
  %v183 = vld [vmem:[%s0 + $0x2ac] sm:$0xf]
  %v184 = vld [vmem:[%s0 + $0x2b0] sm:$0xf]
  %v185 = vld [vmem:[%s0 + $0x2b4] sm:$0xf]
  %v186 = vld [vmem:[%s0 + $0x2b8] sm:$0xf]
  %v187 = vld [vmem:[%s0 + $0x2bc] sm:$0xf]
  %v188 = vld [vmem:[%s0 + $0x2c0] sm:$0xf]
  %v189 = vld [vmem:[%s0 + $0x2c4] sm:$0xf]
  %v190 = vld [vmem:[%s0 + $0x2c8] sm:$0xf]
  %v191 = vld [vmem:[%s0 + $0x2cc] sm:$0xf]
  %v192 = vld [vmem:[%s0 + $0x2d0] sm:$0xf]
  %v193 = vld [vmem:[%s0 + $0x2d4] sm:$0xf]
  %v194 = vld [vmem:[%s0 + $0x2d8] sm:$0xf]
  %v195 = vld [vmem:[%s0 + $0x2dc] sm:$0xf]
  %v196 = vld [vmem:[%s0 + $0x2e0] sm:$0xf]
  %v197 = vld [vmem:[%s0 + $0x2e4] sm:$0xf]
  %v198 = vld [vmem:[%s0 + $0x2e8] sm:$0xf]
  %v199 = vld [vmem:[%s0 + $0x2ec] sm:$0xf]
  %v200 = vld [vmem:[%s0 + $0x2f0] sm:$0xf]
  %v201 = vld [vmem:[%s0 + $0x2f4] sm:$0xf]
  %v202 = vld [vmem:[%s0 + $0x2f8] sm:$0xf]
  %v203 = vld [vmem:[%s0 + $0x2fc] sm:$0xf]
  %v204 = vld [vmem:[%s0 + $0x300] sm:$0xf]
  %v205 = vld [vmem:[%s0 + $0x304] sm:$0xf]
  %v206 = vld [vmem:[%s0 + $0x308] sm:$0xf]
  %v207 = vld [vmem:[%s0 + $0x30c] sm:$0xf]
  %v208 = vld [vmem:[%s0 + $0x310] sm:$0xf]
  %v209 = vld [vmem:[%s0 + $0x314] sm:$0xf]
  %v210 = vld [vmem:[%s0 + $0x318] sm:$0xf]
  %v211 = vld [vmem:[%s0 + $0x31c] sm:$0xf]
  %v212 = vld [vmem:[%s0 + $0x320] sm:$0xf]
  %v213 = vld [vmem:[%s0 + $0x324] sm:$0xf]
  %v214 = vld [vmem:[%s0 + $0x328] sm:$0xf]
  %v215 = vld [vmem:[%s0 + $0x32c] sm:$0xf]
  %v216 = vld [vmem:[%s0 + $0x330] sm:$0xf]
  %v217 = vld [vmem:[%s0 + $0x334] sm:$0xf]
  %v218 = vld [vmem:[%s0 + $0x338] sm:$0xf]
  %v219 = vld [vmem:[%s0 + $0x33c] sm:$0xf]
  %v220 = vld [vmem:[%s0 + $0x340] sm:$0xf]
  %v221 = vld [vmem:[%s0 + $0x344] sm:$0xf]
  %v222 = vld [vmem:[%s0 + $0x348] sm:$0xf]
  %v223 = vld [vmem:[%s0 + $0x34c] sm:$0xf]
  %v224 = vld [vmem:[%s0 + $0x350] sm:$0xf]
  %v225 = vld [vmem:[%s0 + $0x354] sm:$0xf]
  %v226 = vld [vmem:[%s0 + $0x358] sm:$0xf]
  %v227 = vld [vmem:[%s0 + $0x35c] sm:$0xf]
  %v228 = vld [vmem:[%s0 + $0x360] sm:$0xf]
  %v229 = vld [vmem:[%s0 + $0x364] sm:$0xf]
  %v230 = vld [vmem:[%s0 + $0x368] sm:$0xf]
  %v231 = vld [vmem:[%s0 + $0x36c] sm:$0xf]
  %v232 = vld [vmem:[%s0 + $0x370] sm:$0xf]
  %v233 = vld [vmem:[%s0 + $0x374] sm:$0xf]
  %v234 = vld [vmem:[%s0 + $0x378] sm:$0xf]
  %v235 = vld [vmem:[%s0 + $0x37c] sm:$0xf]
  %v236 = vld [vmem:[%s0 + $0x380] sm:$0xf]
  %v237 = vld [vmem:[%s0 + $0x384] sm:$0xf]
  %v238 = vld [vmem:[%s0 + $0x388] sm:$0xf]
  %v239 = vld [vmem:[%s0 + $0x38c] sm:$0xf]
  %v240 = vld [vmem:[%s0 + $0x390] sm:$0xf]
  %v241 = vld [vmem:[%s0 + $0x394] sm:$0xf]
  %v242 = vld [vmem:[%s0 + $0x398] sm:$0xf]
  %v243 = vld [vmem:[%s0 + $0x39c] sm:$0xf]
  %v244 = vld [vmem:[%s0 + $0x3a0] sm:$0xf]
  %v245 = vld [vmem:[%s0 + $0x3a4] sm:$0xf]
  %v246 = vld [vmem:[%s0 + $0x3a8] sm:$0xf]
  %v247 = vld [vmem:[%s0 + $0x3ac] sm:$0xf]
  %v248 = vld [vmem:[%s0 + $0x3b0] sm:$0xf]
  %v249 = vld [vmem:[%s0 + $0x3b4] sm:$0xf]
  %v250 = vld [vmem:[%s0 + $0x3b8] sm:$0xf]
  %v251 = vld [vmem:[%s0 + $0x3bc] sm:$0xf]
  %v252 = vld [vmem:[%s0 + $0x3c0] sm:$0xf]
  %v253 = vld [vmem:[%s0 + $0x3c4] sm:$0xf]
  %v254 = vld [vmem:[%s0 + $0x3c8] sm:$0xf]
  %v255 = vld [vmem:[%s0 + $0x3cc] sm:$0xf]
  %v256 = vld [vmem:[%s0 + $0x3d0] sm:$0xf]
  %v257 = vld [vmem:[%s0 + $0x3d4] sm:$0xf]
  %v258 = vld [vmem:[%s0 + $0x3d8] sm:$0xf]
  %v259 = vld [vmem:[%s0 + $0x3dc] sm:$0xf]
  %v260 = vld [vmem:[%s0 + $0x3e0] sm:$0xf]
  %v261 = vld [vmem:[%s0 + $0x3e4] sm:$0xf]
  %v262 = vld [vmem:[%s0 + $0x3e8] sm:$0xf]
  %v263 = vld [vmem:[%s0 + $0x3ec] sm:$0xf]
  %v264 = vld [vmem:[%s0 + $0x3f0] sm:$0xf]
  %v265 = vld [vmem:[%s0 + $0x3f4] sm:$0xf]
  %v266 = vld [vmem:[%s0 + $0x3f8] sm:$0xf]
  %v267 = vld [vmem:[%s0 + $0x3fc] sm:$0xf]
  %v268 = vld [vmem:[%s1] sm:$0xf]
  %v269 = vld [vmem:[%s1 + $0x4] sm:$0xf]
  %v270 = vld [vmem:[%s1 + $0x8] sm:$0xf]
  %v271 = vld [vmem:[%s1 + $0xc] sm:$0xf]
  %v272 = vld [vmem:[%s1 + $0x10] sm:$0xf]
  %v273 = vld [vmem:[%s1 + $0x14] sm:$0xf]
  %v530 = vunpack.c.l.b16 %v12
  %v531 = vunpack.c.l.b16 %v13
  %v532 = vunpack.c.l.b16 %v14
  %v533 = vunpack.c.l.b16 %v15
  %v534 = vunpack.c.l.b16 %v16
  %v535 = vunpack.c.l.b16 %v17
  %v536 = vunpack.c.l.b16 %v18
  %v537 = vunpack.c.l.b16 %v19
  %v538 = vunpack.c.l.b16 %v20
  %v539 = vunpack.c.l.b16 %v21
  %v540 = vunpack.c.l.b16 %v22
  %v541 = vunpack.c.l.b16 %v23
  %v542 = vunpack.c.l.b16 %v24
  %v543 = vunpack.c.l.b16 %v25
  %v544 = vunpack.c.l.b16 %v26
  %v545 = vunpack.c.l.b16 %v27
  %v546 = vunpack.c.l.b16 %v28
  %v547 = vunpack.c.l.b16 %v29
  %v548 = vunpack.c.l.b16 %v30
  %v549 = vunpack.c.l.b16 %v31
  %v550 = vunpack.c.l.b16 %v32
  %v551 = vunpack.c.l.b16 %v33
  %v552 = vunpack.c.l.b16 %v34
  %v553 = vunpack.c.l.b16 %v35
  %v554 = vunpack.c.l.b16 %v36
  %v555 = vunpack.c.l.b16 %v37
  %v556 = vunpack.c.l.b16 %v38
  %v557 = vunpack.c.l.b16 %v39
  %v558 = vunpack.c.l.b16 %v40
  %v559 = vunpack.c.l.b16 %v41
  %v560 = vunpack.c.l.b16 %v42
  %v561 = vunpack.c.l.b16 %v43
  %v562 = vunpack.c.l.b16 %v44
  %v563 = vunpack.c.l.b16 %v45
  %v564 = vunpack.c.l.b16 %v46
  %v565 = vunpack.c.l.b16 %v47
  %v566 = vunpack.c.l.b16 %v48
  %v567 = vunpack.c.l.b16 %v49
  %v568 = vunpack.c.l.b16 %v50
  %v569 = vunpack.c.l.b16 %v51
  %v570 = vunpack.c.l.b16 %v52
  %v571 = vunpack.c.l.b16 %v53
  %v572 = vunpack.c.l.b16 %v54
  %v573 = vunpack.c.l.b16 %v55
  %v574 = vunpack.c.l.b16 %v56
  %v575 = vunpack.c.l.b16 %v57
  %v576 = vunpack.c.l.b16 %v58
  %v577 = vunpack.c.l.b16 %v59
  %v578 = vunpack.c.l.b16 %v60
  %v579 = vunpack.c.l.b16 %v61
  %v580 = vunpack.c.l.b16 %v62
  %v581 = vunpack.c.l.b16 %v63
  %v582 = vunpack.c.l.b16 %v64
  %v583 = vunpack.c.l.b16 %v65
  %v584 = vunpack.c.l.b16 %v66
  %v585 = vunpack.c.l.b16 %v67
  %v586 = vunpack.c.l.b16 %v68
  %v587 = vunpack.c.l.b16 %v69
  %v588 = vunpack.c.l.b16 %v70
  %v589 = vunpack.c.l.b16 %v71
  %v590 = vunpack.c.l.b16 %v72
  %v591 = vunpack.c.l.b16 %v73
  %v592 = vunpack.c.l.b16 %v74
  %v593 = vunpack.c.l.b16 %v75
  %v594 = vunpack.c.l.b16 %v76
  %v595 = vunpack.c.l.b16 %v77
  %v596 = vunpack.c.l.b16 %v78
  %v597 = vunpack.c.l.b16 %v79
  %v598 = vunpack.c.l.b16 %v80
  %v599 = vunpack.c.l.b16 %v81
  %v600 = vunpack.c.l.b16 %v82
  %v601 = vunpack.c.l.b16 %v83
  %v602 = vunpack.c.l.b16 %v84
  %v603 = vunpack.c.l.b16 %v85
  %v604 = vunpack.c.l.b16 %v86
  %v605 = vunpack.c.l.b16 %v87
  %v606 = vunpack.c.l.b16 %v88
  %v607 = vunpack.c.l.b16 %v89
  %v608 = vunpack.c.l.b16 %v90
  %v609 = vunpack.c.l.b16 %v91
  %v610 = vunpack.c.l.b16 %v92
  %v611 = vunpack.c.l.b16 %v93
  %v612 = vunpack.c.l.b16 %v94
  %v613 = vunpack.c.l.b16 %v95
  %v614 = vunpack.c.l.b16 %v96
  %v615 = vunpack.c.l.b16 %v97
  %v616 = vunpack.c.l.b16 %v98
  %v617 = vunpack.c.l.b16 %v99
  %v618 = vunpack.c.l.b16 %v100
  %v619 = vunpack.c.l.b16 %v101
  %v620 = vunpack.c.l.b16 %v102
  %v621 = vunpack.c.l.b16 %v103
  %v622 = vunpack.c.l.b16 %v104
  %v623 = vunpack.c.l.b16 %v105
  %v624 = vunpack.c.l.b16 %v106
  %v625 = vunpack.c.l.b16 %v107
  %v626 = vunpack.c.l.b16 %v108
  %v627 = vunpack.c.l.b16 %v109
  %v628 = vunpack.c.l.b16 %v110
  %v629 = vunpack.c.l.b16 %v111
  %v630 = vunpack.c.l.b16 %v112
  %v631 = vunpack.c.l.b16 %v113
  %v632 = vunpack.c.l.b16 %v114
  %v633 = vunpack.c.l.b16 %v115
  %v634 = vunpack.c.l.b16 %v116
  %v635 = vunpack.c.l.b16 %v117
  %v636 = vunpack.c.l.b16 %v118
  %v637 = vunpack.c.l.b16 %v119
  %v638 = vunpack.c.l.b16 %v120
  %v639 = vunpack.c.l.b16 %v121
  %v640 = vunpack.c.l.b16 %v122
  %v641 = vunpack.c.l.b16 %v123
  %v642 = vunpack.c.l.b16 %v124
  %v643 = vunpack.c.l.b16 %v125
  %v644 = vunpack.c.l.b16 %v126
  %v645 = vunpack.c.l.b16 %v127
  %v646 = vunpack.c.l.b16 %v128
  %v647 = vunpack.c.l.b16 %v129
  %v648 = vunpack.c.l.b16 %v130
  %v649 = vunpack.c.l.b16 %v131
  %v650 = vunpack.c.l.b16 %v132
  %v651 = vunpack.c.l.b16 %v133
  %v652 = vunpack.c.l.b16 %v134
  %v653 = vunpack.c.l.b16 %v135
  %v654 = vunpack.c.l.b16 %v136
  %v655 = vunpack.c.l.b16 %v137
  %v656 = vunpack.c.l.b16 %v138
  %v657 = vunpack.c.l.b16 %v139
  %v658 = vunpack.c.l.b16 %v140
  %v659 = vunpack.c.l.b16 %v141
  %v660 = vunpack.c.l.b16 %v142
  %v661 = vunpack.c.l.b16 %v143
  %v662 = vunpack.c.l.b16 %v144
  %v663 = vunpack.c.l.b16 %v145
  %v664 = vunpack.c.l.b16 %v146
  %v665 = vunpack.c.l.b16 %v147
  %v666 = vunpack.c.l.b16 %v148
  %v667 = vunpack.c.l.b16 %v149
  %v668 = vunpack.c.l.b16 %v150
  %v669 = vunpack.c.l.b16 %v151
  %v670 = vunpack.c.l.b16 %v152
  %v671 = vunpack.c.l.b16 %v153
  %v672 = vunpack.c.l.b16 %v154
  %v673 = vunpack.c.l.b16 %v155
  %v674 = vunpack.c.l.b16 %v156
  %v675 = vunpack.c.l.b16 %v157
  %v676 = vunpack.c.l.b16 %v158
  %v677 = vunpack.c.l.b16 %v159
  %v678 = vunpack.c.l.b16 %v160
  %v679 = vunpack.c.l.b16 %v161
  %v680 = vunpack.c.l.b16 %v162
  %v681 = vunpack.c.l.b16 %v163
  %v682 = vunpack.c.l.b16 %v164
  %v683 = vunpack.c.l.b16 %v165
  %v684 = vunpack.c.l.b16 %v166
  %v685 = vunpack.c.l.b16 %v167
  %v686 = vunpack.c.l.b16 %v168
  %v687 = vunpack.c.l.b16 %v169
  %v688 = vunpack.c.l.b16 %v170
  %v689 = vunpack.c.l.b16 %v171
  %v690 = vunpack.c.l.b16 %v172
  %v691 = vunpack.c.l.b16 %v173
  %v692 = vunpack.c.l.b16 %v174
  %v693 = vunpack.c.l.b16 %v175
  %v694 = vunpack.c.l.b16 %v176
  %v695 = vunpack.c.l.b16 %v177
  %v696 = vunpack.c.l.b16 %v178
  %v697 = vunpack.c.l.b16 %v179
  %v698 = vunpack.c.l.b16 %v180
  %v699 = vunpack.c.l.b16 %v181
  %v700 = vunpack.c.l.b16 %v182
  %v701 = vunpack.c.l.b16 %v183
  %v702 = vunpack.c.l.b16 %v184
  %v703 = vunpack.c.l.b16 %v185
  %v704 = vunpack.c.l.b16 %v186
  %v705 = vunpack.c.l.b16 %v187
  %v706 = vunpack.c.l.b16 %v188
  %v707 = vunpack.c.l.b16 %v189
  %v708 = vunpack.c.l.b16 %v190
  %v709 = vunpack.c.l.b16 %v191
  %v710 = vunpack.c.l.b16 %v192
  %v711 = vunpack.c.l.b16 %v193
  %v712 = vunpack.c.l.b16 %v194
  %v713 = vunpack.c.l.b16 %v195
  %v714 = vunpack.c.l.b16 %v196
  %v715 = vunpack.c.l.b16 %v197
  %v716 = vunpack.c.l.b16 %v198
  %v717 = vunpack.c.l.b16 %v199
  %v718 = vunpack.c.l.b16 %v200
  %v719 = vunpack.c.l.b16 %v201
  %v720 = vunpack.c.l.b16 %v202
  %v721 = vunpack.c.l.b16 %v203
  %v722 = vunpack.c.l.b16 %v204
  %v723 = vunpack.c.l.b16 %v205
  %v724 = vunpack.c.l.b16 %v206
  %v725 = vunpack.c.l.b16 %v207
  %v726 = vunpack.c.l.b16 %v208
  %v727 = vunpack.c.l.b16 %v209
  %v728 = vunpack.c.l.b16 %v210
  %v729 = vunpack.c.l.b16 %v211
  %v730 = vunpack.c.l.b16 %v212
  %v731 = vunpack.c.l.b16 %v213
  %v732 = vunpack.c.l.b16 %v214
  %v733 = vunpack.c.l.b16 %v215
  %v734 = vunpack.c.l.b16 %v216
  %v735 = vunpack.c.l.b16 %v217
  %v736 = vunpack.c.l.b16 %v218
  %v737 = vunpack.c.l.b16 %v219
  %v738 = vunpack.c.l.b16 %v220
  %v739 = vunpack.c.l.b16 %v221
  %v740 = vunpack.c.l.b16 %v222
  %v741 = vunpack.c.l.b16 %v223
  %v742 = vunpack.c.l.b16 %v224
  %v743 = vunpack.c.l.b16 %v225
  %v744 = vunpack.c.l.b16 %v226
  %v745 = vunpack.c.l.b16 %v227
  %v746 = vunpack.c.l.b16 %v228
  %v747 = vunpack.c.l.b16 %v229
  %v748 = vunpack.c.l.b16 %v230
  %v749 = vunpack.c.l.b16 %v231
  %v750 = vunpack.c.l.b16 %v232
  %v751 = vunpack.c.l.b16 %v233
  %v752 = vunpack.c.l.b16 %v234
  %v753 = vunpack.c.l.b16 %v235
  %v754 = vunpack.c.l.b16 %v236
  %v755 = vunpack.c.l.b16 %v237
  %v756 = vunpack.c.l.b16 %v238
  %v757 = vunpack.c.l.b16 %v239
  %v758 = vunpack.c.l.b16 %v240
  %v759 = vunpack.c.l.b16 %v241
  %v760 = vunpack.c.l.b16 %v242
  %v761 = vunpack.c.l.b16 %v243
  %v762 = vunpack.c.l.b16 %v244
  %v763 = vunpack.c.l.b16 %v245
  %v764 = vunpack.c.l.b16 %v246
  %v765 = vunpack.c.l.b16 %v247
  %v766 = vunpack.c.l.b16 %v248
  %v767 = vunpack.c.l.b16 %v249
  %v768 = vunpack.c.l.b16 %v250
  %v769 = vunpack.c.l.b16 %v251
  %v770 = vunpack.c.l.b16 %v252
  %v771 = vunpack.c.l.b16 %v253
  %v772 = vunpack.c.l.b16 %v254
  %v773 = vunpack.c.l.b16 %v255
  %v774 = vunpack.c.l.b16 %v256
  %v775 = vunpack.c.l.b16 %v257
  %v776 = vunpack.c.l.b16 %v258
  %v777 = vunpack.c.l.b16 %v259
  %v778 = vunpack.c.l.b16 %v260
  %v779 = vunpack.c.l.b16 %v261
  %v780 = vunpack.c.l.b16 %v262
  %v781 = vunpack.c.l.b16 %v263
  %v782 = vunpack.c.l.b16 %v264
  %v783 = vunpack.c.l.b16 %v265
  %v784 = vunpack.c.l.b16 %v266
  %v785 = vunpack.c.l.b16 %v267
  %v786 = vpack.c.b16 %v531, %v530
  %v787 = vpack.c.b16 %v533, %v532
  %v788 = vpack.c.b16 %v535, %v534
  %v789 = vpack.c.b16 %v537, %v536
  %v790 = vpack.c.b16 %v539, %v538
  %v791 = vpack.c.b16 %v541, %v540
  %v792 = vpack.c.b16 %v543, %v542
  %v793 = vpack.c.b16 %v545, %v544
  %v794 = vpack.c.b16 %v547, %v546
  %v795 = vpack.c.b16 %v549, %v548
  %v796 = vpack.c.b16 %v551, %v550
  %v797 = vpack.c.b16 %v553, %v552
  %v798 = vpack.c.b16 %v555, %v554
  %v799 = vpack.c.b16 %v557, %v556
  %v800 = vpack.c.b16 %v559, %v558
  %v801 = vpack.c.b16 %v561, %v560
  %v802 = vpack.c.b16 %v563, %v562
  %v803 = vpack.c.b16 %v565, %v564
  %v804 = vpack.c.b16 %v567, %v566
  %v805 = vpack.c.b16 %v569, %v568
  %v806 = vpack.c.b16 %v571, %v570
  %v807 = vpack.c.b16 %v573, %v572
  %v808 = vpack.c.b16 %v575, %v574
  %v809 = vpack.c.b16 %v577, %v576
  %v810 = vpack.c.b16 %v579, %v578
  %v811 = vpack.c.b16 %v581, %v580
  %v812 = vpack.c.b16 %v583, %v582
  %v813 = vpack.c.b16 %v585, %v584
  %v814 = vpack.c.b16 %v587, %v586
  %v815 = vpack.c.b16 %v589, %v588
  %v816 = vpack.c.b16 %v591, %v590
  %v817 = vpack.c.b16 %v593, %v592
  %v818 = vpack.c.b16 %v595, %v594
  %v819 = vpack.c.b16 %v597, %v596
  %v820 = vpack.c.b16 %v599, %v598
  %v821 = vpack.c.b16 %v601, %v600
  %v822 = vpack.c.b16 %v603, %v602
  %v823 = vpack.c.b16 %v605, %v604
  %v824 = vpack.c.b16 %v607, %v606
  %v825 = vpack.c.b16 %v609, %v608
  %v826 = vpack.c.b16 %v611, %v610
  %v827 = vpack.c.b16 %v613, %v612
  %v828 = vpack.c.b16 %v615, %v614
  %v829 = vpack.c.b16 %v617, %v616
  %v830 = vpack.c.b16 %v619, %v618
  %v831 = vpack.c.b16 %v621, %v620
  %v832 = vpack.c.b16 %v623, %v622
  %v833 = vpack.c.b16 %v625, %v624
  %v834 = vpack.c.b16 %v627, %v626
  %v835 = vpack.c.b16 %v629, %v628
  %v836 = vpack.c.b16 %v631, %v630
  %v837 = vpack.c.b16 %v633, %v632
  %v838 = vpack.c.b16 %v635, %v634
  %v839 = vpack.c.b16 %v637, %v636
  %v840 = vpack.c.b16 %v639, %v638
  %v841 = vpack.c.b16 %v641, %v640
  %v842 = vpack.c.b16 %v643, %v642
  %v843 = vpack.c.b16 %v645, %v644
  %v844 = vpack.c.b16 %v647, %v646
  %v845 = vpack.c.b16 %v649, %v648
  %v846 = vpack.c.b16 %v651, %v650
  %v847 = vpack.c.b16 %v653, %v652
  %v848 = vpack.c.b16 %v655, %v654
  %v849 = vpack.c.b16 %v657, %v656
  %v850 = vpack.c.b16 %v659, %v658
  %v851 = vpack.c.b16 %v661, %v660
  %v852 = vpack.c.b16 %v663, %v662
  %v853 = vpack.c.b16 %v665, %v664
  %v854 = vpack.c.b16 %v667, %v666
  %v855 = vpack.c.b16 %v669, %v668
  %v856 = vpack.c.b16 %v671, %v670
  %v857 = vpack.c.b16 %v673, %v672
  %v858 = vpack.c.b16 %v675, %v674
  %v859 = vpack.c.b16 %v677, %v676
  %v860 = vpack.c.b16 %v679, %v678
  %v861 = vpack.c.b16 %v681, %v680
  %v862 = vpack.c.b16 %v683, %v682
  %v863 = vpack.c.b16 %v685, %v684
  %v864 = vpack.c.b16 %v687, %v686
  %v865 = vpack.c.b16 %v689, %v688
  %v866 = vpack.c.b16 %v691, %v690
  %v867 = vpack.c.b16 %v693, %v692
  %v868 = vpack.c.b16 %v695, %v694
  %v869 = vpack.c.b16 %v697, %v696
  %v870 = vpack.c.b16 %v699, %v698
  %v871 = vpack.c.b16 %v701, %v700
  %v872 = vpack.c.b16 %v703, %v702
  %v873 = vpack.c.b16 %v705, %v704
  %v874 = vpack.c.b16 %v707, %v706
  %v875 = vpack.c.b16 %v709, %v708
  %v876 = vpack.c.b16 %v711, %v710
  %v877 = vpack.c.b16 %v713, %v712
  %v878 = vpack.c.b16 %v715, %v714
  %v879 = vpack.c.b16 %v717, %v716
  %v880 = vpack.c.b16 %v719, %v718
  %v881 = vpack.c.b16 %v721, %v720
  %v882 = vpack.c.b16 %v723, %v722
  %v883 = vpack.c.b16 %v725, %v724
  %v884 = vpack.c.b16 %v727, %v726
  %v885 = vpack.c.b16 %v729, %v728
  %v886 = vpack.c.b16 %v731, %v730
  %v887 = vpack.c.b16 %v733, %v732
  %v888 = vpack.c.b16 %v735, %v734
  %v889 = vpack.c.b16 %v737, %v736
  %v890 = vpack.c.b16 %v739, %v738
  %v891 = vpack.c.b16 %v741, %v740
  %v892 = vpack.c.b16 %v743, %v742
  %v893 = vpack.c.b16 %v745, %v744
  %v894 = vpack.c.b16 %v747, %v746
  %v895 = vpack.c.b16 %v749, %v748
  %v896 = vpack.c.b16 %v751, %v750
  %v897 = vpack.c.b16 %v753, %v752
  %v898 = vpack.c.b16 %v755, %v754
  %v899 = vpack.c.b16 %v757, %v756
  %v900 = vpack.c.b16 %v759, %v758
  %v901 = vpack.c.b16 %v761, %v760
  %v902 = vpack.c.b16 %v763, %v762
  %v903 = vpack.c.b16 %v765, %v764
  %v904 = vpack.c.b16 %v767, %v766
  %v905 = vpack.c.b16 %v769, %v768
  %v906 = vpack.c.b16 %v771, %v770
  %v907 = vpack.c.b16 %v773, %v772
  %v908 = vpack.c.b16 %v775, %v774
  %v909 = vpack.c.b16 %v777, %v776
  %v910 = vpack.c.b16 %v779, %v778
  %v911 = vpack.c.b16 %v781, %v780
  %v912 = vpack.c.b16 %v783, %v782
  %v913 = vpack.c.b16 %v785, %v784
  %v920 = vunpack.c.l.b16 %v268
  %v921 = vunpack.c.l.b16 %v269
  %v922 = vunpack.c.l.b16 %v270
  %v923 = vunpack.c.l.b16 %v271
  %v924 = vunpack.c.l.b16 %v272
  %v925 = vunpack.c.l.b16 %v273
  %v926 = vpack.c.b16 %v921, %v920
  %v927 = vpack.c.b16 %v923, %v922
  %v928 = vpack.c.b16 %v925, %v924
  %vm932 = vcmask 392192
  %v934 = vsel %vm932, %v786, 0
  %v937 = vsel %vm932, %v787, 0
  %v940 = vsel %vm932, %v788, 0
  %v943 = vsel %vm932, %v789, 0
  %v946 = vsel %vm932, %v790, 0
  %v949 = vsel %vm932, %v791, 0
  %v952 = vsel %vm932, %v792, 0
  %v955 = vsel %vm932, %v793, 0
  %v958 = vsel %vm932, %v794, 0
  %v961 = vsel %vm932, %v795, 0
  %v964 = vsel %vm932, %v796, 0
  %v967 = vsel %vm932, %v797, 0
  %v970 = vsel %vm932, %v798, 0
  %v973 = vsel %vm932, %v799, 0
  %v976 = vsel %vm932, %v800, 0
  %v979 = vsel %vm932, %v801, 0
  %v982 = vsel %vm932, %v802, 0
  %v985 = vsel %vm932, %v803, 0
  %v988 = vsel %vm932, %v804, 0
  %v991 = vsel %vm932, %v805, 0
  %v994 = vsel %vm932, %v806, 0
  %v997 = vsel %vm932, %v807, 0
  %v1000 = vsel %vm932, %v808, 0
  %v1003 = vsel %vm932, %v809, 0
  %v1006 = vsel %vm932, %v810, 0
  %v1009 = vsel %vm932, %v811, 0
  %v1012 = vsel %vm932, %v812, 0
  %v1015 = vsel %vm932, %v813, 0
  %v1018 = vsel %vm932, %v814, 0
  %v1021 = vsel %vm932, %v815, 0
  %v1024 = vsel %vm932, %v816, 0
  %v1027 = vsel %vm932, %v817, 0
  %v1030 = vsel %vm932, %v818, 0
  %v1033 = vsel %vm932, %v819, 0
  %v1036 = vsel %vm932, %v820, 0
  %v1039 = vsel %vm932, %v821, 0
  %v1042 = vsel %vm932, %v822, 0
  %v1045 = vsel %vm932, %v823, 0
  %v1048 = vsel %vm932, %v824, 0
  %v1051 = vsel %vm932, %v825, 0
  %v1054 = vsel %vm932, %v826, 0
  %v1057 = vsel %vm932, %v827, 0
  %v1060 = vsel %vm932, %v828, 0
  %v1063 = vsel %vm932, %v829, 0
  %v1066 = vsel %vm932, %v830, 0
  %v1069 = vsel %vm932, %v831, 0
  %v1072 = vsel %vm932, %v832, 0
  %v1075 = vsel %vm932, %v833, 0
  %v1078 = vsel %vm932, %v834, 0
  %v1081 = vsel %vm932, %v835, 0
  %v1084 = vsel %vm932, %v836, 0
  %v1087 = vsel %vm932, %v837, 0
  %v1090 = vsel %vm932, %v838, 0
  %v1093 = vsel %vm932, %v839, 0
  %v1096 = vsel %vm932, %v840, 0
  %v1099 = vsel %vm932, %v841, 0
  %v1102 = vsel %vm932, %v842, 0
  %v1105 = vsel %vm932, %v843, 0
  %v1108 = vsel %vm932, %v844, 0
  %v1111 = vsel %vm932, %v845, 0
  %v1114 = vsel %vm932, %v846, 0
  %v1117 = vsel %vm932, %v847, 0
  %v1120 = vsel %vm932, %v848, 0
  %v1123 = vsel %vm932, %v849, 0
  %v1126 = vsel %vm932, %v850, 0
  %v1129 = vsel %vm932, %v851, 0
  %v1132 = vsel %vm932, %v852, 0
  %v1135 = vsel %vm932, %v853, 0
  %v1138 = vsel %vm932, %v854, 0
  %v1141 = vsel %vm932, %v855, 0
  %v1144 = vsel %vm932, %v856, 0
  %v1147 = vsel %vm932, %v857, 0
  %v1150 = vsel %vm932, %v858, 0
  %v1153 = vsel %vm932, %v859, 0
  %v1156 = vsel %vm932, %v860, 0
  %v1159 = vsel %vm932, %v861, 0
  %v1162 = vsel %vm932, %v862, 0
  %v1165 = vsel %vm932, %v863, 0
  %v1168 = vsel %vm932, %v864, 0
  %v1171 = vsel %vm932, %v865, 0
  %v1174 = vsel %vm932, %v866, 0
  %v1177 = vsel %vm932, %v867, 0
  %v1180 = vsel %vm932, %v868, 0
  %v1183 = vsel %vm932, %v869, 0
  %v1186 = vsel %vm932, %v870, 0
  %v1189 = vsel %vm932, %v871, 0
  %v1192 = vsel %vm932, %v872, 0
  %v1195 = vsel %vm932, %v873, 0
  %v1198 = vsel %vm932, %v874, 0
  %v1201 = vsel %vm932, %v875, 0
  %v1204 = vsel %vm932, %v876, 0
  %v1207 = vsel %vm932, %v877, 0
  %v1210 = vsel %vm932, %v878, 0
  %v1213 = vsel %vm932, %v879, 0
  %v1216 = vsel %vm932, %v880, 0
  %v1219 = vsel %vm932, %v881, 0
  %v1222 = vsel %vm932, %v882, 0
  %v1225 = vsel %vm932, %v883, 0
  %v1228 = vsel %vm932, %v884, 0
  %v1231 = vsel %vm932, %v885, 0
  %v1234 = vsel %vm932, %v886, 0
  %v1237 = vsel %vm932, %v887, 0
  %v1240 = vsel %vm932, %v888, 0
  %v1243 = vsel %vm932, %v889, 0
  %v1246 = vsel %vm932, %v890, 0
  %v1249 = vsel %vm932, %v891, 0
  %v1252 = vsel %vm932, %v892, 0
  %v1255 = vsel %vm932, %v893, 0
  %v1258 = vsel %vm932, %v894, 0
  %v1261 = vsel %vm932, %v895, 0
  %v1264 = vsel %vm932, %v896, 0
  %v1267 = vsel %vm932, %v897, 0
  %v1270 = vsel %vm932, %v898, 0
  %v1273 = vsel %vm932, %v899, 0
  %v1276 = vsel %vm932, %v900, 0
  %v1279 = vsel %vm932, %v901, 0
  %v1282 = vsel %vm932, %v902, 0
  %v1285 = vsel %vm932, %v903, 0
  %v1288 = vsel %vm932, %v904, 0
  %v1291 = vsel %vm932, %v905, 0
  %v1294 = vsel %vm932, %v906, 0
  %v1297 = vsel %vm932, %v907, 0
  %v1300 = vsel %vm932, %v908, 0
  %v1303 = vsel %vm932, %v909, 0
  %v1306 = vsel %vm932, %v910, 0
  %v1309 = vsel %vm932, %v911, 0
  %v1312 = vsel %vm932, %v912, 0
  %v1315 = vsel %vm932, %v913, 0
  %1317 = vmatprep.subr.bf16.mxu0 0
  %1318 = vmatpush1.bf16.msra.mxu0 0
  %1319 = vmatprep.subr.bf16.mxu0 0
  %1320 = vmatpush1.bf16.msra.mxu0 0
  %1321 = vmatprep.subr.bf16.mxu0 0
  %1322 = vmatpush1.bf16.msra.mxu0 0
  %1323 = vmatprep.subr.bf16.mxu0 0
  %1324 = vmatpush1.bf16.msra.mxu0 0
  %1325 = vmatprep.subr.bf16.mxu0 0
  %1326 = vmatpush1.bf16.msra.mxu0 0
  %1327 = vmatprep.subr.bf16.mxu0 0
  %1328 = vmatpush1.bf16.msra.mxu0 %v928
  %1329 = vmatprep.subr.bf16.mxu0 0
  %1330 = vmatpush1.bf16.msra.mxu0 %v927
  %1331 = vmatprep.subr.bf16.mxu0 0
  %1332 = vmatpush1.bf16.msra.mxu0 %v926
  %1333 = vmatprep.subr.bf16.mxu0 0
  %1334 = vmatpush2.bf16.msra.mxu0 0
  %1335 = vmatprep.subr.bf16.mxu0 0
  %1336 = vmatpush2.bf16.msra.mxu0 0
  %1337 = vmatprep.subr.bf16.mxu0 0
  %1338 = vmatpush2.bf16.msra.mxu0 0
  %1339 = vmatprep.subr.bf16.mxu0 0
  %1340 = vmatpush2.bf16.msra.mxu0 0
  %1341 = vmatprep.subr.bf16.mxu0 0
  %1342 = vmatpush2.bf16.msra.mxu0 0
  %1343 = vmatprep.subr.bf16.mxu0 0
  %1344 = vmatpush2.bf16.msra.mxu0 0
  %1345 = vmatprep.subr.bf16.mxu0 0
  %1346 = vmatpush2.bf16.msra.mxu0 0
  %1347 = vmatprep.subr.bf16.mxu0 0
  %1348 = vmatpush2.bf16.msra.mxu0 0
  %1349 = vmatprep.mubr.bf16.mxu0 0
  %1350 = vmatmul.mubr.bf16.gmra.mxu0 %v934
  %v1351 = vpop.f32.mrf.mxu0
  %v1352 = vadd.f32 0.0, %v1351
  %v1353 = vpop.f32.mrf.mxu0
  %v1354 = vpop.f32.mrf.mxu0
  %v1355 = vadd.f32 0.0, %v1354
  %v1356 = vpop.f32.mrf.mxu0
  %1357 = vmatprep.mubr.bf16.mxu0 0
  %1358 = vmatmul.mubr.bf16.gmra.mxu0 %v937
  %v1359 = vpop.f32.mrf.mxu0
  %v1360 = vadd.f32 0.0, %v1359
  %v1361 = vpop.f32.mrf.mxu0
  %v1362 = vpop.f32.mrf.mxu0
  %v1363 = vadd.f32 0.0, %v1362
  %v1364 = vpop.f32.mrf.mxu0
  %1365 = vmatprep.mubr.bf16.mxu0 0
  %1366 = vmatmul.mubr.bf16.gmra.mxu0 %v940
  %v1367 = vpop.f32.mrf.mxu0
  %v1368 = vadd.f32 0.0, %v1367
  %v1369 = vpop.f32.mrf.mxu0
  %v1370 = vpop.f32.mrf.mxu0
  %v1371 = vadd.f32 0.0, %v1370
  %v1372 = vpop.f32.mrf.mxu0
  %1373 = vmatprep.mubr.bf16.mxu0 0
  %1374 = vmatmul.mubr.bf16.gmra.mxu0 %v943
  %v1375 = vpop.f32.mrf.mxu0
  %v1376 = vadd.f32 0.0, %v1375
  %v1377 = vpop.f32.mrf.mxu0
  %v1378 = vpop.f32.mrf.mxu0
  %v1379 = vadd.f32 0.0, %v1378
  %v1380 = vpop.f32.mrf.mxu0
  %1381 = vmatprep.mubr.bf16.mxu0 0
  %1382 = vmatmul.mubr.bf16.gmra.mxu0 %v946
  %v1383 = vpop.f32.mrf.mxu0
  %v1384 = vadd.f32 0.0, %v1383
  %v1385 = vpop.f32.mrf.mxu0
  %v1386 = vpop.f32.mrf.mxu0
  %v1387 = vadd.f32 0.0, %v1386
  %v1388 = vpop.f32.mrf.mxu0
  %1389 = vmatprep.mubr.bf16.mxu0 0
  %1390 = vmatmul.mubr.bf16.gmra.mxu0 %v949
  %v1391 = vpop.f32.mrf.mxu0
  %v1392 = vadd.f32 0.0, %v1391
  %v1393 = vpop.f32.mrf.mxu0
  %v1394 = vpop.f32.mrf.mxu0
  %v1395 = vadd.f32 0.0, %v1394
  %v1396 = vpop.f32.mrf.mxu0
  %1397 = vmatprep.mubr.bf16.mxu0 0
  %1398 = vmatmul.mubr.bf16.gmra.mxu0 %v952
  %v1399 = vpop.f32.mrf.mxu0
  %v1400 = vadd.f32 0.0, %v1399
  %v1401 = vpop.f32.mrf.mxu0
  %v1402 = vpop.f32.mrf.mxu0
  %v1403 = vadd.f32 0.0, %v1402
  %v1404 = vpop.f32.mrf.mxu0
  %1405 = vmatprep.mubr.bf16.mxu0 0
  %1406 = vmatmul.mubr.bf16.gmra.mxu0 %v955
  %v1407 = vpop.f32.mrf.mxu0
  %v1408 = vadd.f32 0.0, %v1407
  %v1409 = vpop.f32.mrf.mxu0
  %v1410 = vpop.f32.mrf.mxu0
  %v1411 = vadd.f32 0.0, %v1410
  %v1412 = vpop.f32.mrf.mxu0
  %1413 = vmatprep.mubr.bf16.mxu0 0
  %1414 = vmatmul.mubr.bf16.gmra.mxu0 %v958
  %v1415 = vpop.f32.mrf.mxu0
  %v1416 = vadd.f32 0.0, %v1415
  %v1417 = vpop.f32.mrf.mxu0
  %v1418 = vpop.f32.mrf.mxu0
  %v1419 = vadd.f32 0.0, %v1418
  %v1420 = vpop.f32.mrf.mxu0
  %1421 = vmatprep.mubr.bf16.mxu0 0
  %1422 = vmatmul.mubr.bf16.gmra.mxu0 %v961
  %v1423 = vpop.f32.mrf.mxu0
  %v1424 = vadd.f32 0.0, %v1423
  %v1425 = vpop.f32.mrf.mxu0
  %v1426 = vpop.f32.mrf.mxu0
  %v1427 = vadd.f32 0.0, %v1426
  %v1428 = vpop.f32.mrf.mxu0
  %1429 = vmatprep.mubr.bf16.mxu0 0
  %1430 = vmatmul.mubr.bf16.gmra.mxu0 %v964
  %v1431 = vpop.f32.mrf.mxu0
  %v1432 = vadd.f32 0.0, %v1431
  %v1433 = vpop.f32.mrf.mxu0
  %v1434 = vpop.f32.mrf.mxu0
  %v1435 = vadd.f32 0.0, %v1434
  %v1436 = vpop.f32.mrf.mxu0
  %1437 = vmatprep.mubr.bf16.mxu0 0
  %1438 = vmatmul.mubr.bf16.gmra.mxu0 %v967
  %v1439 = vpop.f32.mrf.mxu0
  %v1440 = vadd.f32 0.0, %v1439
  %v1441 = vpop.f32.mrf.mxu0
  %v1442 = vpop.f32.mrf.mxu0
  %v1443 = vadd.f32 0.0, %v1442
  %v1444 = vpop.f32.mrf.mxu0
  %1445 = vmatprep.mubr.bf16.mxu0 0
  %1446 = vmatmul.mubr.bf16.gmra.mxu0 %v970
  %v1447 = vpop.f32.mrf.mxu0
  %v1448 = vadd.f32 0.0, %v1447
  %v1449 = vpop.f32.mrf.mxu0
  %v1450 = vpop.f32.mrf.mxu0
  %v1451 = vadd.f32 0.0, %v1450
  %v1452 = vpop.f32.mrf.mxu0
  %1453 = vmatprep.mubr.bf16.mxu0 0
  %1454 = vmatmul.mubr.bf16.gmra.mxu0 %v973
  %v1455 = vpop.f32.mrf.mxu0
  %v1456 = vadd.f32 0.0, %v1455
  %v1457 = vpop.f32.mrf.mxu0
  %v1458 = vpop.f32.mrf.mxu0
  %v1459 = vadd.f32 0.0, %v1458
  %v1460 = vpop.f32.mrf.mxu0
  %1461 = vmatprep.mubr.bf16.mxu0 0
  %1462 = vmatmul.mubr.bf16.gmra.mxu0 %v976
  %v1463 = vpop.f32.mrf.mxu0
  %v1464 = vadd.f32 0.0, %v1463
  %v1465 = vpop.f32.mrf.mxu0
  %v1466 = vpop.f32.mrf.mxu0
  %v1467 = vadd.f32 0.0, %v1466
  %v1468 = vpop.f32.mrf.mxu0
  %1469 = vmatprep.mubr.bf16.mxu0 0
  %1470 = vmatmul.mubr.bf16.gmra.mxu0 %v979
  %v1471 = vpop.f32.mrf.mxu0
  %v1472 = vadd.f32 0.0, %v1471
  %v1473 = vpop.f32.mrf.mxu0
  %v1474 = vpop.f32.mrf.mxu0
  %v1475 = vadd.f32 0.0, %v1474
  %v1476 = vpop.f32.mrf.mxu0
  %1477 = vmatprep.mubr.bf16.mxu0 0
  %1478 = vmatmul.mubr.bf16.gmra.mxu0 %v982
  %v1479 = vpop.f32.mrf.mxu0
  %v1480 = vadd.f32 0.0, %v1479
  %v1481 = vpop.f32.mrf.mxu0
  %v1482 = vpop.f32.mrf.mxu0
  %v1483 = vadd.f32 0.0, %v1482
  %v1484 = vpop.f32.mrf.mxu0
  %1485 = vmatprep.mubr.bf16.mxu0 0
  %1486 = vmatmul.mubr.bf16.gmra.mxu0 %v985
  %v1487 = vpop.f32.mrf.mxu0
  %v1488 = vadd.f32 0.0, %v1487
  %v1489 = vpop.f32.mrf.mxu0
  %v1490 = vpop.f32.mrf.mxu0
  %v1491 = vadd.f32 0.0, %v1490
  %v1492 = vpop.f32.mrf.mxu0
  %1493 = vmatprep.mubr.bf16.mxu0 0
  %1494 = vmatmul.mubr.bf16.gmra.mxu0 %v988
  %v1495 = vpop.f32.mrf.mxu0
  %v1496 = vadd.f32 0.0, %v1495
  %v1497 = vpop.f32.mrf.mxu0
  %v1498 = vpop.f32.mrf.mxu0
  %v1499 = vadd.f32 0.0, %v1498
  %v1500 = vpop.f32.mrf.mxu0
  %1501 = vmatprep.mubr.bf16.mxu0 0
  %1502 = vmatmul.mubr.bf16.gmra.mxu0 %v991
  %v1503 = vpop.f32.mrf.mxu0
  %v1504 = vadd.f32 0.0, %v1503
  %v1505 = vpop.f32.mrf.mxu0
  %v1506 = vpop.f32.mrf.mxu0
  %v1507 = vadd.f32 0.0, %v1506
  %v1508 = vpop.f32.mrf.mxu0
  %1509 = vmatprep.mubr.bf16.mxu0 0
  %1510 = vmatmul.mubr.bf16.gmra.mxu0 %v994
  %v1511 = vpop.f32.mrf.mxu0
  %v1512 = vadd.f32 0.0, %v1511
  %v1513 = vpop.f32.mrf.mxu0
  %v1514 = vpop.f32.mrf.mxu0
  %v1515 = vadd.f32 0.0, %v1514
  %v1516 = vpop.f32.mrf.mxu0
  %1517 = vmatprep.mubr.bf16.mxu0 0
  %1518 = vmatmul.mubr.bf16.gmra.mxu0 %v997
  %v1519 = vpop.f32.mrf.mxu0
  %v1520 = vadd.f32 0.0, %v1519
  %v1521 = vpop.f32.mrf.mxu0
  %v1522 = vpop.f32.mrf.mxu0
  %v1523 = vadd.f32 0.0, %v1522
  %v1524 = vpop.f32.mrf.mxu0
  %1525 = vmatprep.mubr.bf16.mxu0 0
  %1526 = vmatmul.mubr.bf16.gmra.mxu0 %v1000
  %v1527 = vpop.f32.mrf.mxu0
  %v1528 = vadd.f32 0.0, %v1527
  %v1529 = vpop.f32.mrf.mxu0
  %v1530 = vpop.f32.mrf.mxu0
  %v1531 = vadd.f32 0.0, %v1530
  %v1532 = vpop.f32.mrf.mxu0
  %1533 = vmatprep.mubr.bf16.mxu0 0
  %1534 = vmatmul.mubr.bf16.gmra.mxu0 %v1003
  %v1535 = vpop.f32.mrf.mxu0
  %v1536 = vadd.f32 0.0, %v1535
  %v1537 = vpop.f32.mrf.mxu0
  %v1538 = vpop.f32.mrf.mxu0
  %v1539 = vadd.f32 0.0, %v1538
  %v1540 = vpop.f32.mrf.mxu0
  %1541 = vmatprep.mubr.bf16.mxu0 0
  %1542 = vmatmul.mubr.bf16.gmra.mxu0 %v1006
  %v1543 = vpop.f32.mrf.mxu0
  %v1544 = vadd.f32 0.0, %v1543
  %v1545 = vpop.f32.mrf.mxu0
  %v1546 = vpop.f32.mrf.mxu0
  %v1547 = vadd.f32 0.0, %v1546
  %v1548 = vpop.f32.mrf.mxu0
  %1549 = vmatprep.mubr.bf16.mxu0 0
  %1550 = vmatmul.mubr.bf16.gmra.mxu0 %v1009
  %v1551 = vpop.f32.mrf.mxu0
  %v1552 = vadd.f32 0.0, %v1551
  %v1553 = vpop.f32.mrf.mxu0
  %v1554 = vpop.f32.mrf.mxu0
  %v1555 = vadd.f32 0.0, %v1554
  %v1556 = vpop.f32.mrf.mxu0
  %1557 = vmatprep.mubr.bf16.mxu0 0
  %1558 = vmatmul.mubr.bf16.gmra.mxu0 %v1012
  %v1559 = vpop.f32.mrf.mxu0
  %v1560 = vadd.f32 0.0, %v1559
  %v1561 = vpop.f32.mrf.mxu0
  %v1562 = vpop.f32.mrf.mxu0
  %v1563 = vadd.f32 0.0, %v1562
  %v1564 = vpop.f32.mrf.mxu0
  %1565 = vmatprep.mubr.bf16.mxu0 0
  %1566 = vmatmul.mubr.bf16.gmra.mxu0 %v1015
  %v1567 = vpop.f32.mrf.mxu0
  %v1568 = vadd.f32 0.0, %v1567
  %v1569 = vpop.f32.mrf.mxu0
  %v1570 = vpop.f32.mrf.mxu0
  %v1571 = vadd.f32 0.0, %v1570
  %v1572 = vpop.f32.mrf.mxu0
  %1573 = vmatprep.mubr.bf16.mxu0 0
  %1574 = vmatmul.mubr.bf16.gmra.mxu0 %v1018
  %v1575 = vpop.f32.mrf.mxu0
  %v1576 = vadd.f32 0.0, %v1575
  %v1577 = vpop.f32.mrf.mxu0
  %v1578 = vpop.f32.mrf.mxu0
  %v1579 = vadd.f32 0.0, %v1578
  %v1580 = vpop.f32.mrf.mxu0
  %1581 = vmatprep.mubr.bf16.mxu0 0
  %1582 = vmatmul.mubr.bf16.gmra.mxu0 %v1021
  %v1583 = vpop.f32.mrf.mxu0
  %v1584 = vadd.f32 0.0, %v1583
  %v1585 = vpop.f32.mrf.mxu0
  %v1586 = vpop.f32.mrf.mxu0
  %v1587 = vadd.f32 0.0, %v1586
  %v1588 = vpop.f32.mrf.mxu0
  %1589 = vmatprep.mubr.bf16.mxu0 0
  %1590 = vmatmul.mubr.bf16.gmra.mxu0 %v1024
  %v1591 = vpop.f32.mrf.mxu0
  %v1592 = vadd.f32 0.0, %v1591
  %v1593 = vpop.f32.mrf.mxu0
  %v1594 = vpop.f32.mrf.mxu0
  %v1595 = vadd.f32 0.0, %v1594
  %v1596 = vpop.f32.mrf.mxu0
  %1597 = vmatprep.mubr.bf16.mxu0 0
  %1598 = vmatmul.mubr.bf16.gmra.mxu0 %v1027
  %v1599 = vpop.f32.mrf.mxu0
  %v1600 = vadd.f32 0.0, %v1599
  %v1601 = vpop.f32.mrf.mxu0
  %v1602 = vpop.f32.mrf.mxu0
  %v1603 = vadd.f32 0.0, %v1602
  %v1604 = vpop.f32.mrf.mxu0
  %1605 = vmatprep.mubr.bf16.mxu0 0
  %1606 = vmatmul.mubr.bf16.gmra.mxu0 %v1030
  %v1607 = vpop.f32.mrf.mxu0
  %v1608 = vadd.f32 0.0, %v1607
  %v1609 = vpop.f32.mrf.mxu0
  %v1610 = vpop.f32.mrf.mxu0
  %v1611 = vadd.f32 0.0, %v1610
  %v1612 = vpop.f32.mrf.mxu0
  %1613 = vmatprep.mubr.bf16.mxu0 0
  %1614 = vmatmul.mubr.bf16.gmra.mxu0 %v1033
  %v1615 = vpop.f32.mrf.mxu0
  %v1616 = vadd.f32 0.0, %v1615
  %v1617 = vpop.f32.mrf.mxu0
  %v1618 = vpop.f32.mrf.mxu0
  %v1619 = vadd.f32 0.0, %v1618
  %v1620 = vpop.f32.mrf.mxu0
  %1621 = vmatprep.mubr.bf16.mxu0 0
  %1622 = vmatmul.mubr.bf16.gmra.mxu0 %v1036
  %v1623 = vpop.f32.mrf.mxu0
  %v1624 = vadd.f32 0.0, %v1623
  %v1625 = vpop.f32.mrf.mxu0
  %v1626 = vpop.f32.mrf.mxu0
  %v1627 = vadd.f32 0.0, %v1626
  %v1628 = vpop.f32.mrf.mxu0
  %1629 = vmatprep.mubr.bf16.mxu0 0
  %1630 = vmatmul.mubr.bf16.gmra.mxu0 %v1039
  %v1631 = vpop.f32.mrf.mxu0
  %v1632 = vadd.f32 0.0, %v1631
  %v1633 = vpop.f32.mrf.mxu0
  %v1634 = vpop.f32.mrf.mxu0
  %v1635 = vadd.f32 0.0, %v1634
  %v1636 = vpop.f32.mrf.mxu0
  %1637 = vmatprep.mubr.bf16.mxu0 0
  %1638 = vmatmul.mubr.bf16.gmra.mxu0 %v1042
  %v1639 = vpop.f32.mrf.mxu0
  %v1640 = vadd.f32 0.0, %v1639
  %v1641 = vpop.f32.mrf.mxu0
  %v1642 = vpop.f32.mrf.mxu0
  %v1643 = vadd.f32 0.0, %v1642
  %v1644 = vpop.f32.mrf.mxu0
  %1645 = vmatprep.mubr.bf16.mxu0 0
  %1646 = vmatmul.mubr.bf16.gmra.mxu0 %v1045
  %v1647 = vpop.f32.mrf.mxu0
  %v1648 = vadd.f32 0.0, %v1647
  %v1649 = vpop.f32.mrf.mxu0
  %v1650 = vpop.f32.mrf.mxu0
  %v1651 = vadd.f32 0.0, %v1650
  %v1652 = vpop.f32.mrf.mxu0
  %1653 = vmatprep.mubr.bf16.mxu0 0
  %1654 = vmatmul.mubr.bf16.gmra.mxu0 %v1048
  %v1655 = vpop.f32.mrf.mxu0
  %v1656 = vadd.f32 0.0, %v1655
  %v1657 = vpop.f32.mrf.mxu0
  %v1658 = vpop.f32.mrf.mxu0
  %v1659 = vadd.f32 0.0, %v1658
  %v1660 = vpop.f32.mrf.mxu0
  %1661 = vmatprep.mubr.bf16.mxu0 0
  %1662 = vmatmul.mubr.bf16.gmra.mxu0 %v1051
  %v1663 = vpop.f32.mrf.mxu0
  %v1664 = vadd.f32 0.0, %v1663
  %v1665 = vpop.f32.mrf.mxu0
  %v1666 = vpop.f32.mrf.mxu0
  %v1667 = vadd.f32 0.0, %v1666
  %v1668 = vpop.f32.mrf.mxu0
  %1669 = vmatprep.mubr.bf16.mxu0 0
  %1670 = vmatmul.mubr.bf16.gmra.mxu0 %v1054
  %v1671 = vpop.f32.mrf.mxu0
  %v1672 = vadd.f32 0.0, %v1671
  %v1673 = vpop.f32.mrf.mxu0
  %v1674 = vpop.f32.mrf.mxu0
  %v1675 = vadd.f32 0.0, %v1674
  %v1676 = vpop.f32.mrf.mxu0
  %1677 = vmatprep.mubr.bf16.mxu0 0
  %1678 = vmatmul.mubr.bf16.gmra.mxu0 %v1057
  %v1679 = vpop.f32.mrf.mxu0
  %v1680 = vadd.f32 0.0, %v1679
  %v1681 = vpop.f32.mrf.mxu0
  %v1682 = vpop.f32.mrf.mxu0
  %v1683 = vadd.f32 0.0, %v1682
  %v1684 = vpop.f32.mrf.mxu0
  %1685 = vmatprep.mubr.bf16.mxu0 0
  %1686 = vmatmul.mubr.bf16.gmra.mxu0 %v1060
  %v1687 = vpop.f32.mrf.mxu0
  %v1688 = vadd.f32 0.0, %v1687
  %v1689 = vpop.f32.mrf.mxu0
  %v1690 = vpop.f32.mrf.mxu0
  %v1691 = vadd.f32 0.0, %v1690
  %v1692 = vpop.f32.mrf.mxu0
  %1693 = vmatprep.mubr.bf16.mxu0 0
  %1694 = vmatmul.mubr.bf16.gmra.mxu0 %v1063
  %v1695 = vpop.f32.mrf.mxu0
  %v1696 = vadd.f32 0.0, %v1695
  %v1697 = vpop.f32.mrf.mxu0
  %v1698 = vpop.f32.mrf.mxu0
  %v1699 = vadd.f32 0.0, %v1698
  %v1700 = vpop.f32.mrf.mxu0
  %1701 = vmatprep.mubr.bf16.mxu0 0
  %1702 = vmatmul.mubr.bf16.gmra.mxu0 %v1066
  %v1703 = vpop.f32.mrf.mxu0
  %v1704 = vadd.f32 0.0, %v1703
  %v1705 = vpop.f32.mrf.mxu0
  %v1706 = vpop.f32.mrf.mxu0
  %v1707 = vadd.f32 0.0, %v1706
  %v1708 = vpop.f32.mrf.mxu0
  %1709 = vmatprep.mubr.bf16.mxu0 0
  %1710 = vmatmul.mubr.bf16.gmra.mxu0 %v1069
  %v1711 = vpop.f32.mrf.mxu0
  %v1712 = vadd.f32 0.0, %v1711
  %v1713 = vpop.f32.mrf.mxu0
  %v1714 = vpop.f32.mrf.mxu0
  %v1715 = vadd.f32 0.0, %v1714
  %v1716 = vpop.f32.mrf.mxu0
  %1717 = vmatprep.mubr.bf16.mxu0 0
  %1718 = vmatmul.mubr.bf16.gmra.mxu0 %v1072
  %v1719 = vpop.f32.mrf.mxu0
  %v1720 = vadd.f32 0.0, %v1719
  %v1721 = vpop.f32.mrf.mxu0
  %v1722 = vpop.f32.mrf.mxu0
  %v1723 = vadd.f32 0.0, %v1722
  %v1724 = vpop.f32.mrf.mxu0
  %1725 = vmatprep.mubr.bf16.mxu0 0
  %1726 = vmatmul.mubr.bf16.gmra.mxu0 %v1075
  %v1727 = vpop.f32.mrf.mxu0
  %v1728 = vadd.f32 0.0, %v1727
  %v1729 = vpop.f32.mrf.mxu0
  %v1730 = vpop.f32.mrf.mxu0
  %v1731 = vadd.f32 0.0, %v1730
  %v1732 = vpop.f32.mrf.mxu0
  %1733 = vmatprep.mubr.bf16.mxu0 0
  %1734 = vmatmul.mubr.bf16.gmra.mxu0 %v1078
  %v1735 = vpop.f32.mrf.mxu0
  %v1736 = vadd.f32 0.0, %v1735
  %v1737 = vpop.f32.mrf.mxu0
  %v1738 = vpop.f32.mrf.mxu0
  %v1739 = vadd.f32 0.0, %v1738
  %v1740 = vpop.f32.mrf.mxu0
  %1741 = vmatprep.mubr.bf16.mxu0 0
  %1742 = vmatmul.mubr.bf16.gmra.mxu0 %v1081
  %v1743 = vpop.f32.mrf.mxu0
  %v1744 = vadd.f32 0.0, %v1743
  %v1745 = vpop.f32.mrf.mxu0
  %v1746 = vpop.f32.mrf.mxu0
  %v1747 = vadd.f32 0.0, %v1746
  %v1748 = vpop.f32.mrf.mxu0
  %1749 = vmatprep.mubr.bf16.mxu0 0
  %1750 = vmatmul.mubr.bf16.gmra.mxu0 %v1084
  %v1751 = vpop.f32.mrf.mxu0
  %v1752 = vadd.f32 0.0, %v1751
  %v1753 = vpop.f32.mrf.mxu0
  %v1754 = vpop.f32.mrf.mxu0
  %v1755 = vadd.f32 0.0, %v1754
  %v1756 = vpop.f32.mrf.mxu0
  %1757 = vmatprep.mubr.bf16.mxu0 0
  %1758 = vmatmul.mubr.bf16.gmra.mxu0 %v1087
  %v1759 = vpop.f32.mrf.mxu0
  %v1760 = vadd.f32 0.0, %v1759
  %v1761 = vpop.f32.mrf.mxu0
  %v1762 = vpop.f32.mrf.mxu0
  %v1763 = vadd.f32 0.0, %v1762
  %v1764 = vpop.f32.mrf.mxu0
  %1765 = vmatprep.mubr.bf16.mxu0 0
  %1766 = vmatmul.mubr.bf16.gmra.mxu0 %v1090
  %v1767 = vpop.f32.mrf.mxu0
  %v1768 = vadd.f32 0.0, %v1767
  %v1769 = vpop.f32.mrf.mxu0
  %v1770 = vpop.f32.mrf.mxu0
  %v1771 = vadd.f32 0.0, %v1770
  %v1772 = vpop.f32.mrf.mxu0
  %1773 = vmatprep.mubr.bf16.mxu0 0
  %1774 = vmatmul.mubr.bf16.gmra.mxu0 %v1093
  %v1775 = vpop.f32.mrf.mxu0
  %v1776 = vadd.f32 0.0, %v1775
  %v1777 = vpop.f32.mrf.mxu0
  %v1778 = vpop.f32.mrf.mxu0
  %v1779 = vadd.f32 0.0, %v1778
  %v1780 = vpop.f32.mrf.mxu0
  %1781 = vmatprep.mubr.bf16.mxu0 0
  %1782 = vmatmul.mubr.bf16.gmra.mxu0 %v1096
  %v1783 = vpop.f32.mrf.mxu0
  %v1784 = vadd.f32 0.0, %v1783
  %v1785 = vpop.f32.mrf.mxu0
  %v1786 = vpop.f32.mrf.mxu0
  %v1787 = vadd.f32 0.0, %v1786
  %v1788 = vpop.f32.mrf.mxu0
  %1789 = vmatprep.mubr.bf16.mxu0 0
  %1790 = vmatmul.mubr.bf16.gmra.mxu0 %v1099
  %v1791 = vpop.f32.mrf.mxu0
  %v1792 = vadd.f32 0.0, %v1791
  %v1793 = vpop.f32.mrf.mxu0
  %v1794 = vpop.f32.mrf.mxu0
  %v1795 = vadd.f32 0.0, %v1794
  %v1796 = vpop.f32.mrf.mxu0
  %1797 = vmatprep.mubr.bf16.mxu0 0
  %1798 = vmatmul.mubr.bf16.gmra.mxu0 %v1102
  %v1799 = vpop.f32.mrf.mxu0
  %v1800 = vadd.f32 0.0, %v1799
  %v1801 = vpop.f32.mrf.mxu0
  %v1802 = vpop.f32.mrf.mxu0
  %v1803 = vadd.f32 0.0, %v1802
  %v1804 = vpop.f32.mrf.mxu0
  %1805 = vmatprep.mubr.bf16.mxu0 0
  %1806 = vmatmul.mubr.bf16.gmra.mxu0 %v1105
  %v1807 = vpop.f32.mrf.mxu0
  %v1808 = vadd.f32 0.0, %v1807
  %v1809 = vpop.f32.mrf.mxu0
  %v1810 = vpop.f32.mrf.mxu0
  %v1811 = vadd.f32 0.0, %v1810
  %v1812 = vpop.f32.mrf.mxu0
  %1813 = vmatprep.mubr.bf16.mxu0 0
  %1814 = vmatmul.mubr.bf16.gmra.mxu0 %v1108
  %v1815 = vpop.f32.mrf.mxu0
  %v1816 = vadd.f32 0.0, %v1815
  %v1817 = vpop.f32.mrf.mxu0
  %v1818 = vpop.f32.mrf.mxu0
  %v1819 = vadd.f32 0.0, %v1818
  %v1820 = vpop.f32.mrf.mxu0
  %1821 = vmatprep.mubr.bf16.mxu0 0
  %1822 = vmatmul.mubr.bf16.gmra.mxu0 %v1111
  %v1823 = vpop.f32.mrf.mxu0
  %v1824 = vadd.f32 0.0, %v1823
  %v1825 = vpop.f32.mrf.mxu0
  %v1826 = vpop.f32.mrf.mxu0
  %v1827 = vadd.f32 0.0, %v1826
  %v1828 = vpop.f32.mrf.mxu0
  %1829 = vmatprep.mubr.bf16.mxu0 0
  %1830 = vmatmul.mubr.bf16.gmra.mxu0 %v1114
  %v1831 = vpop.f32.mrf.mxu0
  %v1832 = vadd.f32 0.0, %v1831
  %v1833 = vpop.f32.mrf.mxu0
  %v1834 = vpop.f32.mrf.mxu0
  %v1835 = vadd.f32 0.0, %v1834
  %v1836 = vpop.f32.mrf.mxu0
  %1837 = vmatprep.mubr.bf16.mxu0 0
  %1838 = vmatmul.mubr.bf16.gmra.mxu0 %v1117
  %v1839 = vpop.f32.mrf.mxu0
  %v1840 = vadd.f32 0.0, %v1839
  %v1841 = vpop.f32.mrf.mxu0
  %v1842 = vpop.f32.mrf.mxu0
  %v1843 = vadd.f32 0.0, %v1842
  %v1844 = vpop.f32.mrf.mxu0
  %1845 = vmatprep.mubr.bf16.mxu0 0
  %1846 = vmatmul.mubr.bf16.gmra.mxu0 %v1120
  %v1847 = vpop.f32.mrf.mxu0
  %v1848 = vadd.f32 0.0, %v1847
  %v1849 = vpop.f32.mrf.mxu0
  %v1850 = vpop.f32.mrf.mxu0
  %v1851 = vadd.f32 0.0, %v1850
  %v1852 = vpop.f32.mrf.mxu0
  %1853 = vmatprep.mubr.bf16.mxu0 0
  %1854 = vmatmul.mubr.bf16.gmra.mxu0 %v1123
  %v1855 = vpop.f32.mrf.mxu0
  %v1856 = vadd.f32 0.0, %v1855
  %v1857 = vpop.f32.mrf.mxu0
  %v1858 = vpop.f32.mrf.mxu0
  %v1859 = vadd.f32 0.0, %v1858
  %v1860 = vpop.f32.mrf.mxu0
  %1861 = vmatprep.mubr.bf16.mxu0 0
  %1862 = vmatmul.mubr.bf16.gmra.mxu0 %v1126
  %v1863 = vpop.f32.mrf.mxu0
  %v1864 = vadd.f32 0.0, %v1863
  %v1865 = vpop.f32.mrf.mxu0
  %v1866 = vpop.f32.mrf.mxu0
  %v1867 = vadd.f32 0.0, %v1866
  %v1868 = vpop.f32.mrf.mxu0
  %1869 = vmatprep.mubr.bf16.mxu0 0
  %1870 = vmatmul.mubr.bf16.gmra.mxu0 %v1129
  %v1871 = vpop.f32.mrf.mxu0
  %v1872 = vadd.f32 0.0, %v1871
  %v1873 = vpop.f32.mrf.mxu0
  %v1874 = vpop.f32.mrf.mxu0
  %v1875 = vadd.f32 0.0, %v1874
  %v1876 = vpop.f32.mrf.mxu0
  %1877 = vmatprep.mubr.bf16.mxu0 0
  %1878 = vmatmul.mubr.bf16.gmra.mxu0 %v1132
  %v1879 = vpop.f32.mrf.mxu0
  %v1880 = vadd.f32 0.0, %v1879
  %v1881 = vpop.f32.mrf.mxu0
  %v1882 = vpop.f32.mrf.mxu0
  %v1883 = vadd.f32 0.0, %v1882
  %v1884 = vpop.f32.mrf.mxu0
  %1885 = vmatprep.mubr.bf16.mxu0 0
  %1886 = vmatmul.mubr.bf16.gmra.mxu0 %v1135
  %v1887 = vpop.f32.mrf.mxu0
  %v1888 = vadd.f32 0.0, %v1887
  %v1889 = vpop.f32.mrf.mxu0
  %v1890 = vpop.f32.mrf.mxu0
  %v1891 = vadd.f32 0.0, %v1890
  %v1892 = vpop.f32.mrf.mxu0
  %1893 = vmatprep.mubr.bf16.mxu0 0
  %1894 = vmatmul.mubr.bf16.gmra.mxu0 %v1138
  %v1895 = vpop.f32.mrf.mxu0
  %v1896 = vadd.f32 0.0, %v1895
  %v1897 = vpop.f32.mrf.mxu0
  %v1898 = vpop.f32.mrf.mxu0
  %v1899 = vadd.f32 0.0, %v1898
  %v1900 = vpop.f32.mrf.mxu0
  %1901 = vmatprep.mubr.bf16.mxu0 0
  %1902 = vmatmul.mubr.bf16.gmra.mxu0 %v1141
  %v1903 = vpop.f32.mrf.mxu0
  %v1904 = vadd.f32 0.0, %v1903
  %v1905 = vpop.f32.mrf.mxu0
  %v1906 = vpop.f32.mrf.mxu0
  %v1907 = vadd.f32 0.0, %v1906
  %v1908 = vpop.f32.mrf.mxu0
  %1909 = vmatprep.mubr.bf16.mxu0 0
  %1910 = vmatmul.mubr.bf16.gmra.mxu0 %v1144
  %v1911 = vpop.f32.mrf.mxu0
  %v1912 = vadd.f32 0.0, %v1911
  %v1913 = vpop.f32.mrf.mxu0
  %v1914 = vpop.f32.mrf.mxu0
  %v1915 = vadd.f32 0.0, %v1914
  %v1916 = vpop.f32.mrf.mxu0
  %1917 = vmatprep.mubr.bf16.mxu0 0
  %1918 = vmatmul.mubr.bf16.gmra.mxu0 %v1147
  %v1919 = vpop.f32.mrf.mxu0
  %v1920 = vadd.f32 0.0, %v1919
  %v1921 = vpop.f32.mrf.mxu0
  %v1922 = vpop.f32.mrf.mxu0
  %v1923 = vadd.f32 0.0, %v1922
  %v1924 = vpop.f32.mrf.mxu0
  %1925 = vmatprep.mubr.bf16.mxu0 0
  %1926 = vmatmul.mubr.bf16.gmra.mxu0 %v1150
  %v1927 = vpop.f32.mrf.mxu0
  %v1928 = vadd.f32 0.0, %v1927
  %v1929 = vpop.f32.mrf.mxu0
  %v1930 = vpop.f32.mrf.mxu0
  %v1931 = vadd.f32 0.0, %v1930
  %v1932 = vpop.f32.mrf.mxu0
  %1933 = vmatprep.mubr.bf16.mxu0 0
  %1934 = vmatmul.mubr.bf16.gmra.mxu0 %v1153
  %v1935 = vpop.f32.mrf.mxu0
  %v1936 = vadd.f32 0.0, %v1935
  %v1937 = vpop.f32.mrf.mxu0
  %v1938 = vpop.f32.mrf.mxu0
  %v1939 = vadd.f32 0.0, %v1938
  %v1940 = vpop.f32.mrf.mxu0
  %1941 = vmatprep.mubr.bf16.mxu0 0
  %1942 = vmatmul.mubr.bf16.gmra.mxu0 %v1156
  %v1943 = vpop.f32.mrf.mxu0
  %v1944 = vadd.f32 0.0, %v1943
  %v1945 = vpop.f32.mrf.mxu0
  %v1946 = vpop.f32.mrf.mxu0
  %v1947 = vadd.f32 0.0, %v1946
  %v1948 = vpop.f32.mrf.mxu0
  %1949 = vmatprep.mubr.bf16.mxu0 0
  %1950 = vmatmul.mubr.bf16.gmra.mxu0 %v1159
  %v1951 = vpop.f32.mrf.mxu0
  %v1952 = vadd.f32 0.0, %v1951
  %v1953 = vpop.f32.mrf.mxu0
  %v1954 = vpop.f32.mrf.mxu0
  %v1955 = vadd.f32 0.0, %v1954
  %v1956 = vpop.f32.mrf.mxu0
  %1957 = vmatprep.mubr.bf16.mxu0 0
  %1958 = vmatmul.mubr.bf16.gmra.mxu0 %v1162
  %v1959 = vpop.f32.mrf.mxu0
  %v1960 = vadd.f32 0.0, %v1959
  %v1961 = vpop.f32.mrf.mxu0
  %v1962 = vpop.f32.mrf.mxu0
  %v1963 = vadd.f32 0.0, %v1962
  %v1964 = vpop.f32.mrf.mxu0
  %1965 = vmatprep.mubr.bf16.mxu0 0
  %1966 = vmatmul.mubr.bf16.gmra.mxu0 %v1165
  %v1967 = vpop.f32.mrf.mxu0
  %v1968 = vadd.f32 0.0, %v1967
  %v1969 = vpop.f32.mrf.mxu0
  %v1970 = vpop.f32.mrf.mxu0
  %v1971 = vadd.f32 0.0, %v1970
  %v1972 = vpop.f32.mrf.mxu0
  %1973 = vmatprep.mubr.bf16.mxu0 0
  %1974 = vmatmul.mubr.bf16.gmra.mxu0 %v1168
  %v1975 = vpop.f32.mrf.mxu0
  %v1976 = vadd.f32 0.0, %v1975
  %v1977 = vpop.f32.mrf.mxu0
  %v1978 = vpop.f32.mrf.mxu0
  %v1979 = vadd.f32 0.0, %v1978
  %v1980 = vpop.f32.mrf.mxu0
  %1981 = vmatprep.mubr.bf16.mxu0 0
  %1982 = vmatmul.mubr.bf16.gmra.mxu0 %v1171
  %v1983 = vpop.f32.mrf.mxu0
  %v1984 = vadd.f32 0.0, %v1983
  %v1985 = vpop.f32.mrf.mxu0
  %v1986 = vpop.f32.mrf.mxu0
  %v1987 = vadd.f32 0.0, %v1986
  %v1988 = vpop.f32.mrf.mxu0
  %1989 = vmatprep.mubr.bf16.mxu0 0
  %1990 = vmatmul.mubr.bf16.gmra.mxu0 %v1174
  %v1991 = vpop.f32.mrf.mxu0
  %v1992 = vadd.f32 0.0, %v1991
  %v1993 = vpop.f32.mrf.mxu0
  %v1994 = vpop.f32.mrf.mxu0
  %v1995 = vadd.f32 0.0, %v1994
  %v1996 = vpop.f32.mrf.mxu0
  %1997 = vmatprep.mubr.bf16.mxu0 0
  %1998 = vmatmul.mubr.bf16.gmra.mxu0 %v1177
  %v1999 = vpop.f32.mrf.mxu0
  %v2000 = vadd.f32 0.0, %v1999
  %v2001 = vpop.f32.mrf.mxu0
  %v2002 = vpop.f32.mrf.mxu0
  %v2003 = vadd.f32 0.0, %v2002
  %v2004 = vpop.f32.mrf.mxu0
  %2005 = vmatprep.mubr.bf16.mxu0 0
  %2006 = vmatmul.mubr.bf16.gmra.mxu0 %v1180
  %v2007 = vpop.f32.mrf.mxu0
  %v2008 = vadd.f32 0.0, %v2007
  %v2009 = vpop.f32.mrf.mxu0
  %v2010 = vpop.f32.mrf.mxu0
  %v2011 = vadd.f32 0.0, %v2010
  %v2012 = vpop.f32.mrf.mxu0
  %2013 = vmatprep.mubr.bf16.mxu0 0
  %2014 = vmatmul.mubr.bf16.gmra.mxu0 %v1183
  %v2015 = vpop.f32.mrf.mxu0
  %v2016 = vadd.f32 0.0, %v2015
  %v2017 = vpop.f32.mrf.mxu0
  %v2018 = vpop.f32.mrf.mxu0
  %v2019 = vadd.f32 0.0, %v2018
  %v2020 = vpop.f32.mrf.mxu0
  %2021 = vmatprep.mubr.bf16.mxu0 0
  %2022 = vmatmul.mubr.bf16.gmra.mxu0 %v1186
  %v2023 = vpop.f32.mrf.mxu0
  %v2024 = vadd.f32 0.0, %v2023
  %v2025 = vpop.f32.mrf.mxu0
  %v2026 = vpop.f32.mrf.mxu0
  %v2027 = vadd.f32 0.0, %v2026
  %v2028 = vpop.f32.mrf.mxu0
  %2029 = vmatprep.mubr.bf16.mxu0 0
  %2030 = vmatmul.mubr.bf16.gmra.mxu0 %v1189
  %v2031 = vpop.f32.mrf.mxu0
  %v2032 = vadd.f32 0.0, %v2031
  %v2033 = vpop.f32.mrf.mxu0
  %v2034 = vpop.f32.mrf.mxu0
  %v2035 = vadd.f32 0.0, %v2034
  %v2036 = vpop.f32.mrf.mxu0
  %2037 = vmatprep.mubr.bf16.mxu0 0
  %2038 = vmatmul.mubr.bf16.gmra.mxu0 %v1192
  %v2039 = vpop.f32.mrf.mxu0
  %v2040 = vadd.f32 0.0, %v2039
  %v2041 = vpop.f32.mrf.mxu0
  %v2042 = vpop.f32.mrf.mxu0
  %v2043 = vadd.f32 0.0, %v2042
  %v2044 = vpop.f32.mrf.mxu0
  %2045 = vmatprep.mubr.bf16.mxu0 0
  %2046 = vmatmul.mubr.bf16.gmra.mxu0 %v1195
  %v2047 = vpop.f32.mrf.mxu0
  %v2048 = vadd.f32 0.0, %v2047
  %v2049 = vpop.f32.mrf.mxu0
  %v2050 = vpop.f32.mrf.mxu0
  %v2051 = vadd.f32 0.0, %v2050
  %v2052 = vpop.f32.mrf.mxu0
  %2053 = vmatprep.mubr.bf16.mxu0 0
  %2054 = vmatmul.mubr.bf16.gmra.mxu0 %v1198
  %v2055 = vpop.f32.mrf.mxu0
  %v2056 = vadd.f32 0.0, %v2055
  %v2057 = vpop.f32.mrf.mxu0
  %v2058 = vpop.f32.mrf.mxu0
  %v2059 = vadd.f32 0.0, %v2058
  %v2060 = vpop.f32.mrf.mxu0
  %2061 = vmatprep.mubr.bf16.mxu0 0
  %2062 = vmatmul.mubr.bf16.gmra.mxu0 %v1201
  %v2063 = vpop.f32.mrf.mxu0
  %v2064 = vadd.f32 0.0, %v2063
  %v2065 = vpop.f32.mrf.mxu0
  %v2066 = vpop.f32.mrf.mxu0
  %v2067 = vadd.f32 0.0, %v2066
  %v2068 = vpop.f32.mrf.mxu0
  %2069 = vmatprep.mubr.bf16.mxu0 0
  %2070 = vmatmul.mubr.bf16.gmra.mxu0 %v1204
  %v2071 = vpop.f32.mrf.mxu0
  %v2072 = vadd.f32 0.0, %v2071
  %v2073 = vpop.f32.mrf.mxu0
  %v2074 = vpop.f32.mrf.mxu0
  %v2075 = vadd.f32 0.0, %v2074
  %v2076 = vpop.f32.mrf.mxu0
  %2077 = vmatprep.mubr.bf16.mxu0 0
  %2078 = vmatmul.mubr.bf16.gmra.mxu0 %v1207
  %v2079 = vpop.f32.mrf.mxu0
  %v2080 = vadd.f32 0.0, %v2079
  %v2081 = vpop.f32.mrf.mxu0
  %v2082 = vpop.f32.mrf.mxu0
  %v2083 = vadd.f32 0.0, %v2082
  %v2084 = vpop.f32.mrf.mxu0
  %2085 = vmatprep.mubr.bf16.mxu0 0
  %2086 = vmatmul.mubr.bf16.gmra.mxu0 %v1210
  %v2087 = vpop.f32.mrf.mxu0
  %v2088 = vadd.f32 0.0, %v2087
  %v2089 = vpop.f32.mrf.mxu0
  %v2090 = vpop.f32.mrf.mxu0
  %v2091 = vadd.f32 0.0, %v2090
  %v2092 = vpop.f32.mrf.mxu0
  %2093 = vmatprep.mubr.bf16.mxu0 0
  %2094 = vmatmul.mubr.bf16.gmra.mxu0 %v1213
  %v2095 = vpop.f32.mrf.mxu0
  %v2096 = vadd.f32 0.0, %v2095
  %v2097 = vpop.f32.mrf.mxu0
  %v2098 = vpop.f32.mrf.mxu0
  %v2099 = vadd.f32 0.0, %v2098
  %v2100 = vpop.f32.mrf.mxu0
  %2101 = vmatprep.mubr.bf16.mxu0 0
  %2102 = vmatmul.mubr.bf16.gmra.mxu0 %v1216
  %v2103 = vpop.f32.mrf.mxu0
  %v2104 = vadd.f32 0.0, %v2103
  %v2105 = vpop.f32.mrf.mxu0
  %v2106 = vpop.f32.mrf.mxu0
  %v2107 = vadd.f32 0.0, %v2106
  %v2108 = vpop.f32.mrf.mxu0
  %2109 = vmatprep.mubr.bf16.mxu0 0
  %2110 = vmatmul.mubr.bf16.gmra.mxu0 %v1219
  %v2111 = vpop.f32.mrf.mxu0
  %v2112 = vadd.f32 0.0, %v2111
  %v2113 = vpop.f32.mrf.mxu0
  %v2114 = vpop.f32.mrf.mxu0
  %v2115 = vadd.f32 0.0, %v2114
  %v2116 = vpop.f32.mrf.mxu0
  %2117 = vmatprep.mubr.bf16.mxu0 0
  %2118 = vmatmul.mubr.bf16.gmra.mxu0 %v1222
  %v2119 = vpop.f32.mrf.mxu0
  %v2120 = vadd.f32 0.0, %v2119
  %v2121 = vpop.f32.mrf.mxu0
  %v2122 = vpop.f32.mrf.mxu0
  %v2123 = vadd.f32 0.0, %v2122
  %v2124 = vpop.f32.mrf.mxu0
  %2125 = vmatprep.mubr.bf16.mxu0 0
  %2126 = vmatmul.mubr.bf16.gmra.mxu0 %v1225
  %v2127 = vpop.f32.mrf.mxu0
  %v2128 = vadd.f32 0.0, %v2127
  %v2129 = vpop.f32.mrf.mxu0
  %v2130 = vpop.f32.mrf.mxu0
  %v2131 = vadd.f32 0.0, %v2130
  %v2132 = vpop.f32.mrf.mxu0
  %2133 = vmatprep.mubr.bf16.mxu0 0
  %2134 = vmatmul.mubr.bf16.gmra.mxu0 %v1228
  %v2135 = vpop.f32.mrf.mxu0
  %v2136 = vadd.f32 0.0, %v2135
  %v2137 = vpop.f32.mrf.mxu0
  %v2138 = vpop.f32.mrf.mxu0
  %v2139 = vadd.f32 0.0, %v2138
  %v2140 = vpop.f32.mrf.mxu0
  %2141 = vmatprep.mubr.bf16.mxu0 0
  %2142 = vmatmul.mubr.bf16.gmra.mxu0 %v1231
  %v2143 = vpop.f32.mrf.mxu0
  %v2144 = vadd.f32 0.0, %v2143
  %v2145 = vpop.f32.mrf.mxu0
  %v2146 = vpop.f32.mrf.mxu0
  %v2147 = vadd.f32 0.0, %v2146
  %v2148 = vpop.f32.mrf.mxu0
  %2149 = vmatprep.mubr.bf16.mxu0 0
  %2150 = vmatmul.mubr.bf16.gmra.mxu0 %v1234
  %v2151 = vpop.f32.mrf.mxu0
  %v2152 = vadd.f32 0.0, %v2151
  %v2153 = vpop.f32.mrf.mxu0
  %v2154 = vpop.f32.mrf.mxu0
  %v2155 = vadd.f32 0.0, %v2154
  %v2156 = vpop.f32.mrf.mxu0
  %2157 = vmatprep.mubr.bf16.mxu0 0
  %2158 = vmatmul.mubr.bf16.gmra.mxu0 %v1237
  %v2159 = vpop.f32.mrf.mxu0
  %v2160 = vadd.f32 0.0, %v2159
  %v2161 = vpop.f32.mrf.mxu0
  %v2162 = vpop.f32.mrf.mxu0
  %v2163 = vadd.f32 0.0, %v2162
  %v2164 = vpop.f32.mrf.mxu0
  %2165 = vmatprep.mubr.bf16.mxu0 0
  %2166 = vmatmul.mubr.bf16.gmra.mxu0 %v1240
  %v2167 = vpop.f32.mrf.mxu0
  %v2168 = vadd.f32 0.0, %v2167
  %v2169 = vpop.f32.mrf.mxu0
  %v2170 = vpop.f32.mrf.mxu0
  %v2171 = vadd.f32 0.0, %v2170
  %v2172 = vpop.f32.mrf.mxu0
  %2173 = vmatprep.mubr.bf16.mxu0 0
  %2174 = vmatmul.mubr.bf16.gmra.mxu0 %v1243
  %v2175 = vpop.f32.mrf.mxu0
  %v2176 = vadd.f32 0.0, %v2175
  %v2177 = vpop.f32.mrf.mxu0
  %v2178 = vpop.f32.mrf.mxu0
  %v2179 = vadd.f32 0.0, %v2178
  %v2180 = vpop.f32.mrf.mxu0
  %2181 = vmatprep.mubr.bf16.mxu0 0
  %2182 = vmatmul.mubr.bf16.gmra.mxu0 %v1246
  %v2183 = vpop.f32.mrf.mxu0
  %v2184 = vadd.f32 0.0, %v2183
  %v2185 = vpop.f32.mrf.mxu0
  %v2186 = vpop.f32.mrf.mxu0
  %v2187 = vadd.f32 0.0, %v2186
  %v2188 = vpop.f32.mrf.mxu0
  %2189 = vmatprep.mubr.bf16.mxu0 0
  %2190 = vmatmul.mubr.bf16.gmra.mxu0 %v1249
  %v2191 = vpop.f32.mrf.mxu0
  %v2192 = vadd.f32 0.0, %v2191
  %v2193 = vpop.f32.mrf.mxu0
  %v2194 = vpop.f32.mrf.mxu0
  %v2195 = vadd.f32 0.0, %v2194
  %v2196 = vpop.f32.mrf.mxu0
  %2197 = vmatprep.mubr.bf16.mxu0 0
  %2198 = vmatmul.mubr.bf16.gmra.mxu0 %v1252
  %v2199 = vpop.f32.mrf.mxu0
  %v2200 = vadd.f32 0.0, %v2199
  %v2201 = vpop.f32.mrf.mxu0
  %v2202 = vpop.f32.mrf.mxu0
  %v2203 = vadd.f32 0.0, %v2202
  %v2204 = vpop.f32.mrf.mxu0
  %2205 = vmatprep.mubr.bf16.mxu0 0
  %2206 = vmatmul.mubr.bf16.gmra.mxu0 %v1255
  %v2207 = vpop.f32.mrf.mxu0
  %v2208 = vadd.f32 0.0, %v2207
  %v2209 = vpop.f32.mrf.mxu0
  %v2210 = vpop.f32.mrf.mxu0
  %v2211 = vadd.f32 0.0, %v2210
  %v2212 = vpop.f32.mrf.mxu0
  %2213 = vmatprep.mubr.bf16.mxu0 0
  %2214 = vmatmul.mubr.bf16.gmra.mxu0 %v1258
  %v2215 = vpop.f32.mrf.mxu0
  %v2216 = vadd.f32 0.0, %v2215
  %v2217 = vpop.f32.mrf.mxu0
  %v2218 = vpop.f32.mrf.mxu0
  %v2219 = vadd.f32 0.0, %v2218
  %v2220 = vpop.f32.mrf.mxu0
  %2221 = vmatprep.mubr.bf16.mxu0 0
  %2222 = vmatmul.mubr.bf16.gmra.mxu0 %v1261
  %v2223 = vpop.f32.mrf.mxu0
  %v2224 = vadd.f32 0.0, %v2223
  %v2225 = vpop.f32.mrf.mxu0
  %v2226 = vpop.f32.mrf.mxu0
  %v2227 = vadd.f32 0.0, %v2226
  %v2228 = vpop.f32.mrf.mxu0
  %2229 = vmatprep.mubr.bf16.mxu0 0
  %2230 = vmatmul.mubr.bf16.gmra.mxu0 %v1264
  %v2231 = vpop.f32.mrf.mxu0
  %v2232 = vadd.f32 0.0, %v2231
  %v2233 = vpop.f32.mrf.mxu0
  %v2234 = vpop.f32.mrf.mxu0
  %v2235 = vadd.f32 0.0, %v2234
  %v2236 = vpop.f32.mrf.mxu0
  %2237 = vmatprep.mubr.bf16.mxu0 0
  %2238 = vmatmul.mubr.bf16.gmra.mxu0 %v1267
  %v2239 = vpop.f32.mrf.mxu0
  %v2240 = vadd.f32 0.0, %v2239
  %v2241 = vpop.f32.mrf.mxu0
  %v2242 = vpop.f32.mrf.mxu0
  %v2243 = vadd.f32 0.0, %v2242
  %v2244 = vpop.f32.mrf.mxu0
  %2245 = vmatprep.mubr.bf16.mxu0 0
  %2246 = vmatmul.mubr.bf16.gmra.mxu0 %v1270
  %v2247 = vpop.f32.mrf.mxu0
  %v2248 = vadd.f32 0.0, %v2247
  %v2249 = vpop.f32.mrf.mxu0
  %v2250 = vpop.f32.mrf.mxu0
  %v2251 = vadd.f32 0.0, %v2250
  %v2252 = vpop.f32.mrf.mxu0
  %2253 = vmatprep.mubr.bf16.mxu0 0
  %2254 = vmatmul.mubr.bf16.gmra.mxu0 %v1273
  %v2255 = vpop.f32.mrf.mxu0
  %v2256 = vadd.f32 0.0, %v2255
  %v2257 = vpop.f32.mrf.mxu0
  %v2258 = vpop.f32.mrf.mxu0
  %v2259 = vadd.f32 0.0, %v2258
  %v2260 = vpop.f32.mrf.mxu0
  %2261 = vmatprep.mubr.bf16.mxu0 0
  %2262 = vmatmul.mubr.bf16.gmra.mxu0 %v1276
  %v2263 = vpop.f32.mrf.mxu0
  %v2264 = vadd.f32 0.0, %v2263
  %v2265 = vpop.f32.mrf.mxu0
  %v2266 = vpop.f32.mrf.mxu0
  %v2267 = vadd.f32 0.0, %v2266
  %v2268 = vpop.f32.mrf.mxu0
  %2269 = vmatprep.mubr.bf16.mxu0 0
  %2270 = vmatmul.mubr.bf16.gmra.mxu0 %v1279
  %v2271 = vpop.f32.mrf.mxu0
  %v2272 = vadd.f32 0.0, %v2271
  %v2273 = vpop.f32.mrf.mxu0
  %v2274 = vpop.f32.mrf.mxu0
  %v2275 = vadd.f32 0.0, %v2274
  %v2276 = vpop.f32.mrf.mxu0
  %2277 = vmatprep.mubr.bf16.mxu0 0
  %2278 = vmatmul.mubr.bf16.gmra.mxu0 %v1282
  %v2279 = vpop.f32.mrf.mxu0
  %v2280 = vadd.f32 0.0, %v2279
  %v2281 = vpop.f32.mrf.mxu0
  %v2282 = vpop.f32.mrf.mxu0
  %v2283 = vadd.f32 0.0, %v2282
  %v2284 = vpop.f32.mrf.mxu0
  %2285 = vmatprep.mubr.bf16.mxu0 0
  %2286 = vmatmul.mubr.bf16.gmra.mxu0 %v1285
  %v2287 = vpop.f32.mrf.mxu0
  %v2288 = vadd.f32 0.0, %v2287
  %v2289 = vpop.f32.mrf.mxu0
  %v2290 = vpop.f32.mrf.mxu0
  %v2291 = vadd.f32 0.0, %v2290
  %v2292 = vpop.f32.mrf.mxu0
  %2293 = vmatprep.mubr.bf16.mxu0 0
  %2294 = vmatmul.mubr.bf16.gmra.mxu0 %v1288
  %v2295 = vpop.f32.mrf.mxu0
  %v2296 = vadd.f32 0.0, %v2295
  %v2297 = vpop.f32.mrf.mxu0
  %v2298 = vpop.f32.mrf.mxu0
  %v2299 = vadd.f32 0.0, %v2298
  %v2300 = vpop.f32.mrf.mxu0
  %2301 = vmatprep.mubr.bf16.mxu0 0
  %2302 = vmatmul.mubr.bf16.gmra.mxu0 %v1291
  %v2303 = vpop.f32.mrf.mxu0
  %v2304 = vadd.f32 0.0, %v2303
  %v2305 = vpop.f32.mrf.mxu0
  %v2306 = vpop.f32.mrf.mxu0
  %v2307 = vadd.f32 0.0, %v2306
  %v2308 = vpop.f32.mrf.mxu0
  %2309 = vmatprep.mubr.bf16.mxu0 0
  %2310 = vmatmul.mubr.bf16.gmra.mxu0 %v1294
  %v2311 = vpop.f32.mrf.mxu0
  %v2312 = vadd.f32 0.0, %v2311
  %v2313 = vpop.f32.mrf.mxu0
  %v2314 = vpop.f32.mrf.mxu0
  %v2315 = vadd.f32 0.0, %v2314
  %v2316 = vpop.f32.mrf.mxu0
  %2317 = vmatprep.mubr.bf16.mxu0 0
  %2318 = vmatmul.mubr.bf16.gmra.mxu0 %v1297
  %v2319 = vpop.f32.mrf.mxu0
  %v2320 = vadd.f32 0.0, %v2319
  %v2321 = vpop.f32.mrf.mxu0
  %v2322 = vpop.f32.mrf.mxu0
  %v2323 = vadd.f32 0.0, %v2322
  %v2324 = vpop.f32.mrf.mxu0
  %2325 = vmatprep.mubr.bf16.mxu0 0
  %2326 = vmatmul.mubr.bf16.gmra.mxu0 %v1300
  %v2327 = vpop.f32.mrf.mxu0
  %v2328 = vadd.f32 0.0, %v2327
  %v2329 = vpop.f32.mrf.mxu0
  %v2330 = vpop.f32.mrf.mxu0
  %v2331 = vadd.f32 0.0, %v2330
  %v2332 = vpop.f32.mrf.mxu0
  %2333 = vmatprep.mubr.bf16.mxu0 0
  %2334 = vmatmul.mubr.bf16.gmra.mxu0 %v1303
  %v2335 = vpop.f32.mrf.mxu0
  %v2336 = vadd.f32 0.0, %v2335
  %v2337 = vpop.f32.mrf.mxu0
  %v2338 = vpop.f32.mrf.mxu0
  %v2339 = vadd.f32 0.0, %v2338
  %v2340 = vpop.f32.mrf.mxu0
  %2341 = vmatprep.mubr.bf16.mxu0 0
  %2342 = vmatmul.mubr.bf16.gmra.mxu0 %v1306
  %v2343 = vpop.f32.mrf.mxu0
  %v2344 = vadd.f32 0.0, %v2343
  %v2345 = vpop.f32.mrf.mxu0
  %v2346 = vpop.f32.mrf.mxu0
  %v2347 = vadd.f32 0.0, %v2346
  %v2348 = vpop.f32.mrf.mxu0
  %2349 = vmatprep.mubr.bf16.mxu0 0
  %2350 = vmatmul.mubr.bf16.gmra.mxu0 %v1309
  %v2351 = vpop.f32.mrf.mxu0
  %v2352 = vadd.f32 0.0, %v2351
  %v2353 = vpop.f32.mrf.mxu0
  %v2354 = vpop.f32.mrf.mxu0
  %v2355 = vadd.f32 0.0, %v2354
  %v2356 = vpop.f32.mrf.mxu0
  %2357 = vmatprep.mubr.bf16.mxu0 0
  %2358 = vmatmul.mubr.bf16.gmra.mxu0 %v1312
  %v2359 = vpop.f32.mrf.mxu0
  %v2360 = vadd.f32 0.0, %v2359
  %v2361 = vpop.f32.mrf.mxu0
  %v2362 = vpop.f32.mrf.mxu0
  %v2363 = vadd.f32 0.0, %v2362
  %v2364 = vpop.f32.mrf.mxu0
  %2365 = vmatprep.mubr.bf16.mxu0 0
  %2366 = vmatmul.mubr.bf16.gmra.mxu0 %v1315
  %v2367 = vpop.f32.mrf.mxu0
  %v2368 = vadd.f32 0.0, %v2367
  %v2369 = vpop.f32.mrf.mxu0
  %v2370 = vpop.f32.mrf.mxu0
  %v2371 = vadd.f32 0.0, %v2370
  %v2372 = vpop.f32.mrf.mxu0
  %2373 = vdwg.mxu0
  %vm2374 = vcmp.gt.f32.partialorder %v1352, 0.0
  %vm2375 = vcmp.gt.f32.partialorder %v1355, 0.0
  %vm2376 = vcmp.gt.f32.partialorder %v1360, 0.0
  %vm2377 = vcmp.gt.f32.partialorder %v1363, 0.0
  %vm2378 = vcmp.gt.f32.partialorder %v1368, 0.0
  %vm2379 = vcmp.gt.f32.partialorder %v1371, 0.0
  %vm2380 = vcmp.gt.f32.partialorder %v1376, 0.0
  %vm2381 = vcmp.gt.f32.partialorder %v1379, 0.0
  %vm2382 = vcmp.gt.f32.partialorder %v1384, 0.0
  %vm2383 = vcmp.gt.f32.partialorder %v1387, 0.0
  %vm2384 = vcmp.gt.f32.partialorder %v1392, 0.0
  %vm2385 = vcmp.gt.f32.partialorder %v1395, 0.0
  %vm2386 = vcmp.gt.f32.partialorder %v1400, 0.0
  %vm2387 = vcmp.gt.f32.partialorder %v1403, 0.0
  %vm2388 = vcmp.gt.f32.partialorder %v1408, 0.0
  %vm2389 = vcmp.gt.f32.partialorder %v1411, 0.0
  %vm2390 = vcmp.gt.f32.partialorder %v1416, 0.0
  %vm2391 = vcmp.gt.f32.partialorder %v1419, 0.0
  %vm2392 = vcmp.gt.f32.partialorder %v1424, 0.0
  %vm2393 = vcmp.gt.f32.partialorder %v1427, 0.0
  %vm2394 = vcmp.gt.f32.partialorder %v1432, 0.0
  %vm2395 = vcmp.gt.f32.partialorder %v1435, 0.0
  %vm2396 = vcmp.gt.f32.partialorder %v1440, 0.0
  %vm2397 = vcmp.gt.f32.partialorder %v1443, 0.0
  %vm2398 = vcmp.gt.f32.partialorder %v1448, 0.0
  %vm2399 = vcmp.gt.f32.partialorder %v1451, 0.0
  %vm2400 = vcmp.gt.f32.partialorder %v1456, 0.0
  %vm2401 = vcmp.gt.f32.partialorder %v1459, 0.0
  %vm2402 = vcmp.gt.f32.partialorder %v1464, 0.0
  %vm2403 = vcmp.gt.f32.partialorder %v1467, 0.0
  %vm2404 = vcmp.gt.f32.partialorder %v1472, 0.0
  %vm2405 = vcmp.gt.f32.partialorder %v1475, 0.0
  %vm2406 = vcmp.gt.f32.partialorder %v1480, 0.0
  %vm2407 = vcmp.gt.f32.partialorder %v1483, 0.0
  %vm2408 = vcmp.gt.f32.partialorder %v1488, 0.0
  %vm2409 = vcmp.gt.f32.partialorder %v1491, 0.0
  %vm2410 = vcmp.gt.f32.partialorder %v1496, 0.0
  %vm2411 = vcmp.gt.f32.partialorder %v1499, 0.0
  %vm2412 = vcmp.gt.f32.partialorder %v1504, 0.0
  %vm2413 = vcmp.gt.f32.partialorder %v1507, 0.0
  %vm2414 = vcmp.gt.f32.partialorder %v1512, 0.0
  %vm2415 = vcmp.gt.f32.partialorder %v1515, 0.0
  %vm2416 = vcmp.gt.f32.partialorder %v1520, 0.0
  %vm2417 = vcmp.gt.f32.partialorder %v1523, 0.0
  %vm2418 = vcmp.gt.f32.partialorder %v1528, 0.0
  %vm2419 = vcmp.gt.f32.partialorder %v1531, 0.0
  %vm2420 = vcmp.gt.f32.partialorder %v1536, 0.0
  %vm2421 = vcmp.gt.f32.partialorder %v1539, 0.0
  %vm2422 = vcmp.gt.f32.partialorder %v1544, 0.0
  %vm2423 = vcmp.gt.f32.partialorder %v1547, 0.0
  %vm2424 = vcmp.gt.f32.partialorder %v1552, 0.0
  %vm2425 = vcmp.gt.f32.partialorder %v1555, 0.0
  %vm2426 = vcmp.gt.f32.partialorder %v1560, 0.0
  %vm2427 = vcmp.gt.f32.partialorder %v1563, 0.0
  %vm2428 = vcmp.gt.f32.partialorder %v1568, 0.0
  %vm2429 = vcmp.gt.f32.partialorder %v1571, 0.0
  %vm2430 = vcmp.gt.f32.partialorder %v1576, 0.0
  %vm2431 = vcmp.gt.f32.partialorder %v1579, 0.0
  %vm2432 = vcmp.gt.f32.partialorder %v1584, 0.0
  %vm2433 = vcmp.gt.f32.partialorder %v1587, 0.0
  %vm2434 = vcmp.gt.f32.partialorder %v1592, 0.0
  %vm2435 = vcmp.gt.f32.partialorder %v1595, 0.0
  %vm2436 = vcmp.gt.f32.partialorder %v1600, 0.0
  %vm2437 = vcmp.gt.f32.partialorder %v1603, 0.0
  %vm2438 = vcmp.gt.f32.partialorder %v1608, 0.0
  %vm2439 = vcmp.gt.f32.partialorder %v1611, 0.0
  %vm2440 = vcmp.gt.f32.partialorder %v1616, 0.0
  %vm2441 = vcmp.gt.f32.partialorder %v1619, 0.0
  %vm2442 = vcmp.gt.f32.partialorder %v1624, 0.0
  %vm2443 = vcmp.gt.f32.partialorder %v1627, 0.0
  %vm2444 = vcmp.gt.f32.partialorder %v1632, 0.0
  %vm2445 = vcmp.gt.f32.partialorder %v1635, 0.0
  %vm2446 = vcmp.gt.f32.partialorder %v1640, 0.0
  %vm2447 = vcmp.gt.f32.partialorder %v1643, 0.0
  %vm2448 = vcmp.gt.f32.partialorder %v1648, 0.0
  %vm2449 = vcmp.gt.f32.partialorder %v1651, 0.0
  %vm2450 = vcmp.gt.f32.partialorder %v1656, 0.0
  %vm2451 = vcmp.gt.f32.partialorder %v1659, 0.0
  %vm2452 = vcmp.gt.f32.partialorder %v1664, 0.0
  %vm2453 = vcmp.gt.f32.partialorder %v1667, 0.0
  %vm2454 = vcmp.gt.f32.partialorder %v1672, 0.0
  %vm2455 = vcmp.gt.f32.partialorder %v1675, 0.0
  %vm2456 = vcmp.gt.f32.partialorder %v1680, 0.0
  %vm2457 = vcmp.gt.f32.partialorder %v1683, 0.0
  %vm2458 = vcmp.gt.f32.partialorder %v1688, 0.0
  %vm2459 = vcmp.gt.f32.partialorder %v1691, 0.0
  %vm2460 = vcmp.gt.f32.partialorder %v1696, 0.0
  %vm2461 = vcmp.gt.f32.partialorder %v1699, 0.0
  %vm2462 = vcmp.gt.f32.partialorder %v1704, 0.0
  %vm2463 = vcmp.gt.f32.partialorder %v1707, 0.0
  %vm2464 = vcmp.gt.f32.partialorder %v1712, 0.0
  %vm2465 = vcmp.gt.f32.partialorder %v1715, 0.0
  %vm2466 = vcmp.gt.f32.partialorder %v1720, 0.0
  %vm2467 = vcmp.gt.f32.partialorder %v1723, 0.0
  %vm2468 = vcmp.gt.f32.partialorder %v1728, 0.0
  %vm2469 = vcmp.gt.f32.partialorder %v1731, 0.0
  %vm2470 = vcmp.gt.f32.partialorder %v1736, 0.0
  %vm2471 = vcmp.gt.f32.partialorder %v1739, 0.0
  %vm2472 = vcmp.gt.f32.partialorder %v1744, 0.0
  %vm2473 = vcmp.gt.f32.partialorder %v1747, 0.0
  %vm2474 = vcmp.gt.f32.partialorder %v1752, 0.0
  %vm2475 = vcmp.gt.f32.partialorder %v1755, 0.0
  %vm2476 = vcmp.gt.f32.partialorder %v1760, 0.0
  %vm2477 = vcmp.gt.f32.partialorder %v1763, 0.0
  %vm2478 = vcmp.gt.f32.partialorder %v1768, 0.0
  %vm2479 = vcmp.gt.f32.partialorder %v1771, 0.0
  %vm2480 = vcmp.gt.f32.partialorder %v1776, 0.0
  %vm2481 = vcmp.gt.f32.partialorder %v1779, 0.0
  %vm2482 = vcmp.gt.f32.partialorder %v1784, 0.0
  %vm2483 = vcmp.gt.f32.partialorder %v1787, 0.0
  %vm2484 = vcmp.gt.f32.partialorder %v1792, 0.0
  %vm2485 = vcmp.gt.f32.partialorder %v1795, 0.0
  %vm2486 = vcmp.gt.f32.partialorder %v1800, 0.0
  %vm2487 = vcmp.gt.f32.partialorder %v1803, 0.0
  %vm2488 = vcmp.gt.f32.partialorder %v1808, 0.0
  %vm2489 = vcmp.gt.f32.partialorder %v1811, 0.0
  %vm2490 = vcmp.gt.f32.partialorder %v1816, 0.0
  %vm2491 = vcmp.gt.f32.partialorder %v1819, 0.0
  %vm2492 = vcmp.gt.f32.partialorder %v1824, 0.0
  %vm2493 = vcmp.gt.f32.partialorder %v1827, 0.0
  %vm2494 = vcmp.gt.f32.partialorder %v1832, 0.0
  %vm2495 = vcmp.gt.f32.partialorder %v1835, 0.0
  %vm2496 = vcmp.gt.f32.partialorder %v1840, 0.0
  %vm2497 = vcmp.gt.f32.partialorder %v1843, 0.0
  %vm2498 = vcmp.gt.f32.partialorder %v1848, 0.0
  %vm2499 = vcmp.gt.f32.partialorder %v1851, 0.0
  %vm2500 = vcmp.gt.f32.partialorder %v1856, 0.0
  %vm2501 = vcmp.gt.f32.partialorder %v1859, 0.0
  %vm2502 = vcmp.gt.f32.partialorder %v1864, 0.0
  %vm2503 = vcmp.gt.f32.partialorder %v1867, 0.0
  %vm2504 = vcmp.gt.f32.partialorder %v1872, 0.0
  %vm2505 = vcmp.gt.f32.partialorder %v1875, 0.0
  %vm2506 = vcmp.gt.f32.partialorder %v1880, 0.0
  %vm2507 = vcmp.gt.f32.partialorder %v1883, 0.0
  %vm2508 = vcmp.gt.f32.partialorder %v1888, 0.0
  %vm2509 = vcmp.gt.f32.partialorder %v1891, 0.0
  %vm2510 = vcmp.gt.f32.partialorder %v1896, 0.0
  %vm2511 = vcmp.gt.f32.partialorder %v1899, 0.0
  %vm2512 = vcmp.gt.f32.partialorder %v1904, 0.0
  %vm2513 = vcmp.gt.f32.partialorder %v1907, 0.0
  %vm2514 = vcmp.gt.f32.partialorder %v1912, 0.0
  %vm2515 = vcmp.gt.f32.partialorder %v1915, 0.0
  %vm2516 = vcmp.gt.f32.partialorder %v1920, 0.0
  %vm2517 = vcmp.gt.f32.partialorder %v1923, 0.0
  %vm2518 = vcmp.gt.f32.partialorder %v1928, 0.0
  %vm2519 = vcmp.gt.f32.partialorder %v1931, 0.0
  %vm2520 = vcmp.gt.f32.partialorder %v1936, 0.0
  %vm2521 = vcmp.gt.f32.partialorder %v1939, 0.0
  %vm2522 = vcmp.gt.f32.partialorder %v1944, 0.0
  %vm2523 = vcmp.gt.f32.partialorder %v1947, 0.0
  %vm2524 = vcmp.gt.f32.partialorder %v1952, 0.0
  %vm2525 = vcmp.gt.f32.partialorder %v1955, 0.0
  %vm2526 = vcmp.gt.f32.partialorder %v1960, 0.0
  %vm2527 = vcmp.gt.f32.partialorder %v1963, 0.0
  %vm2528 = vcmp.gt.f32.partialorder %v1968, 0.0
  %vm2529 = vcmp.gt.f32.partialorder %v1971, 0.0
  %vm2530 = vcmp.gt.f32.partialorder %v1976, 0.0
  %vm2531 = vcmp.gt.f32.partialorder %v1979, 0.0
  %vm2532 = vcmp.gt.f32.partialorder %v1984, 0.0
  %vm2533 = vcmp.gt.f32.partialorder %v1987, 0.0
  %vm2534 = vcmp.gt.f32.partialorder %v1992, 0.0
  %vm2535 = vcmp.gt.f32.partialorder %v1995, 0.0
  %vm2536 = vcmp.gt.f32.partialorder %v2000, 0.0
  %vm2537 = vcmp.gt.f32.partialorder %v2003, 0.0
  %vm2538 = vcmp.gt.f32.partialorder %v2008, 0.0
  %vm2539 = vcmp.gt.f32.partialorder %v2011, 0.0
  %vm2540 = vcmp.gt.f32.partialorder %v2016, 0.0
  %vm2541 = vcmp.gt.f32.partialorder %v2019, 0.0
  %vm2542 = vcmp.gt.f32.partialorder %v2024, 0.0
  %vm2543 = vcmp.gt.f32.partialorder %v2027, 0.0
  %vm2544 = vcmp.gt.f32.partialorder %v2032, 0.0
  %vm2545 = vcmp.gt.f32.partialorder %v2035, 0.0
  %vm2546 = vcmp.gt.f32.partialorder %v2040, 0.0
  %vm2547 = vcmp.gt.f32.partialorder %v2043, 0.0
  %vm2548 = vcmp.gt.f32.partialorder %v2048, 0.0
  %vm2549 = vcmp.gt.f32.partialorder %v2051, 0.0
  %vm2550 = vcmp.gt.f32.partialorder %v2056, 0.0
  %vm2551 = vcmp.gt.f32.partialorder %v2059, 0.0
  %vm2552 = vcmp.gt.f32.partialorder %v2064, 0.0
  %vm2553 = vcmp.gt.f32.partialorder %v2067, 0.0
  %vm2554 = vcmp.gt.f32.partialorder %v2072, 0.0
  %vm2555 = vcmp.gt.f32.partialorder %v2075, 0.0
  %vm2556 = vcmp.gt.f32.partialorder %v2080, 0.0
  %vm2557 = vcmp.gt.f32.partialorder %v2083, 0.0
  %vm2558 = vcmp.gt.f32.partialorder %v2088, 0.0
  %vm2559 = vcmp.gt.f32.partialorder %v2091, 0.0
  %vm2560 = vcmp.gt.f32.partialorder %v2096, 0.0
  %vm2561 = vcmp.gt.f32.partialorder %v2099, 0.0
  %vm2562 = vcmp.gt.f32.partialorder %v2104, 0.0
  %vm2563 = vcmp.gt.f32.partialorder %v2107, 0.0
  %vm2564 = vcmp.gt.f32.partialorder %v2112, 0.0
  %vm2565 = vcmp.gt.f32.partialorder %v2115, 0.0
  %vm2566 = vcmp.gt.f32.partialorder %v2120, 0.0
  %vm2567 = vcmp.gt.f32.partialorder %v2123, 0.0
  %vm2568 = vcmp.gt.f32.partialorder %v2128, 0.0
  %vm2569 = vcmp.gt.f32.partialorder %v2131, 0.0
  %vm2570 = vcmp.gt.f32.partialorder %v2136, 0.0
  %vm2571 = vcmp.gt.f32.partialorder %v2139, 0.0
  %vm2572 = vcmp.gt.f32.partialorder %v2144, 0.0
  %vm2573 = vcmp.gt.f32.partialorder %v2147, 0.0
  %vm2574 = vcmp.gt.f32.partialorder %v2152, 0.0
  %vm2575 = vcmp.gt.f32.partialorder %v2155, 0.0
  %vm2576 = vcmp.gt.f32.partialorder %v2160, 0.0
  %vm2577 = vcmp.gt.f32.partialorder %v2163, 0.0
  %vm2578 = vcmp.gt.f32.partialorder %v2168, 0.0
  %vm2579 = vcmp.gt.f32.partialorder %v2171, 0.0
  %vm2580 = vcmp.gt.f32.partialorder %v2176, 0.0
  %vm2581 = vcmp.gt.f32.partialorder %v2179, 0.0
  %vm2582 = vcmp.gt.f32.partialorder %v2184, 0.0
  %vm2583 = vcmp.gt.f32.partialorder %v2187, 0.0
  %vm2584 = vcmp.gt.f32.partialorder %v2192, 0.0
  %vm2585 = vcmp.gt.f32.partialorder %v2195, 0.0
  %vm2586 = vcmp.gt.f32.partialorder %v2200, 0.0
  %vm2587 = vcmp.gt.f32.partialorder %v2203, 0.0
  %vm2588 = vcmp.gt.f32.partialorder %v2208, 0.0
  %vm2589 = vcmp.gt.f32.partialorder %v2211, 0.0
  %vm2590 = vcmp.gt.f32.partialorder %v2216, 0.0
  %vm2591 = vcmp.gt.f32.partialorder %v2219, 0.0
  %vm2592 = vcmp.gt.f32.partialorder %v2224, 0.0
  %vm2593 = vcmp.gt.f32.partialorder %v2227, 0.0
  %vm2594 = vcmp.gt.f32.partialorder %v2232, 0.0
  %vm2595 = vcmp.gt.f32.partialorder %v2235, 0.0
  %vm2596 = vcmp.gt.f32.partialorder %v2240, 0.0
  %vm2597 = vcmp.gt.f32.partialorder %v2243, 0.0
  %vm2598 = vcmp.gt.f32.partialorder %v2248, 0.0
  %vm2599 = vcmp.gt.f32.partialorder %v2251, 0.0
  %vm2600 = vcmp.gt.f32.partialorder %v2256, 0.0
  %vm2601 = vcmp.gt.f32.partialorder %v2259, 0.0
  %vm2602 = vcmp.gt.f32.partialorder %v2264, 0.0
  %vm2603 = vcmp.gt.f32.partialorder %v2267, 0.0
  %vm2604 = vcmp.gt.f32.partialorder %v2272, 0.0
  %vm2605 = vcmp.gt.f32.partialorder %v2275, 0.0
  %vm2606 = vcmp.gt.f32.partialorder %v2280, 0.0
  %vm2607 = vcmp.gt.f32.partialorder %v2283, 0.0
  %vm2608 = vcmp.gt.f32.partialorder %v2288, 0.0
  %vm2609 = vcmp.gt.f32.partialorder %v2291, 0.0
  %vm2610 = vcmp.gt.f32.partialorder %v2296, 0.0
  %vm2611 = vcmp.gt.f32.partialorder %v2299, 0.0
  %vm2612 = vcmp.gt.f32.partialorder %v2304, 0.0
  %vm2613 = vcmp.gt.f32.partialorder %v2307, 0.0
  %vm2614 = vcmp.gt.f32.partialorder %v2312, 0.0
  %vm2615 = vcmp.gt.f32.partialorder %v2315, 0.0
  %vm2616 = vcmp.gt.f32.partialorder %v2320, 0.0
  %vm2617 = vcmp.gt.f32.partialorder %v2323, 0.0
  %vm2618 = vcmp.gt.f32.partialorder %v2328, 0.0
  %vm2619 = vcmp.gt.f32.partialorder %v2331, 0.0
  %vm2620 = vcmp.gt.f32.partialorder %v2336, 0.0
  %vm2621 = vcmp.gt.f32.partialorder %v2339, 0.0
  %vm2622 = vcmp.gt.f32.partialorder %v2344, 0.0
  %vm2623 = vcmp.gt.f32.partialorder %v2347, 0.0
  %vm2624 = vcmp.gt.f32.partialorder %v2352, 0.0
  %vm2625 = vcmp.gt.f32.partialorder %v2355, 0.0
  %vm2626 = vcmp.gt.f32.partialorder %v2360, 0.0
  %vm2627 = vcmp.gt.f32.partialorder %v2363, 0.0
  %vm2628 = vcmp.gt.f32.partialorder %v2368, 0.0
  %vm2629 = vcmp.gt.f32.partialorder %v2371, 0.0
  %v2630 = vmul.f32 %v1352, 0.2
  %v2631 = vmul.f32 %v1355, 0.2
  %v2632 = vmul.f32 %v1360, 0.2
  %v2633 = vmul.f32 %v1363, 0.2
  %v2634 = vmul.f32 %v1368, 0.2
  %v2635 = vmul.f32 %v1371, 0.2
  %v2636 = vmul.f32 %v1376, 0.2
  %v2637 = vmul.f32 %v1379, 0.2
  %v2638 = vmul.f32 %v1384, 0.2
  %v2639 = vmul.f32 %v1387, 0.2
  %v2640 = vmul.f32 %v1392, 0.2
  %v2641 = vmul.f32 %v1395, 0.2
  %v2642 = vmul.f32 %v1400, 0.2
  %v2643 = vmul.f32 %v1403, 0.2
  %v2644 = vmul.f32 %v1408, 0.2
  %v2645 = vmul.f32 %v1411, 0.2
  %v2646 = vmul.f32 %v1416, 0.2
  %v2647 = vmul.f32 %v1419, 0.2
  %v2648 = vmul.f32 %v1424, 0.2
  %v2649 = vmul.f32 %v1427, 0.2
  %v2650 = vmul.f32 %v1432, 0.2
  %v2651 = vmul.f32 %v1435, 0.2
  %v2652 = vmul.f32 %v1440, 0.2
  %v2653 = vmul.f32 %v1443, 0.2
  %v2654 = vmul.f32 %v1448, 0.2
  %v2655 = vmul.f32 %v1451, 0.2
  %v2656 = vmul.f32 %v1456, 0.2
  %v2657 = vmul.f32 %v1459, 0.2
  %v2658 = vmul.f32 %v1464, 0.2
  %v2659 = vmul.f32 %v1467, 0.2
  %v2660 = vmul.f32 %v1472, 0.2
  %v2661 = vmul.f32 %v1475, 0.2
  %v2662 = vmul.f32 %v1480, 0.2
  %v2663 = vmul.f32 %v1483, 0.2
  %v2664 = vmul.f32 %v1488, 0.2
  %v2665 = vmul.f32 %v1491, 0.2
  %v2666 = vmul.f32 %v1496, 0.2
  %v2667 = vmul.f32 %v1499, 0.2
  %v2668 = vmul.f32 %v1504, 0.2
  %v2669 = vmul.f32 %v1507, 0.2
  %v2670 = vmul.f32 %v1512, 0.2
  %v2671 = vmul.f32 %v1515, 0.2
  %v2672 = vmul.f32 %v1520, 0.2
  %v2673 = vmul.f32 %v1523, 0.2
  %v2674 = vmul.f32 %v1528, 0.2
  %v2675 = vmul.f32 %v1531, 0.2
  %v2676 = vmul.f32 %v1536, 0.2
  %v2677 = vmul.f32 %v1539, 0.2
  %v2678 = vmul.f32 %v1544, 0.2
  %v2679 = vmul.f32 %v1547, 0.2
  %v2680 = vmul.f32 %v1552, 0.2
  %v2681 = vmul.f32 %v1555, 0.2
  %v2682 = vmul.f32 %v1560, 0.2
  %v2683 = vmul.f32 %v1563, 0.2
  %v2684 = vmul.f32 %v1568, 0.2
  %v2685 = vmul.f32 %v1571, 0.2
  %v2686 = vmul.f32 %v1576, 0.2
  %v2687 = vmul.f32 %v1579, 0.2
  %v2688 = vmul.f32 %v1584, 0.2
  %v2689 = vmul.f32 %v1587, 0.2
  %v2690 = vmul.f32 %v1592, 0.2
  %v2691 = vmul.f32 %v1595, 0.2
  %v2692 = vmul.f32 %v1600, 0.2
  %v2693 = vmul.f32 %v1603, 0.2
  %v2694 = vmul.f32 %v1608, 0.2
  %v2695 = vmul.f32 %v1611, 0.2
  %v2696 = vmul.f32 %v1616, 0.2
  %v2697 = vmul.f32 %v1619, 0.2
  %v2698 = vmul.f32 %v1624, 0.2
  %v2699 = vmul.f32 %v1627, 0.2
  %v2700 = vmul.f32 %v1632, 0.2
  %v2701 = vmul.f32 %v1635, 0.2
  %v2702 = vmul.f32 %v1640, 0.2
  %v2703 = vmul.f32 %v1643, 0.2
  %v2704 = vmul.f32 %v1648, 0.2
  %v2705 = vmul.f32 %v1651, 0.2
  %v2706 = vmul.f32 %v1656, 0.2
  %v2707 = vmul.f32 %v1659, 0.2
  %v2708 = vmul.f32 %v1664, 0.2
  %v2709 = vmul.f32 %v1667, 0.2
  %v2710 = vmul.f32 %v1672, 0.2
  %v2711 = vmul.f32 %v1675, 0.2
  %v2712 = vmul.f32 %v1680, 0.2
  %v2713 = vmul.f32 %v1683, 0.2
  %v2714 = vmul.f32 %v1688, 0.2
  %v2715 = vmul.f32 %v1691, 0.2
  %v2716 = vmul.f32 %v1696, 0.2
  %v2717 = vmul.f32 %v1699, 0.2
  %v2718 = vmul.f32 %v1704, 0.2
  %v2719 = vmul.f32 %v1707, 0.2
  %v2720 = vmul.f32 %v1712, 0.2
  %v2721 = vmul.f32 %v1715, 0.2
  %v2722 = vmul.f32 %v1720, 0.2
  %v2723 = vmul.f32 %v1723, 0.2
  %v2724 = vmul.f32 %v1728, 0.2
  %v2725 = vmul.f32 %v1731, 0.2
  %v2726 = vmul.f32 %v1736, 0.2
  %v2727 = vmul.f32 %v1739, 0.2
  %v2728 = vmul.f32 %v1744, 0.2
  %v2729 = vmul.f32 %v1747, 0.2
  %v2730 = vmul.f32 %v1752, 0.2
  %v2731 = vmul.f32 %v1755, 0.2
  %v2732 = vmul.f32 %v1760, 0.2
  %v2733 = vmul.f32 %v1763, 0.2
  %v2734 = vmul.f32 %v1768, 0.2
  %v2735 = vmul.f32 %v1771, 0.2
  %v2736 = vmul.f32 %v1776, 0.2
  %v2737 = vmul.f32 %v1779, 0.2
  %v2738 = vmul.f32 %v1784, 0.2
  %v2739 = vmul.f32 %v1787, 0.2
  %v2740 = vmul.f32 %v1792, 0.2
  %v2741 = vmul.f32 %v1795, 0.2
  %v2742 = vmul.f32 %v1800, 0.2
  %v2743 = vmul.f32 %v1803, 0.2
  %v2744 = vmul.f32 %v1808, 0.2
  %v2745 = vmul.f32 %v1811, 0.2
  %v2746 = vmul.f32 %v1816, 0.2
  %v2747 = vmul.f32 %v1819, 0.2
  %v2748 = vmul.f32 %v1824, 0.2
  %v2749 = vmul.f32 %v1827, 0.2
  %v2750 = vmul.f32 %v1832, 0.2
  %v2751 = vmul.f32 %v1835, 0.2
  %v2752 = vmul.f32 %v1840, 0.2
  %v2753 = vmul.f32 %v1843, 0.2
  %v2754 = vmul.f32 %v1848, 0.2
  %v2755 = vmul.f32 %v1851, 0.2
  %v2756 = vmul.f32 %v1856, 0.2
  %v2757 = vmul.f32 %v1859, 0.2
  %v2758 = vmul.f32 %v1864, 0.2
  %v2759 = vmul.f32 %v1867, 0.2
  %v2760 = vmul.f32 %v1872, 0.2
  %v2761 = vmul.f32 %v1875, 0.2
  %v2762 = vmul.f32 %v1880, 0.2
  %v2763 = vmul.f32 %v1883, 0.2
  %v2764 = vmul.f32 %v1888, 0.2
  %v2765 = vmul.f32 %v1891, 0.2
  %v2766 = vmul.f32 %v1896, 0.2
  %v2767 = vmul.f32 %v1899, 0.2
  %v2768 = vmul.f32 %v1904, 0.2
  %v2769 = vmul.f32 %v1907, 0.2
  %v2770 = vmul.f32 %v1912, 0.2
  %v2771 = vmul.f32 %v1915, 0.2
  %v2772 = vmul.f32 %v1920, 0.2
  %v2773 = vmul.f32 %v1923, 0.2
  %v2774 = vmul.f32 %v1928, 0.2
  %v2775 = vmul.f32 %v1931, 0.2
  %v2776 = vmul.f32 %v1936, 0.2
  %v2777 = vmul.f32 %v1939, 0.2
  %v2778 = vmul.f32 %v1944, 0.2
  %v2779 = vmul.f32 %v1947, 0.2
  %v2780 = vmul.f32 %v1952, 0.2
  %v2781 = vmul.f32 %v1955, 0.2
  %v2782 = vmul.f32 %v1960, 0.2
  %v2783 = vmul.f32 %v1963, 0.2
  %v2784 = vmul.f32 %v1968, 0.2
  %v2785 = vmul.f32 %v1971, 0.2
  %v2786 = vmul.f32 %v1976, 0.2
  %v2787 = vmul.f32 %v1979, 0.2
  %v2788 = vmul.f32 %v1984, 0.2
  %v2789 = vmul.f32 %v1987, 0.2
  %v2790 = vmul.f32 %v1992, 0.2
  %v2791 = vmul.f32 %v1995, 0.2
  %v2792 = vmul.f32 %v2000, 0.2
  %v2793 = vmul.f32 %v2003, 0.2
  %v2794 = vmul.f32 %v2008, 0.2
  %v2795 = vmul.f32 %v2011, 0.2
  %v2796 = vmul.f32 %v2016, 0.2
  %v2797 = vmul.f32 %v2019, 0.2
  %v2798 = vmul.f32 %v2024, 0.2
  %v2799 = vmul.f32 %v2027, 0.2
  %v2800 = vmul.f32 %v2032, 0.2
  %v2801 = vmul.f32 %v2035, 0.2
  %v2802 = vmul.f32 %v2040, 0.2
  %v2803 = vmul.f32 %v2043, 0.2
  %v2804 = vmul.f32 %v2048, 0.2
  %v2805 = vmul.f32 %v2051, 0.2
  %v2806 = vmul.f32 %v2056, 0.2
  %v2807 = vmul.f32 %v2059, 0.2
  %v2808 = vmul.f32 %v2064, 0.2
  %v2809 = vmul.f32 %v2067, 0.2
  %v2810 = vmul.f32 %v2072, 0.2
  %v2811 = vmul.f32 %v2075, 0.2
  %v2812 = vmul.f32 %v2080, 0.2
  %v2813 = vmul.f32 %v2083, 0.2
  %v2814 = vmul.f32 %v2088, 0.2
  %v2815 = vmul.f32 %v2091, 0.2
  %v2816 = vmul.f32 %v2096, 0.2
  %v2817 = vmul.f32 %v2099, 0.2
  %v2818 = vmul.f32 %v2104, 0.2
  %v2819 = vmul.f32 %v2107, 0.2
  %v2820 = vmul.f32 %v2112, 0.2
  %v2821 = vmul.f32 %v2115, 0.2
  %v2822 = vmul.f32 %v2120, 0.2
  %v2823 = vmul.f32 %v2123, 0.2
  %v2824 = vmul.f32 %v2128, 0.2
  %v2825 = vmul.f32 %v2131, 0.2
  %v2826 = vmul.f32 %v2136, 0.2
  %v2827 = vmul.f32 %v2139, 0.2
  %v2828 = vmul.f32 %v2144, 0.2
  %v2829 = vmul.f32 %v2147, 0.2
  %v2830 = vmul.f32 %v2152, 0.2
  %v2831 = vmul.f32 %v2155, 0.2
  %v2832 = vmul.f32 %v2160, 0.2
  %v2833 = vmul.f32 %v2163, 0.2
  %v2834 = vmul.f32 %v2168, 0.2
  %v2835 = vmul.f32 %v2171, 0.2
  %v2836 = vmul.f32 %v2176, 0.2
  %v2837 = vmul.f32 %v2179, 0.2
  %v2838 = vmul.f32 %v2184, 0.2
  %v2839 = vmul.f32 %v2187, 0.2
  %v2840 = vmul.f32 %v2192, 0.2
  %v2841 = vmul.f32 %v2195, 0.2
  %v2842 = vmul.f32 %v2200, 0.2
  %v2843 = vmul.f32 %v2203, 0.2
  %v2844 = vmul.f32 %v2208, 0.2
  %v2845 = vmul.f32 %v2211, 0.2
  %v2846 = vmul.f32 %v2216, 0.2
  %v2847 = vmul.f32 %v2219, 0.2
  %v2848 = vmul.f32 %v2224, 0.2
  %v2849 = vmul.f32 %v2227, 0.2
  %v2850 = vmul.f32 %v2232, 0.2
  %v2851 = vmul.f32 %v2235, 0.2
  %v2852 = vmul.f32 %v2240, 0.2
  %v2853 = vmul.f32 %v2243, 0.2
  %v2854 = vmul.f32 %v2248, 0.2
  %v2855 = vmul.f32 %v2251, 0.2
  %v2856 = vmul.f32 %v2256, 0.2
  %v2857 = vmul.f32 %v2259, 0.2
  %v2858 = vmul.f32 %v2264, 0.2
  %v2859 = vmul.f32 %v2267, 0.2
  %v2860 = vmul.f32 %v2272, 0.2
  %v2861 = vmul.f32 %v2275, 0.2
  %v2862 = vmul.f32 %v2280, 0.2
  %v2863 = vmul.f32 %v2283, 0.2
  %v2864 = vmul.f32 %v2288, 0.2
  %v2865 = vmul.f32 %v2291, 0.2
  %v2866 = vmul.f32 %v2296, 0.2
  %v2867 = vmul.f32 %v2299, 0.2
  %v2868 = vmul.f32 %v2304, 0.2
  %v2869 = vmul.f32 %v2307, 0.2
  %v2870 = vmul.f32 %v2312, 0.2
  %v2871 = vmul.f32 %v2315, 0.2
  %v2872 = vmul.f32 %v2320, 0.2
  %v2873 = vmul.f32 %v2323, 0.2
  %v2874 = vmul.f32 %v2328, 0.2
  %v2875 = vmul.f32 %v2331, 0.2
  %v2876 = vmul.f32 %v2336, 0.2
  %v2877 = vmul.f32 %v2339, 0.2
  %v2878 = vmul.f32 %v2344, 0.2
  %v2879 = vmul.f32 %v2347, 0.2
  %v2880 = vmul.f32 %v2352, 0.2
  %v2881 = vmul.f32 %v2355, 0.2
  %v2882 = vmul.f32 %v2360, 0.2
  %v2883 = vmul.f32 %v2363, 0.2
  %v2884 = vmul.f32 %v2368, 0.2
  %v2885 = vmul.f32 %v2371, 0.2
  %v2886 = vsel %vm2374, %v1352, %v2630
  %v2887 = vsel %vm2375, %v1355, %v2631
  %v2888 = vsel %vm2376, %v1360, %v2632
  %v2889 = vsel %vm2377, %v1363, %v2633
  %v2890 = vsel %vm2378, %v1368, %v2634
  %v2891 = vsel %vm2379, %v1371, %v2635
  %v2892 = vsel %vm2380, %v1376, %v2636
  %v2893 = vsel %vm2381, %v1379, %v2637
  %v2894 = vsel %vm2382, %v1384, %v2638
  %v2895 = vsel %vm2383, %v1387, %v2639
  %v2896 = vsel %vm2384, %v1392, %v2640
  %v2897 = vsel %vm2385, %v1395, %v2641
  %v2898 = vsel %vm2386, %v1400, %v2642
  %v2899 = vsel %vm2387, %v1403, %v2643
  %v2900 = vsel %vm2388, %v1408, %v2644
  %v2901 = vsel %vm2389, %v1411, %v2645
  %v2902 = vsel %vm2390, %v1416, %v2646
  %v2903 = vsel %vm2391, %v1419, %v2647
  %v2904 = vsel %vm2392, %v1424, %v2648
  %v2905 = vsel %vm2393, %v1427, %v2649
  %v2906 = vsel %vm2394, %v1432, %v2650
  %v2907 = vsel %vm2395, %v1435, %v2651
  %v2908 = vsel %vm2396, %v1440, %v2652
  %v2909 = vsel %vm2397, %v1443, %v2653
  %v2910 = vsel %vm2398, %v1448, %v2654
  %v2911 = vsel %vm2399, %v1451, %v2655
  %v2912 = vsel %vm2400, %v1456, %v2656
  %v2913 = vsel %vm2401, %v1459, %v2657
  %v2914 = vsel %vm2402, %v1464, %v2658
  %v2915 = vsel %vm2403, %v1467, %v2659
  %v2916 = vsel %vm2404, %v1472, %v2660
  %v2917 = vsel %vm2405, %v1475, %v2661
  %v2918 = vsel %vm2406, %v1480, %v2662
  %v2919 = vsel %vm2407, %v1483, %v2663
  %v2920 = vsel %vm2408, %v1488, %v2664
  %v2921 = vsel %vm2409, %v1491, %v2665
  %v2922 = vsel %vm2410, %v1496, %v2666
  %v2923 = vsel %vm2411, %v1499, %v2667
  %v2924 = vsel %vm2412, %v1504, %v2668
  %v2925 = vsel %vm2413, %v1507, %v2669
  %v2926 = vsel %vm2414, %v1512, %v2670
  %v2927 = vsel %vm2415, %v1515, %v2671
  %v2928 = vsel %vm2416, %v1520, %v2672
  %v2929 = vsel %vm2417, %v1523, %v2673
  %v2930 = vsel %vm2418, %v1528, %v2674
  %v2931 = vsel %vm2419, %v1531, %v2675
  %v2932 = vsel %vm2420, %v1536, %v2676
  %v2933 = vsel %vm2421, %v1539, %v2677
  %v2934 = vsel %vm2422, %v1544, %v2678
  %v2935 = vsel %vm2423, %v1547, %v2679
  %v2936 = vsel %vm2424, %v1552, %v2680
  %v2937 = vsel %vm2425, %v1555, %v2681
  %v2938 = vsel %vm2426, %v1560, %v2682
  %v2939 = vsel %vm2427, %v1563, %v2683
  %v2940 = vsel %vm2428, %v1568, %v2684
  %v2941 = vsel %vm2429, %v1571, %v2685
  %v2942 = vsel %vm2430, %v1576, %v2686
  %v2943 = vsel %vm2431, %v1579, %v2687
  %v2944 = vsel %vm2432, %v1584, %v2688
  %v2945 = vsel %vm2433, %v1587, %v2689
  %v2946 = vsel %vm2434, %v1592, %v2690
  %v2947 = vsel %vm2435, %v1595, %v2691
  %v2948 = vsel %vm2436, %v1600, %v2692
  %v2949 = vsel %vm2437, %v1603, %v2693
  %v2950 = vsel %vm2438, %v1608, %v2694
  %v2951 = vsel %vm2439, %v1611, %v2695
  %v2952 = vsel %vm2440, %v1616, %v2696
  %v2953 = vsel %vm2441, %v1619, %v2697
  %v2954 = vsel %vm2442, %v1624, %v2698
  %v2955 = vsel %vm2443, %v1627, %v2699
  %v2956 = vsel %vm2444, %v1632, %v2700
  %v2957 = vsel %vm2445, %v1635, %v2701
  %v2958 = vsel %vm2446, %v1640, %v2702
  %v2959 = vsel %vm2447, %v1643, %v2703
  %v2960 = vsel %vm2448, %v1648, %v2704
  %v2961 = vsel %vm2449, %v1651, %v2705
  %v2962 = vsel %vm2450, %v1656, %v2706
  %v2963 = vsel %vm2451, %v1659, %v2707
  %v2964 = vsel %vm2452, %v1664, %v2708
  %v2965 = vsel %vm2453, %v1667, %v2709
  %v2966 = vsel %vm2454, %v1672, %v2710
  %v2967 = vsel %vm2455, %v1675, %v2711
  %v2968 = vsel %vm2456, %v1680, %v2712
  %v2969 = vsel %vm2457, %v1683, %v2713
  %v2970 = vsel %vm2458, %v1688, %v2714
  %v2971 = vsel %vm2459, %v1691, %v2715
  %v2972 = vsel %vm2460, %v1696, %v2716
  %v2973 = vsel %vm2461, %v1699, %v2717
  %v2974 = vsel %vm2462, %v1704, %v2718
  %v2975 = vsel %vm2463, %v1707, %v2719
  %v2976 = vsel %vm2464, %v1712, %v2720
  %v2977 = vsel %vm2465, %v1715, %v2721
  %v2978 = vsel %vm2466, %v1720, %v2722
  %v2979 = vsel %vm2467, %v1723, %v2723
  %v2980 = vsel %vm2468, %v1728, %v2724
  %v2981 = vsel %vm2469, %v1731, %v2725
  %v2982 = vsel %vm2470, %v1736, %v2726
  %v2983 = vsel %vm2471, %v1739, %v2727
  %v2984 = vsel %vm2472, %v1744, %v2728
  %v2985 = vsel %vm2473, %v1747, %v2729
  %v2986 = vsel %vm2474, %v1752, %v2730
  %v2987 = vsel %vm2475, %v1755, %v2731
  %v2988 = vsel %vm2476, %v1760, %v2732
  %v2989 = vsel %vm2477, %v1763, %v2733
  %v2990 = vsel %vm2478, %v1768, %v2734
  %v2991 = vsel %vm2479, %v1771, %v2735
  %v2992 = vsel %vm2480, %v1776, %v2736
  %v2993 = vsel %vm2481, %v1779, %v2737
  %v2994 = vsel %vm2482, %v1784, %v2738
  %v2995 = vsel %vm2483, %v1787, %v2739
  %v2996 = vsel %vm2484, %v1792, %v2740
  %v2997 = vsel %vm2485, %v1795, %v2741
  %v2998 = vsel %vm2486, %v1800, %v2742
  %v2999 = vsel %vm2487, %v1803, %v2743
  %v3000 = vsel %vm2488, %v1808, %v2744
  %v3001 = vsel %vm2489, %v1811, %v2745
  %v3002 = vsel %vm2490, %v1816, %v2746
  %v3003 = vsel %vm2491, %v1819, %v2747
  %v3004 = vsel %vm2492, %v1824, %v2748
  %v3005 = vsel %vm2493, %v1827, %v2749
  %v3006 = vsel %vm2494, %v1832, %v2750
  %v3007 = vsel %vm2495, %v1835, %v2751
  %v3008 = vsel %vm2496, %v1840, %v2752
  %v3009 = vsel %vm2497, %v1843, %v2753
  %v3010 = vsel %vm2498, %v1848, %v2754
  %v3011 = vsel %vm2499, %v1851, %v2755
  %v3012 = vsel %vm2500, %v1856, %v2756
  %v3013 = vsel %vm2501, %v1859, %v2757
  %v3014 = vsel %vm2502, %v1864, %v2758
  %v3015 = vsel %vm2503, %v1867, %v2759
  %v3016 = vsel %vm2504, %v1872, %v2760
  %v3017 = vsel %vm2505, %v1875, %v2761
  %v3018 = vsel %vm2506, %v1880, %v2762
  %v3019 = vsel %vm2507, %v1883, %v2763
  %v3020 = vsel %vm2508, %v1888, %v2764
  %v3021 = vsel %vm2509, %v1891, %v2765
  %v3022 = vsel %vm2510, %v1896, %v2766
  %v3023 = vsel %vm2511, %v1899, %v2767
  %v3024 = vsel %vm2512, %v1904, %v2768
  %v3025 = vsel %vm2513, %v1907, %v2769
  %v3026 = vsel %vm2514, %v1912, %v2770
  %v3027 = vsel %vm2515, %v1915, %v2771
  %v3028 = vsel %vm2516, %v1920, %v2772
  %v3029 = vsel %vm2517, %v1923, %v2773
  %v3030 = vsel %vm2518, %v1928, %v2774
  %v3031 = vsel %vm2519, %v1931, %v2775
  %v3032 = vsel %vm2520, %v1936, %v2776
  %v3033 = vsel %vm2521, %v1939, %v2777
  %v3034 = vsel %vm2522, %v1944, %v2778
  %v3035 = vsel %vm2523, %v1947, %v2779
  %v3036 = vsel %vm2524, %v1952, %v2780
  %v3037 = vsel %vm2525, %v1955, %v2781
  %v3038 = vsel %vm2526, %v1960, %v2782
  %v3039 = vsel %vm2527, %v1963, %v2783
  %v3040 = vsel %vm2528, %v1968, %v2784
  %v3041 = vsel %vm2529, %v1971, %v2785
  %v3042 = vsel %vm2530, %v1976, %v2786
  %v3043 = vsel %vm2531, %v1979, %v2787
  %v3044 = vsel %vm2532, %v1984, %v2788
  %v3045 = vsel %vm2533, %v1987, %v2789
  %v3046 = vsel %vm2534, %v1992, %v2790
  %v3047 = vsel %vm2535, %v1995, %v2791
  %v3048 = vsel %vm2536, %v2000, %v2792
  %v3049 = vsel %vm2537, %v2003, %v2793
  %v3050 = vsel %vm2538, %v2008, %v2794
  %v3051 = vsel %vm2539, %v2011, %v2795
  %v3052 = vsel %vm2540, %v2016, %v2796
  %v3053 = vsel %vm2541, %v2019, %v2797
  %v3054 = vsel %vm2542, %v2024, %v2798
  %v3055 = vsel %vm2543, %v2027, %v2799
  %v3056 = vsel %vm2544, %v2032, %v2800
  %v3057 = vsel %vm2545, %v2035, %v2801
  %v3058 = vsel %vm2546, %v2040, %v2802
  %v3059 = vsel %vm2547, %v2043, %v2803
  %v3060 = vsel %vm2548, %v2048, %v2804
  %v3061 = vsel %vm2549, %v2051, %v2805
  %v3062 = vsel %vm2550, %v2056, %v2806
  %v3063 = vsel %vm2551, %v2059, %v2807
  %v3064 = vsel %vm2552, %v2064, %v2808
  %v3065 = vsel %vm2553, %v2067, %v2809
  %v3066 = vsel %vm2554, %v2072, %v2810
  %v3067 = vsel %vm2555, %v2075, %v2811
  %v3068 = vsel %vm2556, %v2080, %v2812
  %v3069 = vsel %vm2557, %v2083, %v2813
  %v3070 = vsel %vm2558, %v2088, %v2814
  %v3071 = vsel %vm2559, %v2091, %v2815
  %v3072 = vsel %vm2560, %v2096, %v2816
  %v3073 = vsel %vm2561, %v2099, %v2817
  %v3074 = vsel %vm2562, %v2104, %v2818
  %v3075 = vsel %vm2563, %v2107, %v2819
  %v3076 = vsel %vm2564, %v2112, %v2820
  %v3077 = vsel %vm2565, %v2115, %v2821
  %v3078 = vsel %vm2566, %v2120, %v2822
  %v3079 = vsel %vm2567, %v2123, %v2823
  %v3080 = vsel %vm2568, %v2128, %v2824
  %v3081 = vsel %vm2569, %v2131, %v2825
  %v3082 = vsel %vm2570, %v2136, %v2826
  %v3083 = vsel %vm2571, %v2139, %v2827
  %v3084 = vsel %vm2572, %v2144, %v2828
  %v3085 = vsel %vm2573, %v2147, %v2829
  %v3086 = vsel %vm2574, %v2152, %v2830
  %v3087 = vsel %vm2575, %v2155, %v2831
  %v3088 = vsel %vm2576, %v2160, %v2832
  %v3089 = vsel %vm2577, %v2163, %v2833
  %v3090 = vsel %vm2578, %v2168, %v2834
  %v3091 = vsel %vm2579, %v2171, %v2835
  %v3092 = vsel %vm2580, %v2176, %v2836
  %v3093 = vsel %vm2581, %v2179, %v2837
  %v3094 = vsel %vm2582, %v2184, %v2838
  %v3095 = vsel %vm2583, %v2187, %v2839
  %v3096 = vsel %vm2584, %v2192, %v2840
  %v3097 = vsel %vm2585, %v2195, %v2841
  %v3098 = vsel %vm2586, %v2200, %v2842
  %v3099 = vsel %vm2587, %v2203, %v2843
  %v3100 = vsel %vm2588, %v2208, %v2844
  %v3101 = vsel %vm2589, %v2211, %v2845
  %v3102 = vsel %vm2590, %v2216, %v2846
  %v3103 = vsel %vm2591, %v2219, %v2847
  %v3104 = vsel %vm2592, %v2224, %v2848
  %v3105 = vsel %vm2593, %v2227, %v2849
  %v3106 = vsel %vm2594, %v2232, %v2850
  %v3107 = vsel %vm2595, %v2235, %v2851
  %v3108 = vsel %vm2596, %v2240, %v2852
  %v3109 = vsel %vm2597, %v2243, %v2853
  %v3110 = vsel %vm2598, %v2248, %v2854
  %v3111 = vsel %vm2599, %v2251, %v2855
  %v3112 = vsel %vm2600, %v2256, %v2856
  %v3113 = vsel %vm2601, %v2259, %v2857
  %v3114 = vsel %vm2602, %v2264, %v2858
  %v3115 = vsel %vm2603, %v2267, %v2859
  %v3116 = vsel %vm2604, %v2272, %v2860
  %v3117 = vsel %vm2605, %v2275, %v2861
  %v3118 = vsel %vm2606, %v2280, %v2862
  %v3119 = vsel %vm2607, %v2283, %v2863
  %v3120 = vsel %vm2608, %v2288, %v2864
  %v3121 = vsel %vm2609, %v2291, %v2865
  %v3122 = vsel %vm2610, %v2296, %v2866
  %v3123 = vsel %vm2611, %v2299, %v2867
  %v3124 = vsel %vm2612, %v2304, %v2868
  %v3125 = vsel %vm2613, %v2307, %v2869
  %v3126 = vsel %vm2614, %v2312, %v2870
  %v3127 = vsel %vm2615, %v2315, %v2871
  %v3128 = vsel %vm2616, %v2320, %v2872
  %v3129 = vsel %vm2617, %v2323, %v2873
  %v3130 = vsel %vm2618, %v2328, %v2874
  %v3131 = vsel %vm2619, %v2331, %v2875
  %v3132 = vsel %vm2620, %v2336, %v2876
  %v3133 = vsel %vm2621, %v2339, %v2877
  %v3134 = vsel %vm2622, %v2344, %v2878
  %v3135 = vsel %vm2623, %v2347, %v2879
  %v3136 = vsel %vm2624, %v2352, %v2880
  %v3137 = vsel %vm2625, %v2355, %v2881
  %v3138 = vsel %vm2626, %v2360, %v2882
  %v3139 = vsel %vm2627, %v2363, %v2883
  %v3140 = vsel %vm2628, %v2368, %v2884
  %v3141 = vsel %vm2629, %v2371, %v2885
  %v3142 = vpack.c.bf16 %v2887, %v2886
  %v3143 = vpack.c.bf16 %v2889, %v2888
  %v3144 = vpack.c.bf16 %v2891, %v2890
  %v3145 = vpack.c.bf16 %v2893, %v2892
  %v3146 = vpack.c.bf16 %v2895, %v2894
  %v3147 = vpack.c.bf16 %v2897, %v2896
  %v3148 = vpack.c.bf16 %v2899, %v2898
  %v3149 = vpack.c.bf16 %v2901, %v2900
  %v3150 = vpack.c.bf16 %v2903, %v2902
  %v3151 = vpack.c.bf16 %v2905, %v2904
  %v3152 = vpack.c.bf16 %v2907, %v2906
  %v3153 = vpack.c.bf16 %v2909, %v2908
  %v3154 = vpack.c.bf16 %v2911, %v2910
  %v3155 = vpack.c.bf16 %v2913, %v2912
  %v3156 = vpack.c.bf16 %v2915, %v2914
  %v3157 = vpack.c.bf16 %v2917, %v2916
  %v3158 = vpack.c.bf16 %v2919, %v2918
  %v3159 = vpack.c.bf16 %v2921, %v2920
  %v3160 = vpack.c.bf16 %v2923, %v2922
  %v3161 = vpack.c.bf16 %v2925, %v2924
  %v3162 = vpack.c.bf16 %v2927, %v2926
  %v3163 = vpack.c.bf16 %v2929, %v2928
  %v3164 = vpack.c.bf16 %v2931, %v2930
  %v3165 = vpack.c.bf16 %v2933, %v2932
  %v3166 = vpack.c.bf16 %v2935, %v2934
  %v3167 = vpack.c.bf16 %v2937, %v2936
  %v3168 = vpack.c.bf16 %v2939, %v2938
  %v3169 = vpack.c.bf16 %v2941, %v2940
  %v3170 = vpack.c.bf16 %v2943, %v2942
  %v3171 = vpack.c.bf16 %v2945, %v2944
  %v3172 = vpack.c.bf16 %v2947, %v2946
  %v3173 = vpack.c.bf16 %v2949, %v2948
  %v3174 = vpack.c.bf16 %v2951, %v2950
  %v3175 = vpack.c.bf16 %v2953, %v2952
  %v3176 = vpack.c.bf16 %v2955, %v2954
  %v3177 = vpack.c.bf16 %v2957, %v2956
  %v3178 = vpack.c.bf16 %v2959, %v2958
  %v3179 = vpack.c.bf16 %v2961, %v2960
  %v3180 = vpack.c.bf16 %v2963, %v2962
  %v3181 = vpack.c.bf16 %v2965, %v2964
  %v3182 = vpack.c.bf16 %v2967, %v2966
  %v3183 = vpack.c.bf16 %v2969, %v2968
  %v3184 = vpack.c.bf16 %v2971, %v2970
  %v3185 = vpack.c.bf16 %v2973, %v2972
  %v3186 = vpack.c.bf16 %v2975, %v2974
  %v3187 = vpack.c.bf16 %v2977, %v2976
  %v3188 = vpack.c.bf16 %v2979, %v2978
  %v3189 = vpack.c.bf16 %v2981, %v2980
  %v3190 = vpack.c.bf16 %v2983, %v2982
  %v3191 = vpack.c.bf16 %v2985, %v2984
  %v3192 = vpack.c.bf16 %v2987, %v2986
  %v3193 = vpack.c.bf16 %v2989, %v2988
  %v3194 = vpack.c.bf16 %v2991, %v2990
  %v3195 = vpack.c.bf16 %v2993, %v2992
  %v3196 = vpack.c.bf16 %v2995, %v2994
  %v3197 = vpack.c.bf16 %v2997, %v2996
  %v3198 = vpack.c.bf16 %v2999, %v2998
  %v3199 = vpack.c.bf16 %v3001, %v3000
  %v3200 = vpack.c.bf16 %v3003, %v3002
  %v3201 = vpack.c.bf16 %v3005, %v3004
  %v3202 = vpack.c.bf16 %v3007, %v3006
  %v3203 = vpack.c.bf16 %v3009, %v3008
  %v3204 = vpack.c.bf16 %v3011, %v3010
  %v3205 = vpack.c.bf16 %v3013, %v3012
  %v3206 = vpack.c.bf16 %v3015, %v3014
  %v3207 = vpack.c.bf16 %v3017, %v3016
  %v3208 = vpack.c.bf16 %v3019, %v3018
  %v3209 = vpack.c.bf16 %v3021, %v3020
  %v3210 = vpack.c.bf16 %v3023, %v3022
  %v3211 = vpack.c.bf16 %v3025, %v3024
  %v3212 = vpack.c.bf16 %v3027, %v3026
  %v3213 = vpack.c.bf16 %v3029, %v3028
  %v3214 = vpack.c.bf16 %v3031, %v3030
  %v3215 = vpack.c.bf16 %v3033, %v3032
  %v3216 = vpack.c.bf16 %v3035, %v3034
  %v3217 = vpack.c.bf16 %v3037, %v3036
  %v3218 = vpack.c.bf16 %v3039, %v3038
  %v3219 = vpack.c.bf16 %v3041, %v3040
  %v3220 = vpack.c.bf16 %v3043, %v3042
  %v3221 = vpack.c.bf16 %v3045, %v3044
  %v3222 = vpack.c.bf16 %v3047, %v3046
  %v3223 = vpack.c.bf16 %v3049, %v3048
  %v3224 = vpack.c.bf16 %v3051, %v3050
  %v3225 = vpack.c.bf16 %v3053, %v3052
  %v3226 = vpack.c.bf16 %v3055, %v3054
  %v3227 = vpack.c.bf16 %v3057, %v3056
  %v3228 = vpack.c.bf16 %v3059, %v3058
  %v3229 = vpack.c.bf16 %v3061, %v3060
  %v3230 = vpack.c.bf16 %v3063, %v3062
  %v3231 = vpack.c.bf16 %v3065, %v3064
  %v3232 = vpack.c.bf16 %v3067, %v3066
  %v3233 = vpack.c.bf16 %v3069, %v3068
  %v3234 = vpack.c.bf16 %v3071, %v3070
  %v3235 = vpack.c.bf16 %v3073, %v3072
  %v3236 = vpack.c.bf16 %v3075, %v3074
  %v3237 = vpack.c.bf16 %v3077, %v3076
  %v3238 = vpack.c.bf16 %v3079, %v3078
  %v3239 = vpack.c.bf16 %v3081, %v3080
  %v3240 = vpack.c.bf16 %v3083, %v3082
  %v3241 = vpack.c.bf16 %v3085, %v3084
  %v3242 = vpack.c.bf16 %v3087, %v3086
  %v3243 = vpack.c.bf16 %v3089, %v3088
  %v3244 = vpack.c.bf16 %v3091, %v3090
  %v3245 = vpack.c.bf16 %v3093, %v3092
  %v3246 = vpack.c.bf16 %v3095, %v3094
  %v3247 = vpack.c.bf16 %v3097, %v3096
  %v3248 = vpack.c.bf16 %v3099, %v3098
  %v3249 = vpack.c.bf16 %v3101, %v3100
  %v3250 = vpack.c.bf16 %v3103, %v3102
  %v3251 = vpack.c.bf16 %v3105, %v3104
  %v3252 = vpack.c.bf16 %v3107, %v3106
  %v3253 = vpack.c.bf16 %v3109, %v3108
  %v3254 = vpack.c.bf16 %v3111, %v3110
  %v3255 = vpack.c.bf16 %v3113, %v3112
  %v3256 = vpack.c.bf16 %v3115, %v3114
  %v3257 = vpack.c.bf16 %v3117, %v3116
  %v3258 = vpack.c.bf16 %v3119, %v3118
  %v3259 = vpack.c.bf16 %v3121, %v3120
  %v3260 = vpack.c.bf16 %v3123, %v3122
  %v3261 = vpack.c.bf16 %v3125, %v3124
  %v3262 = vpack.c.bf16 %v3127, %v3126
  %v3263 = vpack.c.bf16 %v3129, %v3128
  %v3264 = vpack.c.bf16 %v3131, %v3130
  %v3265 = vpack.c.bf16 %v3133, %v3132
  %v3266 = vpack.c.bf16 %v3135, %v3134
  %v3267 = vpack.c.bf16 %v3137, %v3136
  %v3268 = vpack.c.bf16 %v3139, %v3138
  %v3269 = vpack.c.bf16 %v3141, %v3140
  %v3398 = vunpack.c.l.b16 %v3142
  %v3399 = vunpack.c.h.b16 %v3142
  %v3400 = vunpack.c.l.b16 %v3143
  %v3401 = vunpack.c.h.b16 %v3143
  %v3402 = vunpack.c.l.b16 %v3144
  %v3403 = vunpack.c.h.b16 %v3144
  %v3404 = vunpack.c.l.b16 %v3145
  %v3405 = vunpack.c.h.b16 %v3145
  %v3406 = vunpack.c.l.b16 %v3146
  %v3407 = vunpack.c.h.b16 %v3146
  %v3408 = vunpack.c.l.b16 %v3147
  %v3409 = vunpack.c.h.b16 %v3147
  %v3410 = vunpack.c.l.b16 %v3148
  %v3411 = vunpack.c.h.b16 %v3148
  %v3412 = vunpack.c.l.b16 %v3149
  %v3413 = vunpack.c.h.b16 %v3149
  %v3414 = vunpack.c.l.b16 %v3150
  %v3415 = vunpack.c.h.b16 %v3150
  %v3416 = vunpack.c.l.b16 %v3151
  %v3417 = vunpack.c.h.b16 %v3151
  %v3418 = vunpack.c.l.b16 %v3152
  %v3419 = vunpack.c.h.b16 %v3152
  %v3420 = vunpack.c.l.b16 %v3153
  %v3421 = vunpack.c.h.b16 %v3153
  %v3422 = vunpack.c.l.b16 %v3154
  %v3423 = vunpack.c.h.b16 %v3154
  %v3424 = vunpack.c.l.b16 %v3155
  %v3425 = vunpack.c.h.b16 %v3155
  %v3426 = vunpack.c.l.b16 %v3156
  %v3427 = vunpack.c.h.b16 %v3156
  %v3428 = vunpack.c.l.b16 %v3157
  %v3429 = vunpack.c.h.b16 %v3157
  %v3430 = vunpack.c.l.b16 %v3158
  %v3431 = vunpack.c.h.b16 %v3158
  %v3432 = vunpack.c.l.b16 %v3159
  %v3433 = vunpack.c.h.b16 %v3159
  %v3434 = vunpack.c.l.b16 %v3160
  %v3435 = vunpack.c.h.b16 %v3160
  %v3436 = vunpack.c.l.b16 %v3161
  %v3437 = vunpack.c.h.b16 %v3161
  %v3438 = vunpack.c.l.b16 %v3162
  %v3439 = vunpack.c.h.b16 %v3162
  %v3440 = vunpack.c.l.b16 %v3163
  %v3441 = vunpack.c.h.b16 %v3163
  %v3442 = vunpack.c.l.b16 %v3164
  %v3443 = vunpack.c.h.b16 %v3164
  %v3444 = vunpack.c.l.b16 %v3165
  %v3445 = vunpack.c.h.b16 %v3165
  %v3446 = vunpack.c.l.b16 %v3166
  %v3447 = vunpack.c.h.b16 %v3166
  %v3448 = vunpack.c.l.b16 %v3167
  %v3449 = vunpack.c.h.b16 %v3167
  %v3450 = vunpack.c.l.b16 %v3168
  %v3451 = vunpack.c.h.b16 %v3168
  %v3452 = vunpack.c.l.b16 %v3169
  %v3453 = vunpack.c.h.b16 %v3169
  %v3454 = vunpack.c.l.b16 %v3170
  %v3455 = vunpack.c.h.b16 %v3170
  %v3456 = vunpack.c.l.b16 %v3171
  %v3457 = vunpack.c.h.b16 %v3171
  %v3458 = vunpack.c.l.b16 %v3172
  %v3459 = vunpack.c.h.b16 %v3172
  %v3460 = vunpack.c.l.b16 %v3173
  %v3461 = vunpack.c.h.b16 %v3173
  %v3462 = vunpack.c.l.b16 %v3174
  %v3463 = vunpack.c.h.b16 %v3174
  %v3464 = vunpack.c.l.b16 %v3175
  %v3465 = vunpack.c.h.b16 %v3175
  %v3466 = vunpack.c.l.b16 %v3176
  %v3467 = vunpack.c.h.b16 %v3176
  %v3468 = vunpack.c.l.b16 %v3177
  %v3469 = vunpack.c.h.b16 %v3177
  %v3470 = vunpack.c.l.b16 %v3178
  %v3471 = vunpack.c.h.b16 %v3178
  %v3472 = vunpack.c.l.b16 %v3179
  %v3473 = vunpack.c.h.b16 %v3179
  %v3474 = vunpack.c.l.b16 %v3180
  %v3475 = vunpack.c.h.b16 %v3180
  %v3476 = vunpack.c.l.b16 %v3181
  %v3477 = vunpack.c.h.b16 %v3181
  %v3478 = vunpack.c.l.b16 %v3182
  %v3479 = vunpack.c.h.b16 %v3182
  %v3480 = vunpack.c.l.b16 %v3183
  %v3481 = vunpack.c.h.b16 %v3183
  %v3482 = vunpack.c.l.b16 %v3184
  %v3483 = vunpack.c.h.b16 %v3184
  %v3484 = vunpack.c.l.b16 %v3185
  %v3485 = vunpack.c.h.b16 %v3185
  %v3486 = vunpack.c.l.b16 %v3186
  %v3487 = vunpack.c.h.b16 %v3186
  %v3488 = vunpack.c.l.b16 %v3187
  %v3489 = vunpack.c.h.b16 %v3187
  %v3490 = vunpack.c.l.b16 %v3188
  %v3491 = vunpack.c.h.b16 %v3188
  %v3492 = vunpack.c.l.b16 %v3189
  %v3493 = vunpack.c.h.b16 %v3189
  %v3494 = vunpack.c.l.b16 %v3190
  %v3495 = vunpack.c.h.b16 %v3190
  %v3496 = vunpack.c.l.b16 %v3191
  %v3497 = vunpack.c.h.b16 %v3191
  %v3498 = vunpack.c.l.b16 %v3192
  %v3499 = vunpack.c.h.b16 %v3192
  %v3500 = vunpack.c.l.b16 %v3193
  %v3501 = vunpack.c.h.b16 %v3193
  %v3502 = vunpack.c.l.b16 %v3194
  %v3503 = vunpack.c.h.b16 %v3194
  %v3504 = vunpack.c.l.b16 %v3195
  %v3505 = vunpack.c.h.b16 %v3195
  %v3506 = vunpack.c.l.b16 %v3196
  %v3507 = vunpack.c.h.b16 %v3196
  %v3508 = vunpack.c.l.b16 %v3197
  %v3509 = vunpack.c.h.b16 %v3197
  %v3510 = vunpack.c.l.b16 %v3198
  %v3511 = vunpack.c.h.b16 %v3198
  %v3512 = vunpack.c.l.b16 %v3199
  %v3513 = vunpack.c.h.b16 %v3199
  %v3514 = vunpack.c.l.b16 %v3200
  %v3515 = vunpack.c.h.b16 %v3200
  %v3516 = vunpack.c.l.b16 %v3201
  %v3517 = vunpack.c.h.b16 %v3201
  %v3518 = vunpack.c.l.b16 %v3202
  %v3519 = vunpack.c.h.b16 %v3202
  %v3520 = vunpack.c.l.b16 %v3203
  %v3521 = vunpack.c.h.b16 %v3203
  %v3522 = vunpack.c.l.b16 %v3204
  %v3523 = vunpack.c.h.b16 %v3204
  %v3524 = vunpack.c.l.b16 %v3205
  %v3525 = vunpack.c.h.b16 %v3205
  %v3526 = vunpack.c.l.b16 %v3206
  %v3527 = vunpack.c.h.b16 %v3206
  %v3528 = vunpack.c.l.b16 %v3207
  %v3529 = vunpack.c.h.b16 %v3207
  %v3530 = vunpack.c.l.b16 %v3208
  %v3531 = vunpack.c.h.b16 %v3208
  %v3532 = vunpack.c.l.b16 %v3209
  %v3533 = vunpack.c.h.b16 %v3209
  %v3534 = vunpack.c.l.b16 %v3210
  %v3535 = vunpack.c.h.b16 %v3210
  %v3536 = vunpack.c.l.b16 %v3211
  %v3537 = vunpack.c.h.b16 %v3211
  %v3538 = vunpack.c.l.b16 %v3212
  %v3539 = vunpack.c.h.b16 %v3212
  %v3540 = vunpack.c.l.b16 %v3213
  %v3541 = vunpack.c.h.b16 %v3213
  %v3542 = vunpack.c.l.b16 %v3214
  %v3543 = vunpack.c.h.b16 %v3214
  %v3544 = vunpack.c.l.b16 %v3215
  %v3545 = vunpack.c.h.b16 %v3215
  %v3546 = vunpack.c.l.b16 %v3216
  %v3547 = vunpack.c.h.b16 %v3216
  %v3548 = vunpack.c.l.b16 %v3217
  %v3549 = vunpack.c.h.b16 %v3217
  %v3550 = vunpack.c.l.b16 %v3218
  %v3551 = vunpack.c.h.b16 %v3218
  %v3552 = vunpack.c.l.b16 %v3219
  %v3553 = vunpack.c.h.b16 %v3219
  %v3554 = vunpack.c.l.b16 %v3220
  %v3555 = vunpack.c.h.b16 %v3220
  %v3556 = vunpack.c.l.b16 %v3221
  %v3557 = vunpack.c.h.b16 %v3221
  %v3558 = vunpack.c.l.b16 %v3222
  %v3559 = vunpack.c.h.b16 %v3222
  %v3560 = vunpack.c.l.b16 %v3223
  %v3561 = vunpack.c.h.b16 %v3223
  %v3562 = vunpack.c.l.b16 %v3224
  %v3563 = vunpack.c.h.b16 %v3224
  %v3564 = vunpack.c.l.b16 %v3225
  %v3565 = vunpack.c.h.b16 %v3225
  %v3566 = vunpack.c.l.b16 %v3226
  %v3567 = vunpack.c.h.b16 %v3226
  %v3568 = vunpack.c.l.b16 %v3227
  %v3569 = vunpack.c.h.b16 %v3227
  %v3570 = vunpack.c.l.b16 %v3228
  %v3571 = vunpack.c.h.b16 %v3228
  %v3572 = vunpack.c.l.b16 %v3229
  %v3573 = vunpack.c.h.b16 %v3229
  %v3574 = vunpack.c.l.b16 %v3230
  %v3575 = vunpack.c.h.b16 %v3230
  %v3576 = vunpack.c.l.b16 %v3231
  %v3577 = vunpack.c.h.b16 %v3231
  %v3578 = vunpack.c.l.b16 %v3232
  %v3579 = vunpack.c.h.b16 %v3232
  %v3580 = vunpack.c.l.b16 %v3233
  %v3581 = vunpack.c.h.b16 %v3233
  %v3582 = vunpack.c.l.b16 %v3234
  %v3583 = vunpack.c.h.b16 %v3234
  %v3584 = vunpack.c.l.b16 %v3235
  %v3585 = vunpack.c.h.b16 %v3235
  %v3586 = vunpack.c.l.b16 %v3236
  %v3587 = vunpack.c.h.b16 %v3236
  %v3588 = vunpack.c.l.b16 %v3237
  %v3589 = vunpack.c.h.b16 %v3237
  %v3590 = vunpack.c.l.b16 %v3238
  %v3591 = vunpack.c.h.b16 %v3238
  %v3592 = vunpack.c.l.b16 %v3239
  %v3593 = vunpack.c.h.b16 %v3239
  %v3594 = vunpack.c.l.b16 %v3240
  %v3595 = vunpack.c.h.b16 %v3240
  %v3596 = vunpack.c.l.b16 %v3241
  %v3597 = vunpack.c.h.b16 %v3241
  %v3598 = vunpack.c.l.b16 %v3242
  %v3599 = vunpack.c.h.b16 %v3242
  %v3600 = vunpack.c.l.b16 %v3243
  %v3601 = vunpack.c.h.b16 %v3243
  %v3602 = vunpack.c.l.b16 %v3244
  %v3603 = vunpack.c.h.b16 %v3244
  %v3604 = vunpack.c.l.b16 %v3245
  %v3605 = vunpack.c.h.b16 %v3245
  %v3606 = vunpack.c.l.b16 %v3246
  %v3607 = vunpack.c.h.b16 %v3246
  %v3608 = vunpack.c.l.b16 %v3247
  %v3609 = vunpack.c.h.b16 %v3247
  %v3610 = vunpack.c.l.b16 %v3248
  %v3611 = vunpack.c.h.b16 %v3248
  %v3612 = vunpack.c.l.b16 %v3249
  %v3613 = vunpack.c.h.b16 %v3249
  %v3614 = vunpack.c.l.b16 %v3250
  %v3615 = vunpack.c.h.b16 %v3250
  %v3616 = vunpack.c.l.b16 %v3251
  %v3617 = vunpack.c.h.b16 %v3251
  %v3618 = vunpack.c.l.b16 %v3252
  %v3619 = vunpack.c.h.b16 %v3252
  %v3620 = vunpack.c.l.b16 %v3253
  %v3621 = vunpack.c.h.b16 %v3253
  %v3622 = vunpack.c.l.b16 %v3254
  %v3623 = vunpack.c.h.b16 %v3254
  %v3624 = vunpack.c.l.b16 %v3255
  %v3625 = vunpack.c.h.b16 %v3255
  %v3626 = vunpack.c.l.b16 %v3256
  %v3627 = vunpack.c.h.b16 %v3256
  %v3628 = vunpack.c.l.b16 %v3257
  %v3629 = vunpack.c.h.b16 %v3257
  %v3630 = vunpack.c.l.b16 %v3258
  %v3631 = vunpack.c.h.b16 %v3258
  %v3632 = vunpack.c.l.b16 %v3259
  %v3633 = vunpack.c.h.b16 %v3259
  %v3634 = vunpack.c.l.b16 %v3260
  %v3635 = vunpack.c.h.b16 %v3260
  %v3636 = vunpack.c.l.b16 %v3261
  %v3637 = vunpack.c.h.b16 %v3261
  %v3638 = vunpack.c.l.b16 %v3262
  %v3639 = vunpack.c.h.b16 %v3262
  %v3640 = vunpack.c.l.b16 %v3263
  %v3641 = vunpack.c.h.b16 %v3263
  %v3642 = vunpack.c.l.b16 %v3264
  %v3643 = vunpack.c.h.b16 %v3264
  %v3644 = vunpack.c.l.b16 %v3265
  %v3645 = vunpack.c.h.b16 %v3265
  %v3646 = vunpack.c.l.b16 %v3266
  %v3647 = vunpack.c.h.b16 %v3266
  %v3648 = vunpack.c.l.b16 %v3267
  %v3649 = vunpack.c.h.b16 %v3267
  %v3650 = vunpack.c.l.b16 %v3268
  %v3651 = vunpack.c.h.b16 %v3268
  %v3652 = vunpack.c.l.b16 %v3269
  %v3653 = vunpack.c.h.b16 %v3269
  %v3654 = vpack.c.b16 %v3398, %v3398
  %v3655 = vpack.c.b16 %v3399, %v3399
  %v3656 = vpack.c.b16 %v3400, %v3400
  %v3657 = vpack.c.b16 %v3401, %v3401
  %v3658 = vpack.c.b16 %v3402, %v3402
  %v3659 = vpack.c.b16 %v3403, %v3403
  %v3660 = vpack.c.b16 %v3404, %v3404
  %v3661 = vpack.c.b16 %v3405, %v3405
  %v3662 = vpack.c.b16 %v3406, %v3406
  %v3663 = vpack.c.b16 %v3407, %v3407
  %v3664 = vpack.c.b16 %v3408, %v3408
  %v3665 = vpack.c.b16 %v3409, %v3409
  %v3666 = vpack.c.b16 %v3410, %v3410
  %v3667 = vpack.c.b16 %v3411, %v3411
  %v3668 = vpack.c.b16 %v3412, %v3412
  %v3669 = vpack.c.b16 %v3413, %v3413
  %v3670 = vpack.c.b16 %v3414, %v3414
  %v3671 = vpack.c.b16 %v3415, %v3415
  %v3672 = vpack.c.b16 %v3416, %v3416
  %v3673 = vpack.c.b16 %v3417, %v3417
  %v3674 = vpack.c.b16 %v3418, %v3418
  %v3675 = vpack.c.b16 %v3419, %v3419
  %v3676 = vpack.c.b16 %v3420, %v3420
  %v3677 = vpack.c.b16 %v3421, %v3421
  %v3678 = vpack.c.b16 %v3422, %v3422
  %v3679 = vpack.c.b16 %v3423, %v3423
  %v3680 = vpack.c.b16 %v3424, %v3424
  %v3681 = vpack.c.b16 %v3425, %v3425
  %v3682 = vpack.c.b16 %v3426, %v3426
  %v3683 = vpack.c.b16 %v3427, %v3427
  %v3684 = vpack.c.b16 %v3428, %v3428
  %v3685 = vpack.c.b16 %v3429, %v3429
  %v3686 = vpack.c.b16 %v3430, %v3430
  %v3687 = vpack.c.b16 %v3431, %v3431
  %v3688 = vpack.c.b16 %v3432, %v3432
  %v3689 = vpack.c.b16 %v3433, %v3433
  %v3690 = vpack.c.b16 %v3434, %v3434
  %v3691 = vpack.c.b16 %v3435, %v3435
  %v3692 = vpack.c.b16 %v3436, %v3436
  %v3693 = vpack.c.b16 %v3437, %v3437
  %v3694 = vpack.c.b16 %v3438, %v3438
  %v3695 = vpack.c.b16 %v3439, %v3439
  %v3696 = vpack.c.b16 %v3440, %v3440
  %v3697 = vpack.c.b16 %v3441, %v3441
  %v3698 = vpack.c.b16 %v3442, %v3442
  %v3699 = vpack.c.b16 %v3443, %v3443
  %v3700 = vpack.c.b16 %v3444, %v3444
  %v3701 = vpack.c.b16 %v3445, %v3445
  %v3702 = vpack.c.b16 %v3446, %v3446
  %v3703 = vpack.c.b16 %v3447, %v3447
  %v3704 = vpack.c.b16 %v3448, %v3448
  %v3705 = vpack.c.b16 %v3449, %v3449
  %v3706 = vpack.c.b16 %v3450, %v3450
  %v3707 = vpack.c.b16 %v3451, %v3451
  %v3708 = vpack.c.b16 %v3452, %v3452
  %v3709 = vpack.c.b16 %v3453, %v3453
  %v3710 = vpack.c.b16 %v3454, %v3454
  %v3711 = vpack.c.b16 %v3455, %v3455
  %v3712 = vpack.c.b16 %v3456, %v3456
  %v3713 = vpack.c.b16 %v3457, %v3457
  %v3714 = vpack.c.b16 %v3458, %v3458
  %v3715 = vpack.c.b16 %v3459, %v3459
  %v3716 = vpack.c.b16 %v3460, %v3460
  %v3717 = vpack.c.b16 %v3461, %v3461
  %v3718 = vpack.c.b16 %v3462, %v3462
  %v3719 = vpack.c.b16 %v3463, %v3463
  %v3720 = vpack.c.b16 %v3464, %v3464
  %v3721 = vpack.c.b16 %v3465, %v3465
  %v3722 = vpack.c.b16 %v3466, %v3466
  %v3723 = vpack.c.b16 %v3467, %v3467
  %v3724 = vpack.c.b16 %v3468, %v3468
  %v3725 = vpack.c.b16 %v3469, %v3469
  %v3726 = vpack.c.b16 %v3470, %v3470
  %v3727 = vpack.c.b16 %v3471, %v3471
  %v3728 = vpack.c.b16 %v3472, %v3472
  %v3729 = vpack.c.b16 %v3473, %v3473
  %v3730 = vpack.c.b16 %v3474, %v3474
  %v3731 = vpack.c.b16 %v3475, %v3475
  %v3732 = vpack.c.b16 %v3476, %v3476
  %v3733 = vpack.c.b16 %v3477, %v3477
  %v3734 = vpack.c.b16 %v3478, %v3478
  %v3735 = vpack.c.b16 %v3479, %v3479
  %v3736 = vpack.c.b16 %v3480, %v3480
  %v3737 = vpack.c.b16 %v3481, %v3481
  %v3738 = vpack.c.b16 %v3482, %v3482
  %v3739 = vpack.c.b16 %v3483, %v3483
  %v3740 = vpack.c.b16 %v3484, %v3484
  %v3741 = vpack.c.b16 %v3485, %v3485
  %v3742 = vpack.c.b16 %v3486, %v3486
  %v3743 = vpack.c.b16 %v3487, %v3487
  %v3744 = vpack.c.b16 %v3488, %v3488
  %v3745 = vpack.c.b16 %v3489, %v3489
  %v3746 = vpack.c.b16 %v3490, %v3490
  %v3747 = vpack.c.b16 %v3491, %v3491
  %v3748 = vpack.c.b16 %v3492, %v3492
  %v3749 = vpack.c.b16 %v3493, %v3493
  %v3750 = vpack.c.b16 %v3494, %v3494
  %v3751 = vpack.c.b16 %v3495, %v3495
  %v3752 = vpack.c.b16 %v3496, %v3496
  %v3753 = vpack.c.b16 %v3497, %v3497
  %v3754 = vpack.c.b16 %v3498, %v3498
  %v3755 = vpack.c.b16 %v3499, %v3499
  %v3756 = vpack.c.b16 %v3500, %v3500
  %v3757 = vpack.c.b16 %v3501, %v3501
  %v3758 = vpack.c.b16 %v3502, %v3502
  %v3759 = vpack.c.b16 %v3503, %v3503
  %v3760 = vpack.c.b16 %v3504, %v3504
  %v3761 = vpack.c.b16 %v3505, %v3505
  %v3762 = vpack.c.b16 %v3506, %v3506
  %v3763 = vpack.c.b16 %v3507, %v3507
  %v3764 = vpack.c.b16 %v3508, %v3508
  %v3765 = vpack.c.b16 %v3509, %v3509
  %v3766 = vpack.c.b16 %v3510, %v3510
  %v3767 = vpack.c.b16 %v3511, %v3511
  %v3768 = vpack.c.b16 %v3512, %v3512
  %v3769 = vpack.c.b16 %v3513, %v3513
  %v3770 = vpack.c.b16 %v3514, %v3514
  %v3771 = vpack.c.b16 %v3515, %v3515
  %v3772 = vpack.c.b16 %v3516, %v3516
  %v3773 = vpack.c.b16 %v3517, %v3517
  %v3774 = vpack.c.b16 %v3518, %v3518
  %v3775 = vpack.c.b16 %v3519, %v3519
  %v3776 = vpack.c.b16 %v3520, %v3520
  %v3777 = vpack.c.b16 %v3521, %v3521
  %v3778 = vpack.c.b16 %v3522, %v3522
  %v3779 = vpack.c.b16 %v3523, %v3523
  %v3780 = vpack.c.b16 %v3524, %v3524
  %v3781 = vpack.c.b16 %v3525, %v3525
  %v3782 = vpack.c.b16 %v3526, %v3526
  %v3783 = vpack.c.b16 %v3527, %v3527
  %v3784 = vpack.c.b16 %v3528, %v3528
  %v3785 = vpack.c.b16 %v3529, %v3529
  %v3786 = vpack.c.b16 %v3530, %v3530
  %v3787 = vpack.c.b16 %v3531, %v3531
  %v3788 = vpack.c.b16 %v3532, %v3532
  %v3789 = vpack.c.b16 %v3533, %v3533
  %v3790 = vpack.c.b16 %v3534, %v3534
  %v3791 = vpack.c.b16 %v3535, %v3535
  %v3792 = vpack.c.b16 %v3536, %v3536
  %v3793 = vpack.c.b16 %v3537, %v3537
  %v3794 = vpack.c.b16 %v3538, %v3538
  %v3795 = vpack.c.b16 %v3539, %v3539
  %v3796 = vpack.c.b16 %v3540, %v3540
  %v3797 = vpack.c.b16 %v3541, %v3541
  %v3798 = vpack.c.b16 %v3542, %v3542
  %v3799 = vpack.c.b16 %v3543, %v3543
  %v3800 = vpack.c.b16 %v3544, %v3544
  %v3801 = vpack.c.b16 %v3545, %v3545
  %v3802 = vpack.c.b16 %v3546, %v3546
  %v3803 = vpack.c.b16 %v3547, %v3547
  %v3804 = vpack.c.b16 %v3548, %v3548
  %v3805 = vpack.c.b16 %v3549, %v3549
  %v3806 = vpack.c.b16 %v3550, %v3550
  %v3807 = vpack.c.b16 %v3551, %v3551
  %v3808 = vpack.c.b16 %v3552, %v3552
  %v3809 = vpack.c.b16 %v3553, %v3553
  %v3810 = vpack.c.b16 %v3554, %v3554
  %v3811 = vpack.c.b16 %v3555, %v3555
  %v3812 = vpack.c.b16 %v3556, %v3556
  %v3813 = vpack.c.b16 %v3557, %v3557
  %v3814 = vpack.c.b16 %v3558, %v3558
  %v3815 = vpack.c.b16 %v3559, %v3559
  %v3816 = vpack.c.b16 %v3560, %v3560
  %v3817 = vpack.c.b16 %v3561, %v3561
  %v3818 = vpack.c.b16 %v3562, %v3562
  %v3819 = vpack.c.b16 %v3563, %v3563
  %v3820 = vpack.c.b16 %v3564, %v3564
  %v3821 = vpack.c.b16 %v3565, %v3565
  %v3822 = vpack.c.b16 %v3566, %v3566
  %v3823 = vpack.c.b16 %v3567, %v3567
  %v3824 = vpack.c.b16 %v3568, %v3568
  %v3825 = vpack.c.b16 %v3569, %v3569
  %v3826 = vpack.c.b16 %v3570, %v3570
  %v3827 = vpack.c.b16 %v3571, %v3571
  %v3828 = vpack.c.b16 %v3572, %v3572
  %v3829 = vpack.c.b16 %v3573, %v3573
  %v3830 = vpack.c.b16 %v3574, %v3574
  %v3831 = vpack.c.b16 %v3575, %v3575
  %v3832 = vpack.c.b16 %v3576, %v3576
  %v3833 = vpack.c.b16 %v3577, %v3577
  %v3834 = vpack.c.b16 %v3578, %v3578
  %v3835 = vpack.c.b16 %v3579, %v3579
  %v3836 = vpack.c.b16 %v3580, %v3580
  %v3837 = vpack.c.b16 %v3581, %v3581
  %v3838 = vpack.c.b16 %v3582, %v3582
  %v3839 = vpack.c.b16 %v3583, %v3583
  %v3840 = vpack.c.b16 %v3584, %v3584
  %v3841 = vpack.c.b16 %v3585, %v3585
  %v3842 = vpack.c.b16 %v3586, %v3586
  %v3843 = vpack.c.b16 %v3587, %v3587
  %v3844 = vpack.c.b16 %v3588, %v3588
  %v3845 = vpack.c.b16 %v3589, %v3589
  %v3846 = vpack.c.b16 %v3590, %v3590
  %v3847 = vpack.c.b16 %v3591, %v3591
  %v3848 = vpack.c.b16 %v3592, %v3592
  %v3849 = vpack.c.b16 %v3593, %v3593
  %v3850 = vpack.c.b16 %v3594, %v3594
  %v3851 = vpack.c.b16 %v3595, %v3595
  %v3852 = vpack.c.b16 %v3596, %v3596
  %v3853 = vpack.c.b16 %v3597, %v3597
  %v3854 = vpack.c.b16 %v3598, %v3598
  %v3855 = vpack.c.b16 %v3599, %v3599
  %v3856 = vpack.c.b16 %v3600, %v3600
  %v3857 = vpack.c.b16 %v3601, %v3601
  %v3858 = vpack.c.b16 %v3602, %v3602
  %v3859 = vpack.c.b16 %v3603, %v3603
  %v3860 = vpack.c.b16 %v3604, %v3604
  %v3861 = vpack.c.b16 %v3605, %v3605
  %v3862 = vpack.c.b16 %v3606, %v3606
  %v3863 = vpack.c.b16 %v3607, %v3607
  %v3864 = vpack.c.b16 %v3608, %v3608
  %v3865 = vpack.c.b16 %v3609, %v3609
  %v3866 = vpack.c.b16 %v3610, %v3610
  %v3867 = vpack.c.b16 %v3611, %v3611
  %v3868 = vpack.c.b16 %v3612, %v3612
  %v3869 = vpack.c.b16 %v3613, %v3613
  %v3870 = vpack.c.b16 %v3614, %v3614
  %v3871 = vpack.c.b16 %v3615, %v3615
  %v3872 = vpack.c.b16 %v3616, %v3616
  %v3873 = vpack.c.b16 %v3617, %v3617
  %v3874 = vpack.c.b16 %v3618, %v3618
  %v3875 = vpack.c.b16 %v3619, %v3619
  %v3876 = vpack.c.b16 %v3620, %v3620
  %v3877 = vpack.c.b16 %v3621, %v3621
  %v3878 = vpack.c.b16 %v3622, %v3622
  %v3879 = vpack.c.b16 %v3623, %v3623
  %v3880 = vpack.c.b16 %v3624, %v3624
  %v3881 = vpack.c.b16 %v3625, %v3625
  %v3882 = vpack.c.b16 %v3626, %v3626
  %v3883 = vpack.c.b16 %v3627, %v3627
  %v3884 = vpack.c.b16 %v3628, %v3628
  %v3885 = vpack.c.b16 %v3629, %v3629
  %v3886 = vpack.c.b16 %v3630, %v3630
  %v3887 = vpack.c.b16 %v3631, %v3631
  %v3888 = vpack.c.b16 %v3632, %v3632
  %v3889 = vpack.c.b16 %v3633, %v3633
  %v3890 = vpack.c.b16 %v3634, %v3634
  %v3891 = vpack.c.b16 %v3635, %v3635
  %v3892 = vpack.c.b16 %v3636, %v3636
  %v3893 = vpack.c.b16 %v3637, %v3637
  %v3894 = vpack.c.b16 %v3638, %v3638
  %v3895 = vpack.c.b16 %v3639, %v3639
  %v3896 = vpack.c.b16 %v3640, %v3640
  %v3897 = vpack.c.b16 %v3641, %v3641
  %v3898 = vpack.c.b16 %v3642, %v3642
  %v3899 = vpack.c.b16 %v3643, %v3643
  %v3900 = vpack.c.b16 %v3644, %v3644
  %v3901 = vpack.c.b16 %v3645, %v3645
  %v3902 = vpack.c.b16 %v3646, %v3646
  %v3903 = vpack.c.b16 %v3647, %v3647
  %v3904 = vpack.c.b16 %v3648, %v3648
  %v3905 = vpack.c.b16 %v3649, %v3649
  %v3906 = vpack.c.b16 %v3650, %v3650
  %v3907 = vpack.c.b16 %v3651, %v3651
  %v3908 = vpack.c.b16 %v3652, %v3652
  %v3909 = vpack.c.b16 %v3653, %v3653
  %4166 = vst [vmem:[%s2] sm:$0xf] %v3654
  %4167 = vst [vmem:[%s2 + $0x4] sm:$0xf] %v3655
  %4168 = vst [vmem:[%s2 + $0x8] sm:$0xf] %v3656
  %4169 = vst [vmem:[%s2 + $0xc] sm:$0xf] %v3657
  %4170 = vst [vmem:[%s2 + $0x10] sm:$0xf] %v3658
  %4171 = vst [vmem:[%s2 + $0x14] sm:$0xf] %v3659
  %4172 = vst [vmem:[%s2 + $0x18] sm:$0xf] %v3660
  %4173 = vst [vmem:[%s2 + $0x1c] sm:$0xf] %v3661
  %4174 = vst [vmem:[%s2 + $0x20] sm:$0xf] %v3662
  %4175 = vst [vmem:[%s2 + $0x24] sm:$0xf] %v3663
  %4176 = vst [vmem:[%s2 + $0x28] sm:$0xf] %v3664
  %4177 = vst [vmem:[%s2 + $0x2c] sm:$0xf] %v3665
  %4178 = vst [vmem:[%s2 + $0x30] sm:$0xf] %v3666
  %4179 = vst [vmem:[%s2 + $0x34] sm:$0xf] %v3667
  %4180 = vst [vmem:[%s2 + $0x38] sm:$0xf] %v3668
  %4181 = vst [vmem:[%s2 + $0x3c] sm:$0xf] %v3669
  %4182 = vst [vmem:[%s2 + $0x40] sm:$0xf] %v3670
  %4183 = vst [vmem:[%s2 + $0x44] sm:$0xf] %v3671
  %4184 = vst [vmem:[%s2 + $0x48] sm:$0xf] %v3672
  %4185 = vst [vmem:[%s2 + $0x4c] sm:$0xf] %v3673
  %4186 = vst [vmem:[%s2 + $0x50] sm:$0xf] %v3674
  %4187 = vst [vmem:[%s2 + $0x54] sm:$0xf] %v3675
  %4188 = vst [vmem:[%s2 + $0x58] sm:$0xf] %v3676
  %4189 = vst [vmem:[%s2 + $0x5c] sm:$0xf] %v3677
  %4190 = vst [vmem:[%s2 + $0x60] sm:$0xf] %v3678
  %4191 = vst [vmem:[%s2 + $0x64] sm:$0xf] %v3679
  %4192 = vst [vmem:[%s2 + $0x68] sm:$0xf] %v3680
  %4193 = vst [vmem:[%s2 + $0x6c] sm:$0xf] %v3681
  %4194 = vst [vmem:[%s2 + $0x70] sm:$0xf] %v3682
  %4195 = vst [vmem:[%s2 + $0x74] sm:$0xf] %v3683
  %4196 = vst [vmem:[%s2 + $0x78] sm:$0xf] %v3684
  %4197 = vst [vmem:[%s2 + $0x7c] sm:$0xf] %v3685
  %4198 = vst [vmem:[%s2 + $0x80] sm:$0xf] %v3686
  %4199 = vst [vmem:[%s2 + $0x84] sm:$0xf] %v3687
  %4200 = vst [vmem:[%s2 + $0x88] sm:$0xf] %v3688
  %4201 = vst [vmem:[%s2 + $0x8c] sm:$0xf] %v3689
  %4202 = vst [vmem:[%s2 + $0x90] sm:$0xf] %v3690
  %4203 = vst [vmem:[%s2 + $0x94] sm:$0xf] %v3691
  %4204 = vst [vmem:[%s2 + $0x98] sm:$0xf] %v3692
  %4205 = vst [vmem:[%s2 + $0x9c] sm:$0xf] %v3693
  %4206 = vst [vmem:[%s2 + $0xa0] sm:$0xf] %v3694
  %4207 = vst [vmem:[%s2 + $0xa4] sm:$0xf] %v3695
  %4208 = vst [vmem:[%s2 + $0xa8] sm:$0xf] %v3696
  %4209 = vst [vmem:[%s2 + $0xac] sm:$0xf] %v3697
  %4210 = vst [vmem:[%s2 + $0xb0] sm:$0xf] %v3698
  %4211 = vst [vmem:[%s2 + $0xb4] sm:$0xf] %v3699
  %4212 = vst [vmem:[%s2 + $0xb8] sm:$0xf] %v3700
  %4213 = vst [vmem:[%s2 + $0xbc] sm:$0xf] %v3701
  %4214 = vst [vmem:[%s2 + $0xc0] sm:$0xf] %v3702
  %4215 = vst [vmem:[%s2 + $0xc4] sm:$0xf] %v3703
  %4216 = vst [vmem:[%s2 + $0xc8] sm:$0xf] %v3704
  %4217 = vst [vmem:[%s2 + $0xcc] sm:$0xf] %v3705
  %4218 = vst [vmem:[%s2 + $0xd0] sm:$0xf] %v3706
  %4219 = vst [vmem:[%s2 + $0xd4] sm:$0xf] %v3707
  %4220 = vst [vmem:[%s2 + $0xd8] sm:$0xf] %v3708
  %4221 = vst [vmem:[%s2 + $0xdc] sm:$0xf] %v3709
  %4222 = vst [vmem:[%s2 + $0xe0] sm:$0xf] %v3710
  %4223 = vst [vmem:[%s2 + $0xe4] sm:$0xf] %v3711
  %4224 = vst [vmem:[%s2 + $0xe8] sm:$0xf] %v3712
  %4225 = vst [vmem:[%s2 + $0xec] sm:$0xf] %v3713
  %4226 = vst [vmem:[%s2 + $0xf0] sm:$0xf] %v3714
  %4227 = vst [vmem:[%s2 + $0xf4] sm:$0xf] %v3715
  %4228 = vst [vmem:[%s2 + $0xf8] sm:$0xf] %v3716
  %4229 = vst [vmem:[%s2 + $0xfc] sm:$0xf] %v3717
  %4230 = vst [vmem:[%s2 + $0x100] sm:$0xf] %v3718
  %4231 = vst [vmem:[%s2 + $0x104] sm:$0xf] %v3719
  %4232 = vst [vmem:[%s2 + $0x108] sm:$0xf] %v3720
  %4233 = vst [vmem:[%s2 + $0x10c] sm:$0xf] %v3721
  %4234 = vst [vmem:[%s2 + $0x110] sm:$0xf] %v3722
  %4235 = vst [vmem:[%s2 + $0x114] sm:$0xf] %v3723
  %4236 = vst [vmem:[%s2 + $0x118] sm:$0xf] %v3724
  %4237 = vst [vmem:[%s2 + $0x11c] sm:$0xf] %v3725
  %4238 = vst [vmem:[%s2 + $0x120] sm:$0xf] %v3726
  %4239 = vst [vmem:[%s2 + $0x124] sm:$0xf] %v3727
  %4240 = vst [vmem:[%s2 + $0x128] sm:$0xf] %v3728
  %4241 = vst [vmem:[%s2 + $0x12c] sm:$0xf] %v3729
  %4242 = vst [vmem:[%s2 + $0x130] sm:$0xf] %v3730
  %4243 = vst [vmem:[%s2 + $0x134] sm:$0xf] %v3731
  %4244 = vst [vmem:[%s2 + $0x138] sm:$0xf] %v3732
  %4245 = vst [vmem:[%s2 + $0x13c] sm:$0xf] %v3733
  %4246 = vst [vmem:[%s2 + $0x140] sm:$0xf] %v3734
  %4247 = vst [vmem:[%s2 + $0x144] sm:$0xf] %v3735
  %4248 = vst [vmem:[%s2 + $0x148] sm:$0xf] %v3736
  %4249 = vst [vmem:[%s2 + $0x14c] sm:$0xf] %v3737
  %4250 = vst [vmem:[%s2 + $0x150] sm:$0xf] %v3738
  %4251 = vst [vmem:[%s2 + $0x154] sm:$0xf] %v3739
  %4252 = vst [vmem:[%s2 + $0x158] sm:$0xf] %v3740
  %4253 = vst [vmem:[%s2 + $0x15c] sm:$0xf] %v3741
  %4254 = vst [vmem:[%s2 + $0x160] sm:$0xf] %v3742
  %4255 = vst [vmem:[%s2 + $0x164] sm:$0xf] %v3743
  %4256 = vst [vmem:[%s2 + $0x168] sm:$0xf] %v3744
  %4257 = vst [vmem:[%s2 + $0x16c] sm:$0xf] %v3745
  %4258 = vst [vmem:[%s2 + $0x170] sm:$0xf] %v3746
  %4259 = vst [vmem:[%s2 + $0x174] sm:$0xf] %v3747
  %4260 = vst [vmem:[%s2 + $0x178] sm:$0xf] %v3748
  %4261 = vst [vmem:[%s2 + $0x17c] sm:$0xf] %v3749
  %4262 = vst [vmem:[%s2 + $0x180] sm:$0xf] %v3750
  %4263 = vst [vmem:[%s2 + $0x184] sm:$0xf] %v3751
  %4264 = vst [vmem:[%s2 + $0x188] sm:$0xf] %v3752
  %4265 = vst [vmem:[%s2 + $0x18c] sm:$0xf] %v3753
  %4266 = vst [vmem:[%s2 + $0x190] sm:$0xf] %v3754
  %4267 = vst [vmem:[%s2 + $0x194] sm:$0xf] %v3755
  %4268 = vst [vmem:[%s2 + $0x198] sm:$0xf] %v3756
  %4269 = vst [vmem:[%s2 + $0x19c] sm:$0xf] %v3757
  %4270 = vst [vmem:[%s2 + $0x1a0] sm:$0xf] %v3758
  %4271 = vst [vmem:[%s2 + $0x1a4] sm:$0xf] %v3759
  %4272 = vst [vmem:[%s2 + $0x1a8] sm:$0xf] %v3760
  %4273 = vst [vmem:[%s2 + $0x1ac] sm:$0xf] %v3761
  %4274 = vst [vmem:[%s2 + $0x1b0] sm:$0xf] %v3762
  %4275 = vst [vmem:[%s2 + $0x1b4] sm:$0xf] %v3763
  %4276 = vst [vmem:[%s2 + $0x1b8] sm:$0xf] %v3764
  %4277 = vst [vmem:[%s2 + $0x1bc] sm:$0xf] %v3765
  %4278 = vst [vmem:[%s2 + $0x1c0] sm:$0xf] %v3766
  %4279 = vst [vmem:[%s2 + $0x1c4] sm:$0xf] %v3767
  %4280 = vst [vmem:[%s2 + $0x1c8] sm:$0xf] %v3768
  %4281 = vst [vmem:[%s2 + $0x1cc] sm:$0xf] %v3769
  %4282 = vst [vmem:[%s2 + $0x1d0] sm:$0xf] %v3770
  %4283 = vst [vmem:[%s2 + $0x1d4] sm:$0xf] %v3771
  %4284 = vst [vmem:[%s2 + $0x1d8] sm:$0xf] %v3772
  %4285 = vst [vmem:[%s2 + $0x1dc] sm:$0xf] %v3773
  %4286 = vst [vmem:[%s2 + $0x1e0] sm:$0xf] %v3774
  %4287 = vst [vmem:[%s2 + $0x1e4] sm:$0xf] %v3775
  %4288 = vst [vmem:[%s2 + $0x1e8] sm:$0xf] %v3776
  %4289 = vst [vmem:[%s2 + $0x1ec] sm:$0xf] %v3777
  %4290 = vst [vmem:[%s2 + $0x1f0] sm:$0xf] %v3778
  %4291 = vst [vmem:[%s2 + $0x1f4] sm:$0xf] %v3779
  %4292 = vst [vmem:[%s2 + $0x1f8] sm:$0xf] %v3780
  %4293 = vst [vmem:[%s2 + $0x1fc] sm:$0xf] %v3781
  %4294 = vst [vmem:[%s2 + $0x200] sm:$0xf] %v3782
  %4295 = vst [vmem:[%s2 + $0x204] sm:$0xf] %v3783
  %4296 = vst [vmem:[%s2 + $0x208] sm:$0xf] %v3784
  %4297 = vst [vmem:[%s2 + $0x20c] sm:$0xf] %v3785
  %4298 = vst [vmem:[%s2 + $0x210] sm:$0xf] %v3786
  %4299 = vst [vmem:[%s2 + $0x214] sm:$0xf] %v3787
  %4300 = vst [vmem:[%s2 + $0x218] sm:$0xf] %v3788
  %4301 = vst [vmem:[%s2 + $0x21c] sm:$0xf] %v3789
  %4302 = vst [vmem:[%s2 + $0x220] sm:$0xf] %v3790
  %4303 = vst [vmem:[%s2 + $0x224] sm:$0xf] %v3791
  %4304 = vst [vmem:[%s2 + $0x228] sm:$0xf] %v3792
  %4305 = vst [vmem:[%s2 + $0x22c] sm:$0xf] %v3793
  %4306 = vst [vmem:[%s2 + $0x230] sm:$0xf] %v3794
  %4307 = vst [vmem:[%s2 + $0x234] sm:$0xf] %v3795
  %4308 = vst [vmem:[%s2 + $0x238] sm:$0xf] %v3796
  %4309 = vst [vmem:[%s2 + $0x23c] sm:$0xf] %v3797
  %4310 = vst [vmem:[%s2 + $0x240] sm:$0xf] %v3798
  %4311 = vst [vmem:[%s2 + $0x244] sm:$0xf] %v3799
  %4312 = vst [vmem:[%s2 + $0x248] sm:$0xf] %v3800
  %4313 = vst [vmem:[%s2 + $0x24c] sm:$0xf] %v3801
  %4314 = vst [vmem:[%s2 + $0x250] sm:$0xf] %v3802
  %4315 = vst [vmem:[%s2 + $0x254] sm:$0xf] %v3803
  %4316 = vst [vmem:[%s2 + $0x258] sm:$0xf] %v3804
  %4317 = vst [vmem:[%s2 + $0x25c] sm:$0xf] %v3805
  %4318 = vst [vmem:[%s2 + $0x260] sm:$0xf] %v3806
  %4319 = vst [vmem:[%s2 + $0x264] sm:$0xf] %v3807
  %4320 = vst [vmem:[%s2 + $0x268] sm:$0xf] %v3808
  %4321 = vst [vmem:[%s2 + $0x26c] sm:$0xf] %v3809
  %4322 = vst [vmem:[%s2 + $0x270] sm:$0xf] %v3810
  %4323 = vst [vmem:[%s2 + $0x274] sm:$0xf] %v3811
  %4324 = vst [vmem:[%s2 + $0x278] sm:$0xf] %v3812
  %4325 = vst [vmem:[%s2 + $0x27c] sm:$0xf] %v3813
  %4326 = vst [vmem:[%s2 + $0x280] sm:$0xf] %v3814
  %4327 = vst [vmem:[%s2 + $0x284] sm:$0xf] %v3815
  %4328 = vst [vmem:[%s2 + $0x288] sm:$0xf] %v3816
  %4329 = vst [vmem:[%s2 + $0x28c] sm:$0xf] %v3817
  %4330 = vst [vmem:[%s2 + $0x290] sm:$0xf] %v3818
  %4331 = vst [vmem:[%s2 + $0x294] sm:$0xf] %v3819
  %4332 = vst [vmem:[%s2 + $0x298] sm:$0xf] %v3820
  %4333 = vst [vmem:[%s2 + $0x29c] sm:$0xf] %v3821
  %4334 = vst [vmem:[%s2 + $0x2a0] sm:$0xf] %v3822
  %4335 = vst [vmem:[%s2 + $0x2a4] sm:$0xf] %v3823
  %4336 = vst [vmem:[%s2 + $0x2a8] sm:$0xf] %v3824
  %4337 = vst [vmem:[%s2 + $0x2ac] sm:$0xf] %v3825
  %4338 = vst [vmem:[%s2 + $0x2b0] sm:$0xf] %v3826
  %4339 = vst [vmem:[%s2 + $0x2b4] sm:$0xf] %v3827
  %4340 = vst [vmem:[%s2 + $0x2b8] sm:$0xf] %v3828
  %4341 = vst [vmem:[%s2 + $0x2bc] sm:$0xf] %v3829
  %4342 = vst [vmem:[%s2 + $0x2c0] sm:$0xf] %v3830
  %4343 = vst [vmem:[%s2 + $0x2c4] sm:$0xf] %v3831
  %4344 = vst [vmem:[%s2 + $0x2c8] sm:$0xf] %v3832
  %4345 = vst [vmem:[%s2 + $0x2cc] sm:$0xf] %v3833
  %4346 = vst [vmem:[%s2 + $0x2d0] sm:$0xf] %v3834
  %4347 = vst [vmem:[%s2 + $0x2d4] sm:$0xf] %v3835
  %4348 = vst [vmem:[%s2 + $0x2d8] sm:$0xf] %v3836
  %4349 = vst [vmem:[%s2 + $0x2dc] sm:$0xf] %v3837
  %4350 = vst [vmem:[%s2 + $0x2e0] sm:$0xf] %v3838
  %4351 = vst [vmem:[%s2 + $0x2e4] sm:$0xf] %v3839
  %4352 = vst [vmem:[%s2 + $0x2e8] sm:$0xf] %v3840
  %4353 = vst [vmem:[%s2 + $0x2ec] sm:$0xf] %v3841
  %4354 = vst [vmem:[%s2 + $0x2f0] sm:$0xf] %v3842
  %4355 = vst [vmem:[%s2 + $0x2f4] sm:$0xf] %v3843
  %4356 = vst [vmem:[%s2 + $0x2f8] sm:$0xf] %v3844
  %4357 = vst [vmem:[%s2 + $0x2fc] sm:$0xf] %v3845
  %4358 = vst [vmem:[%s2 + $0x300] sm:$0xf] %v3846
  %4359 = vst [vmem:[%s2 + $0x304] sm:$0xf] %v3847
  %4360 = vst [vmem:[%s2 + $0x308] sm:$0xf] %v3848
  %4361 = vst [vmem:[%s2 + $0x30c] sm:$0xf] %v3849
  %4362 = vst [vmem:[%s2 + $0x310] sm:$0xf] %v3850
  %4363 = vst [vmem:[%s2 + $0x314] sm:$0xf] %v3851
  %4364 = vst [vmem:[%s2 + $0x318] sm:$0xf] %v3852
  %4365 = vst [vmem:[%s2 + $0x31c] sm:$0xf] %v3853
  %4366 = vst [vmem:[%s2 + $0x320] sm:$0xf] %v3854
  %4367 = vst [vmem:[%s2 + $0x324] sm:$0xf] %v3855
  %4368 = vst [vmem:[%s2 + $0x328] sm:$0xf] %v3856
  %4369 = vst [vmem:[%s2 + $0x32c] sm:$0xf] %v3857
  %4370 = vst [vmem:[%s2 + $0x330] sm:$0xf] %v3858
  %4371 = vst [vmem:[%s2 + $0x334] sm:$0xf] %v3859
  %4372 = vst [vmem:[%s2 + $0x338] sm:$0xf] %v3860
  %4373 = vst [vmem:[%s2 + $0x33c] sm:$0xf] %v3861
  %4374 = vst [vmem:[%s2 + $0x340] sm:$0xf] %v3862
  %4375 = vst [vmem:[%s2 + $0x344] sm:$0xf] %v3863
  %4376 = vst [vmem:[%s2 + $0x348] sm:$0xf] %v3864
  %4377 = vst [vmem:[%s2 + $0x34c] sm:$0xf] %v3865
  %4378 = vst [vmem:[%s2 + $0x350] sm:$0xf] %v3866
  %4379 = vst [vmem:[%s2 + $0x354] sm:$0xf] %v3867
  %4380 = vst [vmem:[%s2 + $0x358] sm:$0xf] %v3868
  %4381 = vst [vmem:[%s2 + $0x35c] sm:$0xf] %v3869
  %4382 = vst [vmem:[%s2 + $0x360] sm:$0xf] %v3870
  %4383 = vst [vmem:[%s2 + $0x364] sm:$0xf] %v3871
  %4384 = vst [vmem:[%s2 + $0x368] sm:$0xf] %v3872
  %4385 = vst [vmem:[%s2 + $0x36c] sm:$0xf] %v3873
  %4386 = vst [vmem:[%s2 + $0x370] sm:$0xf] %v3874
  %4387 = vst [vmem:[%s2 + $0x374] sm:$0xf] %v3875
  %4388 = vst [vmem:[%s2 + $0x378] sm:$0xf] %v3876
  %4389 = vst [vmem:[%s2 + $0x37c] sm:$0xf] %v3877
  %4390 = vst [vmem:[%s2 + $0x380] sm:$0xf] %v3878
  %4391 = vst [vmem:[%s2 + $0x384] sm:$0xf] %v3879
  %4392 = vst [vmem:[%s2 + $0x388] sm:$0xf] %v3880
  %4393 = vst [vmem:[%s2 + $0x38c] sm:$0xf] %v3881
  %4394 = vst [vmem:[%s2 + $0x390] sm:$0xf] %v3882
  %4395 = vst [vmem:[%s2 + $0x394] sm:$0xf] %v3883
  %4396 = vst [vmem:[%s2 + $0x398] sm:$0xf] %v3884
  %4397 = vst [vmem:[%s2 + $0x39c] sm:$0xf] %v3885
  %4398 = vst [vmem:[%s2 + $0x3a0] sm:$0xf] %v3886
  %4399 = vst [vmem:[%s2 + $0x3a4] sm:$0xf] %v3887
  %4400 = vst [vmem:[%s2 + $0x3a8] sm:$0xf] %v3888
  %4401 = vst [vmem:[%s2 + $0x3ac] sm:$0xf] %v3889
  %4402 = vst [vmem:[%s2 + $0x3b0] sm:$0xf] %v3890
  %4403 = vst [vmem:[%s2 + $0x3b4] sm:$0xf] %v3891
  %4404 = vst [vmem:[%s2 + $0x3b8] sm:$0xf] %v3892
  %4405 = vst [vmem:[%s2 + $0x3bc] sm:$0xf] %v3893
  %4406 = vst [vmem:[%s2 + $0x3c0] sm:$0xf] %v3894
  %4407 = vst [vmem:[%s2 + $0x3c4] sm:$0xf] %v3895
  %4408 = vst [vmem:[%s2 + $0x3c8] sm:$0xf] %v3896
  %4409 = vst [vmem:[%s2 + $0x3cc] sm:$0xf] %v3897
  %4410 = vst [vmem:[%s2 + $0x3d0] sm:$0xf] %v3898
  %4411 = vst [vmem:[%s2 + $0x3d4] sm:$0xf] %v3899
  %4412 = vst [vmem:[%s2 + $0x3d8] sm:$0xf] %v3900
  %4413 = vst [vmem:[%s2 + $0x3dc] sm:$0xf] %v3901
  %4414 = vst [vmem:[%s2 + $0x3e0] sm:$0xf] %v3902
  %4415 = vst [vmem:[%s2 + $0x3e4] sm:$0xf] %v3903
  %4416 = vst [vmem:[%s2 + $0x3e8] sm:$0xf] %v3904
  %4417 = vst [vmem:[%s2 + $0x3ec] sm:$0xf] %v3905
  %4418 = vst [vmem:[%s2 + $0x3f0] sm:$0xf] %v3906
  %4419 = vst [vmem:[%s2 + $0x3f4] sm:$0xf] %v3907
  %4420 = vst [vmem:[%s2 + $0x3f8] sm:$0xf] %v3908
  %4421 = vst [vmem:[%s2 + $0x3fc] sm:$0xf] %v3909
  // Predicated region
  $region10: #{discriminator_forward.4} parent=0 // pred_check
    _
  $region11: #{discriminator_forward.4} parent=0 // pred_check_branch
    %4423 = sbr.rel (0) target = $region13
  $region12: #{discriminator_forward.4} parent=0 // pred_region
    _
  $region13: #{discriminator_forward.4} parent=0 // pred_fallthru
    _
  // Predicated region
  $region14: #{discriminator_forward.4} parent=0 // pred_check
    _
  $region15: #{discriminator_forward.4} parent=0 // pred_check_branch
    %4425 = sbr.rel (0) target = $region17
  $region16: #{discriminator_forward.4} parent=0 // pred_region
    _
  $region17: #{discriminator_forward.4} parent=0 // pred_fallthru
    _

// kernel: discriminator_forward.5
$region0: #{discriminator_forward.5}
  #allocation0 [shape = 'u32[]', space=smem, size = 0x4, offset = 0x4, fixed_abs, tag = 'smem constant byte address 0x4 - core index']
  #allocation1 [shape = 'u32[144,128]{1,0:T(1,128)}', space=vmem, size = 0x12000, scoped, tag = 'internal scratch']
  %s0 = inlined_call_operand.vmem [shape: bf16[512,128], index: 0, kind: input, shape index: {}]
  %s1 = inlined_call_operand.vmem [shape: bf16[128,128], index: 1, kind: input, shape index: {}]
  %s2 = inlined_call_operand.vmem [shape: bf16[512,128], index: 2, kind: output, shape index: {}]
  %s3 = sld [smem:[#allocation0]]
  $region18: #{discriminator_forward.5} parent=0
    _
  %s5 = ssub.s32 1, %s3
  %s6 = scalar_select 0, %s5, %s3
  // Predicated region
  $region2: #{discriminator_forward.5} parent=0 // pred_check
    _
  $region3: #{discriminator_forward.5} parent=0 // pred_check_branch
    %8 = sbr.rel (0) target = $region5
  $region4: #{discriminator_forward.5} parent=0 // pred_region
    _
  $region5: #{discriminator_forward.5} parent=0 // pred_fallthru
    _
  // Predicated region
  $region6: #{discriminator_forward.5} parent=0 // pred_check
    _
  $region7: #{discriminator_forward.5} parent=0 // pred_check_branch
    %10 = sbr.rel (0) target = $region9
  $region8: #{discriminator_forward.5} parent=0 // pred_region
    _
  $region9: #{discriminator_forward.5} parent=0 // pred_fallthru
    _
  %v12 = vld [vmem:[%s0] sm:$0xf]
  %v13 = vld [vmem:[%s0 + $0x4] sm:$0xf]
  %v14 = vld [vmem:[%s0 + $0x8] sm:$0xf]
  %v15 = vld [vmem:[%s0 + $0xc] sm:$0xf]
  %v16 = vld [vmem:[%s0 + $0x10] sm:$0xf]
  %v17 = vld [vmem:[%s0 + $0x14] sm:$0xf]
  %v18 = vld [vmem:[%s0 + $0x18] sm:$0xf]
  %v19 = vld [vmem:[%s0 + $0x1c] sm:$0xf]
  %v20 = vld [vmem:[%s0 + $0x20] sm:$0xf]
  %v21 = vld [vmem:[%s0 + $0x24] sm:$0xf]
  %v22 = vld [vmem:[%s0 + $0x28] sm:$0xf]
  %v23 = vld [vmem:[%s0 + $0x2c] sm:$0xf]
  %v24 = vld [vmem:[%s0 + $0x30] sm:$0xf]
  %v25 = vld [vmem:[%s0 + $0x34] sm:$0xf]
  %v26 = vld [vmem:[%s0 + $0x38] sm:$0xf]
  %v27 = vld [vmem:[%s0 + $0x3c] sm:$0xf]
  %v28 = vld [vmem:[%s0 + $0x40] sm:$0xf]
  %v29 = vld [vmem:[%s0 + $0x44] sm:$0xf]
  %v30 = vld [vmem:[%s0 + $0x48] sm:$0xf]
  %v31 = vld [vmem:[%s0 + $0x4c] sm:$0xf]
  %v32 = vld [vmem:[%s0 + $0x50] sm:$0xf]
  %v33 = vld [vmem:[%s0 + $0x54] sm:$0xf]
  %v34 = vld [vmem:[%s0 + $0x58] sm:$0xf]
  %v35 = vld [vmem:[%s0 + $0x5c] sm:$0xf]
  %v36 = vld [vmem:[%s0 + $0x60] sm:$0xf]
  %v37 = vld [vmem:[%s0 + $0x64] sm:$0xf]
  %v38 = vld [vmem:[%s0 + $0x68] sm:$0xf]
  %v39 = vld [vmem:[%s0 + $0x6c] sm:$0xf]
  %v40 = vld [vmem:[%s0 + $0x70] sm:$0xf]
  %v41 = vld [vmem:[%s0 + $0x74] sm:$0xf]
  %v42 = vld [vmem:[%s0 + $0x78] sm:$0xf]
  %v43 = vld [vmem:[%s0 + $0x7c] sm:$0xf]
  %v44 = vld [vmem:[%s0 + $0x80] sm:$0xf]
  %v45 = vld [vmem:[%s0 + $0x84] sm:$0xf]
  %v46 = vld [vmem:[%s0 + $0x88] sm:$0xf]
  %v47 = vld [vmem:[%s0 + $0x8c] sm:$0xf]
  %v48 = vld [vmem:[%s0 + $0x90] sm:$0xf]
  %v49 = vld [vmem:[%s0 + $0x94] sm:$0xf]
  %v50 = vld [vmem:[%s0 + $0x98] sm:$0xf]
  %v51 = vld [vmem:[%s0 + $0x9c] sm:$0xf]
  %v52 = vld [vmem:[%s0 + $0xa0] sm:$0xf]
  %v53 = vld [vmem:[%s0 + $0xa4] sm:$0xf]
  %v54 = vld [vmem:[%s0 + $0xa8] sm:$0xf]
  %v55 = vld [vmem:[%s0 + $0xac] sm:$0xf]
  %v56 = vld [vmem:[%s0 + $0xb0] sm:$0xf]
  %v57 = vld [vmem:[%s0 + $0xb4] sm:$0xf]
  %v58 = vld [vmem:[%s0 + $0xb8] sm:$0xf]
  %v59 = vld [vmem:[%s0 + $0xbc] sm:$0xf]
  %v60 = vld [vmem:[%s0 + $0xc0] sm:$0xf]
  %v61 = vld [vmem:[%s0 + $0xc4] sm:$0xf]
  %v62 = vld [vmem:[%s0 + $0xc8] sm:$0xf]
  %v63 = vld [vmem:[%s0 + $0xcc] sm:$0xf]
  %v64 = vld [vmem:[%s0 + $0xd0] sm:$0xf]
  %v65 = vld [vmem:[%s0 + $0xd4] sm:$0xf]
  %v66 = vld [vmem:[%s0 + $0xd8] sm:$0xf]
  %v67 = vld [vmem:[%s0 + $0xdc] sm:$0xf]
  %v68 = vld [vmem:[%s0 + $0xe0] sm:$0xf]
  %v69 = vld [vmem:[%s0 + $0xe4] sm:$0xf]
  %v70 = vld [vmem:[%s0 + $0xe8] sm:$0xf]
  %v71 = vld [vmem:[%s0 + $0xec] sm:$0xf]
  %v72 = vld [vmem:[%s0 + $0xf0] sm:$0xf]
  %v73 = vld [vmem:[%s0 + $0xf4] sm:$0xf]
  %v74 = vld [vmem:[%s0 + $0xf8] sm:$0xf]
  %v75 = vld [vmem:[%s0 + $0xfc] sm:$0xf]
  %v76 = vld [vmem:[%s1] sm:$0xf]
  %v77 = vld [vmem:[%s1 + $0x4] sm:$0xf]
  %v78 = vld [vmem:[%s1 + $0x8] sm:$0xf]
  %v79 = vld [vmem:[%s1 + $0xc] sm:$0xf]
  %v80 = vld [vmem:[%s1 + $0x10] sm:$0xf]
  %v81 = vld [vmem:[%s1 + $0x14] sm:$0xf]
  %v82 = vld [vmem:[%s1 + $0x18] sm:$0xf]
  %v83 = vld [vmem:[%s1 + $0x1c] sm:$0xf]
  %v84 = vld [vmem:[%s1 + $0x20] sm:$0xf]
  %v85 = vld [vmem:[%s1 + $0x24] sm:$0xf]
  %v86 = vld [vmem:[%s1 + $0x28] sm:$0xf]
  %v87 = vld [vmem:[%s1 + $0x2c] sm:$0xf]
  %v88 = vld [vmem:[%s1 + $0x30] sm:$0xf]
  %v89 = vld [vmem:[%s1 + $0x34] sm:$0xf]
  %v90 = vld [vmem:[%s1 + $0x38] sm:$0xf]
  %v91 = vld [vmem:[%s1 + $0x3c] sm:$0xf]
  %v156 = vunpack.c.l.b16 %v12
  %v157 = vunpack.c.l.b16 %v13
  %v158 = vunpack.c.l.b16 %v14
  %v159 = vunpack.c.l.b16 %v15
  %v160 = vunpack.c.l.b16 %v16
  %v161 = vunpack.c.l.b16 %v17
  %v162 = vunpack.c.l.b16 %v18
  %v163 = vunpack.c.l.b16 %v19
  %v164 = vunpack.c.l.b16 %v20
  %v165 = vunpack.c.l.b16 %v21
  %v166 = vunpack.c.l.b16 %v22
  %v167 = vunpack.c.l.b16 %v23
  %v168 = vunpack.c.l.b16 %v24
  %v169 = vunpack.c.l.b16 %v25
  %v170 = vunpack.c.l.b16 %v26
  %v171 = vunpack.c.l.b16 %v27
  %v172 = vunpack.c.l.b16 %v28
  %v173 = vunpack.c.l.b16 %v29
  %v174 = vunpack.c.l.b16 %v30
  %v175 = vunpack.c.l.b16 %v31
  %v176 = vunpack.c.l.b16 %v32
  %v177 = vunpack.c.l.b16 %v33
  %v178 = vunpack.c.l.b16 %v34
  %v179 = vunpack.c.l.b16 %v35
  %v180 = vunpack.c.l.b16 %v36
  %v181 = vunpack.c.l.b16 %v37
  %v182 = vunpack.c.l.b16 %v38
  %v183 = vunpack.c.l.b16 %v39
  %v184 = vunpack.c.l.b16 %v40
  %v185 = vunpack.c.l.b16 %v41
  %v186 = vunpack.c.l.b16 %v42
  %v187 = vunpack.c.l.b16 %v43
  %v188 = vunpack.c.l.b16 %v44
  %v189 = vunpack.c.l.b16 %v45
  %v190 = vunpack.c.l.b16 %v46
  %v191 = vunpack.c.l.b16 %v47
  %v192 = vunpack.c.l.b16 %v48
  %v193 = vunpack.c.l.b16 %v49
  %v194 = vunpack.c.l.b16 %v50
  %v195 = vunpack.c.l.b16 %v51
  %v196 = vunpack.c.l.b16 %v52
  %v197 = vunpack.c.l.b16 %v53
  %v198 = vunpack.c.l.b16 %v54
  %v199 = vunpack.c.l.b16 %v55
  %v200 = vunpack.c.l.b16 %v56
  %v201 = vunpack.c.l.b16 %v57
  %v202 = vunpack.c.l.b16 %v58
  %v203 = vunpack.c.l.b16 %v59
  %v204 = vunpack.c.l.b16 %v60
  %v205 = vunpack.c.l.b16 %v61
  %v206 = vunpack.c.l.b16 %v62
  %v207 = vunpack.c.l.b16 %v63
  %v208 = vunpack.c.l.b16 %v64
  %v209 = vunpack.c.l.b16 %v65
  %v210 = vunpack.c.l.b16 %v66
  %v211 = vunpack.c.l.b16 %v67
  %v212 = vunpack.c.l.b16 %v68
  %v213 = vunpack.c.l.b16 %v69
  %v214 = vunpack.c.l.b16 %v70
  %v215 = vunpack.c.l.b16 %v71
  %v216 = vunpack.c.l.b16 %v72
  %v217 = vunpack.c.l.b16 %v73
  %v218 = vunpack.c.l.b16 %v74
  %v219 = vunpack.c.l.b16 %v75
  %v220 = vpack.c.b16 %v157, %v156
  %v221 = vpack.c.b16 %v159, %v158
  %v222 = vpack.c.b16 %v161, %v160
  %v223 = vpack.c.b16 %v163, %v162
  %v224 = vpack.c.b16 %v165, %v164
  %v225 = vpack.c.b16 %v167, %v166
  %v226 = vpack.c.b16 %v169, %v168
  %v227 = vpack.c.b16 %v171, %v170
  %v228 = vpack.c.b16 %v173, %v172
  %v229 = vpack.c.b16 %v175, %v174
  %v230 = vpack.c.b16 %v177, %v176
  %v231 = vpack.c.b16 %v179, %v178
  %v232 = vpack.c.b16 %v181, %v180
  %v233 = vpack.c.b16 %v183, %v182
  %v234 = vpack.c.b16 %v185, %v184
  %v235 = vpack.c.b16 %v187, %v186
  %v236 = vpack.c.b16 %v189, %v188
  %v237 = vpack.c.b16 %v191, %v190
  %v238 = vpack.c.b16 %v193, %v192
  %v239 = vpack.c.b16 %v195, %v194
  %v240 = vpack.c.b16 %v197, %v196
  %v241 = vpack.c.b16 %v199, %v198
  %v242 = vpack.c.b16 %v201, %v200
  %v243 = vpack.c.b16 %v203, %v202
  %v244 = vpack.c.b16 %v205, %v204
  %v245 = vpack.c.b16 %v207, %v206
  %v246 = vpack.c.b16 %v209, %v208
  %v247 = vpack.c.b16 %v211, %v210
  %v248 = vpack.c.b16 %v213, %v212
  %v249 = vpack.c.b16 %v215, %v214
  %v250 = vpack.c.b16 %v217, %v216
  %v251 = vpack.c.b16 %v219, %v218
  %v300 = vunpack.c.l.b16 %v76
  %v301 = vunpack.c.l.b16 %v77
  %v302 = vunpack.c.l.b16 %v78
  %v303 = vunpack.c.l.b16 %v79
  %v304 = vunpack.c.l.b16 %v80
  %v305 = vunpack.c.l.b16 %v81
  %v306 = vunpack.c.l.b16 %v82
  %v307 = vunpack.c.l.b16 %v83
  %v308 = vunpack.c.l.b16 %v84
  %v309 = vunpack.c.l.b16 %v85
  %v310 = vunpack.c.l.b16 %v86
  %v311 = vunpack.c.l.b16 %v87
  %v312 = vunpack.c.l.b16 %v88
  %v313 = vunpack.c.l.b16 %v89
  %v314 = vunpack.c.l.b16 %v90
  %v315 = vunpack.c.l.b16 %v91
  %v316 = vpack.c.b16 %v301, %v300
  %v317 = vpack.c.b16 %v303, %v302
  %v318 = vpack.c.b16 %v305, %v304
  %v319 = vpack.c.b16 %v307, %v306
  %v320 = vpack.c.b16 %v309, %v308
  %v321 = vpack.c.b16 %v311, %v310
  %v322 = vpack.c.b16 %v313, %v312
  %v323 = vpack.c.b16 %v315, %v314
  %332 = vmatprep.subr.bf16.mxu0 0
  %333 = vmatpush1.bf16.msra.mxu0 %v323
  %334 = vmatprep.subr.bf16.mxu0 0
  %335 = vmatpush1.bf16.msra.mxu0 %v322
  %336 = vmatprep.subr.bf16.mxu0 0
  %337 = vmatpush1.bf16.msra.mxu0 %v321
  %338 = vmatprep.subr.bf16.mxu0 0
  %339 = vmatpush1.bf16.msra.mxu0 %v320
  %340 = vmatprep.subr.bf16.mxu0 0
  %341 = vmatpush1.bf16.msra.mxu0 %v319
  %342 = vmatprep.subr.bf16.mxu0 0
  %343 = vmatpush1.bf16.msra.mxu0 %v318
  %344 = vmatprep.subr.bf16.mxu0 0
  %345 = vmatpush1.bf16.msra.mxu0 %v317
  %346 = vmatprep.subr.bf16.mxu0 0
  %347 = vmatpush1.bf16.msra.mxu0 %v316
  %348 = vmatprep.subr.bf16.mxu0 0
  %349 = vmatpush2.bf16.msra.mxu0 0
  %350 = vmatprep.subr.bf16.mxu0 0
  %351 = vmatpush2.bf16.msra.mxu0 0
  %352 = vmatprep.subr.bf16.mxu0 0
  %353 = vmatpush2.bf16.msra.mxu0 0
  %354 = vmatprep.subr.bf16.mxu0 0
  %355 = vmatpush2.bf16.msra.mxu0 0
  %356 = vmatprep.subr.bf16.mxu0 0
  %357 = vmatpush2.bf16.msra.mxu0 0
  %358 = vmatprep.subr.bf16.mxu0 0
  %359 = vmatpush2.bf16.msra.mxu0 0
  %360 = vmatprep.subr.bf16.mxu0 0
  %361 = vmatpush2.bf16.msra.mxu0 0
  %362 = vmatprep.subr.bf16.mxu0 0
  %363 = vmatpush2.bf16.msra.mxu0 0
  %364 = vmatprep.mubr.bf16.mxu0 0
  %365 = vmatmul.mubr.bf16.gmra.mxu0 %v220
  %v366 = vpop.f32.mrf.mxu0
  %v367 = vadd.f32 0.0, %v366
  %v368 = vpop.f32.mrf.mxu0
  %v369 = vpop.f32.mrf.mxu0
  %v370 = vadd.f32 0.0, %v369
  %v371 = vpop.f32.mrf.mxu0
  %372 = vmatprep.mubr.bf16.mxu0 0
  %373 = vmatmul.mubr.bf16.gmra.mxu0 %v221
  %v374 = vpop.f32.mrf.mxu0
  %v375 = vadd.f32 0.0, %v374
  %v376 = vpop.f32.mrf.mxu0
  %v377 = vpop.f32.mrf.mxu0
  %v378 = vadd.f32 0.0, %v377
  %v379 = vpop.f32.mrf.mxu0
  %380 = vmatprep.mubr.bf16.mxu0 0
  %381 = vmatmul.mubr.bf16.gmra.mxu0 %v222
  %v382 = vpop.f32.mrf.mxu0
  %v383 = vadd.f32 0.0, %v382
  %v384 = vpop.f32.mrf.mxu0
  %v385 = vpop.f32.mrf.mxu0
  %v386 = vadd.f32 0.0, %v385
  %v387 = vpop.f32.mrf.mxu0
  %388 = vmatprep.mubr.bf16.mxu0 0
  %389 = vmatmul.mubr.bf16.gmra.mxu0 %v223
  %v390 = vpop.f32.mrf.mxu0
  %v391 = vadd.f32 0.0, %v390
  %v392 = vpop.f32.mrf.mxu0
  %v393 = vpop.f32.mrf.mxu0
  %v394 = vadd.f32 0.0, %v393
  %v395 = vpop.f32.mrf.mxu0
  %396 = vmatprep.mubr.bf16.mxu0 0
  %397 = vmatmul.mubr.bf16.gmra.mxu0 %v224
  %v398 = vpop.f32.mrf.mxu0
  %v399 = vadd.f32 0.0, %v398
  %v400 = vpop.f32.mrf.mxu0
  %v401 = vpop.f32.mrf.mxu0
  %v402 = vadd.f32 0.0, %v401
  %v403 = vpop.f32.mrf.mxu0
  %404 = vmatprep.mubr.bf16.mxu0 0
  %405 = vmatmul.mubr.bf16.gmra.mxu0 %v225
  %v406 = vpop.f32.mrf.mxu0
  %v407 = vadd.f32 0.0, %v406
  %v408 = vpop.f32.mrf.mxu0
  %v409 = vpop.f32.mrf.mxu0
  %v410 = vadd.f32 0.0, %v409
  %v411 = vpop.f32.mrf.mxu0
  %412 = vmatprep.mubr.bf16.mxu0 0
  %413 = vmatmul.mubr.bf16.gmra.mxu0 %v226
  %v414 = vpop.f32.mrf.mxu0
  %v415 = vadd.f32 0.0, %v414
  %v416 = vpop.f32.mrf.mxu0
  %v417 = vpop.f32.mrf.mxu0
  %v418 = vadd.f32 0.0, %v417
  %v419 = vpop.f32.mrf.mxu0
  %420 = vmatprep.mubr.bf16.mxu0 0
  %421 = vmatmul.mubr.bf16.gmra.mxu0 %v227
  %v422 = vpop.f32.mrf.mxu0
  %v423 = vadd.f32 0.0, %v422
  %v424 = vpop.f32.mrf.mxu0
  %v425 = vpop.f32.mrf.mxu0
  %v426 = vadd.f32 0.0, %v425
  %v427 = vpop.f32.mrf.mxu0
  %428 = vmatprep.mubr.bf16.mxu0 0
  %429 = vmatmul.mubr.bf16.gmra.mxu0 %v228
  %v430 = vpop.f32.mrf.mxu0
  %v431 = vadd.f32 0.0, %v430
  %v432 = vpop.f32.mrf.mxu0
  %v433 = vpop.f32.mrf.mxu0
  %v434 = vadd.f32 0.0, %v433
  %v435 = vpop.f32.mrf.mxu0
  %436 = vmatprep.mubr.bf16.mxu0 0
  %437 = vmatmul.mubr.bf16.gmra.mxu0 %v229
  %v438 = vpop.f32.mrf.mxu0
  %v439 = vadd.f32 0.0, %v438
  %v440 = vpop.f32.mrf.mxu0
  %v441 = vpop.f32.mrf.mxu0
  %v442 = vadd.f32 0.0, %v441
  %v443 = vpop.f32.mrf.mxu0
  %444 = vmatprep.mubr.bf16.mxu0 0
  %445 = vmatmul.mubr.bf16.gmra.mxu0 %v230
  %v446 = vpop.f32.mrf.mxu0
  %v447 = vadd.f32 0.0, %v446
  %v448 = vpop.f32.mrf.mxu0
  %v449 = vpop.f32.mrf.mxu0
  %v450 = vadd.f32 0.0, %v449
  %v451 = vpop.f32.mrf.mxu0
  %452 = vmatprep.mubr.bf16.mxu0 0
  %453 = vmatmul.mubr.bf16.gmra.mxu0 %v231
  %v454 = vpop.f32.mrf.mxu0
  %v455 = vadd.f32 0.0, %v454
  %v456 = vpop.f32.mrf.mxu0
  %v457 = vpop.f32.mrf.mxu0
  %v458 = vadd.f32 0.0, %v457
  %v459 = vpop.f32.mrf.mxu0
  %460 = vmatprep.mubr.bf16.mxu0 0
  %461 = vmatmul.mubr.bf16.gmra.mxu0 %v232
  %v462 = vpop.f32.mrf.mxu0
  %v463 = vadd.f32 0.0, %v462
  %v464 = vpop.f32.mrf.mxu0
  %v465 = vpop.f32.mrf.mxu0
  %v466 = vadd.f32 0.0, %v465
  %v467 = vpop.f32.mrf.mxu0
  %468 = vmatprep.mubr.bf16.mxu0 0
  %469 = vmatmul.mubr.bf16.gmra.mxu0 %v233
  %v470 = vpop.f32.mrf.mxu0
  %v471 = vadd.f32 0.0, %v470
  %v472 = vpop.f32.mrf.mxu0
  %v473 = vpop.f32.mrf.mxu0
  %v474 = vadd.f32 0.0, %v473
  %v475 = vpop.f32.mrf.mxu0
  %476 = vmatprep.mubr.bf16.mxu0 0
  %477 = vmatmul.mubr.bf16.gmra.mxu0 %v234
  %v478 = vpop.f32.mrf.mxu0
  %v479 = vadd.f32 0.0, %v478
  %v480 = vpop.f32.mrf.mxu0
  %v481 = vpop.f32.mrf.mxu0
  %v482 = vadd.f32 0.0, %v481
  %v483 = vpop.f32.mrf.mxu0
  %484 = vmatprep.mubr.bf16.mxu0 0
  %485 = vmatmul.mubr.bf16.gmra.mxu0 %v235
  %v486 = vpop.f32.mrf.mxu0
  %v487 = vadd.f32 0.0, %v486
  %v488 = vpop.f32.mrf.mxu0
  %v489 = vpop.f32.mrf.mxu0
  %v490 = vadd.f32 0.0, %v489
  %v491 = vpop.f32.mrf.mxu0
  %492 = vmatprep.mubr.bf16.mxu0 0
  %493 = vmatmul.mubr.bf16.gmra.mxu0 %v236
  %v494 = vpop.f32.mrf.mxu0
  %v495 = vadd.f32 0.0, %v494
  %v496 = vpop.f32.mrf.mxu0
  %v497 = vpop.f32.mrf.mxu0
  %v498 = vadd.f32 0.0, %v497
  %v499 = vpop.f32.mrf.mxu0
  %500 = vmatprep.mubr.bf16.mxu0 0
  %501 = vmatmul.mubr.bf16.gmra.mxu0 %v237
  %v502 = vpop.f32.mrf.mxu0
  %v503 = vadd.f32 0.0, %v502
  %v504 = vpop.f32.mrf.mxu0
  %v505 = vpop.f32.mrf.mxu0
  %v506 = vadd.f32 0.0, %v505
  %v507 = vpop.f32.mrf.mxu0
  %508 = vmatprep.mubr.bf16.mxu0 0
  %509 = vmatmul.mubr.bf16.gmra.mxu0 %v238
  %v510 = vpop.f32.mrf.mxu0
  %v511 = vadd.f32 0.0, %v510
  %v512 = vpop.f32.mrf.mxu0
  %v513 = vpop.f32.mrf.mxu0
  %v514 = vadd.f32 0.0, %v513
  %v515 = vpop.f32.mrf.mxu0
  %516 = vmatprep.mubr.bf16.mxu0 0
  %517 = vmatmul.mubr.bf16.gmra.mxu0 %v239
  %v518 = vpop.f32.mrf.mxu0
  %v519 = vadd.f32 0.0, %v518
  %v520 = vpop.f32.mrf.mxu0
  %v521 = vpop.f32.mrf.mxu0
  %v522 = vadd.f32 0.0, %v521
  %v523 = vpop.f32.mrf.mxu0
  %524 = vmatprep.mubr.bf16.mxu0 0
  %525 = vmatmul.mubr.bf16.gmra.mxu0 %v240
  %v526 = vpop.f32.mrf.mxu0
  %v527 = vadd.f32 0.0, %v526
  %v528 = vpop.f32.mrf.mxu0
  %v529 = vpop.f32.mrf.mxu0
  %v530 = vadd.f32 0.0, %v529
  %v531 = vpop.f32.mrf.mxu0
  %532 = vmatprep.mubr.bf16.mxu0 0
  %533 = vmatmul.mubr.bf16.gmra.mxu0 %v241
  %v534 = vpop.f32.mrf.mxu0
  %v535 = vadd.f32 0.0, %v534
  %v536 = vpop.f32.mrf.mxu0
  %v537 = vpop.f32.mrf.mxu0
  %v538 = vadd.f32 0.0, %v537
  %v539 = vpop.f32.mrf.mxu0
  %540 = vmatprep.mubr.bf16.mxu0 0
  %541 = vmatmul.mubr.bf16.gmra.mxu0 %v242
  %v542 = vpop.f32.mrf.mxu0
  %v543 = vadd.f32 0.0, %v542
  %v544 = vpop.f32.mrf.mxu0
  %v545 = vpop.f32.mrf.mxu0
  %v546 = vadd.f32 0.0, %v545
  %v547 = vpop.f32.mrf.mxu0
  %548 = vmatprep.mubr.bf16.mxu0 0
  %549 = vmatmul.mubr.bf16.gmra.mxu0 %v243
  %v550 = vpop.f32.mrf.mxu0
  %v551 = vadd.f32 0.0, %v550
  %v552 = vpop.f32.mrf.mxu0
  %v553 = vpop.f32.mrf.mxu0
  %v554 = vadd.f32 0.0, %v553
  %v555 = vpop.f32.mrf.mxu0
  %556 = vmatprep.mubr.bf16.mxu0 0
  %557 = vmatmul.mubr.bf16.gmra.mxu0 %v244
  %v558 = vpop.f32.mrf.mxu0
  %v559 = vadd.f32 0.0, %v558
  %v560 = vpop.f32.mrf.mxu0
  %v561 = vpop.f32.mrf.mxu0
  %v562 = vadd.f32 0.0, %v561
  %v563 = vpop.f32.mrf.mxu0
  %564 = vmatprep.mubr.bf16.mxu0 0
  %565 = vmatmul.mubr.bf16.gmra.mxu0 %v245
  %v566 = vpop.f32.mrf.mxu0
  %v567 = vadd.f32 0.0, %v566
  %v568 = vpop.f32.mrf.mxu0
  %v569 = vpop.f32.mrf.mxu0
  %v570 = vadd.f32 0.0, %v569
  %v571 = vpop.f32.mrf.mxu0
  %572 = vmatprep.mubr.bf16.mxu0 0
  %573 = vmatmul.mubr.bf16.gmra.mxu0 %v246
  %v574 = vpop.f32.mrf.mxu0
  %v575 = vadd.f32 0.0, %v574
  %v576 = vpop.f32.mrf.mxu0
  %v577 = vpop.f32.mrf.mxu0
  %v578 = vadd.f32 0.0, %v577
  %v579 = vpop.f32.mrf.mxu0
  %580 = vmatprep.mubr.bf16.mxu0 0
  %581 = vmatmul.mubr.bf16.gmra.mxu0 %v247
  %v582 = vpop.f32.mrf.mxu0
  %v583 = vadd.f32 0.0, %v582
  %v584 = vpop.f32.mrf.mxu0
  %v585 = vpop.f32.mrf.mxu0
  %v586 = vadd.f32 0.0, %v585
  %v587 = vpop.f32.mrf.mxu0
  %588 = vmatprep.mubr.bf16.mxu0 0
  %589 = vmatmul.mubr.bf16.gmra.mxu0 %v248
  %v590 = vpop.f32.mrf.mxu0
  %v591 = vadd.f32 0.0, %v590
  %v592 = vpop.f32.mrf.mxu0
  %v593 = vpop.f32.mrf.mxu0
  %v594 = vadd.f32 0.0, %v593
  %v595 = vpop.f32.mrf.mxu0
  %596 = vmatprep.mubr.bf16.mxu0 0
  %597 = vmatmul.mubr.bf16.gmra.mxu0 %v249
  %v598 = vpop.f32.mrf.mxu0
  %v599 = vadd.f32 0.0, %v598
  %v600 = vpop.f32.mrf.mxu0
  %v601 = vpop.f32.mrf.mxu0
  %v602 = vadd.f32 0.0, %v601
  %v603 = vpop.f32.mrf.mxu0
  %604 = vmatprep.mubr.bf16.mxu0 0
  %605 = vmatmul.mubr.bf16.gmra.mxu0 %v250
  %v606 = vpop.f32.mrf.mxu0
  %v607 = vadd.f32 0.0, %v606
  %v608 = vpop.f32.mrf.mxu0
  %v609 = vpop.f32.mrf.mxu0
  %v610 = vadd.f32 0.0, %v609
  %v611 = vpop.f32.mrf.mxu0
  %612 = vmatprep.mubr.bf16.mxu0 0
  %613 = vmatmul.mubr.bf16.gmra.mxu0 %v251
  %v614 = vpop.f32.mrf.mxu0
  %v615 = vadd.f32 0.0, %v614
  %v616 = vpop.f32.mrf.mxu0
  %v617 = vpop.f32.mrf.mxu0
  %v618 = vadd.f32 0.0, %v617
  %v619 = vpop.f32.mrf.mxu0
  %620 = vdwg.mxu0
  %v621 = vlaneseq
  %v622 = vshrl.u32 %v621, 7
  %v623 = vadd.s32 %v622, 8
  %v624 = vadd.s32 %v622, 16
  %v625 = vadd.s32 %v622, 24
  %v626 = vadd.s32 %v622, 32
  %v627 = vadd.s32 %v622, 40
  %v628 = vadd.s32 %v622, 48
  %v629 = vadd.s32 %v622, 56
  %v630 = vadd.s32 %v622, 64
  %v631 = vadd.s32 %v622, 72
  %v632 = vadd.s32 %v622, 80
  %v633 = vadd.s32 %v622, 88
  %v634 = vadd.s32 %v622, 96
  %v635 = vadd.s32 %v622, 104
  %v636 = vadd.s32 %v622, 112
  %v637 = vadd.s32 %v622, 120
  %v638 = vadd.s32 %v622, 128
  %v639 = vadd.s32 %v622, 136
  %v640 = vadd.s32 %v622, 144
  %v641 = vadd.s32 %v622, 152
  %v642 = vadd.s32 %v622, 160
  %v643 = vadd.s32 %v622, 168
  %v644 = vadd.s32 %v622, 176
  %v645 = vadd.s32 %v622, 184
  %v646 = vadd.s32 %v622, 192
  %v647 = vadd.s32 %v622, 200
  %v648 = vadd.s32 %v622, 208
  %v649 = vadd.s32 %v622, 216
  %v650 = vadd.s32 %v622, 224
  %v651 = vadd.s32 %v622, 232
  %v652 = vadd.s32 %v622, 240
  %v653 = vadd.s32 %v622, 248
  %v654 = vadd.s32 %v622, 256
  %v655 = vadd.s32 %v622, 264
  %v656 = vadd.s32 %v622, 272
  %v657 = vadd.s32 %v622, 280
  %v658 = vadd.s32 %v622, 288
  %v659 = vadd.s32 %v622, 296
  %v660 = vadd.s32 %v622, 304
  %v661 = vadd.s32 %v622, 312
  %v662 = vadd.s32 %v622, 320
  %v663 = vadd.s32 %v622, 328
  %v664 = vadd.s32 %v622, 336
  %v665 = vadd.s32 %v622, 344
  %v666 = vadd.s32 %v622, 352
  %v667 = vadd.s32 %v622, 360
  %v668 = vadd.s32 %v622, 368
  %v669 = vadd.s32 %v622, 376
  %v670 = vadd.s32 %v622, 384
  %v671 = vadd.s32 %v622, 392
  %v672 = vadd.s32 %v622, 400
  %v673 = vadd.s32 %v622, 408
  %v674 = vadd.s32 %v622, 416
  %v675 = vadd.s32 %v622, 424
  %v676 = vadd.s32 %v622, 432
  %v677 = vadd.s32 %v622, 440
  %v678 = vadd.s32 %v622, 448
  %v679 = vadd.s32 %v622, 456
  %v680 = vadd.s32 %v622, 464
  %v681 = vadd.s32 %v622, 472
  %v682 = vadd.s32 %v622, 480
  %v683 = vadd.s32 %v622, 488
  %v684 = vadd.s32 %v622, 496
  %v685 = vadd.s32 %v622, 504
  %vm686 = vcmp.lt.s32.totalorder %v622, 512
  %vm687 = vcmp.lt.s32.totalorder %v623, 512
  %vm688 = vcmp.lt.s32.totalorder %v624, 512
  %vm689 = vcmp.lt.s32.totalorder %v625, 512
  %vm690 = vcmp.lt.s32.totalorder %v626, 512
  %vm691 = vcmp.lt.s32.totalorder %v627, 512
  %vm692 = vcmp.lt.s32.totalorder %v628, 512
  %vm693 = vcmp.lt.s32.totalorder %v629, 512
  %vm694 = vcmp.lt.s32.totalorder %v630, 512
  %vm695 = vcmp.lt.s32.totalorder %v631, 512
  %vm696 = vcmp.lt.s32.totalorder %v632, 512
  %vm697 = vcmp.lt.s32.totalorder %v633, 512
  %vm698 = vcmp.lt.s32.totalorder %v634, 512
  %vm699 = vcmp.lt.s32.totalorder %v635, 512
  %vm700 = vcmp.lt.s32.totalorder %v636, 512
  %vm701 = vcmp.lt.s32.totalorder %v637, 512
  %vm702 = vcmp.lt.s32.totalorder %v638, 512
  %vm703 = vcmp.lt.s32.totalorder %v639, 512
  %vm704 = vcmp.lt.s32.totalorder %v640, 512
  %vm705 = vcmp.lt.s32.totalorder %v641, 512
  %vm706 = vcmp.lt.s32.totalorder %v642, 512
  %vm707 = vcmp.lt.s32.totalorder %v643, 512
  %vm708 = vcmp.lt.s32.totalorder %v644, 512
  %vm709 = vcmp.lt.s32.totalorder %v645, 512
  %vm710 = vcmp.lt.s32.totalorder %v646, 512
  %vm711 = vcmp.lt.s32.totalorder %v647, 512
  %vm712 = vcmp.lt.s32.totalorder %v648, 512
  %vm713 = vcmp.lt.s32.totalorder %v649, 512
  %vm714 = vcmp.lt.s32.totalorder %v650, 512
  %vm715 = vcmp.lt.s32.totalorder %v651, 512
  %vm716 = vcmp.lt.s32.totalorder %v652, 512
  %vm717 = vcmp.lt.s32.totalorder %v653, 512
  %vm718 = vcmp.lt.s32.totalorder %v654, 512
  %vm719 = vcmp.lt.s32.totalorder %v655, 512
  %vm720 = vcmp.lt.s32.totalorder %v656, 512
  %vm721 = vcmp.lt.s32.totalorder %v657, 512
  %vm722 = vcmp.lt.s32.totalorder %v658, 512
  %vm723 = vcmp.lt.s32.totalorder %v659, 512
  %vm724 = vcmp.lt.s32.totalorder %v660, 512
  %vm725 = vcmp.lt.s32.totalorder %v661, 512
  %vm726 = vcmp.lt.s32.totalorder %v662, 512
  %vm727 = vcmp.lt.s32.totalorder %v663, 512
  %vm728 = vcmp.lt.s32.totalorder %v664, 512
  %vm729 = vcmp.lt.s32.totalorder %v665, 512
  %vm730 = vcmp.lt.s32.totalorder %v666, 512
  %vm731 = vcmp.lt.s32.totalorder %v667, 512
  %vm732 = vcmp.lt.s32.totalorder %v668, 512
  %vm733 = vcmp.lt.s32.totalorder %v669, 512
  %vm734 = vcmp.lt.s32.totalorder %v670, 512
  %vm735 = vcmp.lt.s32.totalorder %v671, 512
  %vm736 = vcmp.lt.s32.totalorder %v672, 512
  %vm737 = vcmp.lt.s32.totalorder %v673, 512
  %vm738 = vcmp.lt.s32.totalorder %v674, 512
  %vm739 = vcmp.lt.s32.totalorder %v675, 512
  %vm740 = vcmp.lt.s32.totalorder %v676, 512
  %vm741 = vcmp.lt.s32.totalorder %v677, 512
  %vm742 = vcmp.lt.s32.totalorder %v678, 512
  %vm743 = vcmp.lt.s32.totalorder %v679, 512
  %vm744 = vcmp.lt.s32.totalorder %v680, 512
  %vm745 = vcmp.lt.s32.totalorder %v681, 512
  %vm746 = vcmp.lt.s32.totalorder %v682, 512
  %vm747 = vcmp.lt.s32.totalorder %v683, 512
  %vm748 = vcmp.lt.s32.totalorder %v684, 512
  %vm749 = vcmp.lt.s32.totalorder %v685, 512
  %v750 = vsel %vm686, %v367, 0.0
  %v751 = vsel %vm687, %v370, 0.0
  %v752 = vsel %vm688, %v375, 0.0
  %v753 = vsel %vm689, %v378, 0.0
  %v754 = vsel %vm690, %v383, 0.0
  %v755 = vsel %vm691, %v386, 0.0
  %v756 = vsel %vm692, %v391, 0.0
  %v757 = vsel %vm693, %v394, 0.0
  %v758 = vsel %vm694, %v399, 0.0
  %v759 = vsel %vm695, %v402, 0.0
  %v760 = vsel %vm696, %v407, 0.0
  %v761 = vsel %vm697, %v410, 0.0
  %v762 = vsel %vm698, %v415, 0.0
  %v763 = vsel %vm699, %v418, 0.0
  %v764 = vsel %vm700, %v423, 0.0
  %v765 = vsel %vm701, %v426, 0.0
  %v766 = vsel %vm702, %v431, 0.0
  %v767 = vsel %vm703, %v434, 0.0
  %v768 = vsel %vm704, %v439, 0.0
  %v769 = vsel %vm705, %v442, 0.0
  %v770 = vsel %vm706, %v447, 0.0
  %v771 = vsel %vm707, %v450, 0.0
  %v772 = vsel %vm708, %v455, 0.0
  %v773 = vsel %vm709, %v458, 0.0
  %v774 = vsel %vm710, %v463, 0.0
  %v775 = vsel %vm711, %v466, 0.0
  %v776 = vsel %vm712, %v471, 0.0
  %v777 = vsel %vm713, %v474, 0.0
  %v778 = vsel %vm714, %v479, 0.0
  %v779 = vsel %vm715, %v482, 0.0
  %v780 = vsel %vm716, %v487, 0.0
  %v781 = vsel %vm717, %v490, 0.0
  %v782 = vsel %vm718, %v495, 0.0
  %v783 = vsel %vm719, %v498, 0.0
  %v784 = vsel %vm720, %v503, 0.0
  %v785 = vsel %vm721, %v506, 0.0
  %v786 = vsel %vm722, %v511, 0.0
  %v787 = vsel %vm723, %v514, 0.0
  %v788 = vsel %vm724, %v519, 0.0
  %v789 = vsel %vm725, %v522, 0.0
  %v790 = vsel %vm726, %v527, 0.0
  %v791 = vsel %vm727, %v530, 0.0
  %v792 = vsel %vm728, %v535, 0.0
  %v793 = vsel %vm729, %v538, 0.0
  %v794 = vsel %vm730, %v543, 0.0
  %v795 = vsel %vm731, %v546, 0.0
  %v796 = vsel %vm732, %v551, 0.0
  %v797 = vsel %vm733, %v554, 0.0
  %v798 = vsel %vm734, %v559, 0.0
  %v799 = vsel %vm735, %v562, 0.0
  %v800 = vsel %vm736, %v567, 0.0
  %v801 = vsel %vm737, %v570, 0.0
  %v802 = vsel %vm738, %v575, 0.0
  %v803 = vsel %vm739, %v578, 0.0
  %v804 = vsel %vm740, %v583, 0.0
  %v805 = vsel %vm741, %v586, 0.0
  %v806 = vsel %vm742, %v591, 0.0
  %v807 = vsel %vm743, %v594, 0.0
  %v808 = vsel %vm744, %v599, 0.0
  %v809 = vsel %vm745, %v602, 0.0
  %v810 = vsel %vm746, %v607, 0.0
  %v811 = vsel %vm747, %v610, 0.0
  %v812 = vsel %vm748, %v615, 0.0
  %v813 = vsel %vm749, %v618, 0.0
  %v814 = vadd.f32 %v750, %v751
  %v815 = vadd.f32 %v814, %v752
  %v816 = vadd.f32 %v815, %v753
  %v817 = vadd.f32 %v816, %v754
  %v818 = vadd.f32 %v817, %v755
  %v819 = vadd.f32 %v818, %v756
  %v820 = vadd.f32 %v819, %v757
  %v821 = vadd.f32 %v820, %v758
  %v822 = vadd.f32 %v821, %v759
  %v823 = vadd.f32 %v822, %v760
  %v824 = vadd.f32 %v823, %v761
  %v825 = vadd.f32 %v824, %v762
  %v826 = vadd.f32 %v825, %v763
  %v827 = vadd.f32 %v826, %v764
  %v828 = vadd.f32 %v827, %v765
  %v829 = vadd.f32 %v828, %v766
  %v830 = vadd.f32 %v829, %v767
  %v831 = vadd.f32 %v830, %v768
  %v832 = vadd.f32 %v831, %v769
  %v833 = vadd.f32 %v832, %v770
  %v834 = vadd.f32 %v833, %v771
  %v835 = vadd.f32 %v834, %v772
  %v836 = vadd.f32 %v835, %v773
  %v837 = vadd.f32 %v836, %v774
  %v838 = vadd.f32 %v837, %v775
  %v839 = vadd.f32 %v838, %v776
  %v840 = vadd.f32 %v839, %v777
  %v841 = vadd.f32 %v840, %v778
  %v842 = vadd.f32 %v841, %v779
  %v843 = vadd.f32 %v842, %v780
  %v844 = vadd.f32 %v843, %v781
  %v845 = vadd.f32 %v844, %v782
  %v846 = vadd.f32 %v845, %v783
  %v847 = vadd.f32 %v846, %v784
  %v848 = vadd.f32 %v847, %v785
  %v849 = vadd.f32 %v848, %v786
  %v850 = vadd.f32 %v849, %v787
  %v851 = vadd.f32 %v850, %v788
  %v852 = vadd.f32 %v851, %v789
  %v853 = vadd.f32 %v852, %v790
  %v854 = vadd.f32 %v853, %v791
  %v855 = vadd.f32 %v854, %v792
  %v856 = vadd.f32 %v855, %v793
  %v857 = vadd.f32 %v856, %v794
  %v858 = vadd.f32 %v857, %v795
  %v859 = vadd.f32 %v858, %v796
  %v860 = vadd.f32 %v859, %v797
  %v861 = vadd.f32 %v860, %v798
  %v862 = vadd.f32 %v861, %v799
  %v863 = vadd.f32 %v862, %v800
  %v864 = vadd.f32 %v863, %v801
  %v865 = vadd.f32 %v864, %v802
  %v866 = vadd.f32 %v865, %v803
  %v867 = vadd.f32 %v866, %v804
  %v868 = vadd.f32 %v867, %v805
  %v869 = vadd.f32 %v868, %v806
  %v870 = vadd.f32 %v869, %v807
  %v871 = vadd.f32 %v870, %v808
  %v872 = vadd.f32 %v871, %v809
  %v873 = vadd.f32 %v872, %v810
  %v874 = vadd.f32 %v873, %v811
  %v875 = vadd.f32 %v874, %v812
  %v876 = vadd.f32 %v875, %v813
  %v877 = vrot.slane %v876, 4
  %v878 = vadd.f32 %v876, %v877
  %v879 = vrot.slane %v878, 2
  %v880 = vadd.f32 %v878, %v879
  %v881 = vrot.slane %v880, 1
  %v882 = vadd.f32 %v880, %v881
  %v883 = vmul.f32 %v882, 0.001953125
  %v884 = vsub.f32 %v367, %v883
  %v885 = vsub.f32 %v370, %v883
  %v886 = vsub.f32 %v375, %v883
  %v887 = vsub.f32 %v378, %v883
  %v888 = vsub.f32 %v383, %v883
  %v889 = vsub.f32 %v386, %v883
  %v890 = vsub.f32 %v391, %v883
  %v891 = vsub.f32 %v394, %v883
  %v892 = vsub.f32 %v399, %v883
  %v893 = vsub.f32 %v402, %v883
  %v894 = vsub.f32 %v407, %v883
  %v895 = vsub.f32 %v410, %v883
  %v896 = vsub.f32 %v415, %v883
  %v897 = vsub.f32 %v418, %v883
  %v898 = vsub.f32 %v423, %v883
  %v899 = vsub.f32 %v426, %v883
  %v900 = vsub.f32 %v431, %v883
  %v901 = vsub.f32 %v434, %v883
  %v902 = vsub.f32 %v439, %v883
  %v903 = vsub.f32 %v442, %v883
  %v904 = vsub.f32 %v447, %v883
  %v905 = vsub.f32 %v450, %v883
  %v906 = vsub.f32 %v455, %v883
  %v907 = vsub.f32 %v458, %v883
  %v908 = vsub.f32 %v463, %v883
  %v909 = vsub.f32 %v466, %v883
  %v910 = vsub.f32 %v471, %v883
  %v911 = vsub.f32 %v474, %v883
  %v912 = vsub.f32 %v479, %v883
  %v913 = vsub.f32 %v482, %v883
  %v914 = vsub.f32 %v487, %v883
  %v915 = vsub.f32 %v490, %v883
  %v916 = vsub.f32 %v495, %v883
  %v917 = vsub.f32 %v498, %v883
  %v918 = vsub.f32 %v503, %v883
  %v919 = vsub.f32 %v506, %v883
  %v920 = vsub.f32 %v511, %v883
  %v921 = vsub.f32 %v514, %v883
  %v922 = vsub.f32 %v519, %v883
  %v923 = vsub.f32 %v522, %v883
  %v924 = vsub.f32 %v527, %v883
  %v925 = vsub.f32 %v530, %v883
  %v926 = vsub.f32 %v535, %v883
  %v927 = vsub.f32 %v538, %v883
  %v928 = vsub.f32 %v543, %v883
  %v929 = vsub.f32 %v546, %v883
  %v930 = vsub.f32 %v551, %v883
  %v931 = vsub.f32 %v554, %v883
  %v932 = vsub.f32 %v559, %v883
  %v933 = vsub.f32 %v562, %v883
  %v934 = vsub.f32 %v567, %v883
  %v935 = vsub.f32 %v570, %v883
  %v936 = vsub.f32 %v575, %v883
  %v937 = vsub.f32 %v578, %v883
  %v938 = vsub.f32 %v583, %v883
  %v939 = vsub.f32 %v586, %v883
  %v940 = vsub.f32 %v591, %v883
  %v941 = vsub.f32 %v594, %v883
  %v942 = vsub.f32 %v599, %v883
  %v943 = vsub.f32 %v602, %v883
  %v944 = vsub.f32 %v607, %v883
  %v945 = vsub.f32 %v610, %v883
  %v946 = vsub.f32 %v615, %v883
  %v947 = vsub.f32 %v618, %v883
  %v948 = vsel %vm686, %v884, 0.0
  %v949 = vsel %vm687, %v885, 0.0
  %v950 = vsel %vm688, %v886, 0.0
  %v951 = vsel %vm689, %v887, 0.0
  %v952 = vsel %vm690, %v888, 0.0
  %v953 = vsel %vm691, %v889, 0.0
  %v954 = vsel %vm692, %v890, 0.0
  %v955 = vsel %vm693, %v891, 0.0
  %v956 = vsel %vm694, %v892, 0.0
  %v957 = vsel %vm695, %v893, 0.0
  %v958 = vsel %vm696, %v894, 0.0
  %v959 = vsel %vm697, %v895, 0.0
  %v960 = vsel %vm698, %v896, 0.0
  %v961 = vsel %vm699, %v897, 0.0
  %v962 = vsel %vm700, %v898, 0.0
  %v963 = vsel %vm701, %v899, 0.0
  %v964 = vsel %vm702, %v900, 0.0
  %v965 = vsel %vm703, %v901, 0.0
  %v966 = vsel %vm704, %v902, 0.0
  %v967 = vsel %vm705, %v903, 0.0
  %v968 = vsel %vm706, %v904, 0.0
  %v969 = vsel %vm707, %v905, 0.0
  %v970 = vsel %vm708, %v906, 0.0
  %v971 = vsel %vm709, %v907, 0.0
  %v972 = vsel %vm710, %v908, 0.0
  %v973 = vsel %vm711, %v909, 0.0
  %v974 = vsel %vm712, %v910, 0.0
  %v975 = vsel %vm713, %v911, 0.0
  %v976 = vsel %vm714, %v912, 0.0
  %v977 = vsel %vm715, %v913, 0.0
  %v978 = vsel %vm716, %v914, 0.0
  %v979 = vsel %vm717, %v915, 0.0
  %v980 = vsel %vm718, %v916, 0.0
  %v981 = vsel %vm719, %v917, 0.0
  %v982 = vsel %vm720, %v918, 0.0
  %v983 = vsel %vm721, %v919, 0.0
  %v984 = vsel %vm722, %v920, 0.0
  %v985 = vsel %vm723, %v921, 0.0
  %v986 = vsel %vm724, %v922, 0.0
  %v987 = vsel %vm725, %v923, 0.0
  %v988 = vsel %vm726, %v924, 0.0
  %v989 = vsel %vm727, %v925, 0.0
  %v990 = vsel %vm728, %v926, 0.0
  %v991 = vsel %vm729, %v927, 0.0
  %v992 = vsel %vm730, %v928, 0.0
  %v993 = vsel %vm731, %v929, 0.0
  %v994 = vsel %vm732, %v930, 0.0
  %v995 = vsel %vm733, %v931, 0.0
  %v996 = vsel %vm734, %v932, 0.0
  %v997 = vsel %vm735, %v933, 0.0
  %v998 = vsel %vm736, %v934, 0.0
  %v999 = vsel %vm737, %v935, 0.0
  %v1000 = vsel %vm738, %v936, 0.0
  %v1001 = vsel %vm739, %v937, 0.0
  %v1002 = vsel %vm740, %v938, 0.0
  %v1003 = vsel %vm741, %v939, 0.0
  %v1004 = vsel %vm742, %v940, 0.0
  %v1005 = vsel %vm743, %v941, 0.0
  %v1006 = vsel %vm744, %v942, 0.0
  %v1007 = vsel %vm745, %v943, 0.0
  %v1008 = vsel %vm746, %v944, 0.0
  %v1009 = vsel %vm747, %v945, 0.0
  %v1010 = vsel %vm748, %v946, 0.0
  %v1011 = vsel %vm749, %v947, 0.0
  %v1012 = vmul.f32 %v948, %v948
  %v1013 = vmul.f32 %v949, %v949
  %v1014 = vmul.f32 %v950, %v950
  %v1015 = vmul.f32 %v951, %v951
  %v1016 = vmul.f32 %v952, %v952
  %v1017 = vmul.f32 %v953, %v953
  %v1018 = vmul.f32 %v954, %v954
  %v1019 = vmul.f32 %v955, %v955
  %v1020 = vmul.f32 %v956, %v956
  %v1021 = vmul.f32 %v957, %v957
  %v1022 = vmul.f32 %v958, %v958
  %v1023 = vmul.f32 %v959, %v959
  %v1024 = vmul.f32 %v960, %v960
  %v1025 = vmul.f32 %v961, %v961
  %v1026 = vmul.f32 %v962, %v962
  %v1027 = vmul.f32 %v963, %v963
  %v1028 = vmul.f32 %v964, %v964
  %v1029 = vmul.f32 %v965, %v965
  %v1030 = vmul.f32 %v966, %v966
  %v1031 = vmul.f32 %v967, %v967
  %v1032 = vmul.f32 %v968, %v968
  %v1033 = vmul.f32 %v969, %v969
  %v1034 = vmul.f32 %v970, %v970
  %v1035 = vmul.f32 %v971, %v971
  %v1036 = vmul.f32 %v972, %v972
  %v1037 = vmul.f32 %v973, %v973
  %v1038 = vmul.f32 %v974, %v974
  %v1039 = vmul.f32 %v975, %v975
  %v1040 = vmul.f32 %v976, %v976
  %v1041 = vmul.f32 %v977, %v977
  %v1042 = vmul.f32 %v978, %v978
  %v1043 = vmul.f32 %v979, %v979
  %v1044 = vmul.f32 %v980, %v980
  %v1045 = vmul.f32 %v981, %v981
  %v1046 = vmul.f32 %v982, %v982
  %v1047 = vmul.f32 %v983, %v983
  %v1048 = vmul.f32 %v984, %v984
  %v1049 = vmul.f32 %v985, %v985
  %v1050 = vmul.f32 %v986, %v986
  %v1051 = vmul.f32 %v987, %v987
  %v1052 = vmul.f32 %v988, %v988
  %v1053 = vmul.f32 %v989, %v989
  %v1054 = vmul.f32 %v990, %v990
  %v1055 = vmul.f32 %v991, %v991
  %v1056 = vmul.f32 %v992, %v992
  %v1057 = vmul.f32 %v993, %v993
  %v1058 = vmul.f32 %v994, %v994
  %v1059 = vmul.f32 %v995, %v995
  %v1060 = vmul.f32 %v996, %v996
  %v1061 = vmul.f32 %v997, %v997
  %v1062 = vmul.f32 %v998, %v998
  %v1063 = vmul.f32 %v999, %v999
  %v1064 = vmul.f32 %v1000, %v1000
  %v1065 = vmul.f32 %v1001, %v1001
  %v1066 = vmul.f32 %v1002, %v1002
  %v1067 = vmul.f32 %v1003, %v1003
  %v1068 = vmul.f32 %v1004, %v1004
  %v1069 = vmul.f32 %v1005, %v1005
  %v1070 = vmul.f32 %v1006, %v1006
  %v1071 = vmul.f32 %v1007, %v1007
  %v1072 = vmul.f32 %v1008, %v1008
  %v1073 = vmul.f32 %v1009, %v1009
  %v1074 = vmul.f32 %v1010, %v1010
  %v1075 = vmul.f32 %v1011, %v1011
  %v1076 = vadd.f32 %v1012, %v1013
  %v1077 = vadd.f32 %v1076, %v1014
  %v1078 = vadd.f32 %v1077, %v1015
  %v1079 = vadd.f32 %v1078, %v1016
  %v1080 = vadd.f32 %v1079, %v1017
  %v1081 = vadd.f32 %v1080, %v1018
  %v1082 = vadd.f32 %v1081, %v1019
  %v1083 = vadd.f32 %v1082, %v1020
  %v1084 = vadd.f32 %v1083, %v1021
  %v1085 = vadd.f32 %v1084, %v1022
  %v1086 = vadd.f32 %v1085, %v1023
  %v1087 = vadd.f32 %v1086, %v1024
  %v1088 = vadd.f32 %v1087, %v1025
  %v1089 = vadd.f32 %v1088, %v1026
  %v1090 = vadd.f32 %v1089, %v1027
  %v1091 = vadd.f32 %v1090, %v1028
  %v1092 = vadd.f32 %v1091, %v1029
  %v1093 = vadd.f32 %v1092, %v1030
  %v1094 = vadd.f32 %v1093, %v1031
  %v1095 = vadd.f32 %v1094, %v1032
  %v1096 = vadd.f32 %v1095, %v1033
  %v1097 = vadd.f32 %v1096, %v1034
  %v1098 = vadd.f32 %v1097, %v1035
  %v1099 = vadd.f32 %v1098, %v1036
  %v1100 = vadd.f32 %v1099, %v1037
  %v1101 = vadd.f32 %v1100, %v1038
  %v1102 = vadd.f32 %v1101, %v1039
  %v1103 = vadd.f32 %v1102, %v1040
  %v1104 = vadd.f32 %v1103, %v1041
  %v1105 = vadd.f32 %v1104, %v1042
  %v1106 = vadd.f32 %v1105, %v1043
  %v1107 = vadd.f32 %v1106, %v1044
  %v1108 = vadd.f32 %v1107, %v1045
  %v1109 = vadd.f32 %v1108, %v1046
  %v1110 = vadd.f32 %v1109, %v1047
  %v1111 = vadd.f32 %v1110, %v1048
  %v1112 = vadd.f32 %v1111, %v1049
  %v1113 = vadd.f32 %v1112, %v1050
  %v1114 = vadd.f32 %v1113, %v1051
  %v1115 = vadd.f32 %v1114, %v1052
  %v1116 = vadd.f32 %v1115, %v1053
  %v1117 = vadd.f32 %v1116, %v1054
  %v1118 = vadd.f32 %v1117, %v1055
  %v1119 = vadd.f32 %v1118, %v1056
  %v1120 = vadd.f32 %v1119, %v1057
  %v1121 = vadd.f32 %v1120, %v1058
  %v1122 = vadd.f32 %v1121, %v1059
  %v1123 = vadd.f32 %v1122, %v1060
  %v1124 = vadd.f32 %v1123, %v1061
  %v1125 = vadd.f32 %v1124, %v1062
  %v1126 = vadd.f32 %v1125, %v1063
  %v1127 = vadd.f32 %v1126, %v1064
  %v1128 = vadd.f32 %v1127, %v1065
  %v1129 = vadd.f32 %v1128, %v1066
  %v1130 = vadd.f32 %v1129, %v1067
  %v1131 = vadd.f32 %v1130, %v1068
  %v1132 = vadd.f32 %v1131, %v1069
  %v1133 = vadd.f32 %v1132, %v1070
  %v1134 = vadd.f32 %v1133, %v1071
  %v1135 = vadd.f32 %v1134, %v1072
  %v1136 = vadd.f32 %v1135, %v1073
  %v1137 = vadd.f32 %v1136, %v1074
  %v1138 = vadd.f32 %v1137, %v1075
  %v1139 = vrot.slane %v1138, 4
  %v1140 = vadd.f32 %v1138, %v1139
  %v1141 = vrot.slane %v1140, 2
  %v1142 = vadd.f32 %v1140, %v1141
  %v1143 = vrot.slane %v1142, 1
  %v1144 = vadd.f32 %v1142, %v1143
  %v1145 = vmul.f32 %v1144, 0.001953125
  %v1146 = vadd.f32 %v1145, 1e-05
  %v1147 = vrsqrt.pop %v1146
  %v1148 = vmul.f32 %v948, %v1147
  %v1149 = vmul.f32 %v949, %v1147
  %v1150 = vmul.f32 %v950, %v1147
  %v1151 = vmul.f32 %v951, %v1147
  %v1152 = vmul.f32 %v952, %v1147
  %v1153 = vmul.f32 %v953, %v1147
  %v1154 = vmul.f32 %v954, %v1147
  %v1155 = vmul.f32 %v955, %v1147
  %v1156 = vmul.f32 %v956, %v1147
  %v1157 = vmul.f32 %v957, %v1147
  %v1158 = vmul.f32 %v958, %v1147
  %v1159 = vmul.f32 %v959, %v1147
  %v1160 = vmul.f32 %v960, %v1147
  %v1161 = vmul.f32 %v961, %v1147
  %v1162 = vmul.f32 %v962, %v1147
  %v1163 = vmul.f32 %v963, %v1147
  %v1164 = vmul.f32 %v964, %v1147
  %v1165 = vmul.f32 %v965, %v1147
  %v1166 = vmul.f32 %v966, %v1147
  %v1167 = vmul.f32 %v967, %v1147
  %v1168 = vmul.f32 %v968, %v1147
  %v1169 = vmul.f32 %v969, %v1147
  %v1170 = vmul.f32 %v970, %v1147
  %v1171 = vmul.f32 %v971, %v1147
  %v1172 = vmul.f32 %v972, %v1147
  %v1173 = vmul.f32 %v973, %v1147
  %v1174 = vmul.f32 %v974, %v1147
  %v1175 = vmul.f32 %v975, %v1147
  %v1176 = vmul.f32 %v976, %v1147
  %v1177 = vmul.f32 %v977, %v1147
  %v1178 = vmul.f32 %v978, %v1147
  %v1179 = vmul.f32 %v979, %v1147
  %v1180 = vmul.f32 %v980, %v1147
  %v1181 = vmul.f32 %v981, %v1147
  %v1182 = vmul.f32 %v982, %v1147
  %v1183 = vmul.f32 %v983, %v1147
  %v1184 = vmul.f32 %v984, %v1147
  %v1185 = vmul.f32 %v985, %v1147
  %v1186 = vmul.f32 %v986, %v1147
  %v1187 = vmul.f32 %v987, %v1147
  %v1188 = vmul.f32 %v988, %v1147
  %v1189 = vmul.f32 %v989, %v1147
  %v1190 = vmul.f32 %v990, %v1147
  %v1191 = vmul.f32 %v991, %v1147
  %v1192 = vmul.f32 %v992, %v1147
  %v1193 = vmul.f32 %v993, %v1147
  %v1194 = vmul.f32 %v994, %v1147
  %v1195 = vmul.f32 %v995, %v1147
  %v1196 = vmul.f32 %v996, %v1147
  %v1197 = vmul.f32 %v997, %v1147
  %v1198 = vmul.f32 %v998, %v1147
  %v1199 = vmul.f32 %v999, %v1147
  %v1200 = vmul.f32 %v1000, %v1147
  %v1201 = vmul.f32 %v1001, %v1147
  %v1202 = vmul.f32 %v1002, %v1147
  %v1203 = vmul.f32 %v1003, %v1147
  %v1204 = vmul.f32 %v1004, %v1147
  %v1205 = vmul.f32 %v1005, %v1147
  %v1206 = vmul.f32 %v1006, %v1147
  %v1207 = vmul.f32 %v1007, %v1147
  %v1208 = vmul.f32 %v1008, %v1147
  %v1209 = vmul.f32 %v1009, %v1147
  %v1210 = vmul.f32 %v1010, %v1147
  %v1211 = vmul.f32 %v1011, %v1147
  %vm1212 = vcmp.gt.f32.partialorder %v1148, 0.0
  %vm1213 = vcmp.gt.f32.partialorder %v1149, 0.0
  %vm1214 = vcmp.gt.f32.partialorder %v1150, 0.0
  %vm1215 = vcmp.gt.f32.partialorder %v1151, 0.0
  %vm1216 = vcmp.gt.f32.partialorder %v1152, 0.0
  %vm1217 = vcmp.gt.f32.partialorder %v1153, 0.0
  %vm1218 = vcmp.gt.f32.partialorder %v1154, 0.0
  %vm1219 = vcmp.gt.f32.partialorder %v1155, 0.0
  %vm1220 = vcmp.gt.f32.partialorder %v1156, 0.0
  %vm1221 = vcmp.gt.f32.partialorder %v1157, 0.0
  %vm1222 = vcmp.gt.f32.partialorder %v1158, 0.0
  %vm1223 = vcmp.gt.f32.partialorder %v1159, 0.0
  %vm1224 = vcmp.gt.f32.partialorder %v1160, 0.0
  %vm1225 = vcmp.gt.f32.partialorder %v1161, 0.0
  %vm1226 = vcmp.gt.f32.partialorder %v1162, 0.0
  %vm1227 = vcmp.gt.f32.partialorder %v1163, 0.0
  %vm1228 = vcmp.gt.f32.partialorder %v1164, 0.0
  %vm1229 = vcmp.gt.f32.partialorder %v1165, 0.0
  %vm1230 = vcmp.gt.f32.partialorder %v1166, 0.0
  %vm1231 = vcmp.gt.f32.partialorder %v1167, 0.0
  %vm1232 = vcmp.gt.f32.partialorder %v1168, 0.0
  %vm1233 = vcmp.gt.f32.partialorder %v1169, 0.0
  %vm1234 = vcmp.gt.f32.partialorder %v1170, 0.0
  %vm1235 = vcmp.gt.f32.partialorder %v1171, 0.0
  %vm1236 = vcmp.gt.f32.partialorder %v1172, 0.0
  %vm1237 = vcmp.gt.f32.partialorder %v1173, 0.0
  %vm1238 = vcmp.gt.f32.partialorder %v1174, 0.0
  %vm1239 = vcmp.gt.f32.partialorder %v1175, 0.0
  %vm1240 = vcmp.gt.f32.partialorder %v1176, 0.0
  %vm1241 = vcmp.gt.f32.partialorder %v1177, 0.0
  %vm1242 = vcmp.gt.f32.partialorder %v1178, 0.0
  %vm1243 = vcmp.gt.f32.partialorder %v1179, 0.0
  %vm1244 = vcmp.gt.f32.partialorder %v1180, 0.0
  %vm1245 = vcmp.gt.f32.partialorder %v1181, 0.0
  %vm1246 = vcmp.gt.f32.partialorder %v1182, 0.0
  %vm1247 = vcmp.gt.f32.partialorder %v1183, 0.0
  %vm1248 = vcmp.gt.f32.partialorder %v1184, 0.0
  %vm1249 = vcmp.gt.f32.partialorder %v1185, 0.0
  %vm1250 = vcmp.gt.f32.partialorder %v1186, 0.0
  %vm1251 = vcmp.gt.f32.partialorder %v1187, 0.0
  %vm1252 = vcmp.gt.f32.partialorder %v1188, 0.0
  %vm1253 = vcmp.gt.f32.partialorder %v1189, 0.0
  %vm1254 = vcmp.gt.f32.partialorder %v1190, 0.0
  %vm1255 = vcmp.gt.f32.partialorder %v1191, 0.0
  %vm1256 = vcmp.gt.f32.partialorder %v1192, 0.0
  %vm1257 = vcmp.gt.f32.partialorder %v1193, 0.0
  %vm1258 = vcmp.gt.f32.partialorder %v1194, 0.0
  %vm1259 = vcmp.gt.f32.partialorder %v1195, 0.0
  %vm1260 = vcmp.gt.f32.partialorder %v1196, 0.0
  %vm1261 = vcmp.gt.f32.partialorder %v1197, 0.0
  %vm1262 = vcmp.gt.f32.partialorder %v1198, 0.0
  %vm1263 = vcmp.gt.f32.partialorder %v1199, 0.0
  %vm1264 = vcmp.gt.f32.partialorder %v1200, 0.0
  %vm1265 = vcmp.gt.f32.partialorder %v1201, 0.0
  %vm1266 = vcmp.gt.f32.partialorder %v1202, 0.0
  %vm1267 = vcmp.gt.f32.partialorder %v1203, 0.0
  %vm1268 = vcmp.gt.f32.partialorder %v1204, 0.0
  %vm1269 = vcmp.gt.f32.partialorder %v1205, 0.0
  %vm1270 = vcmp.gt.f32.partialorder %v1206, 0.0
  %vm1271 = vcmp.gt.f32.partialorder %v1207, 0.0
  %vm1272 = vcmp.gt.f32.partialorder %v1208, 0.0
  %vm1273 = vcmp.gt.f32.partialorder %v1209, 0.0
  %vm1274 = vcmp.gt.f32.partialorder %v1210, 0.0
  %vm1275 = vcmp.gt.f32.partialorder %v1211, 0.0
  %v1276 = vmul.f32 %v1148, 0.2
  %v1277 = vmul.f32 %v1149, 0.2
  %v1278 = vmul.f32 %v1150, 0.2
  %v1279 = vmul.f32 %v1151, 0.2
  %v1280 = vmul.f32 %v1152, 0.2
  %v1281 = vmul.f32 %v1153, 0.2
  %v1282 = vmul.f32 %v1154, 0.2
  %v1283 = vmul.f32 %v1155, 0.2
  %v1284 = vmul.f32 %v1156, 0.2
  %v1285 = vmul.f32 %v1157, 0.2
  %v1286 = vmul.f32 %v1158, 0.2
  %v1287 = vmul.f32 %v1159, 0.2
  %v1288 = vmul.f32 %v1160, 0.2
  %v1289 = vmul.f32 %v1161, 0.2
  %v1290 = vmul.f32 %v1162, 0.2
  %v1291 = vmul.f32 %v1163, 0.2
  %v1292 = vmul.f32 %v1164, 0.2
  %v1293 = vmul.f32 %v1165, 0.2
  %v1294 = vmul.f32 %v1166, 0.2
  %v1295 = vmul.f32 %v1167, 0.2
  %v1296 = vmul.f32 %v1168, 0.2
  %v1297 = vmul.f32 %v1169, 0.2
  %v1298 = vmul.f32 %v1170, 0.2
  %v1299 = vmul.f32 %v1171, 0.2
  %v1300 = vmul.f32 %v1172, 0.2
  %v1301 = vmul.f32 %v1173, 0.2
  %v1302 = vmul.f32 %v1174, 0.2
  %v1303 = vmul.f32 %v1175, 0.2
  %v1304 = vmul.f32 %v1176, 0.2
  %v1305 = vmul.f32 %v1177, 0.2
  %v1306 = vmul.f32 %v1178, 0.2
  %v1307 = vmul.f32 %v1179, 0.2
  %v1308 = vmul.f32 %v1180, 0.2
  %v1309 = vmul.f32 %v1181, 0.2
  %v1310 = vmul.f32 %v1182, 0.2
  %v1311 = vmul.f32 %v1183, 0.2
  %v1312 = vmul.f32 %v1184, 0.2
  %v1313 = vmul.f32 %v1185, 0.2
  %v1314 = vmul.f32 %v1186, 0.2
  %v1315 = vmul.f32 %v1187, 0.2
  %v1316 = vmul.f32 %v1188, 0.2
  %v1317 = vmul.f32 %v1189, 0.2
  %v1318 = vmul.f32 %v1190, 0.2
  %v1319 = vmul.f32 %v1191, 0.2
  %v1320 = vmul.f32 %v1192, 0.2
  %v1321 = vmul.f32 %v1193, 0.2
  %v1322 = vmul.f32 %v1194, 0.2
  %v1323 = vmul.f32 %v1195, 0.2
  %v1324 = vmul.f32 %v1196, 0.2
  %v1325 = vmul.f32 %v1197, 0.2
  %v1326 = vmul.f32 %v1198, 0.2
  %v1327 = vmul.f32 %v1199, 0.2
  %v1328 = vmul.f32 %v1200, 0.2
  %v1329 = vmul.f32 %v1201, 0.2
  %v1330 = vmul.f32 %v1202, 0.2
  %v1331 = vmul.f32 %v1203, 0.2
  %v1332 = vmul.f32 %v1204, 0.2
  %v1333 = vmul.f32 %v1205, 0.2
  %v1334 = vmul.f32 %v1206, 0.2
  %v1335 = vmul.f32 %v1207, 0.2
  %v1336 = vmul.f32 %v1208, 0.2
  %v1337 = vmul.f32 %v1209, 0.2
  %v1338 = vmul.f32 %v1210, 0.2
  %v1339 = vmul.f32 %v1211, 0.2
  %v1340 = vsel %vm1212, %v1148, %v1276
  %v1341 = vsel %vm1213, %v1149, %v1277
  %v1342 = vsel %vm1214, %v1150, %v1278
  %v1343 = vsel %vm1215, %v1151, %v1279
  %v1344 = vsel %vm1216, %v1152, %v1280
  %v1345 = vsel %vm1217, %v1153, %v1281
  %v1346 = vsel %vm1218, %v1154, %v1282
  %v1347 = vsel %vm1219, %v1155, %v1283
  %v1348 = vsel %vm1220, %v1156, %v1284
  %v1349 = vsel %vm1221, %v1157, %v1285
  %v1350 = vsel %vm1222, %v1158, %v1286
  %v1351 = vsel %vm1223, %v1159, %v1287
  %v1352 = vsel %vm1224, %v1160, %v1288
  %v1353 = vsel %vm1225, %v1161, %v1289
  %v1354 = vsel %vm1226, %v1162, %v1290
  %v1355 = vsel %vm1227, %v1163, %v1291
  %v1356 = vsel %vm1228, %v1164, %v1292
  %v1357 = vsel %vm1229, %v1165, %v1293
  %v1358 = vsel %vm1230, %v1166, %v1294
  %v1359 = vsel %vm1231, %v1167, %v1295
  %v1360 = vsel %vm1232, %v1168, %v1296
  %v1361 = vsel %vm1233, %v1169, %v1297
  %v1362 = vsel %vm1234, %v1170, %v1298
  %v1363 = vsel %vm1235, %v1171, %v1299
  %v1364 = vsel %vm1236, %v1172, %v1300
  %v1365 = vsel %vm1237, %v1173, %v1301
  %v1366 = vsel %vm1238, %v1174, %v1302
  %v1367 = vsel %vm1239, %v1175, %v1303
  %v1368 = vsel %vm1240, %v1176, %v1304
  %v1369 = vsel %vm1241, %v1177, %v1305
  %v1370 = vsel %vm1242, %v1178, %v1306
  %v1371 = vsel %vm1243, %v1179, %v1307
  %v1372 = vsel %vm1244, %v1180, %v1308
  %v1373 = vsel %vm1245, %v1181, %v1309
  %v1374 = vsel %vm1246, %v1182, %v1310
  %v1375 = vsel %vm1247, %v1183, %v1311
  %v1376 = vsel %vm1248, %v1184, %v1312
  %v1377 = vsel %vm1249, %v1185, %v1313
  %v1378 = vsel %vm1250, %v1186, %v1314
  %v1379 = vsel %vm1251, %v1187, %v1315
  %v1380 = vsel %vm1252, %v1188, %v1316
  %v1381 = vsel %vm1253, %v1189, %v1317
  %v1382 = vsel %vm1254, %v1190, %v1318
  %v1383 = vsel %vm1255, %v1191, %v1319
  %v1384 = vsel %vm1256, %v1192, %v1320
  %v1385 = vsel %vm1257, %v1193, %v1321
  %v1386 = vsel %vm1258, %v1194, %v1322
  %v1387 = vsel %vm1259, %v1195, %v1323
  %v1388 = vsel %vm1260, %v1196, %v1324
  %v1389 = vsel %vm1261, %v1197, %v1325
  %v1390 = vsel %vm1262, %v1198, %v1326
  %v1391 = vsel %vm1263, %v1199, %v1327
  %v1392 = vsel %vm1264, %v1200, %v1328
  %v1393 = vsel %vm1265, %v1201, %v1329
  %v1394 = vsel %vm1266, %v1202, %v1330
  %v1395 = vsel %vm1267, %v1203, %v1331
  %v1396 = vsel %vm1268, %v1204, %v1332
  %v1397 = vsel %vm1269, %v1205, %v1333
  %v1398 = vsel %vm1270, %v1206, %v1334
  %v1399 = vsel %vm1271, %v1207, %v1335
  %v1400 = vsel %vm1272, %v1208, %v1336
  %v1401 = vsel %vm1273, %v1209, %v1337
  %v1402 = vsel %vm1274, %v1210, %v1338
  %v1403 = vsel %vm1275, %v1211, %v1339
  %v1404 = vpack.c.bf16 %v1341, %v1340
  %v1405 = vpack.c.bf16 %v1343, %v1342
  %v1406 = vpack.c.bf16 %v1345, %v1344
  %v1407 = vpack.c.bf16 %v1347, %v1346
  %v1408 = vpack.c.bf16 %v1349, %v1348
  %v1409 = vpack.c.bf16 %v1351, %v1350
  %v1410 = vpack.c.bf16 %v1353, %v1352
  %v1411 = vpack.c.bf16 %v1355, %v1354
  %v1412 = vpack.c.bf16 %v1357, %v1356
  %v1413 = vpack.c.bf16 %v1359, %v1358
  %v1414 = vpack.c.bf16 %v1361, %v1360
  %v1415 = vpack.c.bf16 %v1363, %v1362
  %v1416 = vpack.c.bf16 %v1365, %v1364
  %v1417 = vpack.c.bf16 %v1367, %v1366
  %v1418 = vpack.c.bf16 %v1369, %v1368
  %v1419 = vpack.c.bf16 %v1371, %v1370
  %v1420 = vpack.c.bf16 %v1373, %v1372
  %v1421 = vpack.c.bf16 %v1375, %v1374
  %v1422 = vpack.c.bf16 %v1377, %v1376
  %v1423 = vpack.c.bf16 %v1379, %v1378
  %v1424 = vpack.c.bf16 %v1381, %v1380
  %v1425 = vpack.c.bf16 %v1383, %v1382
  %v1426 = vpack.c.bf16 %v1385, %v1384
  %v1427 = vpack.c.bf16 %v1387, %v1386
  %v1428 = vpack.c.bf16 %v1389, %v1388
  %v1429 = vpack.c.bf16 %v1391, %v1390
  %v1430 = vpack.c.bf16 %v1393, %v1392
  %v1431 = vpack.c.bf16 %v1395, %v1394
  %v1432 = vpack.c.bf16 %v1397, %v1396
  %v1433 = vpack.c.bf16 %v1399, %v1398
  %v1434 = vpack.c.bf16 %v1401, %v1400
  %v1435 = vpack.c.bf16 %v1403, %v1402
  %v1468 = vunpack.c.l.b16 %v1404
  %v1469 = vunpack.c.h.b16 %v1404
  %v1470 = vunpack.c.l.b16 %v1405
  %v1471 = vunpack.c.h.b16 %v1405
  %v1472 = vunpack.c.l.b16 %v1406
  %v1473 = vunpack.c.h.b16 %v1406
  %v1474 = vunpack.c.l.b16 %v1407
  %v1475 = vunpack.c.h.b16 %v1407
  %v1476 = vunpack.c.l.b16 %v1408
  %v1477 = vunpack.c.h.b16 %v1408
  %v1478 = vunpack.c.l.b16 %v1409
  %v1479 = vunpack.c.h.b16 %v1409
  %v1480 = vunpack.c.l.b16 %v1410
  %v1481 = vunpack.c.h.b16 %v1410
  %v1482 = vunpack.c.l.b16 %v1411
  %v1483 = vunpack.c.h.b16 %v1411
  %v1484 = vunpack.c.l.b16 %v1412
  %v1485 = vunpack.c.h.b16 %v1412
  %v1486 = vunpack.c.l.b16 %v1413
  %v1487 = vunpack.c.h.b16 %v1413
  %v1488 = vunpack.c.l.b16 %v1414
  %v1489 = vunpack.c.h.b16 %v1414
  %v1490 = vunpack.c.l.b16 %v1415
  %v1491 = vunpack.c.h.b16 %v1415
  %v1492 = vunpack.c.l.b16 %v1416
  %v1493 = vunpack.c.h.b16 %v1416
  %v1494 = vunpack.c.l.b16 %v1417
  %v1495 = vunpack.c.h.b16 %v1417
  %v1496 = vunpack.c.l.b16 %v1418
  %v1497 = vunpack.c.h.b16 %v1418
  %v1498 = vunpack.c.l.b16 %v1419
  %v1499 = vunpack.c.h.b16 %v1419
  %v1500 = vunpack.c.l.b16 %v1420
  %v1501 = vunpack.c.h.b16 %v1420
  %v1502 = vunpack.c.l.b16 %v1421
  %v1503 = vunpack.c.h.b16 %v1421
  %v1504 = vunpack.c.l.b16 %v1422
  %v1505 = vunpack.c.h.b16 %v1422
  %v1506 = vunpack.c.l.b16 %v1423
  %v1507 = vunpack.c.h.b16 %v1423
  %v1508 = vunpack.c.l.b16 %v1424
  %v1509 = vunpack.c.h.b16 %v1424
  %v1510 = vunpack.c.l.b16 %v1425
  %v1511 = vunpack.c.h.b16 %v1425
  %v1512 = vunpack.c.l.b16 %v1426
  %v1513 = vunpack.c.h.b16 %v1426
  %v1514 = vunpack.c.l.b16 %v1427
  %v1515 = vunpack.c.h.b16 %v1427
  %v1516 = vunpack.c.l.b16 %v1428
  %v1517 = vunpack.c.h.b16 %v1428
  %v1518 = vunpack.c.l.b16 %v1429
  %v1519 = vunpack.c.h.b16 %v1429
  %v1520 = vunpack.c.l.b16 %v1430
  %v1521 = vunpack.c.h.b16 %v1430
  %v1522 = vunpack.c.l.b16 %v1431
  %v1523 = vunpack.c.h.b16 %v1431
  %v1524 = vunpack.c.l.b16 %v1432
  %v1525 = vunpack.c.h.b16 %v1432
  %v1526 = vunpack.c.l.b16 %v1433
  %v1527 = vunpack.c.h.b16 %v1433
  %v1528 = vunpack.c.l.b16 %v1434
  %v1529 = vunpack.c.h.b16 %v1434
  %v1530 = vunpack.c.l.b16 %v1435
  %v1531 = vunpack.c.h.b16 %v1435
  %v1532 = vpack.c.b16 %v1468, %v1468
  %v1533 = vpack.c.b16 %v1469, %v1469
  %v1534 = vpack.c.b16 %v1470, %v1470
  %v1535 = vpack.c.b16 %v1471, %v1471
  %v1536 = vpack.c.b16 %v1472, %v1472
  %v1537 = vpack.c.b16 %v1473, %v1473
  %v1538 = vpack.c.b16 %v1474, %v1474
  %v1539 = vpack.c.b16 %v1475, %v1475
  %v1540 = vpack.c.b16 %v1476, %v1476
  %v1541 = vpack.c.b16 %v1477, %v1477
  %v1542 = vpack.c.b16 %v1478, %v1478
  %v1543 = vpack.c.b16 %v1479, %v1479
  %v1544 = vpack.c.b16 %v1480, %v1480
  %v1545 = vpack.c.b16 %v1481, %v1481
  %v1546 = vpack.c.b16 %v1482, %v1482
  %v1547 = vpack.c.b16 %v1483, %v1483
  %v1548 = vpack.c.b16 %v1484, %v1484
  %v1549 = vpack.c.b16 %v1485, %v1485
  %v1550 = vpack.c.b16 %v1486, %v1486
  %v1551 = vpack.c.b16 %v1487, %v1487
  %v1552 = vpack.c.b16 %v1488, %v1488
  %v1553 = vpack.c.b16 %v1489, %v1489
  %v1554 = vpack.c.b16 %v1490, %v1490
  %v1555 = vpack.c.b16 %v1491, %v1491
  %v1556 = vpack.c.b16 %v1492, %v1492
  %v1557 = vpack.c.b16 %v1493, %v1493
  %v1558 = vpack.c.b16 %v1494, %v1494
  %v1559 = vpack.c.b16 %v1495, %v1495
  %v1560 = vpack.c.b16 %v1496, %v1496
  %v1561 = vpack.c.b16 %v1497, %v1497
  %v1562 = vpack.c.b16 %v1498, %v1498
  %v1563 = vpack.c.b16 %v1499, %v1499
  %v1564 = vpack.c.b16 %v1500, %v1500
  %v1565 = vpack.c.b16 %v1501, %v1501
  %v1566 = vpack.c.b16 %v1502, %v1502
  %v1567 = vpack.c.b16 %v1503, %v1503
  %v1568 = vpack.c.b16 %v1504, %v1504
  %v1569 = vpack.c.b16 %v1505, %v1505
  %v1570 = vpack.c.b16 %v1506, %v1506
  %v1571 = vpack.c.b16 %v1507, %v1507
  %v1572 = vpack.c.b16 %v1508, %v1508
  %v1573 = vpack.c.b16 %v1509, %v1509
  %v1574 = vpack.c.b16 %v1510, %v1510
  %v1575 = vpack.c.b16 %v1511, %v1511
  %v1576 = vpack.c.b16 %v1512, %v1512
  %v1577 = vpack.c.b16 %v1513, %v1513
  %v1578 = vpack.c.b16 %v1514, %v1514
  %v1579 = vpack.c.b16 %v1515, %v1515
  %v1580 = vpack.c.b16 %v1516, %v1516
  %v1581 = vpack.c.b16 %v1517, %v1517
  %v1582 = vpack.c.b16 %v1518, %v1518
  %v1583 = vpack.c.b16 %v1519, %v1519
  %v1584 = vpack.c.b16 %v1520, %v1520
  %v1585 = vpack.c.b16 %v1521, %v1521
  %v1586 = vpack.c.b16 %v1522, %v1522
  %v1587 = vpack.c.b16 %v1523, %v1523
  %v1588 = vpack.c.b16 %v1524, %v1524
  %v1589 = vpack.c.b16 %v1525, %v1525
  %v1590 = vpack.c.b16 %v1526, %v1526
  %v1591 = vpack.c.b16 %v1527, %v1527
  %v1592 = vpack.c.b16 %v1528, %v1528
  %v1593 = vpack.c.b16 %v1529, %v1529
  %v1594 = vpack.c.b16 %v1530, %v1530
  %v1595 = vpack.c.b16 %v1531, %v1531
  %1660 = vst [vmem:[%s2] sm:$0xf] %v1532
  %1661 = vst [vmem:[%s2 + $0x4] sm:$0xf] %v1533
  %1662 = vst [vmem:[%s2 + $0x8] sm:$0xf] %v1534
  %1663 = vst [vmem:[%s2 + $0xc] sm:$0xf] %v1535
  %1664 = vst [vmem:[%s2 + $0x10] sm:$0xf] %v1536
  %1665 = vst [vmem:[%s2 + $0x14] sm:$0xf] %v1537
  %1666 = vst [vmem:[%s2 + $0x18] sm:$0xf] %v1538
  %1667 = vst [vmem:[%s2 + $0x1c] sm:$0xf] %v1539
  %1668 = vst [vmem:[%s2 + $0x20] sm:$0xf] %v1540
  %1669 = vst [vmem:[%s2 + $0x24] sm:$0xf] %v1541
  %1670 = vst [vmem:[%s2 + $0x28] sm:$0xf] %v1542
  %1671 = vst [vmem:[%s2 + $0x2c] sm:$0xf] %v1543
  %1672 = vst [vmem:[%s2 + $0x30] sm:$0xf] %v1544
  %1673 = vst [vmem:[%s2 + $0x34] sm:$0xf] %v1545
  %1674 = vst [vmem:[%s2 + $0x38] sm:$0xf] %v1546
  %1675 = vst [vmem:[%s2 + $0x3c] sm:$0xf] %v1547
  %1676 = vst [vmem:[%s2 + $0x40] sm:$0xf] %v1548
  %1677 = vst [vmem:[%s2 + $0x44] sm:$0xf] %v1549
  %1678 = vst [vmem:[%s2 + $0x48] sm:$0xf] %v1550
  %1679 = vst [vmem:[%s2 + $0x4c] sm:$0xf] %v1551
  %1680 = vst [vmem:[%s2 + $0x50] sm:$0xf] %v1552
  %1681 = vst [vmem:[%s2 + $0x54] sm:$0xf] %v1553
  %1682 = vst [vmem:[%s2 + $0x58] sm:$0xf] %v1554
  %1683 = vst [vmem:[%s2 + $0x5c] sm:$0xf] %v1555
  %1684 = vst [vmem:[%s2 + $0x60] sm:$0xf] %v1556
  %1685 = vst [vmem:[%s2 + $0x64] sm:$0xf] %v1557
  %1686 = vst [vmem:[%s2 + $0x68] sm:$0xf] %v1558
  %1687 = vst [vmem:[%s2 + $0x6c] sm:$0xf] %v1559
  %1688 = vst [vmem:[%s2 + $0x70] sm:$0xf] %v1560
  %1689 = vst [vmem:[%s2 + $0x74] sm:$0xf] %v1561
  %1690 = vst [vmem:[%s2 + $0x78] sm:$0xf] %v1562
  %1691 = vst [vmem:[%s2 + $0x7c] sm:$0xf] %v1563
  %1692 = vst [vmem:[%s2 + $0x80] sm:$0xf] %v1564
  %1693 = vst [vmem:[%s2 + $0x84] sm:$0xf] %v1565
  %1694 = vst [vmem:[%s2 + $0x88] sm:$0xf] %v1566
  %1695 = vst [vmem:[%s2 + $0x8c] sm:$0xf] %v1567
  %1696 = vst [vmem:[%s2 + $0x90] sm:$0xf] %v1568
  %1697 = vst [vmem:[%s2 + $0x94] sm:$0xf] %v1569
  %1698 = vst [vmem:[%s2 + $0x98] sm:$0xf] %v1570
  %1699 = vst [vmem:[%s2 + $0x9c] sm:$0xf] %v1571
  %1700 = vst [vmem:[%s2 + $0xa0] sm:$0xf] %v1572
  %1701 = vst [vmem:[%s2 + $0xa4] sm:$0xf] %v1573
  %1702 = vst [vmem:[%s2 + $0xa8] sm:$0xf] %v1574
  %1703 = vst [vmem:[%s2 + $0xac] sm:$0xf] %v1575
  %1704 = vst [vmem:[%s2 + $0xb0] sm:$0xf] %v1576
  %1705 = vst [vmem:[%s2 + $0xb4] sm:$0xf] %v1577
  %1706 = vst [vmem:[%s2 + $0xb8] sm:$0xf] %v1578
  %1707 = vst [vmem:[%s2 + $0xbc] sm:$0xf] %v1579
  %1708 = vst [vmem:[%s2 + $0xc0] sm:$0xf] %v1580
  %1709 = vst [vmem:[%s2 + $0xc4] sm:$0xf] %v1581
  %1710 = vst [vmem:[%s2 + $0xc8] sm:$0xf] %v1582
  %1711 = vst [vmem:[%s2 + $0xcc] sm:$0xf] %v1583
  %1712 = vst [vmem:[%s2 + $0xd0] sm:$0xf] %v1584
  %1713 = vst [vmem:[%s2 + $0xd4] sm:$0xf] %v1585
  %1714 = vst [vmem:[%s2 + $0xd8] sm:$0xf] %v1586
  %1715 = vst [vmem:[%s2 + $0xdc] sm:$0xf] %v1587
  %1716 = vst [vmem:[%s2 + $0xe0] sm:$0xf] %v1588
  %1717 = vst [vmem:[%s2 + $0xe4] sm:$0xf] %v1589
  %1718 = vst [vmem:[%s2 + $0xe8] sm:$0xf] %v1590
  %1719 = vst [vmem:[%s2 + $0xec] sm:$0xf] %v1591
  %1720 = vst [vmem:[%s2 + $0xf0] sm:$0xf] %v1592
  %1721 = vst [vmem:[%s2 + $0xf4] sm:$0xf] %v1593
  %1722 = vst [vmem:[%s2 + $0xf8] sm:$0xf] %v1594
  %1723 = vst [vmem:[%s2 + $0xfc] sm:$0xf] %v1595
  // Predicated region
  $region10: #{discriminator_forward.5} parent=0 // pred_check
    _
  $region11: #{discriminator_forward.5} parent=0 // pred_check_branch
    %1725 = sbr.rel (0) target = $region13
  $region12: #{discriminator_forward.5} parent=0 // pred_region
    _
  $region13: #{discriminator_forward.5} parent=0 // pred_fallthru
    _
  // Predicated region
  $region14: #{discriminator_forward.5} parent=0 // pred_check
    _
  $region15: #{discriminator_forward.5} parent=0 // pred_check_branch
    %1727 = sbr.rel (0) target = $region17
  $region16: #{discriminator_forward.5} parent=0 // pred_region
    _
  $region17: #{discriminator_forward.5} parent=0 // pred_fallthru
    _

// kernel: discriminator_forward.6
$region0: #{discriminator_forward.6}
  #allocation0 [shape = 'u32[]', space=smem, size = 0x4, offset = 0x4, fixed_abs, tag = 'smem constant byte address 0x4 - core index']
  #allocation1 [shape = 'u32[144,128]{1,0:T(1,128)}', space=vmem, size = 0x12000, scoped, tag = 'internal scratch']
  %s0 = inlined_call_operand.vmem [shape: bf16[128,256], index: 0, kind: input, shape index: {}]
  %s1 = inlined_call_operand.vmem [shape: bf16[256,128], index: 1, kind: input, shape index: {}]
  %s2 = inlined_call_operand.vmem [shape: bf16[128,128], index: 2, kind: output, shape index: {}]
  %s3 = sld [smem:[#allocation0]]
  $region18: #{discriminator_forward.6} parent=0
    _
  %s5 = ssub.s32 1, %s3
  %s6 = scalar_select 0, %s5, %s3
  // Predicated region
  $region2: #{discriminator_forward.6} parent=0 // pred_check
    _
  $region3: #{discriminator_forward.6} parent=0 // pred_check_branch
    %8 = sbr.rel (0) target = $region5
  $region4: #{discriminator_forward.6} parent=0 // pred_region
    _
  $region5: #{discriminator_forward.6} parent=0 // pred_fallthru
    _
  // Predicated region
  $region6: #{discriminator_forward.6} parent=0 // pred_check
    _
  $region7: #{discriminator_forward.6} parent=0 // pred_check_branch
    %10 = sbr.rel (0) target = $region9
  $region8: #{discriminator_forward.6} parent=0 // pred_region
    _
  $region9: #{discriminator_forward.6} parent=0 // pred_fallthru
    _
  %v12 = vld [vmem:[%s0] sm:$0xff]
  %v13 = vld [vmem:[%s0 + $0x8] sm:$0xff]
  %v14 = vld [vmem:[%s0 + $0x10] sm:$0xff]
  %v15 = vld [vmem:[%s0 + $0x18] sm:$0xff]
  %v16 = vld [vmem:[%s0 + $0x20] sm:$0xff]
  %v17 = vld [vmem:[%s0 + $0x28] sm:$0xff]
  %v18 = vld [vmem:[%s0 + $0x30] sm:$0xff]
  %v19 = vld [vmem:[%s0 + $0x38] sm:$0xff]
  %v20 = vld [vmem:[%s0 + $0x40] sm:$0xff]
  %v21 = vld [vmem:[%s0 + $0x48] sm:$0xff]
  %v22 = vld [vmem:[%s0 + $0x50] sm:$0xff]
  %v23 = vld [vmem:[%s0 + $0x58] sm:$0xff]
  %v24 = vld [vmem:[%s0 + $0x60] sm:$0xff]
  %v25 = vld [vmem:[%s0 + $0x68] sm:$0xff]
  %v26 = vld [vmem:[%s0 + $0x70] sm:$0xff]
  %v27 = vld [vmem:[%s0 + $0x78] sm:$0xff]
  %v28 = vld [vmem:[%s1] sm:$0xf]
  %v29 = vld [vmem:[%s1 + $0x4] sm:$0xf]
  %v30 = vld [vmem:[%s1 + $0x8] sm:$0xf]
  %v31 = vld [vmem:[%s1 + $0xc] sm:$0xf]
  %v32 = vld [vmem:[%s1 + $0x10] sm:$0xf]
  %v33 = vld [vmem:[%s1 + $0x14] sm:$0xf]
  %v34 = vld [vmem:[%s1 + $0x18] sm:$0xf]
  %v35 = vld [vmem:[%s1 + $0x1c] sm:$0xf]
  %v36 = vld [vmem:[%s1 + $0x20] sm:$0xf]
  %v37 = vld [vmem:[%s1 + $0x24] sm:$0xf]
  %v38 = vld [vmem:[%s1 + $0x28] sm:$0xf]
  %v39 = vld [vmem:[%s1 + $0x2c] sm:$0xf]
  %v40 = vld [vmem:[%s1 + $0x30] sm:$0xf]
  %v41 = vld [vmem:[%s1 + $0x34] sm:$0xf]
  %v42 = vld [vmem:[%s1 + $0x38] sm:$0xf]
  %v43 = vld [vmem:[%s1 + $0x3c] sm:$0xf]
  %v44 = vld [vmem:[%s1 + $0x40] sm:$0xf]
  %v45 = vld [vmem:[%s1 + $0x44] sm:$0xf]
  %v46 = vld [vmem:[%s1 + $0x48] sm:$0xf]
  %v47 = vld [vmem:[%s1 + $0x4c] sm:$0xf]
  %v48 = vld [vmem:[%s1 + $0x50] sm:$0xf]
  %v49 = vld [vmem:[%s1 + $0x54] sm:$0xf]
  %v50 = vld [vmem:[%s1 + $0x58] sm:$0xf]
  %v51 = vld [vmem:[%s1 + $0x5c] sm:$0xf]
  %v52 = vld [vmem:[%s1 + $0x60] sm:$0xf]
  %v53 = vld [vmem:[%s1 + $0x64] sm:$0xf]
  %v54 = vld [vmem:[%s1 + $0x68] sm:$0xf]
  %v55 = vld [vmem:[%s1 + $0x6c] sm:$0xf]
  %v56 = vld [vmem:[%s1 + $0x70] sm:$0xf]
  %v57 = vld [vmem:[%s1 + $0x74] sm:$0xf]
  %v58 = vld [vmem:[%s1 + $0x78] sm:$0xf]
  %v59 = vld [vmem:[%s1 + $0x7c] sm:$0xf]
  %v76 = vunpack.c.l.b16 %v12
  %v77 = vunpack.c.h.b16 %v12
  %v78 = vunpack.c.l.b16 %v13
  %v79 = vunpack.c.h.b16 %v13
  %v80 = vunpack.c.l.b16 %v14
  %v81 = vunpack.c.h.b16 %v14
  %v82 = vunpack.c.l.b16 %v15
  %v83 = vunpack.c.h.b16 %v15
  %v84 = vunpack.c.l.b16 %v16
  %v85 = vunpack.c.h.b16 %v16
  %v86 = vunpack.c.l.b16 %v17
  %v87 = vunpack.c.h.b16 %v17
  %v88 = vunpack.c.l.b16 %v18
  %v89 = vunpack.c.h.b16 %v18
  %v90 = vunpack.c.l.b16 %v19
  %v91 = vunpack.c.h.b16 %v19
  %v92 = vunpack.c.l.b16 %v20
  %v93 = vunpack.c.h.b16 %v20
  %v94 = vunpack.c.l.b16 %v21
  %v95 = vunpack.c.h.b16 %v21
  %v96 = vunpack.c.l.b16 %v22
  %v97 = vunpack.c.h.b16 %v22
  %v98 = vunpack.c.l.b16 %v23
  %v99 = vunpack.c.h.b16 %v23
  %v100 = vunpack.c.l.b16 %v24
  %v101 = vunpack.c.h.b16 %v24
  %v102 = vunpack.c.l.b16 %v25
  %v103 = vunpack.c.h.b16 %v25
  %v104 = vunpack.c.l.b16 %v26
  %v105 = vunpack.c.h.b16 %v26
  %v106 = vunpack.c.l.b16 %v27
  %v107 = vunpack.c.h.b16 %v27
  %v108 = vpack.c.b16 %v78, %v76
  %v109 = vpack.c.b16 %v79, %v77
  %v110 = vpack.c.b16 %v82, %v80
  %v111 = vpack.c.b16 %v83, %v81
  %v112 = vpack.c.b16 %v86, %v84
  %v113 = vpack.c.b16 %v87, %v85
  %v114 = vpack.c.b16 %v90, %v88
  %v115 = vpack.c.b16 %v91, %v89
  %v116 = vpack.c.b16 %v94, %v92
  %v117 = vpack.c.b16 %v95, %v93
  %v118 = vpack.c.b16 %v98, %v96
  %v119 = vpack.c.b16 %v99, %v97
  %v120 = vpack.c.b16 %v102, %v100
  %v121 = vpack.c.b16 %v103, %v101
  %v122 = vpack.c.b16 %v106, %v104
  %v123 = vpack.c.b16 %v107, %v105
  %v172 = vunpack.c.l.b16 %v28
  %v173 = vunpack.c.l.b16 %v29
  %v174 = vunpack.c.l.b16 %v30
  %v175 = vunpack.c.l.b16 %v31
  %v176 = vunpack.c.l.b16 %v32
  %v177 = vunpack.c.l.b16 %v33
  %v178 = vunpack.c.l.b16 %v34
  %v179 = vunpack.c.l.b16 %v35
  %v180 = vunpack.c.l.b16 %v36
  %v181 = vunpack.c.l.b16 %v37
  %v182 = vunpack.c.l.b16 %v38
  %v183 = vunpack.c.l.b16 %v39
  %v184 = vunpack.c.l.b16 %v40
  %v185 = vunpack.c.l.b16 %v41
  %v186 = vunpack.c.l.b16 %v42
  %v187 = vunpack.c.l.b16 %v43
  %v188 = vunpack.c.l.b16 %v44
  %v189 = vunpack.c.l.b16 %v45
  %v190 = vunpack.c.l.b16 %v46
  %v191 = vunpack.c.l.b16 %v47
  %v192 = vunpack.c.l.b16 %v48
  %v193 = vunpack.c.l.b16 %v49
  %v194 = vunpack.c.l.b16 %v50
  %v195 = vunpack.c.l.b16 %v51
  %v196 = vunpack.c.l.b16 %v52
  %v197 = vunpack.c.l.b16 %v53
  %v198 = vunpack.c.l.b16 %v54
  %v199 = vunpack.c.l.b16 %v55
  %v200 = vunpack.c.l.b16 %v56
  %v201 = vunpack.c.l.b16 %v57
  %v202 = vunpack.c.l.b16 %v58
  %v203 = vunpack.c.l.b16 %v59
  %v204 = vpack.c.b16 %v173, %v172
  %v205 = vpack.c.b16 %v175, %v174
  %v206 = vpack.c.b16 %v177, %v176
  %v207 = vpack.c.b16 %v179, %v178
  %v208 = vpack.c.b16 %v181, %v180
  %v209 = vpack.c.b16 %v183, %v182
  %v210 = vpack.c.b16 %v185, %v184
  %v211 = vpack.c.b16 %v187, %v186
  %v212 = vpack.c.b16 %v189, %v188
  %v213 = vpack.c.b16 %v191, %v190
  %v214 = vpack.c.b16 %v193, %v192
  %v215 = vpack.c.b16 %v195, %v194
  %v216 = vpack.c.b16 %v197, %v196
  %v217 = vpack.c.b16 %v199, %v198
  %v218 = vpack.c.b16 %v201, %v200
  %v219 = vpack.c.b16 %v203, %v202
  %236 = vmatprep.subr.bf16.mxu0 0
  %237 = vmatpush1.bf16.msra.mxu0 %v211
  %238 = vmatprep.subr.bf16.mxu0 0
  %239 = vmatpush1.bf16.msra.mxu0 %v210
  %240 = vmatprep.subr.bf16.mxu0 0
  %241 = vmatpush1.bf16.msra.mxu0 %v209
  %242 = vmatprep.subr.bf16.mxu0 0
  %243 = vmatpush1.bf16.msra.mxu0 %v208
  %244 = vmatprep.subr.bf16.mxu0 0
  %245 = vmatpush1.bf16.msra.mxu0 %v207
  %246 = vmatprep.subr.bf16.mxu0 0
  %247 = vmatpush1.bf16.msra.mxu0 %v206
  %248 = vmatprep.subr.bf16.mxu0 0
  %249 = vmatpush1.bf16.msra.mxu0 %v205
  %250 = vmatprep.subr.bf16.mxu0 0
  %251 = vmatpush1.bf16.msra.mxu0 %v204
  %252 = vmatprep.subr.bf16.mxu0 0
  %253 = vmatpush2.bf16.msra.mxu0 %v219
  %254 = vmatprep.subr.bf16.mxu0 0
  %255 = vmatpush2.bf16.msra.mxu0 %v218
  %256 = vmatprep.subr.bf16.mxu0 0
  %257 = vmatpush2.bf16.msra.mxu0 %v217
  %258 = vmatprep.subr.bf16.mxu0 0
  %259 = vmatpush2.bf16.msra.mxu0 %v216
  %260 = vmatprep.subr.bf16.mxu0 0
  %261 = vmatpush2.bf16.msra.mxu0 %v215
  %262 = vmatprep.subr.bf16.mxu0 0
  %263 = vmatpush2.bf16.msra.mxu0 %v214
  %264 = vmatprep.subr.bf16.mxu0 0
  %265 = vmatpush2.bf16.msra.mxu0 %v213
  %266 = vmatprep.subr.bf16.mxu0 0
  %267 = vmatpush2.bf16.msra.mxu0 %v212
  %268 = vmatprep.mubr.bf16.mxu0 %v109
  %269 = vmatmul.mubr.bf16.gmra.mxu0 %v108
  %v270 = vpop.f32.mrf.mxu0
  %v271 = vadd.f32 0.0, %v270
  %v272 = vpop.f32.mrf.mxu0
  %v273 = vpop.f32.mrf.mxu0
  %v274 = vadd.f32 0.0, %v273
  %v275 = vpop.f32.mrf.mxu0
  %276 = vmatprep.mubr.bf16.mxu0 %v111
  %277 = vmatmul.mubr.bf16.gmra.mxu0 %v110
  %v278 = vpop.f32.mrf.mxu0
  %v279 = vadd.f32 0.0, %v278
  %v280 = vpop.f32.mrf.mxu0
  %v281 = vpop.f32.mrf.mxu0
  %v282 = vadd.f32 0.0, %v281
  %v283 = vpop.f32.mrf.mxu0
  %284 = vmatprep.mubr.bf16.mxu0 %v113
  %285 = vmatmul.mubr.bf16.gmra.mxu0 %v112
  %v286 = vpop.f32.mrf.mxu0
  %v287 = vadd.f32 0.0, %v286
  %v288 = vpop.f32.mrf.mxu0
  %v289 = vpop.f32.mrf.mxu0
  %v290 = vadd.f32 0.0, %v289
  %v291 = vpop.f32.mrf.mxu0
  %292 = vmatprep.mubr.bf16.mxu0 %v115
  %293 = vmatmul.mubr.bf16.gmra.mxu0 %v114
  %v294 = vpop.f32.mrf.mxu0
  %v295 = vadd.f32 0.0, %v294
  %v296 = vpop.f32.mrf.mxu0
  %v297 = vpop.f32.mrf.mxu0
  %v298 = vadd.f32 0.0, %v297
  %v299 = vpop.f32.mrf.mxu0
  %300 = vmatprep.mubr.bf16.mxu0 %v117
  %301 = vmatmul.mubr.bf16.gmra.mxu0 %v116
  %v302 = vpop.f32.mrf.mxu0
  %v303 = vadd.f32 0.0, %v302
  %v304 = vpop.f32.mrf.mxu0
  %v305 = vpop.f32.mrf.mxu0
  %v306 = vadd.f32 0.0, %v305
  %v307 = vpop.f32.mrf.mxu0
  %308 = vmatprep.mubr.bf16.mxu0 %v119
  %309 = vmatmul.mubr.bf16.gmra.mxu0 %v118
  %v310 = vpop.f32.mrf.mxu0
  %v311 = vadd.f32 0.0, %v310
  %v312 = vpop.f32.mrf.mxu0
  %v313 = vpop.f32.mrf.mxu0
  %v314 = vadd.f32 0.0, %v313
  %v315 = vpop.f32.mrf.mxu0
  %316 = vmatprep.mubr.bf16.mxu0 %v121
  %317 = vmatmul.mubr.bf16.gmra.mxu0 %v120
  %v318 = vpop.f32.mrf.mxu0
  %v319 = vadd.f32 0.0, %v318
  %v320 = vpop.f32.mrf.mxu0
  %v321 = vpop.f32.mrf.mxu0
  %v322 = vadd.f32 0.0, %v321
  %v323 = vpop.f32.mrf.mxu0
  %324 = vmatprep.mubr.bf16.mxu0 %v123
  %325 = vmatmul.mubr.bf16.gmra.mxu0 %v122
  %v326 = vpop.f32.mrf.mxu0
  %v327 = vadd.f32 0.0, %v326
  %v328 = vpop.f32.mrf.mxu0
  %v329 = vpop.f32.mrf.mxu0
  %v330 = vadd.f32 0.0, %v329
  %v331 = vpop.f32.mrf.mxu0
  %332 = vdwg.mxu0
  %v333 = vlaneseq
  %v334 = vshrl.u32 %v333, 7
  %v335 = vadd.s32 %v334, 8
  %v336 = vadd.s32 %v334, 16
  %v337 = vadd.s32 %v334, 24
  %v338 = vadd.s32 %v334, 32
  %v339 = vadd.s32 %v334, 40
  %v340 = vadd.s32 %v334, 48
  %v341 = vadd.s32 %v334, 56
  %v342 = vadd.s32 %v334, 64
  %v343 = vadd.s32 %v334, 72
  %v344 = vadd.s32 %v334, 80
  %v345 = vadd.s32 %v334, 88
  %v346 = vadd.s32 %v334, 96
  %v347 = vadd.s32 %v334, 104
  %v348 = vadd.s32 %v334, 112
  %v349 = vadd.s32 %v334, 120
  %vm350 = vcmp.lt.s32.totalorder %v334, 128
  %vm351 = vcmp.lt.s32.totalorder %v335, 128
  %vm352 = vcmp.lt.s32.totalorder %v336, 128
  %vm353 = vcmp.lt.s32.totalorder %v337, 128
  %vm354 = vcmp.lt.s32.totalorder %v338, 128
  %vm355 = vcmp.lt.s32.totalorder %v339, 128
  %vm356 = vcmp.lt.s32.totalorder %v340, 128
  %vm357 = vcmp.lt.s32.totalorder %v341, 128
  %vm358 = vcmp.lt.s32.totalorder %v342, 128
  %vm359 = vcmp.lt.s32.totalorder %v343, 128
  %vm360 = vcmp.lt.s32.totalorder %v344, 128
  %vm361 = vcmp.lt.s32.totalorder %v345, 128
  %vm362 = vcmp.lt.s32.totalorder %v346, 128
  %vm363 = vcmp.lt.s32.totalorder %v347, 128
  %vm364 = vcmp.lt.s32.totalorder %v348, 128
  %vm365 = vcmp.lt.s32.totalorder %v349, 128
  %v366 = vsel %vm350, %v271, 0.0
  %v367 = vsel %vm351, %v274, 0.0
  %v368 = vsel %vm352, %v279, 0.0
  %v369 = vsel %vm353, %v282, 0.0
  %v370 = vsel %vm354, %v287, 0.0
  %v371 = vsel %vm355, %v290, 0.0
  %v372 = vsel %vm356, %v295, 0.0
  %v373 = vsel %vm357, %v298, 0.0
  %v374 = vsel %vm358, %v303, 0.0
  %v375 = vsel %vm359, %v306, 0.0
  %v376 = vsel %vm360, %v311, 0.0
  %v377 = vsel %vm361, %v314, 0.0
  %v378 = vsel %vm362, %v319, 0.0
  %v379 = vsel %vm363, %v322, 0.0
  %v380 = vsel %vm364, %v327, 0.0
  %v381 = vsel %vm365, %v330, 0.0
  %v382 = vadd.f32 %v366, %v367
  %v383 = vadd.f32 %v382, %v368
  %v384 = vadd.f32 %v383, %v369
  %v385 = vadd.f32 %v384, %v370
  %v386 = vadd.f32 %v385, %v371
  %v387 = vadd.f32 %v386, %v372
  %v388 = vadd.f32 %v387, %v373
  %v389 = vadd.f32 %v388, %v374
  %v390 = vadd.f32 %v389, %v375
  %v391 = vadd.f32 %v390, %v376
  %v392 = vadd.f32 %v391, %v377
  %v393 = vadd.f32 %v392, %v378
  %v394 = vadd.f32 %v393, %v379
  %v395 = vadd.f32 %v394, %v380
  %v396 = vadd.f32 %v395, %v381
  %v397 = vrot.slane %v396, 4
  %v398 = vadd.f32 %v396, %v397
  %v399 = vrot.slane %v398, 2
  %v400 = vadd.f32 %v398, %v399
  %v401 = vrot.slane %v400, 1
  %v402 = vadd.f32 %v400, %v401
  %v403 = vmul.f32 %v402, 0.0078125
  %v404 = vsub.f32 %v271, %v403
  %v405 = vsub.f32 %v274, %v403
  %v406 = vsub.f32 %v279, %v403
  %v407 = vsub.f32 %v282, %v403
  %v408 = vsub.f32 %v287, %v403
  %v409 = vsub.f32 %v290, %v403
  %v410 = vsub.f32 %v295, %v403
  %v411 = vsub.f32 %v298, %v403
  %v412 = vsub.f32 %v303, %v403
  %v413 = vsub.f32 %v306, %v403
  %v414 = vsub.f32 %v311, %v403
  %v415 = vsub.f32 %v314, %v403
  %v416 = vsub.f32 %v319, %v403
  %v417 = vsub.f32 %v322, %v403
  %v418 = vsub.f32 %v327, %v403
  %v419 = vsub.f32 %v330, %v403
  %v420 = vsel %vm350, %v404, 0.0
  %v421 = vsel %vm351, %v405, 0.0
  %v422 = vsel %vm352, %v406, 0.0
  %v423 = vsel %vm353, %v407, 0.0
  %v424 = vsel %vm354, %v408, 0.0
  %v425 = vsel %vm355, %v409, 0.0
  %v426 = vsel %vm356, %v410, 0.0
  %v427 = vsel %vm357, %v411, 0.0
  %v428 = vsel %vm358, %v412, 0.0
  %v429 = vsel %vm359, %v413, 0.0
  %v430 = vsel %vm360, %v414, 0.0
  %v431 = vsel %vm361, %v415, 0.0
  %v432 = vsel %vm362, %v416, 0.0
  %v433 = vsel %vm363, %v417, 0.0
  %v434 = vsel %vm364, %v418, 0.0
  %v435 = vsel %vm365, %v419, 0.0
  %v436 = vmul.f32 %v420, %v420
  %v437 = vmul.f32 %v421, %v421
  %v438 = vmul.f32 %v422, %v422
  %v439 = vmul.f32 %v423, %v423
  %v440 = vmul.f32 %v424, %v424
  %v441 = vmul.f32 %v425, %v425
  %v442 = vmul.f32 %v426, %v426
  %v443 = vmul.f32 %v427, %v427
  %v444 = vmul.f32 %v428, %v428
  %v445 = vmul.f32 %v429, %v429
  %v446 = vmul.f32 %v430, %v430
  %v447 = vmul.f32 %v431, %v431
  %v448 = vmul.f32 %v432, %v432
  %v449 = vmul.f32 %v433, %v433
  %v450 = vmul.f32 %v434, %v434
  %v451 = vmul.f32 %v435, %v435
  %v452 = vadd.f32 %v436, %v437
  %v453 = vadd.f32 %v452, %v438
  %v454 = vadd.f32 %v453, %v439
  %v455 = vadd.f32 %v454, %v440
  %v456 = vadd.f32 %v455, %v441
  %v457 = vadd.f32 %v456, %v442
  %v458 = vadd.f32 %v457, %v443
  %v459 = vadd.f32 %v458, %v444
  %v460 = vadd.f32 %v459, %v445
  %v461 = vadd.f32 %v460, %v446
  %v462 = vadd.f32 %v461, %v447
  %v463 = vadd.f32 %v462, %v448
  %v464 = vadd.f32 %v463, %v449
  %v465 = vadd.f32 %v464, %v450
  %v466 = vadd.f32 %v465, %v451
  %v467 = vrot.slane %v466, 4
  %v468 = vadd.f32 %v466, %v467
  %v469 = vrot.slane %v468, 2
  %v470 = vadd.f32 %v468, %v469
  %v471 = vrot.slane %v470, 1
  %v472 = vadd.f32 %v470, %v471
  %v473 = vmul.f32 %v472, 0.0078125
  %v474 = vadd.f32 %v473, 1e-05
  %v475 = vrsqrt.pop %v474
  %v476 = vmul.f32 %v420, %v475
  %v477 = vmul.f32 %v421, %v475
  %v478 = vmul.f32 %v422, %v475
  %v479 = vmul.f32 %v423, %v475
  %v480 = vmul.f32 %v424, %v475
  %v481 = vmul.f32 %v425, %v475
  %v482 = vmul.f32 %v426, %v475
  %v483 = vmul.f32 %v427, %v475
  %v484 = vmul.f32 %v428, %v475
  %v485 = vmul.f32 %v429, %v475
  %v486 = vmul.f32 %v430, %v475
  %v487 = vmul.f32 %v431, %v475
  %v488 = vmul.f32 %v432, %v475
  %v489 = vmul.f32 %v433, %v475
  %v490 = vmul.f32 %v434, %v475
  %v491 = vmul.f32 %v435, %v475
  %vm492 = vcmp.gt.f32.partialorder %v476, 0.0
  %vm493 = vcmp.gt.f32.partialorder %v477, 0.0
  %vm494 = vcmp.gt.f32.partialorder %v478, 0.0
  %vm495 = vcmp.gt.f32.partialorder %v479, 0.0
  %vm496 = vcmp.gt.f32.partialorder %v480, 0.0
  %vm497 = vcmp.gt.f32.partialorder %v481, 0.0
  %vm498 = vcmp.gt.f32.partialorder %v482, 0.0
  %vm499 = vcmp.gt.f32.partialorder %v483, 0.0
  %vm500 = vcmp.gt.f32.partialorder %v484, 0.0
  %vm501 = vcmp.gt.f32.partialorder %v485, 0.0
  %vm502 = vcmp.gt.f32.partialorder %v486, 0.0
  %vm503 = vcmp.gt.f32.partialorder %v487, 0.0
  %vm504 = vcmp.gt.f32.partialorder %v488, 0.0
  %vm505 = vcmp.gt.f32.partialorder %v489, 0.0
  %vm506 = vcmp.gt.f32.partialorder %v490, 0.0
  %vm507 = vcmp.gt.f32.partialorder %v491, 0.0
  %v508 = vmul.f32 %v476, 0.2
  %v509 = vmul.f32 %v477, 0.2
  %v510 = vmul.f32 %v478, 0.2
  %v511 = vmul.f32 %v479, 0.2
  %v512 = vmul.f32 %v480, 0.2
  %v513 = vmul.f32 %v481, 0.2
  %v514 = vmul.f32 %v482, 0.2
  %v515 = vmul.f32 %v483, 0.2
  %v516 = vmul.f32 %v484, 0.2
  %v517 = vmul.f32 %v485, 0.2
  %v518 = vmul.f32 %v486, 0.2
  %v519 = vmul.f32 %v487, 0.2
  %v520 = vmul.f32 %v488, 0.2
  %v521 = vmul.f32 %v489, 0.2
  %v522 = vmul.f32 %v490, 0.2
  %v523 = vmul.f32 %v491, 0.2
  %v524 = vsel %vm492, %v476, %v508
  %v525 = vsel %vm493, %v477, %v509
  %v526 = vsel %vm494, %v478, %v510
  %v527 = vsel %vm495, %v479, %v511
  %v528 = vsel %vm496, %v480, %v512
  %v529 = vsel %vm497, %v481, %v513
  %v530 = vsel %vm498, %v482, %v514
  %v531 = vsel %vm499, %v483, %v515
  %v532 = vsel %vm500, %v484, %v516
  %v533 = vsel %vm501, %v485, %v517
  %v534 = vsel %vm502, %v486, %v518
  %v535 = vsel %vm503, %v487, %v519
  %v536 = vsel %vm504, %v488, %v520
  %v537 = vsel %vm505, %v489, %v521
  %v538 = vsel %vm506, %v490, %v522
  %v539 = vsel %vm507, %v491, %v523
  %v540 = vpack.c.bf16 %v525, %v524
  %v541 = vpack.c.bf16 %v527, %v526
  %v542 = vpack.c.bf16 %v529, %v528
  %v543 = vpack.c.bf16 %v531, %v530
  %v544 = vpack.c.bf16 %v533, %v532
  %v545 = vpack.c.bf16 %v535, %v534
  %v546 = vpack.c.bf16 %v537, %v536
  %v547 = vpack.c.bf16 %v539, %v538
  %v556 = vunpack.c.l.b16 %v540
  %v557 = vunpack.c.h.b16 %v540
  %v558 = vunpack.c.l.b16 %v541
  %v559 = vunpack.c.h.b16 %v541
  %v560 = vunpack.c.l.b16 %v542
  %v561 = vunpack.c.h.b16 %v542
  %v562 = vunpack.c.l.b16 %v543
  %v563 = vunpack.c.h.b16 %v543
  %v564 = vunpack.c.l.b16 %v544
  %v565 = vunpack.c.h.b16 %v544
  %v566 = vunpack.c.l.b16 %v545
  %v567 = vunpack.c.h.b16 %v545
  %v568 = vunpack.c.l.b16 %v546
  %v569 = vunpack.c.h.b16 %v546
  %v570 = vunpack.c.l.b16 %v547
  %v571 = vunpack.c.h.b16 %v547
  %v572 = vpack.c.b16 %v556, %v556
  %v573 = vpack.c.b16 %v557, %v557
  %v574 = vpack.c.b16 %v558, %v558
  %v575 = vpack.c.b16 %v559, %v559
  %v576 = vpack.c.b16 %v560, %v560
  %v577 = vpack.c.b16 %v561, %v561
  %v578 = vpack.c.b16 %v562, %v562
  %v579 = vpack.c.b16 %v563, %v563
  %v580 = vpack.c.b16 %v564, %v564
  %v581 = vpack.c.b16 %v565, %v565
  %v582 = vpack.c.b16 %v566, %v566
  %v583 = vpack.c.b16 %v567, %v567
  %v584 = vpack.c.b16 %v568, %v568
  %v585 = vpack.c.b16 %v569, %v569
  %v586 = vpack.c.b16 %v570, %v570
  %v587 = vpack.c.b16 %v571, %v571
  %604 = vst [vmem:[%s2] sm:$0xf] %v572
  %605 = vst [vmem:[%s2 + $0x4] sm:$0xf] %v573
  %606 = vst [vmem:[%s2 + $0x8] sm:$0xf] %v574
  %607 = vst [vmem:[%s2 + $0xc] sm:$0xf] %v575
  %608 = vst [vmem:[%s2 + $0x10] sm:$0xf] %v576
  %609 = vst [vmem:[%s2 + $0x14] sm:$0xf] %v577
  %610 = vst [vmem:[%s2 + $0x18] sm:$0xf] %v578
  %611 = vst [vmem:[%s2 + $0x1c] sm:$0xf] %v579
  %612 = vst [vmem:[%s2 + $0x20] sm:$0xf] %v580
  %613 = vst [vmem:[%s2 + $0x24] sm:$0xf] %v581
  %614 = vst [vmem:[%s2 + $0x28] sm:$0xf] %v582
  %615 = vst [vmem:[%s2 + $0x2c] sm:$0xf] %v583
  %616 = vst [vmem:[%s2 + $0x30] sm:$0xf] %v584
  %617 = vst [vmem:[%s2 + $0x34] sm:$0xf] %v585
  %618 = vst [vmem:[%s2 + $0x38] sm:$0xf] %v586
  %619 = vst [vmem:[%s2 + $0x3c] sm:$0xf] %v587
  // Predicated region
  $region10: #{discriminator_forward.6} parent=0 // pred_check
    _
  $region11: #{discriminator_forward.6} parent=0 // pred_check_branch
    %621 = sbr.rel (0) target = $region13
  $region12: #{discriminator_forward.6} parent=0 // pred_region
    _
  $region13: #{discriminator_forward.6} parent=0 // pred_fallthru
    _
  // Predicated region
  $region14: #{discriminator_forward.6} parent=0 // pred_check
    _
  $region15: #{discriminator_forward.6} parent=0 // pred_check_branch
    %623 = sbr.rel (0) target = $region17
  $region16: #{discriminator_forward.6} parent=0 // pred_region
    _
  $region17: #{discriminator_forward.6} parent=0 // pred_fallthru
    _

// kernel: discriminator_forward.7
$region0: #{discriminator_forward.7}
  #allocation0 [shape = 'u32[]', space=smem, size = 0x4, offset = 0x4, fixed_abs, tag = 'smem constant byte address 0x4 - core index']
  #allocation1 [shape = 'u32[144,128]{1,0:T(1,128)}', space=vmem, size = 0x12000, scoped, tag = 'internal scratch']
  %s0 = inlined_call_operand.vmem [shape: bf16[32,512], index: 0, kind: input, shape index: {}]
  %s1 = inlined_call_operand.vmem [shape: bf16[512,128], index: 1, kind: input, shape index: {}]
  %s2 = inlined_call_operand.vmem [shape: f32[32,128], index: 2, kind: input, shape index: {}]
  %s3 = inlined_call_operand.vmem [shape: f32[8,32], index: 3, kind: input, shape index: {}]
  %s4 = inlined_call_operand.vmem [shape: f32[8,128], index: 4, kind: output, shape index: {}]
  %s5 = sld [smem:[#allocation0]]
  $region26: #{discriminator_forward.7} parent=0
    _
  %s7 = ssub.s32 1, %s5
  %s8 = scalar_select 0, %s7, %s5
  // Predicated region
  $region2: #{discriminator_forward.7} parent=0 // pred_check
    _
  $region3: #{discriminator_forward.7} parent=0 // pred_check_branch
    %10 = sbr.rel (0) target = $region5
  $region4: #{discriminator_forward.7} parent=0 // pred_region
    _
  $region5: #{discriminator_forward.7} parent=0 // pred_fallthru
    _
  // Predicated region
  $region6: #{discriminator_forward.7} parent=0 // pred_check
    _
  $region7: #{discriminator_forward.7} parent=0 // pred_check_branch
    %12 = sbr.rel (0) target = $region9
  $region8: #{discriminator_forward.7} parent=0 // pred_region
    _
  $region9: #{discriminator_forward.7} parent=0 // pred_fallthru
    _
  // Predicated region
  $region10: #{discriminator_forward.7} parent=0 // pred_check
    _
  $region11: #{discriminator_forward.7} parent=0 // pred_check_branch
    %14 = sbr.rel (0) target = $region13
  $region12: #{discriminator_forward.7} parent=0 // pred_region
    _
  $region13: #{discriminator_forward.7} parent=0 // pred_fallthru
    _
  // Predicated region
  $region14: #{discriminator_forward.7} parent=0 // pred_check
    _
  $region15: #{discriminator_forward.7} parent=0 // pred_check_branch
    %16 = sbr.rel (0) target = $region17
  $region16: #{discriminator_forward.7} parent=0 // pred_region
    _
  $region17: #{discriminator_forward.7} parent=0 // pred_fallthru
    _
  %v18 = vld [vmem:[%s0] sm:$0xff]
  %v19 = vld [vmem:[%s0 + $0x8] sm:$0xff]
  %v20 = vld [vmem:[%s0 + $0x10] sm:$0xff]
  %v21 = vld [vmem:[%s0 + $0x18] sm:$0xff]
  %v22 = vld [vmem:[%s0 + $0x20] sm:$0xff]
  %v23 = vld [vmem:[%s0 + $0x28] sm:$0xff]
  %v24 = vld [vmem:[%s0 + $0x30] sm:$0xff]
  %v25 = vld [vmem:[%s0 + $0x38] sm:$0xff]
  %v26 = vld [vmem:[%s1] sm:$0xf]
  %v27 = vld [vmem:[%s1 + $0x4] sm:$0xf]
  %v28 = vld [vmem:[%s1 + $0x8] sm:$0xf]
  %v29 = vld [vmem:[%s1 + $0xc] sm:$0xf]
  %v30 = vld [vmem:[%s1 + $0x10] sm:$0xf]
  %v31 = vld [vmem:[%s1 + $0x14] sm:$0xf]
  %v32 = vld [vmem:[%s1 + $0x18] sm:$0xf]
  %v33 = vld [vmem:[%s1 + $0x1c] sm:$0xf]
  %v34 = vld [vmem:[%s1 + $0x20] sm:$0xf]
  %v35 = vld [vmem:[%s1 + $0x24] sm:$0xf]
  %v36 = vld [vmem:[%s1 + $0x28] sm:$0xf]
  %v37 = vld [vmem:[%s1 + $0x2c] sm:$0xf]
  %v38 = vld [vmem:[%s1 + $0x30] sm:$0xf]
  %v39 = vld [vmem:[%s1 + $0x34] sm:$0xf]
  %v40 = vld [vmem:[%s1 + $0x38] sm:$0xf]
  %v41 = vld [vmem:[%s1 + $0x3c] sm:$0xf]
  %v42 = vld [vmem:[%s1 + $0x40] sm:$0xf]
  %v43 = vld [vmem:[%s1 + $0x44] sm:$0xf]
  %v44 = vld [vmem:[%s1 + $0x48] sm:$0xf]
  %v45 = vld [vmem:[%s1 + $0x4c] sm:$0xf]
  %v46 = vld [vmem:[%s1 + $0x50] sm:$0xf]
  %v47 = vld [vmem:[%s1 + $0x54] sm:$0xf]
  %v48 = vld [vmem:[%s1 + $0x58] sm:$0xf]
  %v49 = vld [vmem:[%s1 + $0x5c] sm:$0xf]
  %v50 = vld [vmem:[%s1 + $0x60] sm:$0xf]
  %v51 = vld [vmem:[%s1 + $0x64] sm:$0xf]
  %v52 = vld [vmem:[%s1 + $0x68] sm:$0xf]
  %v53 = vld [vmem:[%s1 + $0x6c] sm:$0xf]
  %v54 = vld [vmem:[%s1 + $0x70] sm:$0xf]
  %v55 = vld [vmem:[%s1 + $0x74] sm:$0xf]
  %v56 = vld [vmem:[%s1 + $0x78] sm:$0xf]
  %v57 = vld [vmem:[%s1 + $0x7c] sm:$0xf]
  %v58 = vld [vmem:[%s1 + $0x80] sm:$0xf]
  %v59 = vld [vmem:[%s1 + $0x84] sm:$0xf]
  %v60 = vld [vmem:[%s1 + $0x88] sm:$0xf]
  %v61 = vld [vmem:[%s1 + $0x8c] sm:$0xf]
  %v62 = vld [vmem:[%s1 + $0x90] sm:$0xf]
  %v63 = vld [vmem:[%s1 + $0x94] sm:$0xf]
  %v64 = vld [vmem:[%s1 + $0x98] sm:$0xf]
  %v65 = vld [vmem:[%s1 + $0x9c] sm:$0xf]
  %v66 = vld [vmem:[%s1 + $0xa0] sm:$0xf]
  %v67 = vld [vmem:[%s1 + $0xa4] sm:$0xf]
  %v68 = vld [vmem:[%s1 + $0xa8] sm:$0xf]
  %v69 = vld [vmem:[%s1 + $0xac] sm:$0xf]
  %v70 = vld [vmem:[%s1 + $0xb0] sm:$0xf]
  %v71 = vld [vmem:[%s1 + $0xb4] sm:$0xf]
  %v72 = vld [vmem:[%s1 + $0xb8] sm:$0xf]
  %v73 = vld [vmem:[%s1 + $0xbc] sm:$0xf]
  %v74 = vld [vmem:[%s1 + $0xc0] sm:$0xf]
  %v75 = vld [vmem:[%s1 + $0xc4] sm:$0xf]
  %v76 = vld [vmem:[%s1 + $0xc8] sm:$0xf]
  %v77 = vld [vmem:[%s1 + $0xcc] sm:$0xf]
  %v78 = vld [vmem:[%s1 + $0xd0] sm:$0xf]
  %v79 = vld [vmem:[%s1 + $0xd4] sm:$0xf]
  %v80 = vld [vmem:[%s1 + $0xd8] sm:$0xf]
  %v81 = vld [vmem:[%s1 + $0xdc] sm:$0xf]
  %v82 = vld [vmem:[%s1 + $0xe0] sm:$0xf]
  %v83 = vld [vmem:[%s1 + $0xe4] sm:$0xf]
  %v84 = vld [vmem:[%s1 + $0xe8] sm:$0xf]
  %v85 = vld [vmem:[%s1 + $0xec] sm:$0xf]
  %v86 = vld [vmem:[%s1 + $0xf0] sm:$0xf]
  %v87 = vld [vmem:[%s1 + $0xf4] sm:$0xf]
  %v88 = vld [vmem:[%s1 + $0xf8] sm:$0xf]
  %v89 = vld [vmem:[%s1 + $0xfc] sm:$0xf]
  %v98 = vunpack.c.l.b16 %v18
  %v99 = vunpack.c.h.b16 %v18
  %v100 = vunpack.c.l.b16 %v19
  %v101 = vunpack.c.h.b16 %v19
  %v102 = vunpack.c.l.b16 %v20
  %v103 = vunpack.c.h.b16 %v20
  %v104 = vunpack.c.l.b16 %v21
  %v105 = vunpack.c.h.b16 %v21
  %v106 = vunpack.c.l.b16 %v22
  %v107 = vunpack.c.h.b16 %v22
  %v108 = vunpack.c.l.b16 %v23
  %v109 = vunpack.c.h.b16 %v23
  %v110 = vunpack.c.l.b16 %v24
  %v111 = vunpack.c.h.b16 %v24
  %v112 = vunpack.c.l.b16 %v25
  %v113 = vunpack.c.h.b16 %v25
  %v114 = vpack.c.b16 %v102, %v98
  %v115 = vpack.c.b16 %v103, %v99
  %v116 = vpack.c.b16 %v104, %v100
  %v117 = vpack.c.b16 %v105, %v101
  %v118 = vpack.c.b16 %v110, %v106
  %v119 = vpack.c.b16 %v111, %v107
  %v120 = vpack.c.b16 %v112, %v108
  %v121 = vpack.c.b16 %v113, %v109
  %v194 = vunpack.c.l.b16 %v26
  %v195 = vunpack.c.l.b16 %v27
  %v196 = vunpack.c.l.b16 %v28
  %v197 = vunpack.c.l.b16 %v29
  %v198 = vunpack.c.l.b16 %v30
  %v199 = vunpack.c.l.b16 %v31
  %v200 = vunpack.c.l.b16 %v32
  %v201 = vunpack.c.l.b16 %v33
  %v202 = vunpack.c.l.b16 %v34
  %v203 = vunpack.c.l.b16 %v35
  %v204 = vunpack.c.l.b16 %v36
  %v205 = vunpack.c.l.b16 %v37
  %v206 = vunpack.c.l.b16 %v38
  %v207 = vunpack.c.l.b16 %v39
  %v208 = vunpack.c.l.b16 %v40
  %v209 = vunpack.c.l.b16 %v41
  %v210 = vunpack.c.l.b16 %v42
  %v211 = vunpack.c.l.b16 %v43
  %v212 = vunpack.c.l.b16 %v44
  %v213 = vunpack.c.l.b16 %v45
  %v214 = vunpack.c.l.b16 %v46
  %v215 = vunpack.c.l.b16 %v47
  %v216 = vunpack.c.l.b16 %v48
  %v217 = vunpack.c.l.b16 %v49
  %v218 = vunpack.c.l.b16 %v50
  %v219 = vunpack.c.l.b16 %v51
  %v220 = vunpack.c.l.b16 %v52
  %v221 = vunpack.c.l.b16 %v53
  %v222 = vunpack.c.l.b16 %v54
  %v223 = vunpack.c.l.b16 %v55
  %v224 = vunpack.c.l.b16 %v56
  %v225 = vunpack.c.l.b16 %v57
  %v226 = vunpack.c.l.b16 %v58
  %v227 = vunpack.c.l.b16 %v59
  %v228 = vunpack.c.l.b16 %v60
  %v229 = vunpack.c.l.b16 %v61
  %v230 = vunpack.c.l.b16 %v62
  %v231 = vunpack.c.l.b16 %v63
  %v232 = vunpack.c.l.b16 %v64
  %v233 = vunpack.c.l.b16 %v65
  %v234 = vunpack.c.l.b16 %v66
  %v235 = vunpack.c.l.b16 %v67
  %v236 = vunpack.c.l.b16 %v68
  %v237 = vunpack.c.l.b16 %v69
  %v238 = vunpack.c.l.b16 %v70
  %v239 = vunpack.c.l.b16 %v71
  %v240 = vunpack.c.l.b16 %v72
  %v241 = vunpack.c.l.b16 %v73
  %v242 = vunpack.c.l.b16 %v74
  %v243 = vunpack.c.l.b16 %v75
  %v244 = vunpack.c.l.b16 %v76
  %v245 = vunpack.c.l.b16 %v77
  %v246 = vunpack.c.l.b16 %v78
  %v247 = vunpack.c.l.b16 %v79
  %v248 = vunpack.c.l.b16 %v80
  %v249 = vunpack.c.l.b16 %v81
  %v250 = vunpack.c.l.b16 %v82
  %v251 = vunpack.c.l.b16 %v83
  %v252 = vunpack.c.l.b16 %v84
  %v253 = vunpack.c.l.b16 %v85
  %v254 = vunpack.c.l.b16 %v86
  %v255 = vunpack.c.l.b16 %v87
  %v256 = vunpack.c.l.b16 %v88
  %v257 = vunpack.c.l.b16 %v89
  %v258 = vpack.c.b16 %v195, %v194
  %v259 = vpack.c.b16 %v197, %v196
  %v260 = vpack.c.b16 %v199, %v198
  %v261 = vpack.c.b16 %v201, %v200
  %v262 = vpack.c.b16 %v203, %v202
  %v263 = vpack.c.b16 %v205, %v204
  %v264 = vpack.c.b16 %v207, %v206
  %v265 = vpack.c.b16 %v209, %v208
  %v266 = vpack.c.b16 %v211, %v210
  %v267 = vpack.c.b16 %v213, %v212
  %v268 = vpack.c.b16 %v215, %v214
  %v269 = vpack.c.b16 %v217, %v216
  %v270 = vpack.c.b16 %v219, %v218
  %v271 = vpack.c.b16 %v221, %v220
  %v272 = vpack.c.b16 %v223, %v222
  %v273 = vpack.c.b16 %v225, %v224
  %v274 = vpack.c.b16 %v227, %v226
  %v275 = vpack.c.b16 %v229, %v228
  %v276 = vpack.c.b16 %v231, %v230
  %v277 = vpack.c.b16 %v233, %v232
  %v278 = vpack.c.b16 %v235, %v234
  %v279 = vpack.c.b16 %v237, %v236
  %v280 = vpack.c.b16 %v239, %v238
  %v281 = vpack.c.b16 %v241, %v240
  %v282 = vpack.c.b16 %v243, %v242
  %v283 = vpack.c.b16 %v245, %v244
  %v284 = vpack.c.b16 %v247, %v246
  %v285 = vpack.c.b16 %v249, %v248
  %v286 = vpack.c.b16 %v251, %v250
  %v287 = vpack.c.b16 %v253, %v252
  %v288 = vpack.c.b16 %v255, %v254
  %v289 = vpack.c.b16 %v257, %v256
  %322 = vmatprep.subr.bf16.mxu0 0
  %323 = vmatpush1.bf16.msra.mxu0 %v265
  %324 = vmatprep.subr.bf16.mxu0 0
  %325 = vmatpush1.bf16.msra.mxu0 %v264
  %326 = vmatprep.subr.bf16.mxu0 0
  %327 = vmatpush1.bf16.msra.mxu0 %v263
  %328 = vmatprep.subr.bf16.mxu0 0
  %329 = vmatpush1.bf16.msra.mxu0 %v262
  %330 = vmatprep.subr.bf16.mxu0 0
  %331 = vmatpush1.bf16.msra.mxu0 %v261
  %332 = vmatprep.subr.bf16.mxu0 0
  %333 = vmatpush1.bf16.msra.mxu0 %v260
  %334 = vmatprep.subr.bf16.mxu0 0
  %335 = vmatpush1.bf16.msra.mxu0 %v259
  %336 = vmatprep.subr.bf16.mxu0 0
  %337 = vmatpush1.bf16.msra.mxu0 %v258
  %338 = vmatprep.subr.bf16.mxu0 0
  %339 = vmatpush2.bf16.msra.mxu0 %v273
  %340 = vmatprep.subr.bf16.mxu0 0
  %341 = vmatpush2.bf16.msra.mxu0 %v272
  %342 = vmatprep.subr.bf16.mxu0 0
  %343 = vmatpush2.bf16.msra.mxu0 %v271
  %344 = vmatprep.subr.bf16.mxu0 0
  %345 = vmatpush2.bf16.msra.mxu0 %v270
  %346 = vmatprep.subr.bf16.mxu0 0
  %347 = vmatpush2.bf16.msra.mxu0 %v269
  %348 = vmatprep.subr.bf16.mxu0 0
  %349 = vmatpush2.bf16.msra.mxu0 %v268
  %350 = vmatprep.subr.bf16.mxu0 0
  %351 = vmatpush2.bf16.msra.mxu0 %v267
  %352 = vmatprep.subr.bf16.mxu0 0
  %353 = vmatpush2.bf16.msra.mxu0 %v266
  %354 = vmatprep.mubr.bf16.mxu0 %v115
  %355 = vmatmul.mubr.bf16.gmra.mxu0 %v114
  %v356 = vpop.f32.mrf.mxu0
  %v357 = vadd.f32 0.0, %v356
  %v358 = vpop.f32.mrf.mxu0
  %v359 = vpop.f32.mrf.mxu0
  %v360 = vadd.f32 0.0, %v359
  %v361 = vpop.f32.mrf.mxu0
  %362 = vmatprep.mubr.bf16.mxu0 %v119
  %363 = vmatmul.mubr.bf16.gmra.mxu0 %v118
  %v364 = vpop.f32.mrf.mxu0
  %v365 = vadd.f32 0.0, %v364
  %v366 = vpop.f32.mrf.mxu0
  %v367 = vpop.f32.mrf.mxu0
  %v368 = vadd.f32 0.0, %v367
  %v369 = vpop.f32.mrf.mxu0
  %370 = vdwg.mxu0
  %371 = vmatprep.subr.bf16.mxu0 0
  %372 = vmatpush1.bf16.msra.mxu0 %v281
  %373 = vmatprep.subr.bf16.mxu0 0
  %374 = vmatpush1.bf16.msra.mxu0 %v280
  %375 = vmatprep.subr.bf16.mxu0 0
  %376 = vmatpush1.bf16.msra.mxu0 %v279
  %377 = vmatprep.subr.bf16.mxu0 0
  %378 = vmatpush1.bf16.msra.mxu0 %v278
  %379 = vmatprep.subr.bf16.mxu0 0
  %380 = vmatpush1.bf16.msra.mxu0 %v277
  %381 = vmatprep.subr.bf16.mxu0 0
  %382 = vmatpush1.bf16.msra.mxu0 %v276
  %383 = vmatprep.subr.bf16.mxu0 0
  %384 = vmatpush1.bf16.msra.mxu0 %v275
  %385 = vmatprep.subr.bf16.mxu0 0
  %386 = vmatpush1.bf16.msra.mxu0 %v274
  %387 = vmatprep.subr.bf16.mxu0 0
  %388 = vmatpush2.bf16.msra.mxu0 %v289
  %389 = vmatprep.subr.bf16.mxu0 0
  %390 = vmatpush2.bf16.msra.mxu0 %v288
  %391 = vmatprep.subr.bf16.mxu0 0
  %392 = vmatpush2.bf16.msra.mxu0 %v287
  %393 = vmatprep.subr.bf16.mxu0 0
  %394 = vmatpush2.bf16.msra.mxu0 %v286
  %395 = vmatprep.subr.bf16.mxu0 0
  %396 = vmatpush2.bf16.msra.mxu0 %v285
  %397 = vmatprep.subr.bf16.mxu0 0
  %398 = vmatpush2.bf16.msra.mxu0 %v284
  %399 = vmatprep.subr.bf16.mxu0 0
  %400 = vmatpush2.bf16.msra.mxu0 %v283
  %401 = vmatprep.subr.bf16.mxu0 0
  %402 = vmatpush2.bf16.msra.mxu0 %v282
  %403 = vmatprep.mubr.bf16.mxu0 %v117
  %404 = vmatmul.mubr.bf16.gmra.mxu0 %v116
  %v405 = vpop.f32.mrf.mxu0
  %v406 = vadd.f32 %v357, %v405
  %v407 = vpop.f32.mrf.mxu0
  %v408 = vpop.f32.mrf.mxu0
  %v409 = vadd.f32 %v360, %v408
  %v410 = vpop.f32.mrf.mxu0
  %411 = vmatprep.mubr.bf16.mxu0 %v121
  %412 = vmatmul.mubr.bf16.gmra.mxu0 %v120
  %v413 = vpop.f32.mrf.mxu0
  %v414 = vadd.f32 %v365, %v413
  %v415 = vpop.f32.mrf.mxu0
  %v416 = vpop.f32.mrf.mxu0
  %v417 = vadd.f32 %v368, %v416
  %v418 = vpop.f32.mrf.mxu0
  %419 = vdwg.mxu0
  %v420 = vlaneseq
  %v421 = vshrl.u32 %v420, 7
  %v422 = vadd.s32 %v421, 8
  %v423 = vadd.s32 %v421, 16
  %v424 = vadd.s32 %v421, 24
  %vm425 = vcmp.lt.s32.totalorder %v421, 32
  %vm426 = vcmp.lt.s32.totalorder %v422, 32
  %vm427 = vcmp.lt.s32.totalorder %v423, 32
  %vm428 = vcmp.lt.s32.totalorder %v424, 32
  %v429 = vsel %vm425, %v406, 0.0
  %v430 = vsel %vm426, %v409, 0.0
  %v431 = vsel %vm427, %v414, 0.0
  %v432 = vsel %vm428, %v417, 0.0
  %v433 = vadd.f32 %v429, %v430
  %v434 = vadd.f32 %v433, %v431
  %v435 = vadd.f32 %v434, %v432
  %v436 = vrot.slane %v435, 4
  %v437 = vadd.f32 %v435, %v436
  %v438 = vrot.slane %v437, 2
  %v439 = vadd.f32 %v437, %v438
  %v440 = vrot.slane %v439, 1
  %v441 = vadd.f32 %v439, %v440
  %v442 = vmul.f32 %v441, 0.03125
  %v443 = vsub.f32 %v406, %v442
  %v444 = vsub.f32 %v409, %v442
  %v445 = vsub.f32 %v414, %v442
  %v446 = vsub.f32 %v417, %v442
  %v447 = vsel %vm425, %v443, 0.0
  %v448 = vsel %vm426, %v444, 0.0
  %v449 = vsel %vm427, %v445, 0.0
  %v450 = vsel %vm428, %v446, 0.0
  %v451 = vmul.f32 %v447, %v447
  %v452 = vmul.f32 %v448, %v448
  %v453 = vmul.f32 %v449, %v449
  %v454 = vmul.f32 %v450, %v450
  %v455 = vadd.f32 %v451, %v452
  %v456 = vadd.f32 %v455, %v453
  %v457 = vadd.f32 %v456, %v454
  %v458 = vrot.slane %v457, 4
  %v459 = vadd.f32 %v457, %v458
  %v460 = vrot.slane %v459, 2
  %v461 = vadd.f32 %v459, %v460
  %v462 = vrot.slane %v461, 1
  %v463 = vadd.f32 %v461, %v462
  %v464 = vmul.f32 %v463, 0.03125
  %v465 = vadd.f32 %v464, 1e-05
  %v466 = vrsqrt.pop %v465
  %v467 = vmul.f32 %v447, %v466
  %v468 = vmul.f32 %v448, %v466
  %v469 = vmul.f32 %v449, %v466
  %v470 = vmul.f32 %v450, %v466
  %vm471 = vcmp.gt.f32.partialorder %v467, 0.0
  %vm472 = vcmp.gt.f32.partialorder %v468, 0.0
  %vm473 = vcmp.gt.f32.partialorder %v469, 0.0
  %vm474 = vcmp.gt.f32.partialorder %v470, 0.0
  %v475 = vmul.f32 %v467, 0.2
  %v476 = vmul.f32 %v468, 0.2
  %v477 = vmul.f32 %v469, 0.2
  %v478 = vmul.f32 %v470, 0.2
  %v479 = vsel %vm471, %v467, %v475
  %v480 = vsel %vm472, %v468, %v476
  %v481 = vsel %vm473, %v469, %v477
  %v482 = vsel %vm474, %v470, %v478
  %v483 = vld [vmem:[%s2] sm:$0xff]
  %v484 = vld [vmem:[%s2 + $0x8] sm:$0xff]
  %v485 = vld [vmem:[%s2 + $0x10] sm:$0xff]
  %v486 = vld [vmem:[%s2 + $0x18] sm:$0xff]
  %v487 = vmul.f32 %v479, %v483
  %v488 = vmul.f32 %v480, %v484
  %v489 = vmul.f32 %v481, %v485
  %v490 = vmul.f32 %v482, %v486
  %v491 = vld [vmem:[%s3] sm:$0xff]
  %vm492 = vcmask 261120
  %v494 = vsel %vm492, %v491, 0
  %496 = vmatprep.subr.mxu0 0.0
  %497 = vmatpush1.msra.mxu0 0.0
  %498 = vmatprep.subr.mxu0 0.0
  %499 = vmatpush1.msra.mxu0 0.0
  %500 = vmatprep.subr.mxu0 0.0
  %501 = vmatpush1.msra.mxu0 0.0
  %502 = vmatprep.subr.mxu0 0.0
  %503 = vmatpush1.msra.mxu0 0.0
  %504 = vmatprep.subr.mxu0 0.0
  %505 = vmatpush1.msra.mxu0 0.0
  %506 = vmatprep.subr.mxu0 0.0
  %507 = vmatpush1.msra.mxu0 0.0
  %508 = vmatprep.subr.mxu0 0.0
  %509 = vmatpush1.msra.mxu0 0.0
  %510 = vmatprep.subr.mxu0 0.0
  %511 = vmatpush1.msra.mxu0 0.0
  %512 = vmatprep.subr.mxu0 0.0
  %513 = vmatpush1.msra.mxu0 0.0
  %514 = vmatprep.subr.mxu0 0.0
  %515 = vmatpush1.msra.mxu0 0.0
  %516 = vmatprep.subr.mxu0 0.0
  %517 = vmatpush1.msra.mxu0 0.0
  %518 = vmatprep.subr.mxu0 0.0
  %519 = vmatpush1.msra.mxu0 0.0
  %520 = vmatprep.subr.mxu0 0.0
  %521 = vmatpush1.msra.mxu0 %v490
  %522 = vmatprep.subr.mxu0 0.0
  %523 = vmatpush1.msra.mxu0 %v489
  %524 = vmatprep.subr.mxu0 0.0
  %525 = vmatpush1.msra.mxu0 %v488
  %526 = vmatprep.subr.mxu0 0.0
  %527 = vmatpush1.msra.mxu0 %v487
  %528 = vmatprep.subr.mxu0 0.0
  %529 = vmatpush2.msra.mxu0 0.0
  %530 = vmatprep.subr.mxu0 0.0
  %531 = vmatpush2.msra.mxu0 0.0
  %532 = vmatprep.subr.mxu0 0.0
  %533 = vmatpush2.msra.mxu0 0.0
  %534 = vmatprep.subr.mxu0 0.0
  %535 = vmatpush2.msra.mxu0 0.0
  %536 = vmatprep.subr.mxu0 0.0
  %537 = vmatpush2.msra.mxu0 0.0
  %538 = vmatprep.subr.mxu0 0.0
  %539 = vmatpush2.msra.mxu0 0.0
  %540 = vmatprep.subr.mxu0 0.0
  %541 = vmatpush2.msra.mxu0 0.0
  %542 = vmatprep.subr.mxu0 0.0
  %543 = vmatpush2.msra.mxu0 0.0
  %544 = vmatprep.subr.mxu0 0.0
  %545 = vmatpush2.msra.mxu0 0.0
  %546 = vmatprep.subr.mxu0 0.0
  %547 = vmatpush2.msra.mxu0 0.0
  %548 = vmatprep.subr.mxu0 0.0
  %549 = vmatpush2.msra.mxu0 0.0
  %550 = vmatprep.subr.mxu0 0.0
  %551 = vmatpush2.msra.mxu0 0.0
  %552 = vmatprep.subr.mxu0 0.0
  %553 = vmatpush2.msra.mxu0 0.0
  %554 = vmatprep.subr.mxu0 0.0
  %555 = vmatpush2.msra.mxu0 0.0
  %556 = vmatprep.subr.mxu0 0.0
  %557 = vmatpush2.msra.mxu0 0.0
  %558 = vmatprep.subr.mxu0 0.0
  %559 = vmatpush2.msra.mxu0 0.0
  %560 = vmatprep.mubr.f32.mxu0 0.0
  %561 = vmatmul.mubr.f32.gmra.mxu0 %v494
  %v562 = vpop.f32.mrf.mxu0
  %v563 = vadd.f32 0.0, %v562
  %v564 = vpop.f32.mrf.mxu0
  %565 = vdwg.mxu0
  %566 = vadd.xlane.f32.xlu0 %v563
  %v567 = vpop.xlane.xlu0 %566
  %v568 = vsub.f32 0.0, %v567
  %v569 = vmul.f32 %v568, 1.442695
  %v570 = vpow.pop %v569
  %v571 = vadd.f32 %v570, 1.0
  %v572 = vrcp.pop %v571
  %v573 = vmul.f32 1.0, %v572
  %574 = vst [vmem:[%s4] sm:$0xff] %v573
  // Predicated region
  $region18: #{discriminator_forward.7} parent=0 // pred_check
    _
  $region19: #{discriminator_forward.7} parent=0 // pred_check_branch
    %576 = sbr.rel (0) target = $region21
  $region20: #{discriminator_forward.7} parent=0 // pred_region
    _
  $region21: #{discriminator_forward.7} parent=0 // pred_fallthru
    _
  // Predicated region
  $region22: #{discriminator_forward.7} parent=0 // pred_check
    _
  $region23: #{discriminator_forward.7} parent=0 // pred_check_branch
    %578 = sbr.rel (0) target = $region25
  $region24: #{discriminator_forward.7} parent=0 // pred_region
    _
  $region25: #{discriminator_forward.7} parent=0 // pred_fallthru
    _

</llo_original>
